<compile_context>
chip_gen: v6e
topology: v6e:2x2x1
jax: 0.10.0
libtpu: 0.0.40
codegen_flags: <defaults>
</compile_context>

<pallas_src>
import functools

import numpy as np

import jax
import jax.numpy as jnp
from jax import lax
from jax.experimental import pallas as pl
from jax.experimental.pallas import tpu as pltpu


_VMEM_LIMIT = 32 * 1024 * 1024  # safe on v5e / v6e / v7x


def _pick_tile(n, target):
    """Largest row tile <= target that divides n (multiple of 8), else n."""
    if n <= target:
        return n
    t = (target // 8) * 8
    while t >= 8:
        if n % t == 0:
            return t
        t -= 8
    return n


# ---------------------------------------------------------------------------
# MultiHeadAttention kernel
# ---------------------------------------------------------------------------
def _mha_kernel(q_ref, k_ref, v_ref,
                wqh_ref, bqh_ref, wkh_ref, bkh_ref, wvh_ref, bvh_ref,
                wph_ref, bp_ref, gamma_ref, beta_ref,
                out_ref,
                kh_cache, vh_cache,
                *, n_heads, head_dim, q_tile, causal, self_mask, eps):
    qi = pl.program_id(1)
    H, hd = n_heads, head_dim
    inv_scale = 1.0 / float(hd) ** 0.5

    # --- K/V projections: once per batch element, cached head-major (bf16). ---
    @pl.when(qi == 0)
    def _():
        x_k = k_ref[0].astype(jnp.bfloat16)            # (Sk, Din)
        x_v = v_ref[0].astype(jnp.bfloat16)
        for h in range(H):                             # static unroll
            kh_cache[h] = (jnp.dot(x_k, wkh_ref[h],
                                   preferred_element_type=jnp.float32)
                           + bkh_ref[h]).astype(jnp.bfloat16)
            vh_cache[h] = (jnp.dot(x_v, wvh_ref[h],
                                   preferred_element_type=jnp.float32)
                           + bvh_ref[h]).astype(jnp.bfloat16)

    x_q = q_ref[0].astype(jnp.float32)                 # (tq, Din) -- residual
    x_qb = x_q.astype(jnp.bfloat16)
    tq = x_q.shape[0]
    Sk = kh_cache.shape[1]

    # Multiplicative masks (exactly like the PyTorch module: scores are
    # multiplied by a 0/1 mask before softmax, NOT set to -inf).
    # Built once, shared by every head.  Never enabled inside `Decoder`.
    mask = None
    if causal or self_mask:
        row = lax.broadcasted_iota(jnp.int32, (tq, Sk), 0) + qi * q_tile
        col = lax.broadcasted_iota(jnp.int32, (tq, Sk), 1)
        if self_mask:
            mask = (col == row).astype(jnp.float32)
        else:
            mask = (col <= row).astype(jnp.float32)

    # Accumulate every head directly into the output projection (no concat).
    acc = x_q + bp_ref[...]                            # residual + proj bias
    for h in range(H):                                 # static unroll
        qh = (jnp.dot(x_qb, wqh_ref[h], preferred_element_type=jnp.float32)
              + bqh_ref[h]) * inv_scale                # (tq, hd) f32
        kh = kh_cache[h]                               # (Sk, hd) bf16
        vh = vh_cache[h]

        s = lax.dot_general(qh.astype(jnp.bfloat16), kh,
                            (((1,), (1,)), ((), ())),
                            preferred_element_type=jnp.float32)   # (tq, Sk)
        if mask is not None:
            s = s * mask

        # numerically stable softmax; reciprocal on the EUP
        s = s - jnp.max(s, axis=-1, keepdims=True)
        e = jnp.exp(s)
        p = e * pl.reciprocal(jnp.sum(e, axis=-1, keepdims=True), approx=True)

        ctx = jnp.dot(p.astype(jnp.bfloat16), vh,
                      preferred_element_type=jnp.float32)          # (tq, hd)
        acc = acc + jnp.dot(ctx.astype(jnp.bfloat16), wph_ref[h],
                            preferred_element_type=jnp.float32)    # (tq, D)

    # LayerNorm (single pass: E[x], E[x^2]; rsqrt on the EUP).
    mu = jnp.mean(acc, axis=-1, keepdims=True)
    ms = jnp.mean(acc * acc, axis=-1, keepdims=True)
    inv = lax.rsqrt(ms - mu * mu + eps)
    out_ref[0] = ((acc - mu) * inv * gamma_ref[...] + beta_ref[...]
                  ).astype(out_ref.dtype)


def mha_forward(q, k, v, params, *, n_heads, causal=False, self_mask=False,
                eps=1e-5, q_block=128):
    """MultiHeadAttention forward: out = LN(proj(attn) + q)."""
    # TODO(synk): relative_position branch of the PyTorch module is a no-op
    # (`pass`), so it is intentionally not implemented.  Dropout (drop=0.0 /
    # eval mode) is identity.
    B, Sq, Din = q.shape
    Bk, Sk, Dk = k.shape
    assert B == Bk and Dk == Din
    D = params["bp"].shape[-1]
    assert Din == D, "residual add requires input_dim == n_units"
    assert D % n_heads == 0
    hd = D // n_heads
    tq = _pick_tile(Sq, q_block)
    nq = Sq // tq

    # Head-major weight layouts, built once in XLA (no in-kernel lane slicing).
    def split_in(w, b):
        wh = w.reshape(Din, n_heads, hd).transpose(1, 0, 2)   # (H, Din, hd)
        bh = b.reshape(1, n_heads, hd).transpose(1, 0, 2)     # (H, 1, hd)
        return wh, bh

    wqh, bqh = split_in(params["wq"], params["bq"])
    wkh, bkh = split_in(params["wk"], params["bk"])
    wvh, bvh = split_in(params["wv"], params["bv"])
    wph = params["wp"].reshape(n_heads, hd, D)                # (H, hd, D)

    kernel = functools.partial(_mha_kernel, n_heads=n_heads, head_dim=hd,
                               q_tile=tq, causal=causal, self_mask=self_mask,
                               eps=eps)

    def const(shape):
        n = len(shape)
        return pl.BlockSpec(shape, lambda b, i: (0,) * n)

    in_specs = [
        pl.BlockSpec((1, tq, Din), lambda b, i: (b, i, 0)),   # q tile
        pl.BlockSpec((1, Sk, Din), lambda b, i: (b, 0, 0)),   # k (full, per batch)
        pl.BlockSpec((1, Sk, Din), lambda b, i: (b, 0, 0)),   # v
        const((n_heads, Din, hd)), const((n_heads, 1, hd)),   # wq, bq (head-major)
        const((n_heads, Din, hd)), const((n_heads, 1, hd)),   # wk, bk
        const((n_heads, Din, hd)), const((n_heads, 1, hd)),   # wv, bv
        const((n_heads, hd, D)), const((1, D)),               # wp (head-major), bp
        const((1, D)), const((1, D)),                         # ln gamma, beta
    ]
    out_spec = pl.BlockSpec((1, tq, D), lambda b, i: (b, i, 0))

    return pl.pallas_call(
        kernel,
        out_shape=jax.ShapeDtypeStruct((B, Sq, D), jnp.float32),
        grid_spec=pltpu.PrefetchScalarGridSpec(
            num_scalar_prefetch=0,
            grid=(B, nq),
            in_specs=in_specs,
            out_specs=out_spec,
            scratch_shapes=[pltpu.VMEM((n_heads, Sk, hd), jnp.bfloat16),
                            pltpu.VMEM((n_heads, Sk, hd), jnp.bfloat16)],
        ),
        compiler_params=pltpu.CompilerParams(
            dimension_semantics=("parallel", "arbitrary"),
            vmem_limit_bytes=_VMEM_LIMIT),
    )(q, k, v, wqh, bqh, wkh, bkh, wvh, bvh, wph,
      params["bp"], params["gamma"], params["beta"])


# ---------------------------------------------------------------------------
# FFN kernel: LN(x + W2 relu(W1 x + b1) + b2)
# ---------------------------------------------------------------------------
def _ffn_kernel(x_ref, w1_ref, b1_ref, w2_ref, b2_ref, g_ref, bta_ref, o_ref,
                *, eps):
    x = x_ref[...].astype(jnp.float32)                 # (tm, Din) residual
    h = jnp.dot(x.astype(jnp.bfloat16), w1_ref[...],
                preferred_element_type=jnp.float32) + b1_ref[...]
    h = jnp.maximum(h, 0.0)
    y = jnp.dot(h.astype(jnp.bfloat16), w2_ref[...],
                preferred_element_type=jnp.float32) + b2_ref[...]
    out = x + y
    mu = jnp.mean(out, axis=-1, keepdims=True)
    ms = jnp.mean(out * out, axis=-1, keepdims=True)
    inv = lax.rsqrt(ms - mu * mu + eps)
    o_ref[...] = ((out - mu) * inv * g_ref[...] + bta_ref[...]).astype(o_ref.dtype)


def ffn_forward(x, p, *, eps=1e-5, row_tile=256):
    shape = x.shape
    Din = shape[-1]
    Hd = p["w1"].shape[1]
    xf = x.reshape(-1, Din)
    M = xf.shape[0]
    tm = _pick_tile(M, row_tile)

    out = pl.pallas_call(
        functools.partial(_ffn_kernel, eps=eps),
        out_shape=jax.ShapeDtypeStruct((M, Din), jnp.float32),
        grid_spec=pltpu.PrefetchScalarGridSpec(
            num_scalar_prefetch=0,
            grid=(M // tm,),
            in_specs=[
                pl.BlockSpec((tm, Din), lambda i: (i, 0)),
                pl.BlockSpec((Din, Hd), lambda i: (0, 0)),
                pl.BlockSpec((1, Hd), lambda i: (0, 0)),
                pl.BlockSpec((Hd, Din), lambda i: (0, 0)),
                pl.BlockSpec((1, Din), lambda i: (0, 0)),
                pl.BlockSpec((1, Din), lambda i: (0, 0)),
                pl.BlockSpec((1, Din), lambda i: (0, 0)),
            ],
            out_specs=pl.BlockSpec((tm, Din), lambda i: (i, 0)),
        ),
        compiler_params=pltpu.CompilerParams(
            dimension_semantics=("parallel",),
            vmem_limit_bytes=_VMEM_LIMIT),
    )(xf, p["w1"], p["b1"], p["w2"], p["b2"], p["gamma"], p["beta"])
    return out.reshape(shape)


# ---------------------------------------------------------------------------
# linear + relu + LayerNorm (tail of EncodeSegmentFrequency)
# ---------------------------------------------------------------------------
def _linear_relu_ln_kernel(x_ref, w_ref, b_ref, g_ref, bta_ref, o_ref, *, eps):
    y = jnp.dot(x_ref[...].astype(jnp.bfloat16), w_ref[...],
                preferred_element_type=jnp.float32) + b_ref[...]
    y = jnp.maximum(y, 0.0)
    mu = jnp.mean(y, axis=-1, keepdims=True)
    ms = jnp.mean(y * y, axis=-1, keepdims=True)
    inv = lax.rsqrt(ms - mu * mu + eps)
    o_ref[...] = ((y - mu) * inv * g_ref[...] + bta_ref[...]).astype(o_ref.dtype)


def linear_relu_ln_forward(x, w, b, gamma, beta, *, eps=1e-5, row_tile=256):
    shape = x.shape
    Din = shape[-1]
    Dout = w.shape[1]
    xf = x.reshape(-1, Din)
    M = xf.shape[0]
    tm = _pick_tile(M, row_tile)

    out = pl.pallas_call(
        functools.partial(_linear_relu_ln_kernel, eps=eps),
        out_shape=jax.ShapeDtypeStruct((M, Dout), jnp.float32),
        grid_spec=pltpu.PrefetchScalarGridSpec(
            num_scalar_prefetch=0,
            grid=(M // tm,),
            in_specs=[
                pl.BlockSpec((tm, Din), lambda i: (i, 0)),
                pl.BlockSpec((Din, Dout), lambda i: (0, 0)),
                pl.BlockSpec((1, Dout), lambda i: (0, 0)),
                pl.BlockSpec((1, Dout), lambda i: (0, 0)),
                pl.BlockSpec((1, Dout), lambda i: (0, 0)),
            ],
            out_specs=pl.BlockSpec((tm, Dout), lambda i: (i, 0)),
        ),
        compiler_params=pltpu.CompilerParams(
            dimension_semantics=("parallel",),
            vmem_limit_bytes=_VMEM_LIMIT),
    )(xf, w, b, gamma, beta)
    return out.reshape(shape[:-1] + (Dout,))


# ---------------------------------------------------------------------------
# weighted layer combine + final class projection
# ---------------------------------------------------------------------------
def _combine_proj_kernel(wc_ref, x1_ref, x2_ref, w_ref, b_ref, o_ref):
    wc = wc_ref[...]                                   # (1, 2) f32 softmax weights
    xc = x1_ref[...] * wc[:, 0:1] + x2_ref[...] * wc[:, 1:2]
    o_ref[...] = (jnp.dot(xc.astype(jnp.bfloat16), w_ref[...],
                          preferred_element_type=jnp.float32)
                  + b_ref[...]).astype(o_ref.dtype)


def combine_proj_forward(x1, x2, combine_w, w, b, *, row_tile=256):
    B, S, D = x1.shape
    C = w.shape[1]
    x1f = x1.reshape(-1, D)
    x2f = x2.reshape(-1, D)
    M = x1f.shape[0]
    tm = _pick_tile(M, row_tile)

    out = pl.pallas_call(
        _combine_proj_kernel,
        out_shape=jax.ShapeDtypeStruct((M, C), jnp.float32),
        grid_spec=pltpu.PrefetchScalarGridSpec(
            num_scalar_prefetch=0,
            grid=(M // tm,),
            in_specs=[
                pl.BlockSpec((1, 2), lambda i: (0, 0)),        # combine weights
                pl.BlockSpec((tm, D), lambda i: (i, 0)),
                pl.BlockSpec((tm, D), lambda i: (i, 0)),
                pl.BlockSpec((D, C), lambda i: (0, 0)),
                pl.BlockSpec((1, C), lambda i: (0, 0)),
            ],
            out_specs=pl.BlockSpec((tm, C), lambda i: (i, 0)),
        ),
        compiler_params=pltpu.CompilerParams(
            dimension_semantics=("parallel",),
            vmem_limit_bytes=_VMEM_LIMIT),
    )(combine_w, x1f, x2f, w, b)
    return out.reshape(B, S, C)


# ---------------------------------------------------------------------------
# Plain-JAX / numpy glue (no clean rectangular Pallas mapping)
# ---------------------------------------------------------------------------
def get_positional_encoding(time_steps, n_units):
    pe = np.array([[pos / np.power(1000, 2.0 * i / n_units)
                    for i in range(n_units)] for pos in range(time_steps)],
                  dtype=np.float32)
    pe[:, 0::2] = np.sin(pe[:, 0::2])
    pe[:, 1::2] = np.cos(pe[:, 1::2])
    return jnp.asarray(pe)[None, :, :]                 # (1, T, n_units), broadcasts


def chord_block_compression(hidden_states, chord_changes):
    # TODO(synk): kept in plain JAX — ragged, data-dependent segment means have
    # no clean rectangular-tile Pallas mapping.
    N, L, _ = hidden_states.shape
    cc = chord_changes.astype(jnp.int32).at[:, 0].set(0)
    seg_ids = jnp.cumsum(cc, axis=1)                   # (N, L) segment ids

    def per_batch(xb, sb):
        sums = jax.ops.segment_sum(xb, sb, num_segments=L)
        counts = jax.ops.segment_sum(jnp.ones((L,), xb.dtype), sb, num_segments=L)
        counts = jnp.maximum(counts, 1.0)
        return sums[sb] / counts[sb][:, None]

    return jax.vmap(per_batch)(hidden_states, seg_ids)


# ---------------------------------------------------------------------------
# Module-level forwards
# ---------------------------------------------------------------------------
def encode_segment_frequency(x, p, *, frequency_size, segment_width):
    N, T, E = x.shape
    xr = x.reshape(N * T, frequency_size, segment_width)
    pe = get_positional_encoding(frequency_size, segment_width)
    xr = xr + pe * 0.01 + 0.01
    h = mha_forward(xr, xr, xr, p["mhsa"], n_heads=1)
    h = ffn_forward(h, p["ffn"])
    h = h.reshape(N, T, E)
    return linear_relu_ln_forward(h, p["proj_w"], p["proj_b"],
                                  p["ln_g"], p["ln_b"])


def decoder_forward(x, encoder_inputs_embedded, chord_change_prob, params,
                    *, n_steps, frequency_size, segment_width):
    N = x.shape[0]
    E = frequency_size * segment_width

    x = encode_segment_frequency(x, params["seg_enc"],
                                 frequency_size=frequency_size,
                                 segment_width=segment_width)
    blocked = chord_block_compression(x, chord_change_prob > 0.5)
    x = x + blocked + encoder_inputs_embedded
    x = x + get_positional_encoding(n_steps, E)
    # embed_dropout: identity (drop=0.0 / eval mode)

    x1 = mha_forward(x, x, x, params["mhsa1"], n_heads=8)
    x1 = mha_forward(x1, encoder_inputs_embedded, encoder_inputs_embedded,
                     params["mha1"], n_heads=8)
    x1 = ffn_forward(x1, params["ffn1"])

    x2 = mha_forward(x1, x1, x1, params["mhsa2"], n_heads=8)
    x2 = mha_forward(x2, encoder_inputs_embedded, encoder_inputs_embedded,
                     params["mha2"], n_heads=8)
    x2 = ffn_forward(x2, params["ffn2"])

    combine_w = jax.nn.softmax(params["layer_weight"]).reshape(1, 2)
    return combine_proj_forward(x1, x2, combine_w,
                                params["proj_w"], params["proj_b"])


# ---------------------------------------------------------------------------
# Parameter initialization (deterministic; weights stored bf16 for the MXU,
# biases / LayerNorm affine kept f32)
# ---------------------------------------------------------------------------
def _init_linear(key, din, dout, scale=0.05):
    kw, kb = jax.random.split(key)
    w = (jax.random.normal(kw, (din, dout), jnp.float32) * scale).astype(jnp.bfloat16)
    b = jax.random.normal(kb, (1, dout), jnp.float32) * scale
    return w, b


def init_mha_params(key, input_dim, n_units):
    ks = jax.random.split(key, 4)
    wq, bq = _init_linear(ks[0], input_dim, n_units)
    wk, bk = _init_linear(ks[1], input_dim, n_units)
    wv, bv = _init_linear(ks[2], input_dim, n_units)
    wp, bp = _init_linear(ks[3], n_units, n_units)
    return dict(wq=wq, bq=bq, wk=wk, bk=bk, wv=wv, bv=bv, wp=wp, bp=bp,
                gamma=jnp.ones((1, n_units), jnp.float32),
                beta=jnp.zeros((1, n_units), jnp.float32))


def init_ffn_params(key, din, dh):
    k1, k2 = jax.random.split(key)
    w1, b1 = _init_linear(k1, din, dh)
    w2, b2 = _init_linear(k2, dh, din)
    return dict(w1=w1, b1=b1, w2=w2, b2=b2,
                gamma=jnp.ones((1, din), jnp.float32),
                beta=jnp.zeros((1, din), jnp.float32))


def init_decoder_params(key, *, n_classes, frequency_size, segment_width):
    E = frequency_size * segment_width
    ks = jax.random.split(key, 10)
    seg = dict(
        mhsa=init_mha_params(ks[0], segment_width, segment_width),
        ffn=init_ffn_params(ks[1], segment_width, 4 * segment_width),
    )
    seg["proj_w"], seg["proj_b"] = _init_linear(ks[2], E, E)
    seg["ln_g"] = jnp.ones((1, E), jnp.float32)
    seg["ln_b"] = jnp.zeros((1, E), jnp.float32)

    params = dict(
        seg_enc=seg,
        layer_weight=jnp.ones((2,), jnp.float32),
        mhsa1=init_mha_params(ks[3], E, E),
        mha1=init_mha_params(ks[4], E, E),
        ffn1=init_ffn_params(ks[5], E, 4 * E),
        mhsa2=init_mha_params(ks[6], E, E),
        mha2=init_mha_params(ks[7], E, E),
        ffn2=init_ffn_params(ks[8], E, 4 * E),
    )
    params["proj_w"], params["proj_b"] = _init_linear(ks[9], E, n_classes)
    return params


# ---------------------------------------------------------------------------
if __name__ == "__main__":
    B = 2
    n_steps = 8
    frequency_size = 8
    segment_width = 16            # embed dim = 8 * 16 = 128 (lane-dense)
    n_classes = 26
    E = frequency_size * segment_width

    key = jax.random.PRNGKey(0)
    kx, ke, kc, kp = jax.random.split(key, 4)
    x = jax.random.normal(kx, (B, n_steps, E), jnp.float32)
    enc = jax.random.normal(ke, (B, n_steps, E), jnp.float32)
    chord_change_prob = jax.random.uniform(kc, (B, n_steps), jnp.float32)
    params = init_decoder_params(kp, n_classes=n_classes,
                                 frequency_size=frequency_size,
                                 segment_width=segment_width)

    fwd = jax.jit(functools.partial(decoder_forward,
                                    n_steps=n_steps,
                                    frequency_size=frequency_size,
                                    segment_width=segment_width))
    out = fwd(x, enc, chord_change_prob, params)
    jax.block_until_ready(out)
    assert out.shape == (B, n_steps, n_classes)
    print("KERNEL_OK")
</pallas_src>

<mosaic_0001>
module attributes {stable_mosaic.version = 11 : i64} {
  func.func private @main(%arg0: i32) attributes {dimension_semantics = [#tpu.dimension_semantics<core_parallel>], iteration_bounds = array<i64: 2>, tpu.core_type = #tpu.core_type<sc_scalar_subcore>, window_params = []} {
    return
  }
}

module attributes {stable_mosaic.version = 11 : i64} {
  func.func private @main(%arg0: i32) attributes {dimension_semantics = [#tpu.dimension_semantics<core_parallel>], iteration_bounds = array<i64: 2>, tpu.core_type = #tpu.core_type<sc_scalar_subcore>, window_params = []} {
    return
  }
}

module attributes {stable_mosaic.version = 11 : i64} {
  func.func @_ffn_kernel(%arg0: i32, %arg1: memref<128x16xf32, #tpu.memory_space<vmem>>, %arg2: memref<16x64xbf16, #tpu.memory_space<vmem>>, %arg3: memref<1x64xf32, #tpu.memory_space<vmem>>, %arg4: memref<64x16xbf16, #tpu.memory_space<vmem>>, %arg5: memref<1x16xf32, #tpu.memory_space<vmem>>, %arg6: memref<1x16xf32, #tpu.memory_space<vmem>>, %arg7: memref<1x16xf32, #tpu.memory_space<vmem>>, %arg8: memref<128x16xf32, #tpu.memory_space<vmem>>) attributes {dimension_semantics = [#tpu.dimension_semantics<parallel>], iteration_bounds = array<i64: 1>, scalar_prefetch = 0 : i64, scratch_operands = 0 : i64, tpu.core_type = #tpu.core_type<tc>, window_params = [{transform_indices = @transform_0, window_bounds = array<i64: 128, 16>}, {pipeline_mode = #tpu.pipeline_mode<synchronous>, transform_indices = @transform_1, window_bounds = array<i64: 16, 64>}, {pipeline_mode = #tpu.pipeline_mode<synchronous>, transform_indices = @transform_2, window_bounds = array<i64: 1, 64>}, {pipeline_mode = #tpu.pipeline_mode<synchronous>, transform_indices = @transform_3, window_bounds = array<i64: 64, 16>}, {pipeline_mode = #tpu.pipeline_mode<synchronous>, transform_indices = @transform_4, window_bounds = array<i64: 1, 16>}, {pipeline_mode = #tpu.pipeline_mode<synchronous>, transform_indices = @transform_5, window_bounds = array<i64: 1, 16>}, {pipeline_mode = #tpu.pipeline_mode<synchronous>, transform_indices = @transform_6, window_bounds = array<i64: 1, 16>}, {transform_indices = @transform_7, window_bounds = array<i64: 128, 16>}]} {
    %c0 = arith.constant 0 : index
    %c0_0 = arith.constant 0 : index
    %0 = vector.load %arg1[%c0, %c0_0] : memref<128x16xf32, #tpu.memory_space<vmem>>, vector<128x16xf32>
    %1 = arith.truncf %0 : vector<128x16xf32> to vector<128x16xbf16>
    %c0_1 = arith.constant 0 : index
    %c0_2 = arith.constant 0 : index
    %2 = vector.load %arg2[%c0_1, %c0_2] : memref<16x64xbf16, #tpu.memory_space<vmem>>, vector<16x64xbf16>
    %cst = arith.constant dense<0.000000e+00> : vector<128x64xf32>
    %3 = tpu.matmul %1, %2, %cst {dimension_numbers = #tpu.dot_dimension_numbers<[1], [0], [0], [1], [0, 0, 1, 1], [], []>} : vector<128x16xbf16>, vector<16x64xbf16>, vector<128x64xf32> -> vector<128x64xf32>
    %c0_3 = arith.constant 0 : index
    %c0_4 = arith.constant 0 : index
    %4 = vector.load %arg3[%c0_3, %c0_4] : memref<1x64xf32, #tpu.memory_space<vmem>>, vector<1x64xf32>
    %5 = vector.broadcast %4 : vector<1x64xf32> to vector<128x64xf32>
    %6 = arith.addf %3, %5 : vector<128x64xf32>
    %cst_5 = arith.constant 0.000000e+00 : f32
    %7 = vector.broadcast %cst_5 : f32 to vector<128x64xf32>
    %8 = arith.maximumf %6, %7 : vector<128x64xf32>
    %9 = arith.truncf %8 : vector<128x64xf32> to vector<128x64xbf16>
    %c0_6 = arith.constant 0 : index
    %c0_7 = arith.constant 0 : index
    %10 = vector.load %arg4[%c0_6, %c0_7] : memref<64x16xbf16, #tpu.memory_space<vmem>>, vector<64x16xbf16>
    %cst_8 = arith.constant dense<0.000000e+00> : vector<128x16xf32>
    %11 = tpu.matmul %9, %10, %cst_8 {dimension_numbers = #tpu.dot_dimension_numbers<[1], [0], [0], [1], [0, 0, 1, 1], [], []>} : vector<128x64xbf16>, vector<64x16xbf16>, vector<128x16xf32> -> vector<128x16xf32>
    %c0_9 = arith.constant 0 : index
    %c0_10 = arith.constant 0 : index
    %12 = vector.load %arg5[%c0_9, %c0_10] : memref<1x16xf32, #tpu.memory_space<vmem>>, vector<1x16xf32>
    %13 = vector.broadcast %12 : vector<1x16xf32> to vector<128x16xf32>
    %14 = arith.addf %11, %13 : vector<128x16xf32>
    %15 = arith.addf %0, %14 : vector<128x16xf32>
    %cst_11 = arith.constant dense<0.000000e+00> : vector<128xf32>
    %16 = vector.multi_reduction <add>, %15, %cst_11 [1] : vector<128x16xf32> to vector<128xf32>
    %17 = vector.shape_cast %16 : vector<128xf32> to vector<128x1xf32>
    %cst_12 = arith.constant 1.600000e+01 : f32
    %18 = vector.broadcast %cst_12 : f32 to vector<128x1xf32>
    %19 = arith.divf %17, %18 : vector<128x1xf32>
    %20 = arith.mulf %15, %15 : vector<128x16xf32>
    %cst_13 = arith.constant dense<0.000000e+00> : vector<128xf32>
    %21 = vector.multi_reduction <add>, %20, %cst_13 [1] : vector<128x16xf32> to vector<128xf32>
    %22 = vector.shape_cast %21 : vector<128xf32> to vector<128x1xf32>
    %cst_14 = arith.constant 1.600000e+01 : f32
    %23 = vector.broadcast %cst_14 : f32 to vector<128x1xf32>
    %24 = arith.divf %22, %23 : vector<128x1xf32>
    %25 = arith.mulf %19, %19 : vector<128x1xf32>
    %26 = arith.subf %24, %25 : vector<128x1xf32>
    %cst_15 = arith.constant 9.99999974E-6 : f32
    %27 = vector.broadcast %cst_15 : f32 to vector<128x1xf32>
    %28 = arith.addf %26, %27 : vector<128x1xf32>
    %29 = math.rsqrt %28 : vector<128x1xf32>
    %30 = vector.broadcast %19 : vector<128x1xf32> to vector<128x16xf32>
    %31 = arith.subf %15, %30 : vector<128x16xf32>
    %32 = vector.broadcast %29 : vector<128x1xf32> to vector<128x16xf32>
    %33 = arith.mulf %31, %32 : vector<128x16xf32>
    %c0_16 = arith.constant 0 : index
    %c0_17 = arith.constant 0 : index
    %34 = vector.load %arg6[%c0_16, %c0_17] : memref<1x16xf32, #tpu.memory_space<vmem>>, vector<1x16xf32>
    %35 = vector.broadcast %34 : vector<1x16xf32> to vector<128x16xf32>
    %36 = arith.mulf %33, %35 : vector<128x16xf32>
    %c0_18 = arith.constant 0 : index
    %c0_19 = arith.constant 0 : index
    %37 = vector.load %arg7[%c0_18, %c0_19] : memref<1x16xf32, #tpu.memory_space<vmem>>, vector<1x16xf32>
    %38 = vector.broadcast %37 : vector<1x16xf32> to vector<128x16xf32>
    %39 = arith.addf %36, %38 : vector<128x16xf32>
    %c0_20 = arith.constant 0 : index
    %c0_21 = arith.constant 0 : index
    %40 = vector.load %arg8[%c0_20, %c0_21] : memref<128x16xf32, #tpu.memory_space<vmem>>, vector<128x16xf32>
    tpu.vector_store %arg8[%c0_20, %c0_21], %39 {strides = array<i32>} : memref<128x16xf32, #tpu.memory_space<vmem>>, vector<128x16xf32>,
    return
  }
  func.func @transform_0(%arg0: i32) -> (i32, i32) {
    %c0_i32 = arith.constant 0 : i32
    %c0_i32_0 = arith.constant 0 : i32
    return %arg0, %c0_i32 : i32, i32
  }
  func.func @transform_1(%arg0: i32) -> (i32, i32) {
    %c0_i32 = arith.constant 0 : i32
    %c0_i32_0 = arith.constant 0 : i32
    %c0_i32_1 = arith.constant 0 : i32
    return %c0_i32, %c0_i32_0 : i32, i32
  }
  func.func @transform_2(%arg0: i32) -> (i32, i32) {
    %c0_i32 = arith.constant 0 : i32
    %c0_i32_0 = arith.constant 0 : i32
    %c0_i32_1 = arith.constant 0 : i32
    return %c0_i32, %c0_i32_0 : i32, i32
  }
  func.func @transform_3(%arg0: i32) -> (i32, i32) {
    %c0_i32 = arith.constant 0 : i32
    %c0_i32_0 = arith.constant 0 : i32
    %c0_i32_1 = arith.constant 0 : i32
    return %c0_i32, %c0_i32_0 : i32, i32
  }
  func.func @transform_4(%arg0: i32) -> (i32, i32) {
    %c0_i32 = arith.constant 0 : i32
    %c0_i32_0 = arith.constant 0 : i32
    %c0_i32_1 = arith.constant 0 : i32
    return %c0_i32, %c0_i32_0 : i32, i32
  }
  func.func @transform_5(%arg0: i32) -> (i32, i32) {
    %c0_i32 = arith.constant 0 : i32
    %c0_i32_0 = arith.constant 0 : i32
    %c0_i32_1 = arith.constant 0 : i32
    return %c0_i32, %c0_i32_0 : i32, i32
  }
  func.func @transform_6(%arg0: i32) -> (i32, i32) {
    %c0_i32 = arith.constant 0 : i32
    %c0_i32_0 = arith.constant 0 : i32
    %c0_i32_1 = arith.constant 0 : i32
    return %c0_i32, %c0_i32_0 : i32, i32
  }
  func.func @transform_7(%arg0: i32) -> (i32, i32) {
    %c0_i32 = arith.constant 0 : i32
    %c0_i32_0 = arith.constant 0 : i32
    return %arg0, %c0_i32 : i32, i32
  }
}

module attributes {stable_mosaic.version = 11 : i64} {
  func.func @_mha_kernel(%arg0: i32, %arg1: i32, %arg2: memref<1x8x16xf32, #tpu.memory_space<vmem>>, %arg3: memref<1x8x16xf32, #tpu.memory_space<vmem>>, %arg4: memref<1x8x16xf32, #tpu.memory_space<vmem>>, %arg5: memref<1x16x16xbf16, #tpu.memory_space<vmem>>, %arg6: memref<1x1x16xf32, #tpu.memory_space<vmem>>, %arg7: memref<1x16x16xbf16, #tpu.memory_space<vmem>>, %arg8: memref<1x1x16xf32, #tpu.memory_space<vmem>>, %arg9: memref<1x16x16xbf16, #tpu.memory_space<vmem>>, %arg10: memref<1x1x16xf32, #tpu.memory_space<vmem>>, %arg11: memref<1x16x16xbf16, #tpu.memory_space<vmem>>, %arg12: memref<1x16xf32, #tpu.memory_space<vmem>>, %arg13: memref<1x16xf32, #tpu.memory_space<vmem>>, %arg14: memref<1x16xf32, #tpu.memory_space<vmem>>, %arg15: memref<1x8x16xf32, #tpu.memory_space<vmem>>, %arg16: memref<1x8x16xbf16, #tpu.memory_space<vmem>>, %arg17: memref<1x8x16xbf16, #tpu.memory_space<vmem>>) attributes {dimension_semantics = [#tpu.dimension_semantics<parallel>, #tpu.dimension_semantics<arbitrary>], iteration_bounds = array<i64: 16, 1>, scalar_prefetch = 0 : i64, scratch_operands = 2 : i64, tpu.core_type = #tpu.core_type<tc>, window_params = [{transform_indices = @transform_0, window_bounds = array<i64: 1, 8, 16>}, {transform_indices = @transform_1, window_bounds = array<i64: 1, 8, 16>}, {transform_indices = @transform_2, window_bounds = array<i64: 1, 8, 16>}, {pipeline_mode = #tpu.pipeline_mode<synchronous>, transform_indices = @transform_3, window_bounds = array<i64: 1, 16, 16>}, {pipeline_mode = #tpu.pipeline_mode<synchronous>, transform_indices = @transform_4, window_bounds = array<i64: 1, 1, 16>}, {pipeline_mode = #tpu.pipeline_mode<synchronous>, transform_indices = @transform_5, window_bounds = array<i64: 1, 16, 16>}, {pipeline_mode = #tpu.pipeline_mode<synchronous>, transform_indices = @transform_6, window_bounds = array<i64: 1, 1, 16>}, {pipeline_mode = #tpu.pipeline_mode<synchronous>, transform_indices = @transform_7, window_bounds = array<i64: 1, 16, 16>}, {pipeline_mode = #tpu.pipeline_mode<synchronous>, transform_indices = @transform_8, window_bounds = array<i64: 1, 1, 16>}, {pipeline_mode = #tpu.pipeline_mode<synchronous>, transform_indices = @transform_9, window_bounds = array<i64: 1, 16, 16>}, {pipeline_mode = #tpu.pipeline_mode<synchronous>, transform_indices = @transform_10, window_bounds = array<i64: 1, 16>}, {pipeline_mode = #tpu.pipeline_mode<synchronous>, transform_indices = @transform_11, window_bounds = array<i64: 1, 16>}, {pipeline_mode = #tpu.pipeline_mode<synchronous>, transform_indices = @transform_12, window_bounds = array<i64: 1, 16>}, {transform_indices = @transform_13, window_bounds = array<i64: 1, 8, 16>}]} {
    %c0_i32 = arith.constant 0 : i32
    %0 = arith.cmpi eq, %arg1, %c0_i32 : i32
    %1 = arith.extui %0 : i1 to i32
    %c0_i32_0 = arith.constant 0 : i32
    %2 = arith.cmpi ne, %1, %c0_i32_0 : i32
    scf.if %2 {
      %c0_38 = arith.constant 0 : index
      %c0_39 = arith.constant 0 : index
      %c0_40 = arith.constant 0 : index
      %68 = vector.load %arg3[%c0_38, %c0_39, %c0_40] : memref<1x8x16xf32, #tpu.memory_space<vmem>>, vector<1x8x16xf32>
      %69 = vector.shape_cast %68 : vector<1x8x16xf32> to vector<8x16xf32>
      %70 = arith.truncf %69 : vector<8x16xf32> to vector<8x16xbf16>
      %c0_41 = arith.constant 0 : index
      %c0_42 = arith.constant 0 : index
      %c0_43 = arith.constant 0 : index
      %71 = vector.load %arg4[%c0_41, %c0_42, %c0_43] : memref<1x8x16xf32, #tpu.memory_space<vmem>>, vector<1x8x16xf32>
      %72 = vector.shape_cast %71 : vector<1x8x16xf32> to vector<8x16xf32>
      %73 = arith.truncf %72 : vector<8x16xf32> to vector<8x16xbf16>
      %c0_44 = arith.constant 0 : index
      %c0_45 = arith.constant 0 : index
      %c0_46 = arith.constant 0 : index
      %74 = vector.load %arg7[%c0_44, %c0_45, %c0_46] : memref<1x16x16xbf16, #tpu.memory_space<vmem>>, vector<1x16x16xbf16>
      %75 = vector.shape_cast %74 : vector<1x16x16xbf16> to vector<16x16xbf16>
      %cst_47 = arith.constant dense<0.000000e+00> : vector<8x16xf32>
      %76 = tpu.matmul %70, %75, %cst_47 {dimension_numbers = #tpu.dot_dimension_numbers<[1], [0], [0], [1], [0, 0, 1, 1], [], []>} : vector<8x16xbf16>, vector<16x16xbf16>, vector<8x16xf32> -> vector<8x16xf32>
      %c0_48 = arith.constant 0 : index
      %c0_49 = arith.constant 0 : index
      %c0_50 = arith.constant 0 : index
      %77 = vector.load %arg8[%c0_48, %c0_49, %c0_50] : memref<1x1x16xf32, #tpu.memory_space<vmem>>, vector<1x1x16xf32>
      %78 = vector.shape_cast %77 : vector<1x1x16xf32> to vector<1x16xf32>
      %79 = vector.broadcast %78 : vector<1x16xf32> to vector<8x16xf32>
      %80 = arith.addf %76, %79 : vector<8x16xf32>
      %81 = arith.truncf %80 : vector<8x16xf32> to vector<8x16xbf16>
      %c0_51 = arith.constant 0 : index
      %c0_52 = arith.constant 0 : index
      %c0_53 = arith.constant 0 : index
      %82 = vector.load %arg16[%c0_51, %c0_52, %c0_53] : memref<1x8x16xbf16, #tpu.memory_space<vmem>>, vector<1x8x16xbf16>
      %83 = vector.shape_cast %82 : vector<1x8x16xbf16> to vector<8x16xbf16>
      %84 = vector.shape_cast %81 : vector<8x16xbf16> to vector<1x8x16xbf16>
      tpu.vector_store %arg16[%c0_51, %c0_52, %c0_53], %84 {strides = array<i32>} : memref<1x8x16xbf16, #tpu.memory_space<vmem>>, vector<1x8x16xbf16>,
      %c0_54 = arith.constant 0 : index
      %c0_55 = arith.constant 0 : index
      %c0_56 = arith.constant 0 : index
      %85 = vector.load %arg9[%c0_54, %c0_55, %c0_56] : memref<1x16x16xbf16, #tpu.memory_space<vmem>>, vector<1x16x16xbf16>
      %86 = vector.shape_cast %85 : vector<1x16x16xbf16> to vector<16x16xbf16>
      %cst_57 = arith.constant dense<0.000000e+00> : vector<8x16xf32>
      %87 = tpu.matmul %73, %86, %cst_57 {dimension_numbers = #tpu.dot_dimension_numbers<[1], [0], [0], [1], [0, 0, 1, 1], [], []>} : vector<8x16xbf16>, vector<16x16xbf16>, vector<8x16xf32> -> vector<8x16xf32>
      %c0_58 = arith.constant 0 : index
      %c0_59 = arith.constant 0 : index
      %c0_60 = arith.constant 0 : index
      %88 = vector.load %arg10[%c0_58, %c0_59, %c0_60] : memref<1x1x16xf32, #tpu.memory_space<vmem>>, vector<1x1x16xf32>
      %89 = vector.shape_cast %88 : vector<1x1x16xf32> to vector<1x16xf32>
      %90 = vector.broadcast %89 : vector<1x16xf32> to vector<8x16xf32>
      %91 = arith.addf %87, %90 : vector<8x16xf32>
      %92 = arith.truncf %91 : vector<8x16xf32> to vector<8x16xbf16>
      %c0_61 = arith.constant 0 : index
      %c0_62 = arith.constant 0 : index
      %c0_63 = arith.constant 0 : index
      %93 = vector.load %arg17[%c0_61, %c0_62, %c0_63] : memref<1x8x16xbf16, #tpu.memory_space<vmem>>, vector<1x8x16xbf16>
      %94 = vector.shape_cast %93 : vector<1x8x16xbf16> to vector<8x16xbf16>
      %95 = vector.shape_cast %92 : vector<8x16xbf16> to vector<1x8x16xbf16>
      tpu.vector_store %arg17[%c0_61, %c0_62, %c0_63], %95 {strides = array<i32>} : memref<1x8x16xbf16, #tpu.memory_space<vmem>>, vector<1x8x16xbf16>,
    } else {
    }
    %c0 = arith.constant 0 : index
    %c0_1 = arith.constant 0 : index
    %c0_2 = arith.constant 0 : index
    %3 = vector.load %arg2[%c0, %c0_1, %c0_2] : memref<1x8x16xf32, #tpu.memory_space<vmem>>, vector<1x8x16xf32>
    %4 = vector.shape_cast %3 : vector<1x8x16xf32> to vector<8x16xf32>
    %5 = arith.truncf %4 : vector<8x16xf32> to vector<8x16xbf16>
    %c0_3 = arith.constant 0 : index
    %c0_4 = arith.constant 0 : index
    %6 = vector.load %arg12[%c0_3, %c0_4] : memref<1x16xf32, #tpu.memory_space<vmem>>, vector<1x16xf32>
    %7 = vector.broadcast %6 : vector<1x16xf32> to vector<8x16xf32>
    %8 = arith.addf %4, %7 : vector<8x16xf32>
    %c0_5 = arith.constant 0 : index
    %c0_6 = arith.constant 0 : index
    %c0_7 = arith.constant 0 : index
    %9 = vector.load %arg5[%c0_5, %c0_6, %c0_7] : memref<1x16x16xbf16, #tpu.memory_space<vmem>>, vector<1x16x16xbf16>
    %10 = vector.shape_cast %9 : vector<1x16x16xbf16> to vector<16x16xbf16>
    %cst = arith.constant dense<0.000000e+00> : vector<8x16xf32>
    %11 = tpu.matmul %5, %10, %cst {dimension_numbers = #tpu.dot_dimension_numbers<[1], [0], [0], [1], [0, 0, 1, 1], [], []>} : vector<8x16xbf16>, vector<16x16xbf16>, vector<8x16xf32> -> vector<8x16xf32>
    %c0_8 = arith.constant 0 : index
    %c0_9 = arith.constant 0 : index
    %c0_10 = arith.constant 0 : index
    %12 = vector.load %arg6[%c0_8, %c0_9, %c0_10] : memref<1x1x16xf32, #tpu.memory_space<vmem>>, vector<1x1x16xf32>
    %13 = vector.shape_cast %12 : vector<1x1x16xf32> to vector<1x16xf32>
    %14 = vector.broadcast %13 : vector<1x16xf32> to vector<8x16xf32>
    %15 = arith.addf %11, %14 : vector<8x16xf32>
    %cst_11 = arith.constant 2.500000e-01 : f32
    %16 = vector.broadcast %cst_11 : f32 to vector<8x16xf32>
    %17 = arith.mulf %15, %16 : vector<8x16xf32>
    %c0_12 = arith.constant 0 : index
    %c0_13 = arith.constant 0 : index
    %c0_14 = arith.constant 0 : index
    %18 = vector.load %arg16[%c0_12, %c0_13, %c0_14] : memref<1x8x16xbf16, #tpu.memory_space<vmem>>, vector<1x8x16xbf16>
    %19 = vector.shape_cast %18 : vector<1x8x16xbf16> to vector<8x16xbf16>
    %c0_15 = arith.constant 0 : index
    %c0_16 = arith.constant 0 : index
    %c0_17 = arith.constant 0 : index
    %20 = vector.load %arg17[%c0_15, %c0_16, %c0_17] : memref<1x8x16xbf16, #tpu.memory_space<vmem>>, vector<1x8x16xbf16>
    %21 = vector.shape_cast %20 : vector<1x8x16xbf16> to vector<8x16xbf16>
    %22 = arith.truncf %17 : vector<8x16xf32> to vector<8x16xbf16>
    %cst_18 = arith.constant dense<0.000000e+00> : vector<8x8xf32>
    %23 = tpu.matmul %22, %19, %cst_18 {dimension_numbers = #tpu.dot_dimension_numbers<[1], [1], [0], [0], [0, 0, 1, 0], [], []>} : vector<8x16xbf16>, vector<8x16xbf16>, vector<8x8xf32> -> vector<8x8xf32>
    %cst_19 = arith.constant dense<0xFF800000> : vector<8xf32>
    %24 = vector.multi_reduction <maximumf>, %23, %cst_19 [1] : vector<8x8xf32> to vector<8xf32>
    %25 = vector.shape_cast %24 : vector<8xf32> to vector<8x1xf32>
    %26 = vector.broadcast %25 : vector<8x1xf32> to vector<8x8xf32>
    %27 = arith.subf %23, %26 : vector<8x8xf32>
    %28 = math.exp %27 : vector<8x8xf32>
    %cst_20 = arith.constant dense<0.000000e+00> : vector<8xf32>
    %29 = vector.multi_reduction <add>, %28, %cst_20 [1] : vector<8x8xf32> to vector<8xf32>
    %30 = vector.shape_cast %29 : vector<8xf32> to vector<8x1xf32>
    %31 = tpu.reciprocal %30 {approx = true} : vector<8x1xf32> -> vector<8x1xf32>
    %32 = vector.broadcast %31 : vector<8x1xf32> to vector<8x8xf32>
    %33 = arith.mulf %28, %32 : vector<8x8xf32>
    %34 = arith.truncf %33 : vector<8x8xf32> to vector<8x8xbf16>
    %cst_21 = arith.constant dense<0.000000e+00> : vector<8x16xf32>
    %35 = tpu.matmul %34, %21, %cst_21 {dimension_numbers = #tpu.dot_dimension_numbers<[1], [0], [0], [1], [0, 0, 1, 1], [], []>} : vector<8x8xbf16>, vector<8x16xbf16>, vector<8x16xf32> -> vector<8x16xf32>
    %36 = arith.truncf %35 : vector<8x16xf32> to vector<8x16xbf16>
    %c0_22 = arith.constant 0 : index
    %c0_23 = arith.constant 0 : index
    %c0_24 = arith.constant 0 : index
    %37 = vector.load %arg11[%c0_22, %c0_23, %c0_24] : memref<1x16x16xbf16, #tpu.memory_space<vmem>>, vector<1x16x16xbf16>
    %38 = vector.shape_cast %37 : vector<1x16x16xbf16> to vector<16x16xbf16>
    %cst_25 = arith.constant dense<0.000000e+00> : vector<8x16xf32>
    %39 = tpu.matmul %36, %38, %cst_25 {dimension_numbers = #tpu.dot_dimension_numbers<[1], [0], [0], [1], [0, 0, 1, 1], [], []>} : vector<8x16xbf16>, vector<16x16xbf16>, vector<8x16xf32> -> vector<8x16xf32>
    %40 = arith.addf %8, %39 : vector<8x16xf32>
    %cst_26 = arith.constant dense<0.000000e+00> : vector<8xf32>
    %41 = vector.multi_reduction <add>, %40, %cst_26 [1] : vector<8x16xf32> to vector<8xf32>
    %42 = vector.shape_cast %41 : vector<8xf32> to vector<8x1xf32>
    %cst_27 = arith.constant 1.600000e+01 : f32
    %43 = vector.broadcast %cst_27 : f32 to vector<8x1xf32>
    %44 = arith.divf %42, %43 : vector<8x1xf32>
    %45 = arith.mulf %40, %40 : vector<8x16xf32>
    %cst_28 = arith.constant dense<0.000000e+00> : vector<8xf32>
    %46 = vector.multi_reduction <add>, %45, %cst_28 [1] : vector<8x16xf32> to vector<8xf32>
    %47 = vector.shape_cast %46 : vector<8xf32> to vector<8x1xf32>
    %cst_29 = arith.constant 1.600000e+01 : f32
    %48 = vector.broadcast %cst_29 : f32 to vector<8x1xf32>
    %49 = arith.divf %47, %48 : vector<8x1xf32>
    %50 = arith.mulf %44, %44 : vector<8x1xf32>
    %51 = arith.subf %49, %50 : vector<8x1xf32>
    %cst_30 = arith.constant 9.99999974E-6 : f32
    %52 = vector.broadcast %cst_30 : f32 to vector<8x1xf32>
    %53 = arith.addf %51, %52 : vector<8x1xf32>
    %54 = math.rsqrt %53 : vector<8x1xf32>
    %55 = vector.broadcast %44 : vector<8x1xf32> to vector<8x16xf32>
    %56 = arith.subf %40, %55 : vector<8x16xf32>
    %57 = vector.broadcast %54 : vector<8x1xf32> to vector<8x16xf32>
    %58 = arith.mulf %56, %57 : vector<8x16xf32>
    %c0_31 = arith.constant 0 : index
    %c0_32 = arith.constant 0 : index
    %59 = vector.load %arg13[%c0_31, %c0_32] : memref<1x16xf32, #tpu.memory_space<vmem>>, vector<1x16xf32>
    %60 = vector.broadcast %59 : vector<1x16xf32> to vector<8x16xf32>
    %61 = arith.mulf %58, %60 : vector<8x16xf32>
    %c0_33 = arith.constant 0 : index
    %c0_34 = arith.constant 0 : index
    %62 = vector.load %arg14[%c0_33, %c0_34] : memref<1x16xf32, #tpu.memory_space<vmem>>, vector<1x16xf32>
    %63 = vector.broadcast %62 : vector<1x16xf32> to vector<8x16xf32>
    %64 = arith.addf %61, %63 : vector<8x16xf32>
    %c0_35 = arith.constant 0 : index
    %c0_36 = arith.constant 0 : index
    %c0_37 = arith.constant 0 : index
    %65 = vector.load %arg15[%c0_35, %c0_36, %c0_37] : memref<1x8x16xf32, #tpu.memory_space<vmem>>, vector<1x8x16xf32>
    %66 = vector.shape_cast %65 : vector<1x8x16xf32> to vector<8x16xf32>
    %67 = vector.shape_cast %64 : vector<8x16xf32> to vector<1x8x16xf32>
    tpu.vector_store %arg15[%c0_35, %c0_36, %c0_37], %67 {strides = array<i32>} : memref<1x8x16xf32, #tpu.memory_space<vmem>>, vector<1x8x16xf32>,
    return
  }
  func.func @transform_0(%arg0: i32, %arg1: i32) -> (i32, i32, i32) {
    %c0_i32 = arith.constant 0 : i32
    %c0_i32_0 = arith.constant 0 : i32
    return %arg0, %arg1, %c0_i32 : i32, i32, i32
  }
  func.func @transform_1(%arg0: i32, %arg1: i32) -> (i32, i32, i32) {
    %c0_i32 = arith.constant 0 : i32
    %c0_i32_0 = arith.constant 0 : i32
    %c0_i32_1 = arith.constant 0 : i32
    return %arg0, %c0_i32, %c0_i32_0 : i32, i32, i32
  }
  func.func @transform_2(%arg0: i32, %arg1: i32) -> (i32, i32, i32) {
    %c0_i32 = arith.constant 0 : i32
    %c0_i32_0 = arith.constant 0 : i32
    %c0_i32_1 = arith.constant 0 : i32
    return %arg0, %c0_i32, %c0_i32_0 : i32, i32, i32
  }
  func.func @transform_3(%arg0: i32, %arg1: i32) -> (i32, i32, i32) {
    %c0_i32 = arith.constant 0 : i32
    %c0_i32_0 = arith.constant 0 : i32
    %c0_i32_1 = arith.constant 0 : i32
    %c0_i32_2 = arith.constant 0 : i32
    return %c0_i32, %c0_i32_0, %c0_i32_1 : i32, i32, i32
  }
  func.func @transform_4(%arg0: i32, %arg1: i32) -> (i32, i32, i32) {
    %c0_i32 = arith.constant 0 : i32
    %c0_i32_0 = arith.constant 0 : i32
    %c0_i32_1 = arith.constant 0 : i32
    %c0_i32_2 = arith.constant 0 : i32
    return %c0_i32, %c0_i32_0, %c0_i32_1 : i32, i32, i32
  }
  func.func @transform_5(%arg0: i32, %arg1: i32) -> (i32, i32, i32) {
    %c0_i32 = arith.constant 0 : i32
    %c0_i32_0 = arith.constant 0 : i32
    %c0_i32_1 = arith.constant 0 : i32
    %c0_i32_2 = arith.constant 0 : i32
    return %c0_i32, %c0_i32_0, %c0_i32_1 : i32, i32, i32
  }
  func.func @transform_6(%arg0: i32, %arg1: i32) -> (i32, i32, i32) {
    %c0_i32 = arith.constant 0 : i32
    %c0_i32_0 = arith.constant 0 : i32
    %c0_i32_1 = arith.constant 0 : i32
    %c0_i32_2 = arith.constant 0 : i32
    return %c0_i32, %c0_i32_0, %c0_i32_1 : i32, i32, i32
  }
  func.func @transform_7(%arg0: i32, %arg1: i32) -> (i32, i32, i32) {
    %c0_i32 = arith.constant 0 : i32
    %c0_i32_0 = arith.constant 0 : i32
    %c0_i32_1 = arith.constant 0 : i32
    %c0_i32_2 = arith.constant 0 : i32
    return %c0_i32, %c0_i32_0, %c0_i32_1 : i32, i32, i32
  }
  func.func @transform_8(%arg0: i32, %arg1: i32) -> (i32, i32, i32) {
    %c0_i32 = arith.constant 0 : i32
    %c0_i32_0 = arith.constant 0 : i32
    %c0_i32_1 = arith.constant 0 : i32
    %c0_i32_2 = arith.constant 0 : i32
    return %c0_i32, %c0_i32_0, %c0_i32_1 : i32, i32, i32
  }
  func.func @transform_9(%arg0: i32, %arg1: i32) -> (i32, i32, i32) {
    %c0_i32 = arith.constant 0 : i32
    %c0_i32_0 = arith.constant 0 : i32
    %c0_i32_1 = arith.constant 0 : i32
    %c0_i32_2 = arith.constant 0 : i32
    return %c0_i32, %c0_i32_0, %c0_i32_1 : i32, i32, i32
  }
  func.func @transform_10(%arg0: i32, %arg1: i32) -> (i32, i32) {
    %c0_i32 = arith.constant 0 : i32
    %c0_i32_0 = arith.constant 0 : i32
    %c0_i32_1 = arith.constant 0 : i32
    return %c0_i32, %c0_i32_0 : i32, i32
  }
  func.func @transform_11(%arg0: i32, %arg1: i32) -> (i32, i32) {
    %c0_i32 = arith.constant 0 : i32
    %c0_i32_0 = arith.constant 0 : i32
    %c0_i32_1 = arith.constant 0 : i32
    return %c0_i32, %c0_i32_0 : i32, i32
  }
  func.func @transform_12(%arg0: i32, %arg1: i32) -> (i32, i32) {
    %c0_i32 = arith.constant 0 : i32
    %c0_i32_0 = arith.constant 0 : i32
    %c0_i32_1 = arith.constant 0 : i32
    return %c0_i32, %c0_i32_0 : i32, i32
  }
  func.func @transform_13(%arg0: i32, %arg1: i32) -> (i32, i32, i32) {
    %c0_i32 = arith.constant 0 : i32
    %c0_i32_0 = arith.constant 0 : i32
    return %arg0, %arg1, %c0_i32 : i32, i32, i32
  }
}

module attributes {stable_mosaic.version = 11 : i64} {
  func.func @_linear_relu_ln_kernel(%arg0: i32, %arg1: memref<16x128xf32, #tpu.memory_space<vmem>>, %arg2: memref<128x128xbf16, #tpu.memory_space<vmem>>, %arg3: memref<1x128xf32, #tpu.memory_space<vmem>>, %arg4: memref<1x128xf32, #tpu.memory_space<vmem>>, %arg5: memref<1x128xf32, #tpu.memory_space<vmem>>, %arg6: memref<16x128xf32, #tpu.memory_space<vmem>>) attributes {dimension_semantics = [#tpu.dimension_semantics<parallel>], iteration_bounds = array<i64: 1>, scalar_prefetch = 0 : i64, scratch_operands = 0 : i64, tpu.core_type = #tpu.core_type<tc>, window_params = [{transform_indices = @transform_0, window_bounds = array<i64: 16, 128>}, {pipeline_mode = #tpu.pipeline_mode<synchronous>, transform_indices = @transform_1, window_bounds = array<i64: 128, 128>}, {pipeline_mode = #tpu.pipeline_mode<synchronous>, transform_indices = @transform_2, window_bounds = array<i64: 1, 128>}, {pipeline_mode = #tpu.pipeline_mode<synchronous>, transform_indices = @transform_3, window_bounds = array<i64: 1, 128>}, {pipeline_mode = #tpu.pipeline_mode<synchronous>, transform_indices = @transform_4, window_bounds = array<i64: 1, 128>}, {transform_indices = @transform_5, window_bounds = array<i64: 16, 128>}]} {
    %c0 = arith.constant 0 : index
    %c0_0 = arith.constant 0 : index
    %0 = vector.load %arg1[%c0, %c0_0] : memref<16x128xf32, #tpu.memory_space<vmem>>, vector<16x128xf32>
    %1 = arith.truncf %0 : vector<16x128xf32> to vector<16x128xbf16>
    %c0_1 = arith.constant 0 : index
    %c0_2 = arith.constant 0 : index
    %2 = vector.load %arg2[%c0_1, %c0_2] : memref<128x128xbf16, #tpu.memory_space<vmem>>, vector<128x128xbf16>
    %cst = arith.constant dense<0.000000e+00> : vector<16x128xf32>
    %3 = tpu.matmul %1, %2, %cst {dimension_numbers = #tpu.dot_dimension_numbers<[1], [0], [0], [1], [0, 0, 1, 1], [], []>} : vector<16x128xbf16>, vector<128x128xbf16>, vector<16x128xf32> -> vector<16x128xf32>
    %c0_3 = arith.constant 0 : index
    %c0_4 = arith.constant 0 : index
    %4 = vector.load %arg3[%c0_3, %c0_4] : memref<1x128xf32, #tpu.memory_space<vmem>>, vector<1x128xf32>
    %5 = vector.broadcast %4 : vector<1x128xf32> to vector<16x128xf32>
    %6 = arith.addf %3, %5 : vector<16x128xf32>
    %cst_5 = arith.constant 0.000000e+00 : f32
    %7 = vector.broadcast %cst_5 : f32 to vector<16x128xf32>
    %8 = arith.maximumf %6, %7 : vector<16x128xf32>
    %cst_6 = arith.constant dense<0.000000e+00> : vector<16xf32>
    %9 = vector.multi_reduction <add>, %8, %cst_6 [1] : vector<16x128xf32> to vector<16xf32>
    %10 = vector.shape_cast %9 : vector<16xf32> to vector<16x1xf32>
    %cst_7 = arith.constant 1.280000e+02 : f32
    %11 = vector.broadcast %cst_7 : f32 to vector<16x1xf32>
    %12 = arith.divf %10, %11 : vector<16x1xf32>
    %13 = arith.mulf %8, %8 : vector<16x128xf32>
    %cst_8 = arith.constant dense<0.000000e+00> : vector<16xf32>
    %14 = vector.multi_reduction <add>, %13, %cst_8 [1] : vector<16x128xf32> to vector<16xf32>
    %15 = vector.shape_cast %14 : vector<16xf32> to vector<16x1xf32>
    %cst_9 = arith.constant 1.280000e+02 : f32
    %16 = vector.broadcast %cst_9 : f32 to vector<16x1xf32>
    %17 = arith.divf %15, %16 : vector<16x1xf32>
    %18 = arith.mulf %12, %12 : vector<16x1xf32>
    %19 = arith.subf %17, %18 : vector<16x1xf32>
    %cst_10 = arith.constant 9.99999974E-6 : f32
    %20 = vector.broadcast %cst_10 : f32 to vector<16x1xf32>
    %21 = arith.addf %19, %20 : vector<16x1xf32>
    %22 = math.rsqrt %21 : vector<16x1xf32>
    %23 = vector.broadcast %12 : vector<16x1xf32> to vector<16x128xf32>
    %24 = arith.subf %8, %23 : vector<16x128xf32>
    %25 = vector.broadcast %22 : vector<16x1xf32> to vector<16x128xf32>
    %26 = arith.mulf %24, %25 : vector<16x128xf32>
    %c0_11 = arith.constant 0 : index
    %c0_12 = arith.constant 0 : index
    %27 = vector.load %arg4[%c0_11, %c0_12] : memref<1x128xf32, #tpu.memory_space<vmem>>, vector<1x128xf32>
    %28 = vector.broadcast %27 : vector<1x128xf32> to vector<16x128xf32>
    %29 = arith.mulf %26, %28 : vector<16x128xf32>
    %c0_13 = arith.constant 0 : index
    %c0_14 = arith.constant 0 : index
    %30 = vector.load %arg5[%c0_13, %c0_14] : memref<1x128xf32, #tpu.memory_space<vmem>>, vector<1x128xf32>
    %31 = vector.broadcast %30 : vector<1x128xf32> to vector<16x128xf32>
    %32 = arith.addf %29, %31 : vector<16x128xf32>
    %c0_15 = arith.constant 0 : index
    %c0_16 = arith.constant 0 : index
    %33 = vector.load %arg6[%c0_15, %c0_16] : memref<16x128xf32, #tpu.memory_space<vmem>>, vector<16x128xf32>
    tpu.vector_store %arg6[%c0_15, %c0_16], %32 {strides = array<i32>} : memref<16x128xf32, #tpu.memory_space<vmem>>, vector<16x128xf32>,
    return
  }
  func.func @transform_0(%arg0: i32) -> (i32, i32) {
    %c0_i32 = arith.constant 0 : i32
    %c0_i32_0 = arith.constant 0 : i32
    return %arg0, %c0_i32 : i32, i32
  }
  func.func @transform_1(%arg0: i32) -> (i32, i32) {
    %c0_i32 = arith.constant 0 : i32
    %c0_i32_0 = arith.constant 0 : i32
    %c0_i32_1 = arith.constant 0 : i32
    return %c0_i32, %c0_i32_0 : i32, i32
  }
  func.func @transform_2(%arg0: i32) -> (i32, i32) {
    %c0_i32 = arith.constant 0 : i32
    %c0_i32_0 = arith.constant 0 : i32
    %c0_i32_1 = arith.constant 0 : i32
    return %c0_i32, %c0_i32_0 : i32, i32
  }
  func.func @transform_3(%arg0: i32) -> (i32, i32) {
    %c0_i32 = arith.constant 0 : i32
    %c0_i32_0 = arith.constant 0 : i32
    %c0_i32_1 = arith.constant 0 : i32
    return %c0_i32, %c0_i32_0 : i32, i32
  }
  func.func @transform_4(%arg0: i32) -> (i32, i32) {
    %c0_i32 = arith.constant 0 : i32
    %c0_i32_0 = arith.constant 0 : i32
    %c0_i32_1 = arith.constant 0 : i32
    return %c0_i32, %c0_i32_0 : i32, i32
  }
  func.func @transform_5(%arg0: i32) -> (i32, i32) {
    %c0_i32 = arith.constant 0 : i32
    %c0_i32_0 = arith.constant 0 : i32
    return %arg0, %c0_i32 : i32, i32
  }
}

module attributes {stable_mosaic.version = 11 : i64} {
  func.func @_combine_proj_kernel(%arg0: i32, %arg1: memref<1x2xf32, #tpu.memory_space<vmem>>, %arg2: memref<16x128xf32, #tpu.memory_space<vmem>>, %arg3: memref<16x128xf32, #tpu.memory_space<vmem>>, %arg4: memref<128x26xbf16, #tpu.memory_space<vmem>>, %arg5: memref<1x26xf32, #tpu.memory_space<vmem>>, %arg6: memref<16x26xf32, #tpu.memory_space<vmem>>) attributes {dimension_semantics = [#tpu.dimension_semantics<parallel>], iteration_bounds = array<i64: 1>, scalar_prefetch = 0 : i64, scratch_operands = 0 : i64, tpu.core_type = #tpu.core_type<tc>, window_params = [{pipeline_mode = #tpu.pipeline_mode<synchronous>, transform_indices = @transform_0, window_bounds = array<i64: 1, 2>}, {transform_indices = @transform_1, window_bounds = array<i64: 16, 128>}, {transform_indices = @transform_2, window_bounds = array<i64: 16, 128>}, {pipeline_mode = #tpu.pipeline_mode<synchronous>, transform_indices = @transform_3, window_bounds = array<i64: 128, 26>}, {pipeline_mode = #tpu.pipeline_mode<synchronous>, transform_indices = @transform_4, window_bounds = array<i64: 1, 26>}, {transform_indices = @transform_5, window_bounds = array<i64: 16, 26>}]} {
    %c0 = arith.constant 0 : index
    %c0_0 = arith.constant 0 : index
    %0 = vector.load %arg1[%c0, %c0_0] : memref<1x2xf32, #tpu.memory_space<vmem>>, vector<1x2xf32>
    %c0_1 = arith.constant 0 : index
    %c0_2 = arith.constant 0 : index
    %1 = vector.load %arg2[%c0_1, %c0_2] : memref<16x128xf32, #tpu.memory_space<vmem>>, vector<16x128xf32>
    %2 = vector.extract_strided_slice %0 {offsets = [0, 0], sizes = [1, 1], strides = [1, 1]} : vector<1x2xf32> to vector<1x1xf32>
    %3 = vector.broadcast %2 : vector<1x1xf32> to vector<16x128xf32>
    %4 = arith.mulf %1, %3 : vector<16x128xf32>
    %c0_3 = arith.constant 0 : index
    %c0_4 = arith.constant 0 : index
    %5 = vector.load %arg3[%c0_3, %c0_4] : memref<16x128xf32, #tpu.memory_space<vmem>>, vector<16x128xf32>
    %6 = vector.extract_strided_slice %0 {offsets = [0, 1], sizes = [1, 1], strides = [1, 1]} : vector<1x2xf32> to vector<1x1xf32>
    %7 = vector.broadcast %6 : vector<1x1xf32> to vector<16x128xf32>
    %8 = arith.mulf %5, %7 : vector<16x128xf32>
    %9 = arith.addf %4, %8 : vector<16x128xf32>
    %10 = arith.truncf %9 : vector<16x128xf32> to vector<16x128xbf16>
    %c0_5 = arith.constant 0 : index
    %c0_6 = arith.constant 0 : index
    %11 = vector.load %arg4[%c0_5, %c0_6] : memref<128x26xbf16, #tpu.memory_space<vmem>>, vector<128x26xbf16>
    %cst = arith.constant dense<0.000000e+00> : vector<16x26xf32>
    %12 = tpu.matmul %10, %11, %cst {dimension_numbers = #tpu.dot_dimension_numbers<[1], [0], [0], [1], [0, 0, 1, 1], [], []>} : vector<16x128xbf16>, vector<128x26xbf16>, vector<16x26xf32> -> vector<16x26xf32>
    %c0_7 = arith.constant 0 : index
    %c0_8 = arith.constant 0 : index
    %13 = vector.load %arg5[%c0_7, %c0_8] : memref<1x26xf32, #tpu.memory_space<vmem>>, vector<1x26xf32>
    %14 = vector.broadcast %13 : vector<1x26xf32> to vector<16x26xf32>
    %15 = arith.addf %12, %14 : vector<16x26xf32>
    %c0_9 = arith.constant 0 : index
    %c0_10 = arith.constant 0 : index
    %16 = vector.load %arg6[%c0_9, %c0_10] : memref<16x26xf32, #tpu.memory_space<vmem>>, vector<16x26xf32>
    tpu.vector_store %arg6[%c0_9, %c0_10], %15 {strides = array<i32>} : memref<16x26xf32, #tpu.memory_space<vmem>>, vector<16x26xf32>,
    return
  }
  func.func @transform_0(%arg0: i32) -> (i32, i32) {
    %c0_i32 = arith.constant 0 : i32
    %c0_i32_0 = arith.constant 0 : i32
    %c0_i32_1 = arith.constant 0 : i32
    return %c0_i32, %c0_i32_0 : i32, i32
  }
  func.func @transform_1(%arg0: i32) -> (i32, i32) {
    %c0_i32 = arith.constant 0 : i32
    %c0_i32_0 = arith.constant 0 : i32
    return %arg0, %c0_i32 : i32, i32
  }
  func.func @transform_2(%arg0: i32) -> (i32, i32) {
    %c0_i32 = arith.constant 0 : i32
    %c0_i32_0 = arith.constant 0 : i32
    return %arg0, %c0_i32 : i32, i32
  }
  func.func @transform_3(%arg0: i32) -> (i32, i32) {
    %c0_i32 = arith.constant 0 : i32
    %c0_i32_0 = arith.constant 0 : i32
    %c0_i32_1 = arith.constant 0 : i32
    return %c0_i32, %c0_i32_0 : i32, i32
  }
  func.func @transform_4(%arg0: i32) -> (i32, i32) {
    %c0_i32 = arith.constant 0 : i32
    %c0_i32_0 = arith.constant 0 : i32
    %c0_i32_1 = arith.constant 0 : i32
    return %c0_i32, %c0_i32_0 : i32, i32
  }
  func.func @transform_5(%arg0: i32) -> (i32, i32) {
    %c0_i32 = arith.constant 0 : i32
    %c0_i32_0 = arith.constant 0 : i32
    return %arg0, %c0_i32 : i32, i32
  }
}

module attributes {stable_mosaic.version = 11 : i64} {
  func.func @_ffn_kernel(%arg0: i32, %arg1: memref<16x128xf32, #tpu.memory_space<vmem>>, %arg2: memref<128x512xbf16, #tpu.memory_space<vmem>>, %arg3: memref<1x512xf32, #tpu.memory_space<vmem>>, %arg4: memref<512x128xbf16, #tpu.memory_space<vmem>>, %arg5: memref<1x128xf32, #tpu.memory_space<vmem>>, %arg6: memref<1x128xf32, #tpu.memory_space<vmem>>, %arg7: memref<1x128xf32, #tpu.memory_space<vmem>>, %arg8: memref<16x128xf32, #tpu.memory_space<vmem>>) attributes {dimension_semantics = [#tpu.dimension_semantics<parallel>], iteration_bounds = array<i64: 1>, scalar_prefetch = 0 : i64, scratch_operands = 0 : i64, tpu.core_type = #tpu.core_type<tc>, window_params = [{transform_indices = @transform_0, window_bounds = array<i64: 16, 128>}, {pipeline_mode = #tpu.pipeline_mode<synchronous>, transform_indices = @transform_1, window_bounds = array<i64: 128, 512>}, {pipeline_mode = #tpu.pipeline_mode<synchronous>, transform_indices = @transform_2, window_bounds = array<i64: 1, 512>}, {pipeline_mode = #tpu.pipeline_mode<synchronous>, transform_indices = @transform_3, window_bounds = array<i64: 512, 128>}, {pipeline_mode = #tpu.pipeline_mode<synchronous>, transform_indices = @transform_4, window_bounds = array<i64: 1, 128>}, {pipeline_mode = #tpu.pipeline_mode<synchronous>, transform_indices = @transform_5, window_bounds = array<i64: 1, 128>}, {pipeline_mode = #tpu.pipeline_mode<synchronous>, transform_indices = @transform_6, window_bounds = array<i64: 1, 128>}, {transform_indices = @transform_7, window_bounds = array<i64: 16, 128>}]} {
    %c0 = arith.constant 0 : index
    %c0_0 = arith.constant 0 : index
    %0 = vector.load %arg1[%c0, %c0_0] : memref<16x128xf32, #tpu.memory_space<vmem>>, vector<16x128xf32>
    %1 = arith.truncf %0 : vector<16x128xf32> to vector<16x128xbf16>
    %c0_1 = arith.constant 0 : index
    %c0_2 = arith.constant 0 : index
    %2 = vector.load %arg2[%c0_1, %c0_2] : memref<128x512xbf16, #tpu.memory_space<vmem>>, vector<128x512xbf16>
    %cst = arith.constant dense<0.000000e+00> : vector<16x512xf32>
    %3 = tpu.matmul %1, %2, %cst {dimension_numbers = #tpu.dot_dimension_numbers<[1], [0], [0], [1], [0, 0, 1, 1], [], []>} : vector<16x128xbf16>, vector<128x512xbf16>, vector<16x512xf32> -> vector<16x512xf32>
    %c0_3 = arith.constant 0 : index
    %c0_4 = arith.constant 0 : index
    %4 = vector.load %arg3[%c0_3, %c0_4] : memref<1x512xf32, #tpu.memory_space<vmem>>, vector<1x512xf32>
    %5 = vector.broadcast %4 : vector<1x512xf32> to vector<16x512xf32>
    %6 = arith.addf %3, %5 : vector<16x512xf32>
    %cst_5 = arith.constant 0.000000e+00 : f32
    %7 = vector.broadcast %cst_5 : f32 to vector<16x512xf32>
    %8 = arith.maximumf %6, %7 : vector<16x512xf32>
    %9 = arith.truncf %8 : vector<16x512xf32> to vector<16x512xbf16>
    %c0_6 = arith.constant 0 : index
    %c0_7 = arith.constant 0 : index
    %10 = vector.load %arg4[%c0_6, %c0_7] : memref<512x128xbf16, #tpu.memory_space<vmem>>, vector<512x128xbf16>
    %cst_8 = arith.constant dense<0.000000e+00> : vector<16x128xf32>
    %11 = tpu.matmul %9, %10, %cst_8 {dimension_numbers = #tpu.dot_dimension_numbers<[1], [0], [0], [1], [0, 0, 1, 1], [], []>} : vector<16x512xbf16>, vector<512x128xbf16>, vector<16x128xf32> -> vector<16x128xf32>
    %c0_9 = arith.constant 0 : index
    %c0_10 = arith.constant 0 : index
    %12 = vector.load %arg5[%c0_9, %c0_10] : memref<1x128xf32, #tpu.memory_space<vmem>>, vector<1x128xf32>
    %13 = vector.broadcast %12 : vector<1x128xf32> to vector<16x128xf32>
    %14 = arith.addf %11, %13 : vector<16x128xf32>
    %15 = arith.addf %0, %14 : vector<16x128xf32>
    %cst_11 = arith.constant dense<0.000000e+00> : vector<16xf32>
    %16 = vector.multi_reduction <add>, %15, %cst_11 [1] : vector<16x128xf32> to vector<16xf32>
    %17 = vector.shape_cast %16 : vector<16xf32> to vector<16x1xf32>
    %cst_12 = arith.constant 1.280000e+02 : f32
    %18 = vector.broadcast %cst_12 : f32 to vector<16x1xf32>
    %19 = arith.divf %17, %18 : vector<16x1xf32>
    %20 = arith.mulf %15, %15 : vector<16x128xf32>
    %cst_13 = arith.constant dense<0.000000e+00> : vector<16xf32>
    %21 = vector.multi_reduction <add>, %20, %cst_13 [1] : vector<16x128xf32> to vector<16xf32>
    %22 = vector.shape_cast %21 : vector<16xf32> to vector<16x1xf32>
    %cst_14 = arith.constant 1.280000e+02 : f32
    %23 = vector.broadcast %cst_14 : f32 to vector<16x1xf32>
    %24 = arith.divf %22, %23 : vector<16x1xf32>
    %25 = arith.mulf %19, %19 : vector<16x1xf32>
    %26 = arith.subf %24, %25 : vector<16x1xf32>
    %cst_15 = arith.constant 9.99999974E-6 : f32
    %27 = vector.broadcast %cst_15 : f32 to vector<16x1xf32>
    %28 = arith.addf %26, %27 : vector<16x1xf32>
    %29 = math.rsqrt %28 : vector<16x1xf32>
    %30 = vector.broadcast %19 : vector<16x1xf32> to vector<16x128xf32>
    %31 = arith.subf %15, %30 : vector<16x128xf32>
    %32 = vector.broadcast %29 : vector<16x1xf32> to vector<16x128xf32>
    %33 = arith.mulf %31, %32 : vector<16x128xf32>
    %c0_16 = arith.constant 0 : index
    %c0_17 = arith.constant 0 : index
    %34 = vector.load %arg6[%c0_16, %c0_17] : memref<1x128xf32, #tpu.memory_space<vmem>>, vector<1x128xf32>
    %35 = vector.broadcast %34 : vector<1x128xf32> to vector<16x128xf32>
    %36 = arith.mulf %33, %35 : vector<16x128xf32>
    %c0_18 = arith.constant 0 : index
    %c0_19 = arith.constant 0 : index
    %37 = vector.load %arg7[%c0_18, %c0_19] : memref<1x128xf32, #tpu.memory_space<vmem>>, vector<1x128xf32>
    %38 = vector.broadcast %37 : vector<1x128xf32> to vector<16x128xf32>
    %39 = arith.addf %36, %38 : vector<16x128xf32>
    %c0_20 = arith.constant 0 : index
    %c0_21 = arith.constant 0 : index
    %40 = vector.load %arg8[%c0_20, %c0_21] : memref<16x128xf32, #tpu.memory_space<vmem>>, vector<16x128xf32>
    tpu.vector_store %arg8[%c0_20, %c0_21], %39 {strides = array<i32>} : memref<16x128xf32, #tpu.memory_space<vmem>>, vector<16x128xf32>,
    return
  }
  func.func @transform_0(%arg0: i32) -> (i32, i32) {
    %c0_i32 = arith.constant 0 : i32
    %c0_i32_0 = arith.constant 0 : i32
    return %arg0, %c0_i32 : i32, i32
  }
  func.func @transform_1(%arg0: i32) -> (i32, i32) {
    %c0_i32 = arith.constant 0 : i32
    %c0_i32_0 = arith.constant 0 : i32
    %c0_i32_1 = arith.constant 0 : i32
    return %c0_i32, %c0_i32_0 : i32, i32
  }
  func.func @transform_2(%arg0: i32) -> (i32, i32) {
    %c0_i32 = arith.constant 0 : i32
    %c0_i32_0 = arith.constant 0 : i32
    %c0_i32_1 = arith.constant 0 : i32
    return %c0_i32, %c0_i32_0 : i32, i32
  }
  func.func @transform_3(%arg0: i32) -> (i32, i32) {
    %c0_i32 = arith.constant 0 : i32
    %c0_i32_0 = arith.constant 0 : i32
    %c0_i32_1 = arith.constant 0 : i32
    return %c0_i32, %c0_i32_0 : i32, i32
  }
  func.func @transform_4(%arg0: i32) -> (i32, i32) {
    %c0_i32 = arith.constant 0 : i32
    %c0_i32_0 = arith.constant 0 : i32
    %c0_i32_1 = arith.constant 0 : i32
    return %c0_i32, %c0_i32_0 : i32, i32
  }
  func.func @transform_5(%arg0: i32) -> (i32, i32) {
    %c0_i32 = arith.constant 0 : i32
    %c0_i32_0 = arith.constant 0 : i32
    %c0_i32_1 = arith.constant 0 : i32
    return %c0_i32, %c0_i32_0 : i32, i32
  }
  func.func @transform_6(%arg0: i32) -> (i32, i32) {
    %c0_i32 = arith.constant 0 : i32
    %c0_i32_0 = arith.constant 0 : i32
    %c0_i32_1 = arith.constant 0 : i32
    return %c0_i32, %c0_i32_0 : i32, i32
  }
  func.func @transform_7(%arg0: i32) -> (i32, i32) {
    %c0_i32 = arith.constant 0 : i32
    %c0_i32_0 = arith.constant 0 : i32
    return %arg0, %c0_i32 : i32, i32
  }
}

module attributes {stable_mosaic.version = 11 : i64} {
  func.func @_mha_kernel(%arg0: i32, %arg1: i32, %arg2: memref<1x8x128xf32, #tpu.memory_space<vmem>>, %arg3: memref<1x8x128xf32, #tpu.memory_space<vmem>>, %arg4: memref<1x8x128xf32, #tpu.memory_space<vmem>>, %arg5: memref<8x128x16xbf16, #tpu.memory_space<vmem>>, %arg6: memref<8x1x16xf32, #tpu.memory_space<vmem>>, %arg7: memref<8x128x16xbf16, #tpu.memory_space<vmem>>, %arg8: memref<8x1x16xf32, #tpu.memory_space<vmem>>, %arg9: memref<8x128x16xbf16, #tpu.memory_space<vmem>>, %arg10: memref<8x1x16xf32, #tpu.memory_space<vmem>>, %arg11: memref<8x16x128xbf16, #tpu.memory_space<vmem>>, %arg12: memref<1x128xf32, #tpu.memory_space<vmem>>, %arg13: memref<1x128xf32, #tpu.memory_space<vmem>>, %arg14: memref<1x128xf32, #tpu.memory_space<vmem>>, %arg15: memref<1x8x128xf32, #tpu.memory_space<vmem>>, %arg16: memref<8x8x16xbf16, #tpu.memory_space<vmem>>, %arg17: memref<8x8x16xbf16, #tpu.memory_space<vmem>>) attributes {dimension_semantics = [#tpu.dimension_semantics<parallel>, #tpu.dimension_semantics<arbitrary>], iteration_bounds = array<i64: 2, 1>, scalar_prefetch = 0 : i64, scratch_operands = 2 : i64, tpu.core_type = #tpu.core_type<tc>, window_params = [{transform_indices = @transform_0, window_bounds = array<i64: 1, 8, 128>}, {transform_indices = @transform_1, window_bounds = array<i64: 1, 8, 128>}, {transform_indices = @transform_2, window_bounds = array<i64: 1, 8, 128>}, {pipeline_mode = #tpu.pipeline_mode<synchronous>, transform_indices = @transform_3, window_bounds = array<i64: 8, 128, 16>}, {pipeline_mode = #tpu.pipeline_mode<synchronous>, transform_indices = @transform_4, window_bounds = array<i64: 8, 1, 16>}, {pipeline_mode = #tpu.pipeline_mode<synchronous>, transform_indices = @transform_5, window_bounds = array<i64: 8, 128, 16>}, {pipeline_mode = #tpu.pipeline_mode<synchronous>, transform_indices = @transform_6, window_bounds = array<i64: 8, 1, 16>}, {pipeline_mode = #tpu.pipeline_mode<synchronous>, transform_indices = @transform_7, window_bounds = array<i64: 8, 128, 16>}, {pipeline_mode = #tpu.pipeline_mode<synchronous>, transform_indices = @transform_8, window_bounds = array<i64: 8, 1, 16>}, {pipeline_mode = #tpu.pipeline_mode<synchronous>, transform_indices = @transform_9, window_bounds = array<i64: 8, 16, 128>}, {pipeline_mode = #tpu.pipeline_mode<synchronous>, transform_indices = @transform_10, window_bounds = array<i64: 1, 128>}, {pipeline_mode = #tpu.pipeline_mode<synchronous>, transform_indices = @transform_11, window_bounds = array<i64: 1, 128>}, {pipeline_mode = #tpu.pipeline_mode<synchronous>, transform_indices = @transform_12, window_bounds = array<i64: 1, 128>}, {transform_indices = @transform_13, window_bounds = array<i64: 1, 8, 128>}]} {
    %c0_i32 = arith.constant 0 : i32
    %0 = arith.cmpi eq, %arg1, %c0_i32 : i32
    %1 = arith.extui %0 : i1 to i32
    %c0_i32_0 = arith.constant 0 : i32
    %2 = arith.cmpi ne, %1, %c0_i32_0 : i32
    scf.if %2 {
      %c0_185 = arith.constant 0 : index
      %c0_186 = arith.constant 0 : index
      %c0_187 = arith.constant 0 : index
      %292 = vector.load %arg3[%c0_185, %c0_186, %c0_187] : memref<1x8x128xf32, #tpu.memory_space<vmem>>, vector<1x8x128xf32>
      %293 = vector.shape_cast %292 : vector<1x8x128xf32> to vector<8x128xf32>
      %294 = arith.truncf %293 : vector<8x128xf32> to vector<8x128xbf16>
      %c0_188 = arith.constant 0 : index
      %c0_189 = arith.constant 0 : index
      %c0_190 = arith.constant 0 : index
      %295 = vector.load %arg4[%c0_188, %c0_189, %c0_190] : memref<1x8x128xf32, #tpu.memory_space<vmem>>, vector<1x8x128xf32>
      %296 = vector.shape_cast %295 : vector<1x8x128xf32> to vector<8x128xf32>
      %297 = arith.truncf %296 : vector<8x128xf32> to vector<8x128xbf16>
      %c0_191 = arith.constant 0 : index
      %c0_192 = arith.constant 0 : index
      %c0_193 = arith.constant 0 : index
      %298 = vector.load %arg7[%c0_191, %c0_192, %c0_193] : memref<8x128x16xbf16, #tpu.memory_space<vmem>>, vector<1x128x16xbf16>
      %299 = vector.shape_cast %298 : vector<1x128x16xbf16> to vector<128x16xbf16>
      %cst_194 = arith.constant dense<0.000000e+00> : vector<8x16xf32>
      %300 = tpu.matmul %294, %299, %cst_194 {dimension_numbers = #tpu.dot_dimension_numbers<[1], [0], [0], [1], [0, 0, 1, 1], [], []>} : vector<8x128xbf16>, vector<128x16xbf16>, vector<8x16xf32> -> vector<8x16xf32>
      %c0_195 = arith.constant 0 : index
      %c0_196 = arith.constant 0 : index
      %c0_197 = arith.constant 0 : index
      %301 = vector.load %arg8[%c0_195, %c0_196, %c0_197] : memref<8x1x16xf32, #tpu.memory_space<vmem>>, vector<1x1x16xf32>
      %302 = vector.shape_cast %301 : vector<1x1x16xf32> to vector<1x16xf32>
      %303 = vector.broadcast %302 : vector<1x16xf32> to vector<8x16xf32>
      %304 = arith.addf %300, %303 : vector<8x16xf32>
      %305 = arith.truncf %304 : vector<8x16xf32> to vector<8x16xbf16>
      %c0_198 = arith.constant 0 : index
      %c0_199 = arith.constant 0 : index
      %c0_200 = arith.constant 0 : index
      %306 = vector.load %arg16[%c0_198, %c0_199, %c0_200] : memref<8x8x16xbf16, #tpu.memory_space<vmem>>, vector<1x8x16xbf16>
      %307 = vector.shape_cast %306 : vector<1x8x16xbf16> to vector<8x16xbf16>
      %308 = vector.shape_cast %305 : vector<8x16xbf16> to vector<1x8x16xbf16>
      tpu.vector_store %arg16[%c0_198, %c0_199, %c0_200], %308 {strides = array<i32>} : memref<8x8x16xbf16, #tpu.memory_space<vmem>>, vector<1x8x16xbf16>,
      %c0_201 = arith.constant 0 : index
      %c0_202 = arith.constant 0 : index
      %c0_203 = arith.constant 0 : index
      %309 = vector.load %arg9[%c0_201, %c0_202, %c0_203] : memref<8x128x16xbf16, #tpu.memory_space<vmem>>, vector<1x128x16xbf16>
      %310 = vector.shape_cast %309 : vector<1x128x16xbf16> to vector<128x16xbf16>
      %cst_204 = arith.constant dense<0.000000e+00> : vector<8x16xf32>
      %311 = tpu.matmul %297, %310, %cst_204 {dimension_numbers = #tpu.dot_dimension_numbers<[1], [0], [0], [1], [0, 0, 1, 1], [], []>} : vector<8x128xbf16>, vector<128x16xbf16>, vector<8x16xf32> -> vector<8x16xf32>
      %c0_205 = arith.constant 0 : index
      %c0_206 = arith.constant 0 : index
      %c0_207 = arith.constant 0 : index
      %312 = vector.load %arg10[%c0_205, %c0_206, %c0_207] : memref<8x1x16xf32, #tpu.memory_space<vmem>>, vector<1x1x16xf32>
      %313 = vector.shape_cast %312 : vector<1x1x16xf32> to vector<1x16xf32>
      %314 = vector.broadcast %313 : vector<1x16xf32> to vector<8x16xf32>
      %315 = arith.addf %311, %314 : vector<8x16xf32>
      %316 = arith.truncf %315 : vector<8x16xf32> to vector<8x16xbf16>
      %c0_208 = arith.constant 0 : index
      %c0_209 = arith.constant 0 : index
      %c0_210 = arith.constant 0 : index
      %317 = vector.load %arg17[%c0_208, %c0_209, %c0_210] : memref<8x8x16xbf16, #tpu.memory_space<vmem>>, vector<1x8x16xbf16>
      %318 = vector.shape_cast %317 : vector<1x8x16xbf16> to vector<8x16xbf16>
      %319 = vector.shape_cast %316 : vector<8x16xbf16> to vector<1x8x16xbf16>
      tpu.vector_store %arg17[%c0_208, %c0_209, %c0_210], %319 {strides = array<i32>} : memref<8x8x16xbf16, #tpu.memory_space<vmem>>, vector<1x8x16xbf16>,
      %c1_211 = arith.constant 1 : index
      %c0_212 = arith.constant 0 : index
      %c0_213 = arith.constant 0 : index
      %320 = vector.load %arg7[%c1_211, %c0_212, %c0_213] : memref<8x128x16xbf16, #tpu.memory_space<vmem>>, vector<1x128x16xbf16>
      %321 = vector.shape_cast %320 : vector<1x128x16xbf16> to vector<128x16xbf16>
      %cst_214 = arith.constant dense<0.000000e+00> : vector<8x16xf32>
      %322 = tpu.matmul %294, %321, %cst_214 {dimension_numbers = #tpu.dot_dimension_numbers<[1], [0], [0], [1], [0, 0, 1, 1], [], []>} : vector<8x128xbf16>, vector<128x16xbf16>, vector<8x16xf32> -> vector<8x16xf32>
      %c1_215 = arith.constant 1 : index
      %c0_216 = arith.constant 0 : index
      %c0_217 = arith.constant 0 : index
      %323 = vector.load %arg8[%c1_215, %c0_216, %c0_217] : memref<8x1x16xf32, #tpu.memory_space<vmem>>, vector<1x1x16xf32>
      %324 = vector.shape_cast %323 : vector<1x1x16xf32> to vector<1x16xf32>
      %325 = vector.broadcast %324 : vector<1x16xf32> to vector<8x16xf32>
      %326 = arith.addf %322, %325 : vector<8x16xf32>
      %327 = arith.truncf %326 : vector<8x16xf32> to vector<8x16xbf16>
      %c1_218 = arith.constant 1 : index
      %c0_219 = arith.constant 0 : index
      %c0_220 = arith.constant 0 : index
      %328 = vector.load %arg16[%c1_218, %c0_219, %c0_220] : memref<8x8x16xbf16, #tpu.memory_space<vmem>>, vector<1x8x16xbf16>
      %329 = vector.shape_cast %328 : vector<1x8x16xbf16> to vector<8x16xbf16>
      %330 = vector.shape_cast %327 : vector<8x16xbf16> to vector<1x8x16xbf16>
      tpu.vector_store %arg16[%c1_218, %c0_219, %c0_220], %330 {strides = array<i32>} : memref<8x8x16xbf16, #tpu.memory_space<vmem>>, vector<1x8x16xbf16>,
      %c1_221 = arith.constant 1 : index
      %c0_222 = arith.constant 0 : index
      %c0_223 = arith.constant 0 : index
      %331 = vector.load %arg9[%c1_221, %c0_222, %c0_223] : memref<8x128x16xbf16, #tpu.memory_space<vmem>>, vector<1x128x16xbf16>
      %332 = vector.shape_cast %331 : vector<1x128x16xbf16> to vector<128x16xbf16>
      %cst_224 = arith.constant dense<0.000000e+00> : vector<8x16xf32>
      %333 = tpu.matmul %297, %332, %cst_224 {dimension_numbers = #tpu.dot_dimension_numbers<[1], [0], [0], [1], [0, 0, 1, 1], [], []>} : vector<8x128xbf16>, vector<128x16xbf16>, vector<8x16xf32> -> vector<8x16xf32>
      %c1_225 = arith.constant 1 : index
      %c0_226 = arith.constant 0 : index
      %c0_227 = arith.constant 0 : index
      %334 = vector.load %arg10[%c1_225, %c0_226, %c0_227] : memref<8x1x16xf32, #tpu.memory_space<vmem>>, vector<1x1x16xf32>
      %335 = vector.shape_cast %334 : vector<1x1x16xf32> to vector<1x16xf32>
      %336 = vector.broadcast %335 : vector<1x16xf32> to vector<8x16xf32>
      %337 = arith.addf %333, %336 : vector<8x16xf32>
      %338 = arith.truncf %337 : vector<8x16xf32> to vector<8x16xbf16>
      %c1_228 = arith.constant 1 : index
      %c0_229 = arith.constant 0 : index
      %c0_230 = arith.constant 0 : index
      %339 = vector.load %arg17[%c1_228, %c0_229, %c0_230] : memref<8x8x16xbf16, #tpu.memory_space<vmem>>, vector<1x8x16xbf16>
      %340 = vector.shape_cast %339 : vector<1x8x16xbf16> to vector<8x16xbf16>
      %341 = vector.shape_cast %338 : vector<8x16xbf16> to vector<1x8x16xbf16>
      tpu.vector_store %arg17[%c1_228, %c0_229, %c0_230], %341 {strides = array<i32>} : memref<8x8x16xbf16, #tpu.memory_space<vmem>>, vector<1x8x16xbf16>,
      %c2_231 = arith.constant 2 : index
      %c0_232 = arith.constant 0 : index
      %c0_233 = arith.constant 0 : index
      %342 = vector.load %arg7[%c2_231, %c0_232, %c0_233] : memref<8x128x16xbf16, #tpu.memory_space<vmem>>, vector<1x128x16xbf16>
      %343 = vector.shape_cast %342 : vector<1x128x16xbf16> to vector<128x16xbf16>
      %cst_234 = arith.constant dense<0.000000e+00> : vector<8x16xf32>
      %344 = tpu.matmul %294, %343, %cst_234 {dimension_numbers = #tpu.dot_dimension_numbers<[1], [0], [0], [1], [0, 0, 1, 1], [], []>} : vector<8x128xbf16>, vector<128x16xbf16>, vector<8x16xf32> -> vector<8x16xf32>
      %c2_235 = arith.constant 2 : index
      %c0_236 = arith.constant 0 : index
      %c0_237 = arith.constant 0 : index
      %345 = vector.load %arg8[%c2_235, %c0_236, %c0_237] : memref<8x1x16xf32, #tpu.memory_space<vmem>>, vector<1x1x16xf32>
      %346 = vector.shape_cast %345 : vector<1x1x16xf32> to vector<1x16xf32>
      %347 = vector.broadcast %346 : vector<1x16xf32> to vector<8x16xf32>
      %348 = arith.addf %344, %347 : vector<8x16xf32>
      %349 = arith.truncf %348 : vector<8x16xf32> to vector<8x16xbf16>
      %c2_238 = arith.constant 2 : index
      %c0_239 = arith.constant 0 : index
      %c0_240 = arith.constant 0 : index
      %350 = vector.load %arg16[%c2_238, %c0_239, %c0_240] : memref<8x8x16xbf16, #tpu.memory_space<vmem>>, vector<1x8x16xbf16>
      %351 = vector.shape_cast %350 : vector<1x8x16xbf16> to vector<8x16xbf16>
      %352 = vector.shape_cast %349 : vector<8x16xbf16> to vector<1x8x16xbf16>
      tpu.vector_store %arg16[%c2_238, %c0_239, %c0_240], %352 {strides = array<i32>} : memref<8x8x16xbf16, #tpu.memory_space<vmem>>, vector<1x8x16xbf16>,
      %c2_241 = arith.constant 2 : index
      %c0_242 = arith.constant 0 : index
      %c0_243 = arith.constant 0 : index
      %353 = vector.load %arg9[%c2_241, %c0_242, %c0_243] : memref<8x128x16xbf16, #tpu.memory_space<vmem>>, vector<1x128x16xbf16>
      %354 = vector.shape_cast %353 : vector<1x128x16xbf16> to vector<128x16xbf16>
      %cst_244 = arith.constant dense<0.000000e+00> : vector<8x16xf32>
      %355 = tpu.matmul %297, %354, %cst_244 {dimension_numbers = #tpu.dot_dimension_numbers<[1], [0], [0], [1], [0, 0, 1, 1], [], []>} : vector<8x128xbf16>, vector<128x16xbf16>, vector<8x16xf32> -> vector<8x16xf32>
      %c2_245 = arith.constant 2 : index
      %c0_246 = arith.constant 0 : index
      %c0_247 = arith.constant 0 : index
      %356 = vector.load %arg10[%c2_245, %c0_246, %c0_247] : memref<8x1x16xf32, #tpu.memory_space<vmem>>, vector<1x1x16xf32>
      %357 = vector.shape_cast %356 : vector<1x1x16xf32> to vector<1x16xf32>
      %358 = vector.broadcast %357 : vector<1x16xf32> to vector<8x16xf32>
      %359 = arith.addf %355, %358 : vector<8x16xf32>
      %360 = arith.truncf %359 : vector<8x16xf32> to vector<8x16xbf16>
      %c2_248 = arith.constant 2 : index
      %c0_249 = arith.constant 0 : index
      %c0_250 = arith.constant 0 : index
      %361 = vector.load %arg17[%c2_248, %c0_249, %c0_250] : memref<8x8x16xbf16, #tpu.memory_space<vmem>>, vector<1x8x16xbf16>
      %362 = vector.shape_cast %361 : vector<1x8x16xbf16> to vector<8x16xbf16>
      %363 = vector.shape_cast %360 : vector<8x16xbf16> to vector<1x8x16xbf16>
      tpu.vector_store %arg17[%c2_248, %c0_249, %c0_250], %363 {strides = array<i32>} : memref<8x8x16xbf16, #tpu.memory_space<vmem>>, vector<1x8x16xbf16>,
      %c3_251 = arith.constant 3 : index
      %c0_252 = arith.constant 0 : index
      %c0_253 = arith.constant 0 : index
      %364 = vector.load %arg7[%c3_251, %c0_252, %c0_253] : memref<8x128x16xbf16, #tpu.memory_space<vmem>>, vector<1x128x16xbf16>
      %365 = vector.shape_cast %364 : vector<1x128x16xbf16> to vector<128x16xbf16>
      %cst_254 = arith.constant dense<0.000000e+00> : vector<8x16xf32>
      %366 = tpu.matmul %294, %365, %cst_254 {dimension_numbers = #tpu.dot_dimension_numbers<[1], [0], [0], [1], [0, 0, 1, 1], [], []>} : vector<8x128xbf16>, vector<128x16xbf16>, vector<8x16xf32> -> vector<8x16xf32>
      %c3_255 = arith.constant 3 : index
      %c0_256 = arith.constant 0 : index
      %c0_257 = arith.constant 0 : index
      %367 = vector.load %arg8[%c3_255, %c0_256, %c0_257] : memref<8x1x16xf32, #tpu.memory_space<vmem>>, vector<1x1x16xf32>
      %368 = vector.shape_cast %367 : vector<1x1x16xf32> to vector<1x16xf32>
      %369 = vector.broadcast %368 : vector<1x16xf32> to vector<8x16xf32>
      %370 = arith.addf %366, %369 : vector<8x16xf32>
      %371 = arith.truncf %370 : vector<8x16xf32> to vector<8x16xbf16>
      %c3_258 = arith.constant 3 : index
      %c0_259 = arith.constant 0 : index
      %c0_260 = arith.constant 0 : index
      %372 = vector.load %arg16[%c3_258, %c0_259, %c0_260] : memref<8x8x16xbf16, #tpu.memory_space<vmem>>, vector<1x8x16xbf16>
      %373 = vector.shape_cast %372 : vector<1x8x16xbf16> to vector<8x16xbf16>
      %374 = vector.shape_cast %371 : vector<8x16xbf16> to vector<1x8x16xbf16>
      tpu.vector_store %arg16[%c3_258, %c0_259, %c0_260], %374 {strides = array<i32>} : memref<8x8x16xbf16, #tpu.memory_space<vmem>>, vector<1x8x16xbf16>,
      %c3_261 = arith.constant 3 : index
      %c0_262 = arith.constant 0 : index
      %c0_263 = arith.constant 0 : index
      %375 = vector.load %arg9[%c3_261, %c0_262, %c0_263] : memref<8x128x16xbf16, #tpu.memory_space<vmem>>, vector<1x128x16xbf16>
      %376 = vector.shape_cast %375 : vector<1x128x16xbf16> to vector<128x16xbf16>
      %cst_264 = arith.constant dense<0.000000e+00> : vector<8x16xf32>
      %377 = tpu.matmul %297, %376, %cst_264 {dimension_numbers = #tpu.dot_dimension_numbers<[1], [0], [0], [1], [0, 0, 1, 1], [], []>} : vector<8x128xbf16>, vector<128x16xbf16>, vector<8x16xf32> -> vector<8x16xf32>
      %c3_265 = arith.constant 3 : index
      %c0_266 = arith.constant 0 : index
      %c0_267 = arith.constant 0 : index
      %378 = vector.load %arg10[%c3_265, %c0_266, %c0_267] : memref<8x1x16xf32, #tpu.memory_space<vmem>>, vector<1x1x16xf32>
      %379 = vector.shape_cast %378 : vector<1x1x16xf32> to vector<1x16xf32>
      %380 = vector.broadcast %379 : vector<1x16xf32> to vector<8x16xf32>
      %381 = arith.addf %377, %380 : vector<8x16xf32>
      %382 = arith.truncf %381 : vector<8x16xf32> to vector<8x16xbf16>
      %c3_268 = arith.constant 3 : index
      %c0_269 = arith.constant 0 : index
      %c0_270 = arith.constant 0 : index
      %383 = vector.load %arg17[%c3_268, %c0_269, %c0_270] : memref<8x8x16xbf16, #tpu.memory_space<vmem>>, vector<1x8x16xbf16>
      %384 = vector.shape_cast %383 : vector<1x8x16xbf16> to vector<8x16xbf16>
      %385 = vector.shape_cast %382 : vector<8x16xbf16> to vector<1x8x16xbf16>
      tpu.vector_store %arg17[%c3_268, %c0_269, %c0_270], %385 {strides = array<i32>} : memref<8x8x16xbf16, #tpu.memory_space<vmem>>, vector<1x8x16xbf16>,
      %c4_271 = arith.constant 4 : index
      %c0_272 = arith.constant 0 : index
      %c0_273 = arith.constant 0 : index
      %386 = vector.load %arg7[%c4_271, %c0_272, %c0_273] : memref<8x128x16xbf16, #tpu.memory_space<vmem>>, vector<1x128x16xbf16>
      %387 = vector.shape_cast %386 : vector<1x128x16xbf16> to vector<128x16xbf16>
      %cst_274 = arith.constant dense<0.000000e+00> : vector<8x16xf32>
      %388 = tpu.matmul %294, %387, %cst_274 {dimension_numbers = #tpu.dot_dimension_numbers<[1], [0], [0], [1], [0, 0, 1, 1], [], []>} : vector<8x128xbf16>, vector<128x16xbf16>, vector<8x16xf32> -> vector<8x16xf32>
      %c4_275 = arith.constant 4 : index
      %c0_276 = arith.constant 0 : index
      %c0_277 = arith.constant 0 : index
      %389 = vector.load %arg8[%c4_275, %c0_276, %c0_277] : memref<8x1x16xf32, #tpu.memory_space<vmem>>, vector<1x1x16xf32>
      %390 = vector.shape_cast %389 : vector<1x1x16xf32> to vector<1x16xf32>
      %391 = vector.broadcast %390 : vector<1x16xf32> to vector<8x16xf32>
      %392 = arith.addf %388, %391 : vector<8x16xf32>
      %393 = arith.truncf %392 : vector<8x16xf32> to vector<8x16xbf16>
      %c4_278 = arith.constant 4 : index
      %c0_279 = arith.constant 0 : index
      %c0_280 = arith.constant 0 : index
      %394 = vector.load %arg16[%c4_278, %c0_279, %c0_280] : memref<8x8x16xbf16, #tpu.memory_space<vmem>>, vector<1x8x16xbf16>
      %395 = vector.shape_cast %394 : vector<1x8x16xbf16> to vector<8x16xbf16>
      %396 = vector.shape_cast %393 : vector<8x16xbf16> to vector<1x8x16xbf16>
      tpu.vector_store %arg16[%c4_278, %c0_279, %c0_280], %396 {strides = array<i32>} : memref<8x8x16xbf16, #tpu.memory_space<vmem>>, vector<1x8x16xbf16>,
      %c4_281 = arith.constant 4 : index
      %c0_282 = arith.constant 0 : index
      %c0_283 = arith.constant 0 : index
      %397 = vector.load %arg9[%c4_281, %c0_282, %c0_283] : memref<8x128x16xbf16, #tpu.memory_space<vmem>>, vector<1x128x16xbf16>
      %398 = vector.shape_cast %397 : vector<1x128x16xbf16> to vector<128x16xbf16>
      %cst_284 = arith.constant dense<0.000000e+00> : vector<8x16xf32>
      %399 = tpu.matmul %297, %398, %cst_284 {dimension_numbers = #tpu.dot_dimension_numbers<[1], [0], [0], [1], [0, 0, 1, 1], [], []>} : vector<8x128xbf16>, vector<128x16xbf16>, vector<8x16xf32> -> vector<8x16xf32>
      %c4_285 = arith.constant 4 : index
      %c0_286 = arith.constant 0 : index
      %c0_287 = arith.constant 0 : index
      %400 = vector.load %arg10[%c4_285, %c0_286, %c0_287] : memref<8x1x16xf32, #tpu.memory_space<vmem>>, vector<1x1x16xf32>
      %401 = vector.shape_cast %400 : vector<1x1x16xf32> to vector<1x16xf32>
      %402 = vector.broadcast %401 : vector<1x16xf32> to vector<8x16xf32>
      %403 = arith.addf %399, %402 : vector<8x16xf32>
      %404 = arith.truncf %403 : vector<8x16xf32> to vector<8x16xbf16>
      %c4_288 = arith.constant 4 : index
      %c0_289 = arith.constant 0 : index
      %c0_290 = arith.constant 0 : index
      %405 = vector.load %arg17[%c4_288, %c0_289, %c0_290] : memref<8x8x16xbf16, #tpu.memory_space<vmem>>, vector<1x8x16xbf16>
      %406 = vector.shape_cast %405 : vector<1x8x16xbf16> to vector<8x16xbf16>
      %407 = vector.shape_cast %404 : vector<8x16xbf16> to vector<1x8x16xbf16>
      tpu.vector_store %arg17[%c4_288, %c0_289, %c0_290], %407 {strides = array<i32>} : memref<8x8x16xbf16, #tpu.memory_space<vmem>>, vector<1x8x16xbf16>,
      %c5_291 = arith.constant 5 : index
      %c0_292 = arith.constant 0 : index
      %c0_293 = arith.constant 0 : index
      %408 = vector.load %arg7[%c5_291, %c0_292, %c0_293] : memref<8x128x16xbf16, #tpu.memory_space<vmem>>, vector<1x128x16xbf16>
      %409 = vector.shape_cast %408 : vector<1x128x16xbf16> to vector<128x16xbf16>
      %cst_294 = arith.constant dense<0.000000e+00> : vector<8x16xf32>
      %410 = tpu.matmul %294, %409, %cst_294 {dimension_numbers = #tpu.dot_dimension_numbers<[1], [0], [0], [1], [0, 0, 1, 1], [], []>} : vector<8x128xbf16>, vector<128x16xbf16>, vector<8x16xf32> -> vector<8x16xf32>
      %c5_295 = arith.constant 5 : index
      %c0_296 = arith.constant 0 : index
      %c0_297 = arith.constant 0 : index
      %411 = vector.load %arg8[%c5_295, %c0_296, %c0_297] : memref<8x1x16xf32, #tpu.memory_space<vmem>>, vector<1x1x16xf32>
      %412 = vector.shape_cast %411 : vector<1x1x16xf32> to vector<1x16xf32>
      %413 = vector.broadcast %412 : vector<1x16xf32> to vector<8x16xf32>
      %414 = arith.addf %410, %413 : vector<8x16xf32>
      %415 = arith.truncf %414 : vector<8x16xf32> to vector<8x16xbf16>
      %c5_298 = arith.constant 5 : index
      %c0_299 = arith.constant 0 : index
      %c0_300 = arith.constant 0 : index
      %416 = vector.load %arg16[%c5_298, %c0_299, %c0_300] : memref<8x8x16xbf16, #tpu.memory_space<vmem>>, vector<1x8x16xbf16>
      %417 = vector.shape_cast %416 : vector<1x8x16xbf16> to vector<8x16xbf16>
      %418 = vector.shape_cast %415 : vector<8x16xbf16> to vector<1x8x16xbf16>
      tpu.vector_store %arg16[%c5_298, %c0_299, %c0_300], %418 {strides = array<i32>} : memref<8x8x16xbf16, #tpu.memory_space<vmem>>, vector<1x8x16xbf16>,
      %c5_301 = arith.constant 5 : index
      %c0_302 = arith.constant 0 : index
      %c0_303 = arith.constant 0 : index
      %419 = vector.load %arg9[%c5_301, %c0_302, %c0_303] : memref<8x128x16xbf16, #tpu.memory_space<vmem>>, vector<1x128x16xbf16>
      %420 = vector.shape_cast %419 : vector<1x128x16xbf16> to vector<128x16xbf16>
      %cst_304 = arith.constant dense<0.000000e+00> : vector<8x16xf32>
      %421 = tpu.matmul %297, %420, %cst_304 {dimension_numbers = #tpu.dot_dimension_numbers<[1], [0], [0], [1], [0, 0, 1, 1], [], []>} : vector<8x128xbf16>, vector<128x16xbf16>, vector<8x16xf32> -> vector<8x16xf32>
      %c5_305 = arith.constant 5 : index
      %c0_306 = arith.constant 0 : index
      %c0_307 = arith.constant 0 : index
      %422 = vector.load %arg10[%c5_305, %c0_306, %c0_307] : memref<8x1x16xf32, #tpu.memory_space<vmem>>, vector<1x1x16xf32>
      %423 = vector.shape_cast %422 : vector<1x1x16xf32> to vector<1x16xf32>
      %424 = vector.broadcast %423 : vector<1x16xf32> to vector<8x16xf32>
      %425 = arith.addf %421, %424 : vector<8x16xf32>
      %426 = arith.truncf %425 : vector<8x16xf32> to vector<8x16xbf16>
      %c5_308 = arith.constant 5 : index
      %c0_309 = arith.constant 0 : index
      %c0_310 = arith.constant 0 : index
      %427 = vector.load %arg17[%c5_308, %c0_309, %c0_310] : memref<8x8x16xbf16, #tpu.memory_space<vmem>>, vector<1x8x16xbf16>
      %428 = vector.shape_cast %427 : vector<1x8x16xbf16> to vector<8x16xbf16>
      %429 = vector.shape_cast %426 : vector<8x16xbf16> to vector<1x8x16xbf16>
      tpu.vector_store %arg17[%c5_308, %c0_309, %c0_310], %429 {strides = array<i32>} : memref<8x8x16xbf16, #tpu.memory_space<vmem>>, vector<1x8x16xbf16>,
      %c6_311 = arith.constant 6 : index
      %c0_312 = arith.constant 0 : index
      %c0_313 = arith.constant 0 : index
      %430 = vector.load %arg7[%c6_311, %c0_312, %c0_313] : memref<8x128x16xbf16, #tpu.memory_space<vmem>>, vector<1x128x16xbf16>
      %431 = vector.shape_cast %430 : vector<1x128x16xbf16> to vector<128x16xbf16>
      %cst_314 = arith.constant dense<0.000000e+00> : vector<8x16xf32>
      %432 = tpu.matmul %294, %431, %cst_314 {dimension_numbers = #tpu.dot_dimension_numbers<[1], [0], [0], [1], [0, 0, 1, 1], [], []>} : vector<8x128xbf16>, vector<128x16xbf16>, vector<8x16xf32> -> vector<8x16xf32>
      %c6_315 = arith.constant 6 : index
      %c0_316 = arith.constant 0 : index
      %c0_317 = arith.constant 0 : index
      %433 = vector.load %arg8[%c6_315, %c0_316, %c0_317] : memref<8x1x16xf32, #tpu.memory_space<vmem>>, vector<1x1x16xf32>
      %434 = vector.shape_cast %433 : vector<1x1x16xf32> to vector<1x16xf32>
      %435 = vector.broadcast %434 : vector<1x16xf32> to vector<8x16xf32>
      %436 = arith.addf %432, %435 : vector<8x16xf32>
      %437 = arith.truncf %436 : vector<8x16xf32> to vector<8x16xbf16>
      %c6_318 = arith.constant 6 : index
      %c0_319 = arith.constant 0 : index
      %c0_320 = arith.constant 0 : index
      %438 = vector.load %arg16[%c6_318, %c0_319, %c0_320] : memref<8x8x16xbf16, #tpu.memory_space<vmem>>, vector<1x8x16xbf16>
      %439 = vector.shape_cast %438 : vector<1x8x16xbf16> to vector<8x16xbf16>
      %440 = vector.shape_cast %437 : vector<8x16xbf16> to vector<1x8x16xbf16>
      tpu.vector_store %arg16[%c6_318, %c0_319, %c0_320], %440 {strides = array<i32>} : memref<8x8x16xbf16, #tpu.memory_space<vmem>>, vector<1x8x16xbf16>,
      %c6_321 = arith.constant 6 : index
      %c0_322 = arith.constant 0 : index
      %c0_323 = arith.constant 0 : index
      %441 = vector.load %arg9[%c6_321, %c0_322, %c0_323] : memref<8x128x16xbf16, #tpu.memory_space<vmem>>, vector<1x128x16xbf16>
      %442 = vector.shape_cast %441 : vector<1x128x16xbf16> to vector<128x16xbf16>
      %cst_324 = arith.constant dense<0.000000e+00> : vector<8x16xf32>
      %443 = tpu.matmul %297, %442, %cst_324 {dimension_numbers = #tpu.dot_dimension_numbers<[1], [0], [0], [1], [0, 0, 1, 1], [], []>} : vector<8x128xbf16>, vector<128x16xbf16>, vector<8x16xf32> -> vector<8x16xf32>
      %c6_325 = arith.constant 6 : index
      %c0_326 = arith.constant 0 : index
      %c0_327 = arith.constant 0 : index
      %444 = vector.load %arg10[%c6_325, %c0_326, %c0_327] : memref<8x1x16xf32, #tpu.memory_space<vmem>>, vector<1x1x16xf32>
      %445 = vector.shape_cast %444 : vector<1x1x16xf32> to vector<1x16xf32>
      %446 = vector.broadcast %445 : vector<1x16xf32> to vector<8x16xf32>
      %447 = arith.addf %443, %446 : vector<8x16xf32>
      %448 = arith.truncf %447 : vector<8x16xf32> to vector<8x16xbf16>
      %c6_328 = arith.constant 6 : index
      %c0_329 = arith.constant 0 : index
      %c0_330 = arith.constant 0 : index
      %449 = vector.load %arg17[%c6_328, %c0_329, %c0_330] : memref<8x8x16xbf16, #tpu.memory_space<vmem>>, vector<1x8x16xbf16>
      %450 = vector.shape_cast %449 : vector<1x8x16xbf16> to vector<8x16xbf16>
      %451 = vector.shape_cast %448 : vector<8x16xbf16> to vector<1x8x16xbf16>
      tpu.vector_store %arg17[%c6_328, %c0_329, %c0_330], %451 {strides = array<i32>} : memref<8x8x16xbf16, #tpu.memory_space<vmem>>, vector<1x8x16xbf16>,
      %c7_331 = arith.constant 7 : index
      %c0_332 = arith.constant 0 : index
      %c0_333 = arith.constant 0 : index
      %452 = vector.load %arg7[%c7_331, %c0_332, %c0_333] : memref<8x128x16xbf16, #tpu.memory_space<vmem>>, vector<1x128x16xbf16>
      %453 = vector.shape_cast %452 : vector<1x128x16xbf16> to vector<128x16xbf16>
      %cst_334 = arith.constant dense<0.000000e+00> : vector<8x16xf32>
      %454 = tpu.matmul %294, %453, %cst_334 {dimension_numbers = #tpu.dot_dimension_numbers<[1], [0], [0], [1], [0, 0, 1, 1], [], []>} : vector<8x128xbf16>, vector<128x16xbf16>, vector<8x16xf32> -> vector<8x16xf32>
      %c7_335 = arith.constant 7 : index
      %c0_336 = arith.constant 0 : index
      %c0_337 = arith.constant 0 : index
      %455 = vector.load %arg8[%c7_335, %c0_336, %c0_337] : memref<8x1x16xf32, #tpu.memory_space<vmem>>, vector<1x1x16xf32>
      %456 = vector.shape_cast %455 : vector<1x1x16xf32> to vector<1x16xf32>
      %457 = vector.broadcast %456 : vector<1x16xf32> to vector<8x16xf32>
      %458 = arith.addf %454, %457 : vector<8x16xf32>
      %459 = arith.truncf %458 : vector<8x16xf32> to vector<8x16xbf16>
      %c7_338 = arith.constant 7 : index
      %c0_339 = arith.constant 0 : index
      %c0_340 = arith.constant 0 : index
      %460 = vector.load %arg16[%c7_338, %c0_339, %c0_340] : memref<8x8x16xbf16, #tpu.memory_space<vmem>>, vector<1x8x16xbf16>
      %461 = vector.shape_cast %460 : vector<1x8x16xbf16> to vector<8x16xbf16>
      %462 = vector.shape_cast %459 : vector<8x16xbf16> to vector<1x8x16xbf16>
      tpu.vector_store %arg16[%c7_338, %c0_339, %c0_340], %462 {strides = array<i32>} : memref<8x8x16xbf16, #tpu.memory_space<vmem>>, vector<1x8x16xbf16>,
      %c7_341 = arith.constant 7 : index
      %c0_342 = arith.constant 0 : index
      %c0_343 = arith.constant 0 : index
      %463 = vector.load %arg9[%c7_341, %c0_342, %c0_343] : memref<8x128x16xbf16, #tpu.memory_space<vmem>>, vector<1x128x16xbf16>
      %464 = vector.shape_cast %463 : vector<1x128x16xbf16> to vector<128x16xbf16>
      %cst_344 = arith.constant dense<0.000000e+00> : vector<8x16xf32>
      %465 = tpu.matmul %297, %464, %cst_344 {dimension_numbers = #tpu.dot_dimension_numbers<[1], [0], [0], [1], [0, 0, 1, 1], [], []>} : vector<8x128xbf16>, vector<128x16xbf16>, vector<8x16xf32> -> vector<8x16xf32>
      %c7_345 = arith.constant 7 : index
      %c0_346 = arith.constant 0 : index
      %c0_347 = arith.constant 0 : index
      %466 = vector.load %arg10[%c7_345, %c0_346, %c0_347] : memref<8x1x16xf32, #tpu.memory_space<vmem>>, vector<1x1x16xf32>
      %467 = vector.shape_cast %466 : vector<1x1x16xf32> to vector<1x16xf32>
      %468 = vector.broadcast %467 : vector<1x16xf32> to vector<8x16xf32>
      %469 = arith.addf %465, %468 : vector<8x16xf32>
      %470 = arith.truncf %469 : vector<8x16xf32> to vector<8x16xbf16>
      %c7_348 = arith.constant 7 : index
      %c0_349 = arith.constant 0 : index
      %c0_350 = arith.constant 0 : index
      %471 = vector.load %arg17[%c7_348, %c0_349, %c0_350] : memref<8x8x16xbf16, #tpu.memory_space<vmem>>, vector<1x8x16xbf16>
      %472 = vector.shape_cast %471 : vector<1x8x16xbf16> to vector<8x16xbf16>
      %473 = vector.shape_cast %470 : vector<8x16xbf16> to vector<1x8x16xbf16>
      tpu.vector_store %arg17[%c7_348, %c0_349, %c0_350], %473 {strides = array<i32>} : memref<8x8x16xbf16, #tpu.memory_space<vmem>>, vector<1x8x16xbf16>,
    } else {
    }
    %c0 = arith.constant 0 : index
    %c0_1 = arith.constant 0 : index
    %c0_2 = arith.constant 0 : index
    %3 = vector.load %arg2[%c0, %c0_1, %c0_2] : memref<1x8x128xf32, #tpu.memory_space<vmem>>, vector<1x8x128xf32>
    %4 = vector.shape_cast %3 : vector<1x8x128xf32> to vector<8x128xf32>
    %5 = arith.truncf %4 : vector<8x128xf32> to vector<8x128xbf16>
    %c0_3 = arith.constant 0 : index
    %c0_4 = arith.constant 0 : index
    %6 = vector.load %arg12[%c0_3, %c0_4] : memref<1x128xf32, #tpu.memory_space<vmem>>, vector<1x128xf32>
    %7 = vector.broadcast %6 : vector<1x128xf32> to vector<8x128xf32>
    %8 = arith.addf %4, %7 : vector<8x128xf32>
    %c0_5 = arith.constant 0 : index
    %c0_6 = arith.constant 0 : index
    %c0_7 = arith.constant 0 : index
    %9 = vector.load %arg5[%c0_5, %c0_6, %c0_7] : memref<8x128x16xbf16, #tpu.memory_space<vmem>>, vector<1x128x16xbf16>
    %10 = vector.shape_cast %9 : vector<1x128x16xbf16> to vector<128x16xbf16>
    %cst = arith.constant dense<0.000000e+00> : vector<8x16xf32>
    %11 = tpu.matmul %5, %10, %cst {dimension_numbers = #tpu.dot_dimension_numbers<[1], [0], [0], [1], [0, 0, 1, 1], [], []>} : vector<8x128xbf16>, vector<128x16xbf16>, vector<8x16xf32> -> vector<8x16xf32>
    %c0_8 = arith.constant 0 : index
    %c0_9 = arith.constant 0 : index
    %c0_10 = arith.constant 0 : index
    %12 = vector.load %arg6[%c0_8, %c0_9, %c0_10] : memref<8x1x16xf32, #tpu.memory_space<vmem>>, vector<1x1x16xf32>
    %13 = vector.shape_cast %12 : vector<1x1x16xf32> to vector<1x16xf32>
    %14 = vector.broadcast %13 : vector<1x16xf32> to vector<8x16xf32>
    %15 = arith.addf %11, %14 : vector<8x16xf32>
    %cst_11 = arith.constant 2.500000e-01 : f32
    %16 = vector.broadcast %cst_11 : f32 to vector<8x16xf32>
    %17 = arith.mulf %15, %16 : vector<8x16xf32>
    %c0_12 = arith.constant 0 : index
    %c0_13 = arith.constant 0 : index
    %c0_14 = arith.constant 0 : index
    %18 = vector.load %arg16[%c0_12, %c0_13, %c0_14] : memref<8x8x16xbf16, #tpu.memory_space<vmem>>, vector<1x8x16xbf16>
    %19 = vector.shape_cast %18 : vector<1x8x16xbf16> to vector<8x16xbf16>
    %c0_15 = arith.constant 0 : index
    %c0_16 = arith.constant 0 : index
    %c0_17 = arith.constant 0 : index
    %20 = vector.load %arg17[%c0_15, %c0_16, %c0_17] : memref<8x8x16xbf16, #tpu.memory_space<vmem>>, vector<1x8x16xbf16>
    %21 = vector.shape_cast %20 : vector<1x8x16xbf16> to vector<8x16xbf16>
    %22 = arith.truncf %17 : vector<8x16xf32> to vector<8x16xbf16>
    %cst_18 = arith.constant dense<0.000000e+00> : vector<8x8xf32>
    %23 = tpu.matmul %22, %19, %cst_18 {dimension_numbers = #tpu.dot_dimension_numbers<[1], [1], [0], [0], [0, 0, 1, 0], [], []>} : vector<8x16xbf16>, vector<8x16xbf16>, vector<8x8xf32> -> vector<8x8xf32>
    %cst_19 = arith.constant dense<0xFF800000> : vector<8xf32>
    %24 = vector.multi_reduction <maximumf>, %23, %cst_19 [1] : vector<8x8xf32> to vector<8xf32>
    %25 = vector.shape_cast %24 : vector<8xf32> to vector<8x1xf32>
    %26 = vector.broadcast %25 : vector<8x1xf32> to vector<8x8xf32>
    %27 = arith.subf %23, %26 : vector<8x8xf32>
    %28 = math.exp %27 : vector<8x8xf32>
    %cst_20 = arith.constant dense<0.000000e+00> : vector<8xf32>
    %29 = vector.multi_reduction <add>, %28, %cst_20 [1] : vector<8x8xf32> to vector<8xf32>
    %30 = vector.shape_cast %29 : vector<8xf32> to vector<8x1xf32>
    %31 = tpu.reciprocal %30 {approx = true} : vector<8x1xf32> -> vector<8x1xf32>
    %32 = vector.broadcast %31 : vector<8x1xf32> to vector<8x8xf32>
    %33 = arith.mulf %28, %32 : vector<8x8xf32>
    %34 = arith.truncf %33 : vector<8x8xf32> to vector<8x8xbf16>
    %cst_21 = arith.constant dense<0.000000e+00> : vector<8x16xf32>
    %35 = tpu.matmul %34, %21, %cst_21 {dimension_numbers = #tpu.dot_dimension_numbers<[1], [0], [0], [1], [0, 0, 1, 1], [], []>} : vector<8x8xbf16>, vector<8x16xbf16>, vector<8x16xf32> -> vector<8x16xf32>
    %36 = arith.truncf %35 : vector<8x16xf32> to vector<8x16xbf16>
    %c0_22 = arith.constant 0 : index
    %c0_23 = arith.constant 0 : index
    %c0_24 = arith.constant 0 : index
    %37 = vector.load %arg11[%c0_22, %c0_23, %c0_24] : memref<8x16x128xbf16, #tpu.memory_space<vmem>>, vector<1x16x128xbf16>
    %38 = vector.shape_cast %37 : vector<1x16x128xbf16> to vector<16x128xbf16>
    %cst_25 = arith.constant dense<0.000000e+00> : vector<8x128xf32>
    %39 = tpu.matmul %36, %38, %cst_25 {dimension_numbers = #tpu.dot_dimension_numbers<[1], [0], [0], [1], [0, 0, 1, 1], [], []>} : vector<8x16xbf16>, vector<16x128xbf16>, vector<8x128xf32> -> vector<8x128xf32>
    %40 = arith.addf %8, %39 : vector<8x128xf32>
    %c1 = arith.constant 1 : index
    %c0_26 = arith.constant 0 : index
    %c0_27 = arith.constant 0 : index
    %41 = vector.load %arg5[%c1, %c0_26, %c0_27] : memref<8x128x16xbf16, #tpu.memory_space<vmem>>, vector<1x128x16xbf16>
    %42 = vector.shape_cast %41 : vector<1x128x16xbf16> to vector<128x16xbf16>
    %cst_28 = arith.constant dense<0.000000e+00> : vector<8x16xf32>
    %43 = tpu.matmul %5, %42, %cst_28 {dimension_numbers = #tpu.dot_dimension_numbers<[1], [0], [0], [1], [0, 0, 1, 1], [], []>} : vector<8x128xbf16>, vector<128x16xbf16>, vector<8x16xf32> -> vector<8x16xf32>
    %c1_29 = arith.constant 1 : index
    %c0_30 = arith.constant 0 : index
    %c0_31 = arith.constant 0 : index
    %44 = vector.load %arg6[%c1_29, %c0_30, %c0_31] : memref<8x1x16xf32, #tpu.memory_space<vmem>>, vector<1x1x16xf32>
    %45 = vector.shape_cast %44 : vector<1x1x16xf32> to vector<1x16xf32>
    %46 = vector.broadcast %45 : vector<1x16xf32> to vector<8x16xf32>
    %47 = arith.addf %43, %46 : vector<8x16xf32>
    %cst_32 = arith.constant 2.500000e-01 : f32
    %48 = vector.broadcast %cst_32 : f32 to vector<8x16xf32>
    %49 = arith.mulf %47, %48 : vector<8x16xf32>
    %c1_33 = arith.constant 1 : index
    %c0_34 = arith.constant 0 : index
    %c0_35 = arith.constant 0 : index
    %50 = vector.load %arg16[%c1_33, %c0_34, %c0_35] : memref<8x8x16xbf16, #tpu.memory_space<vmem>>, vector<1x8x16xbf16>
    %51 = vector.shape_cast %50 : vector<1x8x16xbf16> to vector<8x16xbf16>
    %c1_36 = arith.constant 1 : index
    %c0_37 = arith.constant 0 : index
    %c0_38 = arith.constant 0 : index
    %52 = vector.load %arg17[%c1_36, %c0_37, %c0_38] : memref<8x8x16xbf16, #tpu.memory_space<vmem>>, vector<1x8x16xbf16>
    %53 = vector.shape_cast %52 : vector<1x8x16xbf16> to vector<8x16xbf16>
    %54 = arith.truncf %49 : vector<8x16xf32> to vector<8x16xbf16>
    %cst_39 = arith.constant dense<0.000000e+00> : vector<8x8xf32>
    %55 = tpu.matmul %54, %51, %cst_39 {dimension_numbers = #tpu.dot_dimension_numbers<[1], [1], [0], [0], [0, 0, 1, 0], [], []>} : vector<8x16xbf16>, vector<8x16xbf16>, vector<8x8xf32> -> vector<8x8xf32>
    %cst_40 = arith.constant dense<0xFF800000> : vector<8xf32>
    %56 = vector.multi_reduction <maximumf>, %55, %cst_40 [1] : vector<8x8xf32> to vector<8xf32>
    %57 = vector.shape_cast %56 : vector<8xf32> to vector<8x1xf32>
    %58 = vector.broadcast %57 : vector<8x1xf32> to vector<8x8xf32>
    %59 = arith.subf %55, %58 : vector<8x8xf32>
    %60 = math.exp %59 : vector<8x8xf32>
    %cst_41 = arith.constant dense<0.000000e+00> : vector<8xf32>
    %61 = vector.multi_reduction <add>, %60, %cst_41 [1] : vector<8x8xf32> to vector<8xf32>
    %62 = vector.shape_cast %61 : vector<8xf32> to vector<8x1xf32>
    %63 = tpu.reciprocal %62 {approx = true} : vector<8x1xf32> -> vector<8x1xf32>
    %64 = vector.broadcast %63 : vector<8x1xf32> to vector<8x8xf32>
    %65 = arith.mulf %60, %64 : vector<8x8xf32>
    %66 = arith.truncf %65 : vector<8x8xf32> to vector<8x8xbf16>
    %cst_42 = arith.constant dense<0.000000e+00> : vector<8x16xf32>
    %67 = tpu.matmul %66, %53, %cst_42 {dimension_numbers = #tpu.dot_dimension_numbers<[1], [0], [0], [1], [0, 0, 1, 1], [], []>} : vector<8x8xbf16>, vector<8x16xbf16>, vector<8x16xf32> -> vector<8x16xf32>
    %68 = arith.truncf %67 : vector<8x16xf32> to vector<8x16xbf16>
    %c1_43 = arith.constant 1 : index
    %c0_44 = arith.constant 0 : index
    %c0_45 = arith.constant 0 : index
    %69 = vector.load %arg11[%c1_43, %c0_44, %c0_45] : memref<8x16x128xbf16, #tpu.memory_space<vmem>>, vector<1x16x128xbf16>
    %70 = vector.shape_cast %69 : vector<1x16x128xbf16> to vector<16x128xbf16>
    %cst_46 = arith.constant dense<0.000000e+00> : vector<8x128xf32>
    %71 = tpu.matmul %68, %70, %cst_46 {dimension_numbers = #tpu.dot_dimension_numbers<[1], [0], [0], [1], [0, 0, 1, 1], [], []>} : vector<8x16xbf16>, vector<16x128xbf16>, vector<8x128xf32> -> vector<8x128xf32>
    %72 = arith.addf %40, %71 : vector<8x128xf32>
    %c2 = arith.constant 2 : index
    %c0_47 = arith.constant 0 : index
    %c0_48 = arith.constant 0 : index
    %73 = vector.load %arg5[%c2, %c0_47, %c0_48] : memref<8x128x16xbf16, #tpu.memory_space<vmem>>, vector<1x128x16xbf16>
    %74 = vector.shape_cast %73 : vector<1x128x16xbf16> to vector<128x16xbf16>
    %cst_49 = arith.constant dense<0.000000e+00> : vector<8x16xf32>
    %75 = tpu.matmul %5, %74, %cst_49 {dimension_numbers = #tpu.dot_dimension_numbers<[1], [0], [0], [1], [0, 0, 1, 1], [], []>} : vector<8x128xbf16>, vector<128x16xbf16>, vector<8x16xf32> -> vector<8x16xf32>
    %c2_50 = arith.constant 2 : index
    %c0_51 = arith.constant 0 : index
    %c0_52 = arith.constant 0 : index
    %76 = vector.load %arg6[%c2_50, %c0_51, %c0_52] : memref<8x1x16xf32, #tpu.memory_space<vmem>>, vector<1x1x16xf32>
    %77 = vector.shape_cast %76 : vector<1x1x16xf32> to vector<1x16xf32>
    %78 = vector.broadcast %77 : vector<1x16xf32> to vector<8x16xf32>
    %79 = arith.addf %75, %78 : vector<8x16xf32>
    %cst_53 = arith.constant 2.500000e-01 : f32
    %80 = vector.broadcast %cst_53 : f32 to vector<8x16xf32>
    %81 = arith.mulf %79, %80 : vector<8x16xf32>
    %c2_54 = arith.constant 2 : index
    %c0_55 = arith.constant 0 : index
    %c0_56 = arith.constant 0 : index
    %82 = vector.load %arg16[%c2_54, %c0_55, %c0_56] : memref<8x8x16xbf16, #tpu.memory_space<vmem>>, vector<1x8x16xbf16>
    %83 = vector.shape_cast %82 : vector<1x8x16xbf16> to vector<8x16xbf16>
    %c2_57 = arith.constant 2 : index
    %c0_58 = arith.constant 0 : index
    %c0_59 = arith.constant 0 : index
    %84 = vector.load %arg17[%c2_57, %c0_58, %c0_59] : memref<8x8x16xbf16, #tpu.memory_space<vmem>>, vector<1x8x16xbf16>
    %85 = vector.shape_cast %84 : vector<1x8x16xbf16> to vector<8x16xbf16>
    %86 = arith.truncf %81 : vector<8x16xf32> to vector<8x16xbf16>
    %cst_60 = arith.constant dense<0.000000e+00> : vector<8x8xf32>
    %87 = tpu.matmul %86, %83, %cst_60 {dimension_numbers = #tpu.dot_dimension_numbers<[1], [1], [0], [0], [0, 0, 1, 0], [], []>} : vector<8x16xbf16>, vector<8x16xbf16>, vector<8x8xf32> -> vector<8x8xf32>
    %cst_61 = arith.constant dense<0xFF800000> : vector<8xf32>
    %88 = vector.multi_reduction <maximumf>, %87, %cst_61 [1] : vector<8x8xf32> to vector<8xf32>
    %89 = vector.shape_cast %88 : vector<8xf32> to vector<8x1xf32>
    %90 = vector.broadcast %89 : vector<8x1xf32> to vector<8x8xf32>
    %91 = arith.subf %87, %90 : vector<8x8xf32>
    %92 = math.exp %91 : vector<8x8xf32>
    %cst_62 = arith.constant dense<0.000000e+00> : vector<8xf32>
    %93 = vector.multi_reduction <add>, %92, %cst_62 [1] : vector<8x8xf32> to vector<8xf32>
    %94 = vector.shape_cast %93 : vector<8xf32> to vector<8x1xf32>
    %95 = tpu.reciprocal %94 {approx = true} : vector<8x1xf32> -> vector<8x1xf32>
    %96 = vector.broadcast %95 : vector<8x1xf32> to vector<8x8xf32>
    %97 = arith.mulf %92, %96 : vector<8x8xf32>
    %98 = arith.truncf %97 : vector<8x8xf32> to vector<8x8xbf16>
    %cst_63 = arith.constant dense<0.000000e+00> : vector<8x16xf32>
    %99 = tpu.matmul %98, %85, %cst_63 {dimension_numbers = #tpu.dot_dimension_numbers<[1], [0], [0], [1], [0, 0, 1, 1], [], []>} : vector<8x8xbf16>, vector<8x16xbf16>, vector<8x16xf32> -> vector<8x16xf32>
    %100 = arith.truncf %99 : vector<8x16xf32> to vector<8x16xbf16>
    %c2_64 = arith.constant 2 : index
    %c0_65 = arith.constant 0 : index
    %c0_66 = arith.constant 0 : index
    %101 = vector.load %arg11[%c2_64, %c0_65, %c0_66] : memref<8x16x128xbf16, #tpu.memory_space<vmem>>, vector<1x16x128xbf16>
    %102 = vector.shape_cast %101 : vector<1x16x128xbf16> to vector<16x128xbf16>
    %cst_67 = arith.constant dense<0.000000e+00> : vector<8x128xf32>
    %103 = tpu.matmul %100, %102, %cst_67 {dimension_numbers = #tpu.dot_dimension_numbers<[1], [0], [0], [1], [0, 0, 1, 1], [], []>} : vector<8x16xbf16>, vector<16x128xbf16>, vector<8x128xf32> -> vector<8x128xf32>
    %104 = arith.addf %72, %103 : vector<8x128xf32>
    %c3 = arith.constant 3 : index
    %c0_68 = arith.constant 0 : index
    %c0_69 = arith.constant 0 : index
    %105 = vector.load %arg5[%c3, %c0_68, %c0_69] : memref<8x128x16xbf16, #tpu.memory_space<vmem>>, vector<1x128x16xbf16>
    %106 = vector.shape_cast %105 : vector<1x128x16xbf16> to vector<128x16xbf16>
    %cst_70 = arith.constant dense<0.000000e+00> : vector<8x16xf32>
    %107 = tpu.matmul %5, %106, %cst_70 {dimension_numbers = #tpu.dot_dimension_numbers<[1], [0], [0], [1], [0, 0, 1, 1], [], []>} : vector<8x128xbf16>, vector<128x16xbf16>, vector<8x16xf32> -> vector<8x16xf32>
    %c3_71 = arith.constant 3 : index
    %c0_72 = arith.constant 0 : index
    %c0_73 = arith.constant 0 : index
    %108 = vector.load %arg6[%c3_71, %c0_72, %c0_73] : memref<8x1x16xf32, #tpu.memory_space<vmem>>, vector<1x1x16xf32>
    %109 = vector.shape_cast %108 : vector<1x1x16xf32> to vector<1x16xf32>
    %110 = vector.broadcast %109 : vector<1x16xf32> to vector<8x16xf32>
    %111 = arith.addf %107, %110 : vector<8x16xf32>
    %cst_74 = arith.constant 2.500000e-01 : f32
    %112 = vector.broadcast %cst_74 : f32 to vector<8x16xf32>
    %113 = arith.mulf %111, %112 : vector<8x16xf32>
    %c3_75 = arith.constant 3 : index
    %c0_76 = arith.constant 0 : index
    %c0_77 = arith.constant 0 : index
    %114 = vector.load %arg16[%c3_75, %c0_76, %c0_77] : memref<8x8x16xbf16, #tpu.memory_space<vmem>>, vector<1x8x16xbf16>
    %115 = vector.shape_cast %114 : vector<1x8x16xbf16> to vector<8x16xbf16>
    %c3_78 = arith.constant 3 : index
    %c0_79 = arith.constant 0 : index
    %c0_80 = arith.constant 0 : index
    %116 = vector.load %arg17[%c3_78, %c0_79, %c0_80] : memref<8x8x16xbf16, #tpu.memory_space<vmem>>, vector<1x8x16xbf16>
    %117 = vector.shape_cast %116 : vector<1x8x16xbf16> to vector<8x16xbf16>
    %118 = arith.truncf %113 : vector<8x16xf32> to vector<8x16xbf16>
    %cst_81 = arith.constant dense<0.000000e+00> : vector<8x8xf32>
    %119 = tpu.matmul %118, %115, %cst_81 {dimension_numbers = #tpu.dot_dimension_numbers<[1], [1], [0], [0], [0, 0, 1, 0], [], []>} : vector<8x16xbf16>, vector<8x16xbf16>, vector<8x8xf32> -> vector<8x8xf32>
    %cst_82 = arith.constant dense<0xFF800000> : vector<8xf32>
    %120 = vector.multi_reduction <maximumf>, %119, %cst_82 [1] : vector<8x8xf32> to vector<8xf32>
    %121 = vector.shape_cast %120 : vector<8xf32> to vector<8x1xf32>
    %122 = vector.broadcast %121 : vector<8x1xf32> to vector<8x8xf32>
    %123 = arith.subf %119, %122 : vector<8x8xf32>
    %124 = math.exp %123 : vector<8x8xf32>
    %cst_83 = arith.constant dense<0.000000e+00> : vector<8xf32>
    %125 = vector.multi_reduction <add>, %124, %cst_83 [1] : vector<8x8xf32> to vector<8xf32>
    %126 = vector.shape_cast %125 : vector<8xf32> to vector<8x1xf32>
    %127 = tpu.reciprocal %126 {approx = true} : vector<8x1xf32> -> vector<8x1xf32>
    %128 = vector.broadcast %127 : vector<8x1xf32> to vector<8x8xf32>
    %129 = arith.mulf %124, %128 : vector<8x8xf32>
    %130 = arith.truncf %129 : vector<8x8xf32> to vector<8x8xbf16>
    %cst_84 = arith.constant dense<0.000000e+00> : vector<8x16xf32>
    %131 = tpu.matmul %130, %117, %cst_84 {dimension_numbers = #tpu.dot_dimension_numbers<[1], [0], [0], [1], [0, 0, 1, 1], [], []>} : vector<8x8xbf16>, vector<8x16xbf16>, vector<8x16xf32> -> vector<8x16xf32>
    %132 = arith.truncf %131 : vector<8x16xf32> to vector<8x16xbf16>
    %c3_85 = arith.constant 3 : index
    %c0_86 = arith.constant 0 : index
    %c0_87 = arith.constant 0 : index
    %133 = vector.load %arg11[%c3_85, %c0_86, %c0_87] : memref<8x16x128xbf16, #tpu.memory_space<vmem>>, vector<1x16x128xbf16>
    %134 = vector.shape_cast %133 : vector<1x16x128xbf16> to vector<16x128xbf16>
    %cst_88 = arith.constant dense<0.000000e+00> : vector<8x128xf32>
    %135 = tpu.matmul %132, %134, %cst_88 {dimension_numbers = #tpu.dot_dimension_numbers<[1], [0], [0], [1], [0, 0, 1, 1], [], []>} : vector<8x16xbf16>, vector<16x128xbf16>, vector<8x128xf32> -> vector<8x128xf32>
    %136 = arith.addf %104, %135 : vector<8x128xf32>
    %c4 = arith.constant 4 : index
    %c0_89 = arith.constant 0 : index
    %c0_90 = arith.constant 0 : index
    %137 = vector.load %arg5[%c4, %c0_89, %c0_90] : memref<8x128x16xbf16, #tpu.memory_space<vmem>>, vector<1x128x16xbf16>
    %138 = vector.shape_cast %137 : vector<1x128x16xbf16> to vector<128x16xbf16>
    %cst_91 = arith.constant dense<0.000000e+00> : vector<8x16xf32>
    %139 = tpu.matmul %5, %138, %cst_91 {dimension_numbers = #tpu.dot_dimension_numbers<[1], [0], [0], [1], [0, 0, 1, 1], [], []>} : vector<8x128xbf16>, vector<128x16xbf16>, vector<8x16xf32> -> vector<8x16xf32>
    %c4_92 = arith.constant 4 : index
    %c0_93 = arith.constant 0 : index
    %c0_94 = arith.constant 0 : index
    %140 = vector.load %arg6[%c4_92, %c0_93, %c0_94] : memref<8x1x16xf32, #tpu.memory_space<vmem>>, vector<1x1x16xf32>
    %141 = vector.shape_cast %140 : vector<1x1x16xf32> to vector<1x16xf32>
    %142 = vector.broadcast %141 : vector<1x16xf32> to vector<8x16xf32>
    %143 = arith.addf %139, %142 : vector<8x16xf32>
    %cst_95 = arith.constant 2.500000e-01 : f32
    %144 = vector.broadcast %cst_95 : f32 to vector<8x16xf32>
    %145 = arith.mulf %143, %144 : vector<8x16xf32>
    %c4_96 = arith.constant 4 : index
    %c0_97 = arith.constant 0 : index
    %c0_98 = arith.constant 0 : index
    %146 = vector.load %arg16[%c4_96, %c0_97, %c0_98] : memref<8x8x16xbf16, #tpu.memory_space<vmem>>, vector<1x8x16xbf16>
    %147 = vector.shape_cast %146 : vector<1x8x16xbf16> to vector<8x16xbf16>
    %c4_99 = arith.constant 4 : index
    %c0_100 = arith.constant 0 : index
    %c0_101 = arith.constant 0 : index
    %148 = vector.load %arg17[%c4_99, %c0_100, %c0_101] : memref<8x8x16xbf16, #tpu.memory_space<vmem>>, vector<1x8x16xbf16>
    %149 = vector.shape_cast %148 : vector<1x8x16xbf16> to vector<8x16xbf16>
    %150 = arith.truncf %145 : vector<8x16xf32> to vector<8x16xbf16>
    %cst_102 = arith.constant dense<0.000000e+00> : vector<8x8xf32>
    %151 = tpu.matmul %150, %147, %cst_102 {dimension_numbers = #tpu.dot_dimension_numbers<[1], [1], [0], [0], [0, 0, 1, 0], [], []>} : vector<8x16xbf16>, vector<8x16xbf16>, vector<8x8xf32> -> vector<8x8xf32>
    %cst_103 = arith.constant dense<0xFF800000> : vector<8xf32>
    %152 = vector.multi_reduction <maximumf>, %151, %cst_103 [1] : vector<8x8xf32> to vector<8xf32>
    %153 = vector.shape_cast %152 : vector<8xf32> to vector<8x1xf32>
    %154 = vector.broadcast %153 : vector<8x1xf32> to vector<8x8xf32>
    %155 = arith.subf %151, %154 : vector<8x8xf32>
    %156 = math.exp %155 : vector<8x8xf32>
    %cst_104 = arith.constant dense<0.000000e+00> : vector<8xf32>
    %157 = vector.multi_reduction <add>, %156, %cst_104 [1] : vector<8x8xf32> to vector<8xf32>
    %158 = vector.shape_cast %157 : vector<8xf32> to vector<8x1xf32>
    %159 = tpu.reciprocal %158 {approx = true} : vector<8x1xf32> -> vector<8x1xf32>
    %160 = vector.broadcast %159 : vector<8x1xf32> to vector<8x8xf32>
    %161 = arith.mulf %156, %160 : vector<8x8xf32>
    %162 = arith.truncf %161 : vector<8x8xf32> to vector<8x8xbf16>
    %cst_105 = arith.constant dense<0.000000e+00> : vector<8x16xf32>
    %163 = tpu.matmul %162, %149, %cst_105 {dimension_numbers = #tpu.dot_dimension_numbers<[1], [0], [0], [1], [0, 0, 1, 1], [], []>} : vector<8x8xbf16>, vector<8x16xbf16>, vector<8x16xf32> -> vector<8x16xf32>
    %164 = arith.truncf %163 : vector<8x16xf32> to vector<8x16xbf16>
    %c4_106 = arith.constant 4 : index
    %c0_107 = arith.constant 0 : index
    %c0_108 = arith.constant 0 : index
    %165 = vector.load %arg11[%c4_106, %c0_107, %c0_108] : memref<8x16x128xbf16, #tpu.memory_space<vmem>>, vector<1x16x128xbf16>
    %166 = vector.shape_cast %165 : vector<1x16x128xbf16> to vector<16x128xbf16>
    %cst_109 = arith.constant dense<0.000000e+00> : vector<8x128xf32>
    %167 = tpu.matmul %164, %166, %cst_109 {dimension_numbers = #tpu.dot_dimension_numbers<[1], [0], [0], [1], [0, 0, 1, 1], [], []>} : vector<8x16xbf16>, vector<16x128xbf16>, vector<8x128xf32> -> vector<8x128xf32>
    %168 = arith.addf %136, %167 : vector<8x128xf32>
    %c5 = arith.constant 5 : index
    %c0_110 = arith.constant 0 : index
    %c0_111 = arith.constant 0 : index
    %169 = vector.load %arg5[%c5, %c0_110, %c0_111] : memref<8x128x16xbf16, #tpu.memory_space<vmem>>, vector<1x128x16xbf16>
    %170 = vector.shape_cast %169 : vector<1x128x16xbf16> to vector<128x16xbf16>
    %cst_112 = arith.constant dense<0.000000e+00> : vector<8x16xf32>
    %171 = tpu.matmul %5, %170, %cst_112 {dimension_numbers = #tpu.dot_dimension_numbers<[1], [0], [0], [1], [0, 0, 1, 1], [], []>} : vector<8x128xbf16>, vector<128x16xbf16>, vector<8x16xf32> -> vector<8x16xf32>
    %c5_113 = arith.constant 5 : index
    %c0_114 = arith.constant 0 : index
    %c0_115 = arith.constant 0 : index
    %172 = vector.load %arg6[%c5_113, %c0_114, %c0_115] : memref<8x1x16xf32, #tpu.memory_space<vmem>>, vector<1x1x16xf32>
    %173 = vector.shape_cast %172 : vector<1x1x16xf32> to vector<1x16xf32>
    %174 = vector.broadcast %173 : vector<1x16xf32> to vector<8x16xf32>
    %175 = arith.addf %171, %174 : vector<8x16xf32>
    %cst_116 = arith.constant 2.500000e-01 : f32
    %176 = vector.broadcast %cst_116 : f32 to vector<8x16xf32>
    %177 = arith.mulf %175, %176 : vector<8x16xf32>
    %c5_117 = arith.constant 5 : index
    %c0_118 = arith.constant 0 : index
    %c0_119 = arith.constant 0 : index
    %178 = vector.load %arg16[%c5_117, %c0_118, %c0_119] : memref<8x8x16xbf16, #tpu.memory_space<vmem>>, vector<1x8x16xbf16>
    %179 = vector.shape_cast %178 : vector<1x8x16xbf16> to vector<8x16xbf16>
    %c5_120 = arith.constant 5 : index
    %c0_121 = arith.constant 0 : index
    %c0_122 = arith.constant 0 : index
    %180 = vector.load %arg17[%c5_120, %c0_121, %c0_122] : memref<8x8x16xbf16, #tpu.memory_space<vmem>>, vector<1x8x16xbf16>
    %181 = vector.shape_cast %180 : vector<1x8x16xbf16> to vector<8x16xbf16>
    %182 = arith.truncf %177 : vector<8x16xf32> to vector<8x16xbf16>
    %cst_123 = arith.constant dense<0.000000e+00> : vector<8x8xf32>
    %183 = tpu.matmul %182, %179, %cst_123 {dimension_numbers = #tpu.dot_dimension_numbers<[1], [1], [0], [0], [0, 0, 1, 0], [], []>} : vector<8x16xbf16>, vector<8x16xbf16>, vector<8x8xf32> -> vector<8x8xf32>
    %cst_124 = arith.constant dense<0xFF800000> : vector<8xf32>
    %184 = vector.multi_reduction <maximumf>, %183, %cst_124 [1] : vector<8x8xf32> to vector<8xf32>
    %185 = vector.shape_cast %184 : vector<8xf32> to vector<8x1xf32>
    %186 = vector.broadcast %185 : vector<8x1xf32> to vector<8x8xf32>
    %187 = arith.subf %183, %186 : vector<8x8xf32>
    %188 = math.exp %187 : vector<8x8xf32>
    %cst_125 = arith.constant dense<0.000000e+00> : vector<8xf32>
    %189 = vector.multi_reduction <add>, %188, %cst_125 [1] : vector<8x8xf32> to vector<8xf32>
    %190 = vector.shape_cast %189 : vector<8xf32> to vector<8x1xf32>
    %191 = tpu.reciprocal %190 {approx = true} : vector<8x1xf32> -> vector<8x1xf32>
    %192 = vector.broadcast %191 : vector<8x1xf32> to vector<8x8xf32>
    %193 = arith.mulf %188, %192 : vector<8x8xf32>
    %194 = arith.truncf %193 : vector<8x8xf32> to vector<8x8xbf16>
    %cst_126 = arith.constant dense<0.000000e+00> : vector<8x16xf32>
    %195 = tpu.matmul %194, %181, %cst_126 {dimension_numbers = #tpu.dot_dimension_numbers<[1], [0], [0], [1], [0, 0, 1, 1], [], []>} : vector<8x8xbf16>, vector<8x16xbf16>, vector<8x16xf32> -> vector<8x16xf32>
    %196 = arith.truncf %195 : vector<8x16xf32> to vector<8x16xbf16>
    %c5_127 = arith.constant 5 : index
    %c0_128 = arith.constant 0 : index
    %c0_129 = arith.constant 0 : index
    %197 = vector.load %arg11[%c5_127, %c0_128, %c0_129] : memref<8x16x128xbf16, #tpu.memory_space<vmem>>, vector<1x16x128xbf16>
    %198 = vector.shape_cast %197 : vector<1x16x128xbf16> to vector<16x128xbf16>
    %cst_130 = arith.constant dense<0.000000e+00> : vector<8x128xf32>
    %199 = tpu.matmul %196, %198, %cst_130 {dimension_numbers = #tpu.dot_dimension_numbers<[1], [0], [0], [1], [0, 0, 1, 1], [], []>} : vector<8x16xbf16>, vector<16x128xbf16>, vector<8x128xf32> -> vector<8x128xf32>
    %200 = arith.addf %168, %199 : vector<8x128xf32>
    %c6 = arith.constant 6 : index
    %c0_131 = arith.constant 0 : index
    %c0_132 = arith.constant 0 : index
    %201 = vector.load %arg5[%c6, %c0_131, %c0_132] : memref<8x128x16xbf16, #tpu.memory_space<vmem>>, vector<1x128x16xbf16>
    %202 = vector.shape_cast %201 : vector<1x128x16xbf16> to vector<128x16xbf16>
    %cst_133 = arith.constant dense<0.000000e+00> : vector<8x16xf32>
    %203 = tpu.matmul %5, %202, %cst_133 {dimension_numbers = #tpu.dot_dimension_numbers<[1], [0], [0], [1], [0, 0, 1, 1], [], []>} : vector<8x128xbf16>, vector<128x16xbf16>, vector<8x16xf32> -> vector<8x16xf32>
    %c6_134 = arith.constant 6 : index
    %c0_135 = arith.constant 0 : index
    %c0_136 = arith.constant 0 : index
    %204 = vector.load %arg6[%c6_134, %c0_135, %c0_136] : memref<8x1x16xf32, #tpu.memory_space<vmem>>, vector<1x1x16xf32>
    %205 = vector.shape_cast %204 : vector<1x1x16xf32> to vector<1x16xf32>
    %206 = vector.broadcast %205 : vector<1x16xf32> to vector<8x16xf32>
    %207 = arith.addf %203, %206 : vector<8x16xf32>
    %cst_137 = arith.constant 2.500000e-01 : f32
    %208 = vector.broadcast %cst_137 : f32 to vector<8x16xf32>
    %209 = arith.mulf %207, %208 : vector<8x16xf32>
    %c6_138 = arith.constant 6 : index
    %c0_139 = arith.constant 0 : index
    %c0_140 = arith.constant 0 : index
    %210 = vector.load %arg16[%c6_138, %c0_139, %c0_140] : memref<8x8x16xbf16, #tpu.memory_space<vmem>>, vector<1x8x16xbf16>
    %211 = vector.shape_cast %210 : vector<1x8x16xbf16> to vector<8x16xbf16>
    %c6_141 = arith.constant 6 : index
    %c0_142 = arith.constant 0 : index
    %c0_143 = arith.constant 0 : index
    %212 = vector.load %arg17[%c6_141, %c0_142, %c0_143] : memref<8x8x16xbf16, #tpu.memory_space<vmem>>, vector<1x8x16xbf16>
    %213 = vector.shape_cast %212 : vector<1x8x16xbf16> to vector<8x16xbf16>
    %214 = arith.truncf %209 : vector<8x16xf32> to vector<8x16xbf16>
    %cst_144 = arith.constant dense<0.000000e+00> : vector<8x8xf32>
    %215 = tpu.matmul %214, %211, %cst_144 {dimension_numbers = #tpu.dot_dimension_numbers<[1], [1], [0], [0], [0, 0, 1, 0], [], []>} : vector<8x16xbf16>, vector<8x16xbf16>, vector<8x8xf32> -> vector<8x8xf32>
    %cst_145 = arith.constant dense<0xFF800000> : vector<8xf32>
    %216 = vector.multi_reduction <maximumf>, %215, %cst_145 [1] : vector<8x8xf32> to vector<8xf32>
    %217 = vector.shape_cast %216 : vector<8xf32> to vector<8x1xf32>
    %218 = vector.broadcast %217 : vector<8x1xf32> to vector<8x8xf32>
    %219 = arith.subf %215, %218 : vector<8x8xf32>
    %220 = math.exp %219 : vector<8x8xf32>
    %cst_146 = arith.constant dense<0.000000e+00> : vector<8xf32>
    %221 = vector.multi_reduction <add>, %220, %cst_146 [1] : vector<8x8xf32> to vector<8xf32>
    %222 = vector.shape_cast %221 : vector<8xf32> to vector<8x1xf32>
    %223 = tpu.reciprocal %222 {approx = true} : vector<8x1xf32> -> vector<8x1xf32>
    %224 = vector.broadcast %223 : vector<8x1xf32> to vector<8x8xf32>
    %225 = arith.mulf %220, %224 : vector<8x8xf32>
    %226 = arith.truncf %225 : vector<8x8xf32> to vector<8x8xbf16>
    %cst_147 = arith.constant dense<0.000000e+00> : vector<8x16xf32>
    %227 = tpu.matmul %226, %213, %cst_147 {dimension_numbers = #tpu.dot_dimension_numbers<[1], [0], [0], [1], [0, 0, 1, 1], [], []>} : vector<8x8xbf16>, vector<8x16xbf16>, vector<8x16xf32> -> vector<8x16xf32>
    %228 = arith.truncf %227 : vector<8x16xf32> to vector<8x16xbf16>
    %c6_148 = arith.constant 6 : index
    %c0_149 = arith.constant 0 : index
    %c0_150 = arith.constant 0 : index
    %229 = vector.load %arg11[%c6_148, %c0_149, %c0_150] : memref<8x16x128xbf16, #tpu.memory_space<vmem>>, vector<1x16x128xbf16>
    %230 = vector.shape_cast %229 : vector<1x16x128xbf16> to vector<16x128xbf16>
    %cst_151 = arith.constant dense<0.000000e+00> : vector<8x128xf32>
    %231 = tpu.matmul %228, %230, %cst_151 {dimension_numbers = #tpu.dot_dimension_numbers<[1], [0], [0], [1], [0, 0, 1, 1], [], []>} : vector<8x16xbf16>, vector<16x128xbf16>, vector<8x128xf32> -> vector<8x128xf32>
    %232 = arith.addf %200, %231 : vector<8x128xf32>
    %c7 = arith.constant 7 : index
    %c0_152 = arith.constant 0 : index
    %c0_153 = arith.constant 0 : index
    %233 = vector.load %arg5[%c7, %c0_152, %c0_153] : memref<8x128x16xbf16, #tpu.memory_space<vmem>>, vector<1x128x16xbf16>
    %234 = vector.shape_cast %233 : vector<1x128x16xbf16> to vector<128x16xbf16>
    %cst_154 = arith.constant dense<0.000000e+00> : vector<8x16xf32>
    %235 = tpu.matmul %5, %234, %cst_154 {dimension_numbers = #tpu.dot_dimension_numbers<[1], [0], [0], [1], [0, 0, 1, 1], [], []>} : vector<8x128xbf16>, vector<128x16xbf16>, vector<8x16xf32> -> vector<8x16xf32>
    %c7_155 = arith.constant 7 : index
    %c0_156 = arith.constant 0 : index
    %c0_157 = arith.constant 0 : index
    %236 = vector.load %arg6[%c7_155, %c0_156, %c0_157] : memref<8x1x16xf32, #tpu.memory_space<vmem>>, vector<1x1x16xf32>
    %237 = vector.shape_cast %236 : vector<1x1x16xf32> to vector<1x16xf32>
    %238 = vector.broadcast %237 : vector<1x16xf32> to vector<8x16xf32>
    %239 = arith.addf %235, %238 : vector<8x16xf32>
    %cst_158 = arith.constant 2.500000e-01 : f32
    %240 = vector.broadcast %cst_158 : f32 to vector<8x16xf32>
    %241 = arith.mulf %239, %240 : vector<8x16xf32>
    %c7_159 = arith.constant 7 : index
    %c0_160 = arith.constant 0 : index
    %c0_161 = arith.constant 0 : index
    %242 = vector.load %arg16[%c7_159, %c0_160, %c0_161] : memref<8x8x16xbf16, #tpu.memory_space<vmem>>, vector<1x8x16xbf16>
    %243 = vector.shape_cast %242 : vector<1x8x16xbf16> to vector<8x16xbf16>
    %c7_162 = arith.constant 7 : index
    %c0_163 = arith.constant 0 : index
    %c0_164 = arith.constant 0 : index
    %244 = vector.load %arg17[%c7_162, %c0_163, %c0_164] : memref<8x8x16xbf16, #tpu.memory_space<vmem>>, vector<1x8x16xbf16>
    %245 = vector.shape_cast %244 : vector<1x8x16xbf16> to vector<8x16xbf16>
    %246 = arith.truncf %241 : vector<8x16xf32> to vector<8x16xbf16>
    %cst_165 = arith.constant dense<0.000000e+00> : vector<8x8xf32>
    %247 = tpu.matmul %246, %243, %cst_165 {dimension_numbers = #tpu.dot_dimension_numbers<[1], [1], [0], [0], [0, 0, 1, 0], [], []>} : vector<8x16xbf16>, vector<8x16xbf16>, vector<8x8xf32> -> vector<8x8xf32>
    %cst_166 = arith.constant dense<0xFF800000> : vector<8xf32>
    %248 = vector.multi_reduction <maximumf>, %247, %cst_166 [1] : vector<8x8xf32> to vector<8xf32>
    %249 = vector.shape_cast %248 : vector<8xf32> to vector<8x1xf32>
    %250 = vector.broadcast %249 : vector<8x1xf32> to vector<8x8xf32>
    %251 = arith.subf %247, %250 : vector<8x8xf32>
    %252 = math.exp %251 : vector<8x8xf32>
    %cst_167 = arith.constant dense<0.000000e+00> : vector<8xf32>
    %253 = vector.multi_reduction <add>, %252, %cst_167 [1] : vector<8x8xf32> to vector<8xf32>
    %254 = vector.shape_cast %253 : vector<8xf32> to vector<8x1xf32>
    %255 = tpu.reciprocal %254 {approx = true} : vector<8x1xf32> -> vector<8x1xf32>
    %256 = vector.broadcast %255 : vector<8x1xf32> to vector<8x8xf32>
    %257 = arith.mulf %252, %256 : vector<8x8xf32>
    %258 = arith.truncf %257 : vector<8x8xf32> to vector<8x8xbf16>
    %cst_168 = arith.constant dense<0.000000e+00> : vector<8x16xf32>
    %259 = tpu.matmul %258, %245, %cst_168 {dimension_numbers = #tpu.dot_dimension_numbers<[1], [0], [0], [1], [0, 0, 1, 1], [], []>} : vector<8x8xbf16>, vector<8x16xbf16>, vector<8x16xf32> -> vector<8x16xf32>
    %260 = arith.truncf %259 : vector<8x16xf32> to vector<8x16xbf16>
    %c7_169 = arith.constant 7 : index
    %c0_170 = arith.constant 0 : index
    %c0_171 = arith.constant 0 : index
    %261 = vector.load %arg11[%c7_169, %c0_170, %c0_171] : memref<8x16x128xbf16, #tpu.memory_space<vmem>>, vector<1x16x128xbf16>
    %262 = vector.shape_cast %261 : vector<1x16x128xbf16> to vector<16x128xbf16>
    %cst_172 = arith.constant dense<0.000000e+00> : vector<8x128xf32>
    %263 = tpu.matmul %260, %262, %cst_172 {dimension_numbers = #tpu.dot_dimension_numbers<[1], [0], [0], [1], [0, 0, 1, 1], [], []>} : vector<8x16xbf16>, vector<16x128xbf16>, vector<8x128xf32> -> vector<8x128xf32>
    %264 = arith.addf %232, %263 : vector<8x128xf32>
    %cst_173 = arith.constant dense<0.000000e+00> : vector<8xf32>
    %265 = vector.multi_reduction <add>, %264, %cst_173 [1] : vector<8x128xf32> to vector<8xf32>
    %266 = vector.shape_cast %265 : vector<8xf32> to vector<8x1xf32>
    %cst_174 = arith.constant 1.280000e+02 : f32
    %267 = vector.broadcast %cst_174 : f32 to vector<8x1xf32>
    %268 = arith.divf %266, %267 : vector<8x1xf32>
    %269 = arith.mulf %264, %264 : vector<8x128xf32>
    %cst_175 = arith.constant dense<0.000000e+00> : vector<8xf32>
    %270 = vector.multi_reduction <add>, %269, %cst_175 [1] : vector<8x128xf32> to vector<8xf32>
    %271 = vector.shape_cast %270 : vector<8xf32> to vector<8x1xf32>
    %cst_176 = arith.constant 1.280000e+02 : f32
    %272 = vector.broadcast %cst_176 : f32 to vector<8x1xf32>
    %273 = arith.divf %271, %272 : vector<8x1xf32>
    %274 = arith.mulf %268, %268 : vector<8x1xf32>
    %275 = arith.subf %273, %274 : vector<8x1xf32>
    %cst_177 = arith.constant 9.99999974E-6 : f32
    %276 = vector.broadcast %cst_177 : f32 to vector<8x1xf32>
    %277 = arith.addf %275, %276 : vector<8x1xf32>
    %278 = math.rsqrt %277 : vector<8x1xf32>
    %279 = vector.broadcast %268 : vector<8x1xf32> to vector<8x128xf32>
    %280 = arith.subf %264, %279 : vector<8x128xf32>
    %281 = vector.broadcast %278 : vector<8x1xf32> to vector<8x128xf32>
    %282 = arith.mulf %280, %281 : vector<8x128xf32>
    %c0_178 = arith.constant 0 : index
    %c0_179 = arith.constant 0 : index
    %283 = vector.load %arg13[%c0_178, %c0_179] : memref<1x128xf32, #tpu.memory_space<vmem>>, vector<1x128xf32>
    %284 = vector.broadcast %283 : vector<1x128xf32> to vector<8x128xf32>
    %285 = arith.mulf %282, %284 : vector<8x128xf32>
    %c0_180 = arith.constant 0 : index
    %c0_181 = arith.constant 0 : index
    %286 = vector.load %arg14[%c0_180, %c0_181] : memref<1x128xf32, #tpu.memory_space<vmem>>, vector<1x128xf32>
    %287 = vector.broadcast %286 : vector<1x128xf32> to vector<8x128xf32>
    %288 = arith.addf %285, %287 : vector<8x128xf32>
    %c0_182 = arith.constant 0 : index
    %c0_183 = arith.constant 0 : index
    %c0_184 = arith.constant 0 : index
    %289 = vector.load %arg15[%c0_182, %c0_183, %c0_184] : memref<1x8x128xf32, #tpu.memory_space<vmem>>, vector<1x8x128xf32>
    %290 = vector.shape_cast %289 : vector<1x8x128xf32> to vector<8x128xf32>
    %291 = vector.shape_cast %288 : vector<8x128xf32> to vector<1x8x128xf32>
    tpu.vector_store %arg15[%c0_182, %c0_183, %c0_184], %291 {strides = array<i32>} : memref<1x8x128xf32, #tpu.memory_space<vmem>>, vector<1x8x128xf32>,
    return
  }
  func.func @transform_0(%arg0: i32, %arg1: i32) -> (i32, i32, i32) {
    %c0_i32 = arith.constant 0 : i32
    %c0_i32_0 = arith.constant 0 : i32
    return %arg0, %arg1, %c0_i32 : i32, i32, i32
  }
  func.func @transform_1(%arg0: i32, %arg1: i32) -> (i32, i32, i32) {
    %c0_i32 = arith.constant 0 : i32
    %c0_i32_0 = arith.constant 0 : i32
    %c0_i32_1 = arith.constant 0 : i32
    return %arg0, %c0_i32, %c0_i32_0 : i32, i32, i32
  }
  func.func @transform_2(%arg0: i32, %arg1: i32) -> (i32, i32, i32) {
    %c0_i32 = arith.constant 0 : i32
    %c0_i32_0 = arith.constant 0 : i32
    %c0_i32_1 = arith.constant 0 : i32
    return %arg0, %c0_i32, %c0_i32_0 : i32, i32, i32
  }
  func.func @transform_3(%arg0: i32, %arg1: i32) -> (i32, i32, i32) {
    %c0_i32 = arith.constant 0 : i32
    %c0_i32_0 = arith.constant 0 : i32
    %c0_i32_1 = arith.constant 0 : i32
    %c0_i32_2 = arith.constant 0 : i32
    return %c0_i32, %c0_i32_0, %c0_i32_1 : i32, i32, i32
  }
  func.func @transform_4(%arg0: i32, %arg1: i32) -> (i32, i32, i32) {
    %c0_i32 = arith.constant 0 : i32
    %c0_i32_0 = arith.constant 0 : i32
    %c0_i32_1 = arith.constant 0 : i32
    %c0_i32_2 = arith.constant 0 : i32
    return %c0_i32, %c0_i32_0, %c0_i32_1 : i32, i32, i32
  }
  func.func @transform_5(%arg0: i32, %arg1: i32) -> (i32, i32, i32) {
    %c0_i32 = arith.constant 0 : i32
    %c0_i32_0 = arith.constant 0 : i32
    %c0_i32_1 = arith.constant 0 : i32
    %c0_i32_2 = arith.constant 0 : i32
    return %c0_i32, %c0_i32_0, %c0_i32_1 : i32, i32, i32
  }
  func.func @transform_6(%arg0: i32, %arg1: i32) -> (i32, i32, i32) {
    %c0_i32 = arith.constant 0 : i32
    %c0_i32_0 = arith.constant 0 : i32
    %c0_i32_1 = arith.constant 0 : i32
    %c0_i32_2 = arith.constant 0 : i32
    return %c0_i32, %c0_i32_0, %c0_i32_1 : i32, i32, i32
  }
  func.func @transform_7(%arg0: i32, %arg1: i32) -> (i32, i32, i32) {
    %c0_i32 = arith.constant 0 : i32
    %c0_i32_0 = arith.constant 0 : i32
    %c0_i32_1 = arith.constant 0 : i32
    %c0_i32_2 = arith.constant 0 : i32
    return %c0_i32, %c0_i32_0, %c0_i32_1 : i32, i32, i32
  }
  func.func @transform_8(%arg0: i32, %arg1: i32) -> (i32, i32, i32) {
    %c0_i32 = arith.constant 0 : i32
    %c0_i32_0 = arith.constant 0 : i32
    %c0_i32_1 = arith.constant 0 : i32
    %c0_i32_2 = arith.constant 0 : i32
    return %c0_i32, %c0_i32_0, %c0_i32_1 : i32, i32, i32
  }
  func.func @transform_9(%arg0: i32, %arg1: i32) -> (i32, i32, i32) {
    %c0_i32 = arith.constant 0 : i32
    %c0_i32_0 = arith.constant 0 : i32
    %c0_i32_1 = arith.constant 0 : i32
    %c0_i32_2 = arith.constant 0 : i32
    return %c0_i32, %c0_i32_0, %c0_i32_1 : i32, i32, i32
  }
  func.func @transform_10(%arg0: i32, %arg1: i32) -> (i32, i32) {
    %c0_i32 = arith.constant 0 : i32
    %c0_i32_0 = arith.constant 0 : i32
    %c0_i32_1 = arith.constant 0 : i32
    return %c0_i32, %c0_i32_0 : i32, i32
  }
  func.func @transform_11(%arg0: i32, %arg1: i32) -> (i32, i32) {
    %c0_i32 = arith.constant 0 : i32
    %c0_i32_0 = arith.constant 0 : i32
    %c0_i32_1 = arith.constant 0 : i32
    return %c0_i32, %c0_i32_0 : i32, i32
  }
  func.func @transform_12(%arg0: i32, %arg1: i32) -> (i32, i32) {
    %c0_i32 = arith.constant 0 : i32
    %c0_i32_0 = arith.constant 0 : i32
    %c0_i32_1 = arith.constant 0 : i32
    return %c0_i32, %c0_i32_0 : i32, i32
  }
  func.func @transform_13(%arg0: i32, %arg1: i32) -> (i32, i32, i32) {
    %c0_i32 = arith.constant 0 : i32
    %c0_i32_0 = arith.constant 0 : i32
    return %arg0, %arg1, %c0_i32 : i32, i32, i32
  }
}

</mosaic_0001>

<llo_original>
// kernel: decoder_forward.11
$region0: #{decoder_forward.11}
  #allocation0 [shape = 'u32[]', space=smem, size = 0x4, offset = 0x4, fixed_abs, tag = 'smem constant byte address 0x4 - core index']
  #allocation1 [shape = 'u32[144,128]{1,0:T(1,128)}', space=vmem, size = 0x12000, scoped, tag = 'internal scratch']
  %s0 = inlined_call_operand.vmem [shape: f32[128,16], index: 0, kind: input, shape index: {}]
  %s1 = inlined_call_operand.vmem [shape: bf16[16,64], index: 1, kind: input, shape index: {}]
  %s2 = inlined_call_operand.vmem [shape: f32[1,64], index: 2, kind: input, shape index: {}]
  %s3 = inlined_call_operand.vmem [shape: bf16[64,16], index: 3, kind: input, shape index: {}]
  %s4 = inlined_call_operand.vmem [shape: f32[1,16], index: 4, kind: input, shape index: {}]
  %s5 = inlined_call_operand.vmem [shape: f32[1,16], index: 5, kind: input, shape index: {}]
  %s6 = inlined_call_operand.vmem [shape: f32[1,16], index: 6, kind: input, shape index: {}]
  %s7 = inlined_call_operand.vmem [shape: f32[128,16], index: 7, kind: output, shape index: {}]
  %s8 = sld [smem:[#allocation0]]
  $region38: #{decoder_forward.11} parent=0
    _
  %s10 = ssub.s32 1, %s8
  %s11 = scalar_select 0, %s10, %s8
  // Predicated region
  $region2: #{decoder_forward.11} parent=0 // pred_check
    _
  $region3: #{decoder_forward.11} parent=0 // pred_check_branch
    %13 = sbr.rel (0) target = $region5
  $region4: #{decoder_forward.11} parent=0 // pred_region
    _
  $region5: #{decoder_forward.11} parent=0 // pred_fallthru
    _
  // Predicated region
  $region6: #{decoder_forward.11} parent=0 // pred_check
    _
  $region7: #{decoder_forward.11} parent=0 // pred_check_branch
    %15 = sbr.rel (0) target = $region9
  $region8: #{decoder_forward.11} parent=0 // pred_region
    _
  $region9: #{decoder_forward.11} parent=0 // pred_fallthru
    _
  // Predicated region
  $region10: #{decoder_forward.11} parent=0 // pred_check
    _
  $region11: #{decoder_forward.11} parent=0 // pred_check_branch
    %17 = sbr.rel (0) target = $region13
  $region12: #{decoder_forward.11} parent=0 // pred_region
    _
  $region13: #{decoder_forward.11} parent=0 // pred_fallthru
    _
  // Predicated region
  $region14: #{decoder_forward.11} parent=0 // pred_check
    _
  $region15: #{decoder_forward.11} parent=0 // pred_check_branch
    %19 = sbr.rel (0) target = $region17
  $region16: #{decoder_forward.11} parent=0 // pred_region
    _
  $region17: #{decoder_forward.11} parent=0 // pred_fallthru
    _
  // Predicated region
  $region18: #{decoder_forward.11} parent=0 // pred_check
    _
  $region19: #{decoder_forward.11} parent=0 // pred_check_branch
    %21 = sbr.rel (0) target = $region21
  $region20: #{decoder_forward.11} parent=0 // pred_region
    _
  $region21: #{decoder_forward.11} parent=0 // pred_fallthru
    _
  // Predicated region
  $region22: #{decoder_forward.11} parent=0 // pred_check
    _
  $region23: #{decoder_forward.11} parent=0 // pred_check_branch
    %23 = sbr.rel (0) target = $region25
  $region24: #{decoder_forward.11} parent=0 // pred_region
    _
  $region25: #{decoder_forward.11} parent=0 // pred_fallthru
    _
  // Predicated region
  $region26: #{decoder_forward.11} parent=0 // pred_check
    _
  $region27: #{decoder_forward.11} parent=0 // pred_check_branch
    %25 = sbr.rel (0) target = $region29
  $region28: #{decoder_forward.11} parent=0 // pred_region
    _
  $region29: #{decoder_forward.11} parent=0 // pred_fallthru
    _
  %v27 = vld [vmem:[%s0] sm:$0xff]
  %v28 = vld [vmem:[%s0 + $0x8] sm:$0xff]
  %v29 = vld [vmem:[%s0 + $0x10] sm:$0xff]
  %v30 = vld [vmem:[%s0 + $0x18] sm:$0xff]
  %v31 = vld [vmem:[%s0 + $0x20] sm:$0xff]
  %v32 = vld [vmem:[%s0 + $0x28] sm:$0xff]
  %v33 = vld [vmem:[%s0 + $0x30] sm:$0xff]
  %v34 = vld [vmem:[%s0 + $0x38] sm:$0xff]
  %v35 = vld [vmem:[%s0 + $0x40] sm:$0xff]
  %v36 = vld [vmem:[%s0 + $0x48] sm:$0xff]
  %v37 = vld [vmem:[%s0 + $0x50] sm:$0xff]
  %v38 = vld [vmem:[%s0 + $0x58] sm:$0xff]
  %v39 = vld [vmem:[%s0 + $0x60] sm:$0xff]
  %v40 = vld [vmem:[%s0 + $0x68] sm:$0xff]
  %v41 = vld [vmem:[%s0 + $0x70] sm:$0xff]
  %v42 = vld [vmem:[%s0 + $0x78] sm:$0xff]
  %v43 = vpack.c.bf16 %v28, %v27
  %v44 = vpack.c.bf16 %v30, %v29
  %v45 = vpack.c.bf16 %v32, %v31
  %v46 = vpack.c.bf16 %v34, %v33
  %v47 = vpack.c.bf16 %v36, %v35
  %v48 = vpack.c.bf16 %v38, %v37
  %v49 = vpack.c.bf16 %v40, %v39
  %v50 = vpack.c.bf16 %v42, %v41
  %v51 = vld [vmem:[%s1] sm:$0xf]
  %v52 = vld [vmem:[%s1 + $0x4] sm:$0xf]
  %v53 = vld [vmem:[%s2] sm:$0x1]
  %v55 = vlaneseq
  %v56 = vshrl.u32 %v55, 7
  %v57 = vsub.s32 0, %v56
  %v58 = vrot.slane %v53, %v57
  %v62 = vunpack.c.l.b16 %v51
  %v63 = vunpack.c.l.b16 %v52
  %v64 = vpack.c.b16 %v63, %v62
  %vm66 = vcmask 130048
  %v68 = vsel %vm66, %v43, 0
  %v71 = vsel %vm66, %v44, 0
  %v74 = vsel %vm66, %v45, 0
  %v77 = vsel %vm66, %v46, 0
  %v80 = vsel %vm66, %v47, 0
  %v83 = vsel %vm66, %v48, 0
  %v86 = vsel %vm66, %v49, 0
  %v89 = vsel %vm66, %v50, 0
  %91 = vmatprep.subr.bf16.mxu0 0
  %92 = vmatpush1.bf16.msra.mxu0 0
  %93 = vmatprep.subr.bf16.mxu0 0
  %94 = vmatpush1.bf16.msra.mxu0 0
  %95 = vmatprep.subr.bf16.mxu0 0
  %96 = vmatpush1.bf16.msra.mxu0 0
  %97 = vmatprep.subr.bf16.mxu0 0
  %98 = vmatpush1.bf16.msra.mxu0 0
  %99 = vmatprep.subr.bf16.mxu0 0
  %100 = vmatpush1.bf16.msra.mxu0 0
  %101 = vmatprep.subr.bf16.mxu0 0
  %102 = vmatpush1.bf16.msra.mxu0 0
  %103 = vmatprep.subr.bf16.mxu0 0
  %104 = vmatpush1.bf16.msra.mxu0 0
  %105 = vmatprep.subr.bf16.mxu0 0
  %106 = vmatpush1.bf16.msra.mxu0 %v64
  %107 = vmatprep.subr.bf16.mxu0 0
  %108 = vmatpush2.bf16.msra.mxu0 0
  %109 = vmatprep.subr.bf16.mxu0 0
  %110 = vmatpush2.bf16.msra.mxu0 0
  %111 = vmatprep.subr.bf16.mxu0 0
  %112 = vmatpush2.bf16.msra.mxu0 0
  %113 = vmatprep.subr.bf16.mxu0 0
  %114 = vmatpush2.bf16.msra.mxu0 0
  %115 = vmatprep.subr.bf16.mxu0 0
  %116 = vmatpush2.bf16.msra.mxu0 0
  %117 = vmatprep.subr.bf16.mxu0 0
  %118 = vmatpush2.bf16.msra.mxu0 0
  %119 = vmatprep.subr.bf16.mxu0 0
  %120 = vmatpush2.bf16.msra.mxu0 0
  %121 = vmatprep.subr.bf16.mxu0 0
  %122 = vmatpush2.bf16.msra.mxu0 0
  %123 = vmatprep.mubr.bf16.mxu0 0
  %124 = vmatmul.mubr.bf16.gmra.mxu0 %v68
  %v125 = vpop.f32.mrf.mxu0
  %v126 = vadd.f32 %v58, %v125
  %v127 = vpop.f32.mrf.mxu0
  %v128 = vpop.f32.mrf.mxu0
  %v129 = vadd.f32 %v58, %v128
  %v130 = vpop.f32.mrf.mxu0
  %131 = vmatprep.mubr.bf16.mxu0 0
  %132 = vmatmul.mubr.bf16.gmra.mxu0 %v71
  %v133 = vpop.f32.mrf.mxu0
  %v134 = vadd.f32 %v58, %v133
  %v135 = vpop.f32.mrf.mxu0
  %v136 = vpop.f32.mrf.mxu0
  %v137 = vadd.f32 %v58, %v136
  %v138 = vpop.f32.mrf.mxu0
  %139 = vmatprep.mubr.bf16.mxu0 0
  %140 = vmatmul.mubr.bf16.gmra.mxu0 %v74
  %v141 = vpop.f32.mrf.mxu0
  %v142 = vadd.f32 %v58, %v141
  %v143 = vpop.f32.mrf.mxu0
  %v144 = vpop.f32.mrf.mxu0
  %v145 = vadd.f32 %v58, %v144
  %v146 = vpop.f32.mrf.mxu0
  %147 = vmatprep.mubr.bf16.mxu0 0
  %148 = vmatmul.mubr.bf16.gmra.mxu0 %v77
  %v149 = vpop.f32.mrf.mxu0
  %v150 = vadd.f32 %v58, %v149
  %v151 = vpop.f32.mrf.mxu0
  %v152 = vpop.f32.mrf.mxu0
  %v153 = vadd.f32 %v58, %v152
  %v154 = vpop.f32.mrf.mxu0
  %155 = vmatprep.mubr.bf16.mxu0 0
  %156 = vmatmul.mubr.bf16.gmra.mxu0 %v80
  %v157 = vpop.f32.mrf.mxu0
  %v158 = vadd.f32 %v58, %v157
  %v159 = vpop.f32.mrf.mxu0
  %v160 = vpop.f32.mrf.mxu0
  %v161 = vadd.f32 %v58, %v160
  %v162 = vpop.f32.mrf.mxu0
  %163 = vmatprep.mubr.bf16.mxu0 0
  %164 = vmatmul.mubr.bf16.gmra.mxu0 %v83
  %v165 = vpop.f32.mrf.mxu0
  %v166 = vadd.f32 %v58, %v165
  %v167 = vpop.f32.mrf.mxu0
  %v168 = vpop.f32.mrf.mxu0
  %v169 = vadd.f32 %v58, %v168
  %v170 = vpop.f32.mrf.mxu0
  %171 = vmatprep.mubr.bf16.mxu0 0
  %172 = vmatmul.mubr.bf16.gmra.mxu0 %v86
  %v173 = vpop.f32.mrf.mxu0
  %v174 = vadd.f32 %v58, %v173
  %v175 = vpop.f32.mrf.mxu0
  %v176 = vpop.f32.mrf.mxu0
  %v177 = vadd.f32 %v58, %v176
  %v178 = vpop.f32.mrf.mxu0
  %179 = vmatprep.mubr.bf16.mxu0 0
  %180 = vmatmul.mubr.bf16.gmra.mxu0 %v89
  %v181 = vpop.f32.mrf.mxu0
  %v182 = vadd.f32 %v58, %v181
  %v183 = vpop.f32.mrf.mxu0
  %v184 = vpop.f32.mrf.mxu0
  %v185 = vadd.f32 %v58, %v184
  %v186 = vpop.f32.mrf.mxu0
  %187 = vdwg.mxu0
  %v188 = vmax.f32 %v126, 0.0
  %v189 = vmax.f32 %v129, 0.0
  %v190 = vmax.f32 %v134, 0.0
  %v191 = vmax.f32 %v137, 0.0
  %v192 = vmax.f32 %v142, 0.0
  %v193 = vmax.f32 %v145, 0.0
  %v194 = vmax.f32 %v150, 0.0
  %v195 = vmax.f32 %v153, 0.0
  %v196 = vmax.f32 %v158, 0.0
  %v197 = vmax.f32 %v161, 0.0
  %v198 = vmax.f32 %v166, 0.0
  %v199 = vmax.f32 %v169, 0.0
  %v200 = vmax.f32 %v174, 0.0
  %v201 = vmax.f32 %v177, 0.0
  %v202 = vmax.f32 %v182, 0.0
  %v203 = vmax.f32 %v185, 0.0
  %v204 = vpack.c.bf16 %v189, %v188
  %v205 = vpack.c.bf16 %v191, %v190
  %v206 = vpack.c.bf16 %v193, %v192
  %v207 = vpack.c.bf16 %v195, %v194
  %v208 = vpack.c.bf16 %v197, %v196
  %v209 = vpack.c.bf16 %v199, %v198
  %v210 = vpack.c.bf16 %v201, %v200
  %v211 = vpack.c.bf16 %v203, %v202
  %v212 = vld [vmem:[%s3] sm:$0xf]
  %v213 = vld [vmem:[%s3 + $0x4] sm:$0xf]
  %v214 = vld [vmem:[%s3 + $0x8] sm:$0xf]
  %v215 = vld [vmem:[%s3 + $0xc] sm:$0xf]
  %v216 = vld [vmem:[%s3 + $0x10] sm:$0xf]
  %v217 = vld [vmem:[%s3 + $0x14] sm:$0xf]
  %v218 = vld [vmem:[%s3 + $0x18] sm:$0xf]
  %v219 = vld [vmem:[%s3 + $0x1c] sm:$0xf]
  %v220 = vld [vmem:[%s4] sm:$0x1]
  %v222 = vlaneseq
  %v223 = vshrl.u32 %v222, 7
  %v224 = vsub.s32 0, %v223
  %v225 = vrot.slane %v220, %v224
  %v235 = vunpack.c.l.b16 %v212
  %v236 = vunpack.c.l.b16 %v213
  %v237 = vunpack.c.l.b16 %v214
  %v238 = vunpack.c.l.b16 %v215
  %v239 = vunpack.c.l.b16 %v216
  %v240 = vunpack.c.l.b16 %v217
  %v241 = vunpack.c.l.b16 %v218
  %v242 = vunpack.c.l.b16 %v219
  %v243 = vpack.c.b16 %v236, %v235
  %v244 = vpack.c.b16 %v238, %v237
  %v245 = vpack.c.b16 %v240, %v239
  %v246 = vpack.c.b16 %v242, %v241
  %vm251 = vcmask 523264
  %v253 = vsel %vm251, %v204, 0
  %v256 = vsel %vm251, %v205, 0
  %v259 = vsel %vm251, %v206, 0
  %v262 = vsel %vm251, %v207, 0
  %v265 = vsel %vm251, %v208, 0
  %v268 = vsel %vm251, %v209, 0
  %v271 = vsel %vm251, %v210, 0
  %v274 = vsel %vm251, %v211, 0
  %276 = vmatprep.subr.bf16.mxu0 0
  %277 = vmatpush1.bf16.msra.mxu0 0
  %278 = vmatprep.subr.bf16.mxu0 0
  %279 = vmatpush1.bf16.msra.mxu0 0
  %280 = vmatprep.subr.bf16.mxu0 0
  %281 = vmatpush1.bf16.msra.mxu0 0
  %282 = vmatprep.subr.bf16.mxu0 0
  %283 = vmatpush1.bf16.msra.mxu0 0
  %284 = vmatprep.subr.bf16.mxu0 0
  %285 = vmatpush1.bf16.msra.mxu0 %v246
  %286 = vmatprep.subr.bf16.mxu0 0
  %287 = vmatpush1.bf16.msra.mxu0 %v245
  %288 = vmatprep.subr.bf16.mxu0 0
  %289 = vmatpush1.bf16.msra.mxu0 %v244
  %290 = vmatprep.subr.bf16.mxu0 0
  %291 = vmatpush1.bf16.msra.mxu0 %v243
  %292 = vmatprep.subr.bf16.mxu0 0
  %293 = vmatpush2.bf16.msra.mxu0 0
  %294 = vmatprep.subr.bf16.mxu0 0
  %295 = vmatpush2.bf16.msra.mxu0 0
  %296 = vmatprep.subr.bf16.mxu0 0
  %297 = vmatpush2.bf16.msra.mxu0 0
  %298 = vmatprep.subr.bf16.mxu0 0
  %299 = vmatpush2.bf16.msra.mxu0 0
  %300 = vmatprep.subr.bf16.mxu0 0
  %301 = vmatpush2.bf16.msra.mxu0 0
  %302 = vmatprep.subr.bf16.mxu0 0
  %303 = vmatpush2.bf16.msra.mxu0 0
  %304 = vmatprep.subr.bf16.mxu0 0
  %305 = vmatpush2.bf16.msra.mxu0 0
  %306 = vmatprep.subr.bf16.mxu0 0
  %307 = vmatpush2.bf16.msra.mxu0 0
  %308 = vmatprep.mubr.bf16.mxu0 0
  %309 = vmatmul.mubr.bf16.gmra.mxu0 %v253
  %v310 = vpop.f32.mrf.mxu0
  %v311 = vadd.f32 %v225, %v310
  %v312 = vpop.f32.mrf.mxu0
  %v313 = vpop.f32.mrf.mxu0
  %v314 = vadd.f32 %v225, %v313
  %v315 = vpop.f32.mrf.mxu0
  %316 = vmatprep.mubr.bf16.mxu0 0
  %317 = vmatmul.mubr.bf16.gmra.mxu0 %v256
  %v318 = vpop.f32.mrf.mxu0
  %v319 = vadd.f32 %v225, %v318
  %v320 = vpop.f32.mrf.mxu0
  %v321 = vpop.f32.mrf.mxu0
  %v322 = vadd.f32 %v225, %v321
  %v323 = vpop.f32.mrf.mxu0
  %324 = vmatprep.mubr.bf16.mxu0 0
  %325 = vmatmul.mubr.bf16.gmra.mxu0 %v259
  %v326 = vpop.f32.mrf.mxu0
  %v327 = vadd.f32 %v225, %v326
  %v328 = vpop.f32.mrf.mxu0
  %v329 = vpop.f32.mrf.mxu0
  %v330 = vadd.f32 %v225, %v329
  %v331 = vpop.f32.mrf.mxu0
  %332 = vmatprep.mubr.bf16.mxu0 0
  %333 = vmatmul.mubr.bf16.gmra.mxu0 %v262
  %v334 = vpop.f32.mrf.mxu0
  %v335 = vadd.f32 %v225, %v334
  %v336 = vpop.f32.mrf.mxu0
  %v337 = vpop.f32.mrf.mxu0
  %v338 = vadd.f32 %v225, %v337
  %v339 = vpop.f32.mrf.mxu0
  %340 = vmatprep.mubr.bf16.mxu0 0
  %341 = vmatmul.mubr.bf16.gmra.mxu0 %v265
  %v342 = vpop.f32.mrf.mxu0
  %v343 = vadd.f32 %v225, %v342
  %v344 = vpop.f32.mrf.mxu0
  %v345 = vpop.f32.mrf.mxu0
  %v346 = vadd.f32 %v225, %v345
  %v347 = vpop.f32.mrf.mxu0
  %348 = vmatprep.mubr.bf16.mxu0 0
  %349 = vmatmul.mubr.bf16.gmra.mxu0 %v268
  %v350 = vpop.f32.mrf.mxu0
  %v351 = vadd.f32 %v225, %v350
  %v352 = vpop.f32.mrf.mxu0
  %v353 = vpop.f32.mrf.mxu0
  %v354 = vadd.f32 %v225, %v353
  %v355 = vpop.f32.mrf.mxu0
  %356 = vmatprep.mubr.bf16.mxu0 0
  %357 = vmatmul.mubr.bf16.gmra.mxu0 %v271
  %v358 = vpop.f32.mrf.mxu0
  %v359 = vadd.f32 %v225, %v358
  %v360 = vpop.f32.mrf.mxu0
  %v361 = vpop.f32.mrf.mxu0
  %v362 = vadd.f32 %v225, %v361
  %v363 = vpop.f32.mrf.mxu0
  %364 = vmatprep.mubr.bf16.mxu0 0
  %365 = vmatmul.mubr.bf16.gmra.mxu0 %v274
  %v366 = vpop.f32.mrf.mxu0
  %v367 = vadd.f32 %v225, %v366
  %v368 = vpop.f32.mrf.mxu0
  %v369 = vpop.f32.mrf.mxu0
  %v370 = vadd.f32 %v225, %v369
  %v371 = vpop.f32.mrf.mxu0
  %372 = vdwg.mxu0
  %v373 = vadd.f32 %v27, %v311
  %v374 = vadd.f32 %v28, %v314
  %v375 = vadd.f32 %v29, %v319
  %v376 = vadd.f32 %v30, %v322
  %v377 = vadd.f32 %v31, %v327
  %v378 = vadd.f32 %v32, %v330
  %v379 = vadd.f32 %v33, %v335
  %v380 = vadd.f32 %v34, %v338
  %v381 = vadd.f32 %v35, %v343
  %v382 = vadd.f32 %v36, %v346
  %v383 = vadd.f32 %v37, %v351
  %v384 = vadd.f32 %v38, %v354
  %v385 = vadd.f32 %v39, %v359
  %v386 = vadd.f32 %v40, %v362
  %v387 = vadd.f32 %v41, %v367
  %v388 = vadd.f32 %v42, %v370
  %v389 = vsel %vm66, %v373, 0.0
  %390 = vadd.xlane.f32.xlu0 %v389
  %v391 = vpop.xlane.xlu0 %390
  %v392 = vsel %vm66, %v374, 0.0
  %393 = vadd.xlane.f32.xlu0 %v392
  %v394 = vpop.xlane.xlu0 %393
  %v395 = vsel %vm66, %v375, 0.0
  %396 = vadd.xlane.f32.xlu0 %v395
  %v397 = vpop.xlane.xlu0 %396
  %v398 = vsel %vm66, %v376, 0.0
  %399 = vadd.xlane.f32.xlu0 %v398
  %v400 = vpop.xlane.xlu0 %399
  %v401 = vsel %vm66, %v377, 0.0
  %402 = vadd.xlane.f32.xlu0 %v401
  %v403 = vpop.xlane.xlu0 %402
  %v404 = vsel %vm66, %v378, 0.0
  %405 = vadd.xlane.f32.xlu0 %v404
  %v406 = vpop.xlane.xlu0 %405
  %v407 = vsel %vm66, %v379, 0.0
  %408 = vadd.xlane.f32.xlu0 %v407
  %v409 = vpop.xlane.xlu0 %408
  %v410 = vsel %vm66, %v380, 0.0
  %411 = vadd.xlane.f32.xlu0 %v410
  %v412 = vpop.xlane.xlu0 %411
  %v413 = vsel %vm66, %v381, 0.0
  %414 = vadd.xlane.f32.xlu0 %v413
  %v415 = vpop.xlane.xlu0 %414
  %v416 = vsel %vm66, %v382, 0.0
  %417 = vadd.xlane.f32.xlu0 %v416
  %v418 = vpop.xlane.xlu0 %417
  %v419 = vsel %vm66, %v383, 0.0
  %420 = vadd.xlane.f32.xlu0 %v419
  %v421 = vpop.xlane.xlu0 %420
  %v422 = vsel %vm66, %v384, 0.0
  %423 = vadd.xlane.f32.xlu0 %v422
  %v424 = vpop.xlane.xlu0 %423
  %v425 = vsel %vm66, %v385, 0.0
  %426 = vadd.xlane.f32.xlu0 %v425
  %v427 = vpop.xlane.xlu0 %426
  %v428 = vsel %vm66, %v386, 0.0
  %429 = vadd.xlane.f32.xlu0 %v428
  %v430 = vpop.xlane.xlu0 %429
  %v431 = vsel %vm66, %v387, 0.0
  %432 = vadd.xlane.f32.xlu0 %v431
  %v433 = vpop.xlane.xlu0 %432
  %v434 = vsel %vm66, %v388, 0.0
  %435 = vadd.xlane.f32.xlu0 %v434
  %v436 = vpop.xlane.xlu0 %435
  %v437 = vrcp.pop 16.0
  %v438 = vmul.f32 %v391, %v437
  %v439 = vmul.f32 %v394, %v437
  %v440 = vmul.f32 %v397, %v437
  %v441 = vmul.f32 %v400, %v437
  %v442 = vmul.f32 %v403, %v437
  %v443 = vmul.f32 %v406, %v437
  %v444 = vmul.f32 %v409, %v437
  %v445 = vmul.f32 %v412, %v437
  %v446 = vmul.f32 %v415, %v437
  %v447 = vmul.f32 %v418, %v437
  %v448 = vmul.f32 %v421, %v437
  %v449 = vmul.f32 %v424, %v437
  %v450 = vmul.f32 %v427, %v437
  %v451 = vmul.f32 %v430, %v437
  %v452 = vmul.f32 %v433, %v437
  %v453 = vmul.f32 %v436, %v437
  %v454 = vmul.f32 %v373, %v373
  %v455 = vmul.f32 %v374, %v374
  %v456 = vmul.f32 %v375, %v375
  %v457 = vmul.f32 %v376, %v376
  %v458 = vmul.f32 %v377, %v377
  %v459 = vmul.f32 %v378, %v378
  %v460 = vmul.f32 %v379, %v379
  %v461 = vmul.f32 %v380, %v380
  %v462 = vmul.f32 %v381, %v381
  %v463 = vmul.f32 %v382, %v382
  %v464 = vmul.f32 %v383, %v383
  %v465 = vmul.f32 %v384, %v384
  %v466 = vmul.f32 %v385, %v385
  %v467 = vmul.f32 %v386, %v386
  %v468 = vmul.f32 %v387, %v387
  %v469 = vmul.f32 %v388, %v388
  %v470 = vsel %vm66, %v454, 0.0
  %471 = vadd.xlane.f32.xlu0 %v470
  %v472 = vpop.xlane.xlu0 %471
  %v473 = vsel %vm66, %v455, 0.0
  %474 = vadd.xlane.f32.xlu0 %v473
  %v475 = vpop.xlane.xlu0 %474
  %v476 = vsel %vm66, %v456, 0.0
  %477 = vadd.xlane.f32.xlu0 %v476
  %v478 = vpop.xlane.xlu0 %477
  %v479 = vsel %vm66, %v457, 0.0
  %480 = vadd.xlane.f32.xlu0 %v479
  %v481 = vpop.xlane.xlu0 %480
  %v482 = vsel %vm66, %v458, 0.0
  %483 = vadd.xlane.f32.xlu0 %v482
  %v484 = vpop.xlane.xlu0 %483
  %v485 = vsel %vm66, %v459, 0.0
  %486 = vadd.xlane.f32.xlu0 %v485
  %v487 = vpop.xlane.xlu0 %486
  %v488 = vsel %vm66, %v460, 0.0
  %489 = vadd.xlane.f32.xlu0 %v488
  %v490 = vpop.xlane.xlu0 %489
  %v491 = vsel %vm66, %v461, 0.0
  %492 = vadd.xlane.f32.xlu0 %v491
  %v493 = vpop.xlane.xlu0 %492
  %v494 = vsel %vm66, %v462, 0.0
  %495 = vadd.xlane.f32.xlu0 %v494
  %v496 = vpop.xlane.xlu0 %495
  %v497 = vsel %vm66, %v463, 0.0
  %498 = vadd.xlane.f32.xlu0 %v497
  %v499 = vpop.xlane.xlu0 %498
  %v500 = vsel %vm66, %v464, 0.0
  %501 = vadd.xlane.f32.xlu0 %v500
  %v502 = vpop.xlane.xlu0 %501
  %v503 = vsel %vm66, %v465, 0.0
  %504 = vadd.xlane.f32.xlu0 %v503
  %v505 = vpop.xlane.xlu0 %504
  %v506 = vsel %vm66, %v466, 0.0
  %507 = vadd.xlane.f32.xlu0 %v506
  %v508 = vpop.xlane.xlu0 %507
  %v509 = vsel %vm66, %v467, 0.0
  %510 = vadd.xlane.f32.xlu0 %v509
  %v511 = vpop.xlane.xlu0 %510
  %v512 = vsel %vm66, %v468, 0.0
  %513 = vadd.xlane.f32.xlu0 %v512
  %v514 = vpop.xlane.xlu0 %513
  %v515 = vsel %vm66, %v469, 0.0
  %516 = vadd.xlane.f32.xlu0 %v515
  %v517 = vpop.xlane.xlu0 %516
  %v518 = vmul.f32 %v472, %v437
  %v519 = vmul.f32 %v475, %v437
  %v520 = vmul.f32 %v478, %v437
  %v521 = vmul.f32 %v481, %v437
  %v522 = vmul.f32 %v484, %v437
  %v523 = vmul.f32 %v487, %v437
  %v524 = vmul.f32 %v490, %v437
  %v525 = vmul.f32 %v493, %v437
  %v526 = vmul.f32 %v496, %v437
  %v527 = vmul.f32 %v499, %v437
  %v528 = vmul.f32 %v502, %v437
  %v529 = vmul.f32 %v505, %v437
  %v530 = vmul.f32 %v508, %v437
  %v531 = vmul.f32 %v511, %v437
  %v532 = vmul.f32 %v514, %v437
  %v533 = vmul.f32 %v517, %v437
  %v534 = vmul.f32 %v438, %v438
  %v535 = vmul.f32 %v439, %v439
  %v536 = vmul.f32 %v440, %v440
  %v537 = vmul.f32 %v441, %v441
  %v538 = vmul.f32 %v442, %v442
  %v539 = vmul.f32 %v443, %v443
  %v540 = vmul.f32 %v444, %v444
  %v541 = vmul.f32 %v445, %v445
  %v542 = vmul.f32 %v446, %v446
  %v543 = vmul.f32 %v447, %v447
  %v544 = vmul.f32 %v448, %v448
  %v545 = vmul.f32 %v449, %v449
  %v546 = vmul.f32 %v450, %v450
  %v547 = vmul.f32 %v451, %v451
  %v548 = vmul.f32 %v452, %v452
  %v549 = vmul.f32 %v453, %v453
  %v550 = vsub.f32 %v518, %v534
  %v551 = vsub.f32 %v519, %v535
  %v552 = vsub.f32 %v520, %v536
  %v553 = vsub.f32 %v521, %v537
  %v554 = vsub.f32 %v522, %v538
  %v555 = vsub.f32 %v523, %v539
  %v556 = vsub.f32 %v524, %v540
  %v557 = vsub.f32 %v525, %v541
  %v558 = vsub.f32 %v526, %v542
  %v559 = vsub.f32 %v527, %v543
  %v560 = vsub.f32 %v528, %v544
  %v561 = vsub.f32 %v529, %v545
  %v562 = vsub.f32 %v530, %v546
  %v563 = vsub.f32 %v531, %v547
  %v564 = vsub.f32 %v532, %v548
  %v565 = vsub.f32 %v533, %v549
  %v566 = vadd.f32 %v550, 1e-05
  %v567 = vadd.f32 %v551, 1e-05
  %v568 = vadd.f32 %v552, 1e-05
  %v569 = vadd.f32 %v553, 1e-05
  %v570 = vadd.f32 %v554, 1e-05
  %v571 = vadd.f32 %v555, 1e-05
  %v572 = vadd.f32 %v556, 1e-05
  %v573 = vadd.f32 %v557, 1e-05
  %v574 = vadd.f32 %v558, 1e-05
  %v575 = vadd.f32 %v559, 1e-05
  %v576 = vadd.f32 %v560, 1e-05
  %v577 = vadd.f32 %v561, 1e-05
  %v578 = vadd.f32 %v562, 1e-05
  %v579 = vadd.f32 %v563, 1e-05
  %v580 = vadd.f32 %v564, 1e-05
  %v581 = vadd.f32 %v565, 1e-05
  %v582 = vrsqrt.pop %v566
  %v583 = vrsqrt.pop %v567
  %v584 = vrsqrt.pop %v568
  %v585 = vrsqrt.pop %v569
  %v586 = vrsqrt.pop %v570
  %v587 = vrsqrt.pop %v571
  %v588 = vrsqrt.pop %v572
  %v589 = vrsqrt.pop %v573
  %v590 = vrsqrt.pop %v574
  %v591 = vrsqrt.pop %v575
  %v592 = vrsqrt.pop %v576
  %v593 = vrsqrt.pop %v577
  %v594 = vrsqrt.pop %v578
  %v595 = vrsqrt.pop %v579
  %v596 = vrsqrt.pop %v580
  %v597 = vrsqrt.pop %v581
  %v598 = vsub.f32 %v373, %v438
  %v599 = vsub.f32 %v374, %v439
  %v600 = vsub.f32 %v375, %v440
  %v601 = vsub.f32 %v376, %v441
  %v602 = vsub.f32 %v377, %v442
  %v603 = vsub.f32 %v378, %v443
  %v604 = vsub.f32 %v379, %v444
  %v605 = vsub.f32 %v380, %v445
  %v606 = vsub.f32 %v381, %v446
  %v607 = vsub.f32 %v382, %v447
  %v608 = vsub.f32 %v383, %v448
  %v609 = vsub.f32 %v384, %v449
  %v610 = vsub.f32 %v385, %v450
  %v611 = vsub.f32 %v386, %v451
  %v612 = vsub.f32 %v387, %v452
  %v613 = vsub.f32 %v388, %v453
  %v614 = vmul.f32 %v598, %v582
  %v615 = vmul.f32 %v599, %v583
  %v616 = vmul.f32 %v600, %v584
  %v617 = vmul.f32 %v601, %v585
  %v618 = vmul.f32 %v602, %v586
  %v619 = vmul.f32 %v603, %v587
  %v620 = vmul.f32 %v604, %v588
  %v621 = vmul.f32 %v605, %v589
  %v622 = vmul.f32 %v606, %v590
  %v623 = vmul.f32 %v607, %v591
  %v624 = vmul.f32 %v608, %v592
  %v625 = vmul.f32 %v609, %v593
  %v626 = vmul.f32 %v610, %v594
  %v627 = vmul.f32 %v611, %v595
  %v628 = vmul.f32 %v612, %v596
  %v629 = vmul.f32 %v613, %v597
  %v630 = vld [vmem:[%s5] sm:$0x1]
  %v632 = vlaneseq
  %v633 = vshrl.u32 %v632, 7
  %v634 = vsub.s32 0, %v633
  %v635 = vrot.slane %v630, %v634
  %v637 = vmul.f32 %v614, %v635
  %v638 = vmul.f32 %v615, %v635
  %v639 = vmul.f32 %v616, %v635
  %v640 = vmul.f32 %v617, %v635
  %v641 = vmul.f32 %v618, %v635
  %v642 = vmul.f32 %v619, %v635
  %v643 = vmul.f32 %v620, %v635
  %v644 = vmul.f32 %v621, %v635
  %v645 = vmul.f32 %v622, %v635
  %v646 = vmul.f32 %v623, %v635
  %v647 = vmul.f32 %v624, %v635
  %v648 = vmul.f32 %v625, %v635
  %v649 = vmul.f32 %v626, %v635
  %v650 = vmul.f32 %v627, %v635
  %v651 = vmul.f32 %v628, %v635
  %v652 = vmul.f32 %v629, %v635
  %v653 = vld [vmem:[%s6] sm:$0x1]
  %v655 = vlaneseq
  %v656 = vshrl.u32 %v655, 7
  %v657 = vsub.s32 0, %v656
  %v658 = vrot.slane %v653, %v657
  %v660 = vadd.f32 %v637, %v658
  %v661 = vadd.f32 %v638, %v658
  %v662 = vadd.f32 %v639, %v658
  %v663 = vadd.f32 %v640, %v658
  %v664 = vadd.f32 %v641, %v658
  %v665 = vadd.f32 %v642, %v658
  %v666 = vadd.f32 %v643, %v658
  %v667 = vadd.f32 %v644, %v658
  %v668 = vadd.f32 %v645, %v658
  %v669 = vadd.f32 %v646, %v658
  %v670 = vadd.f32 %v647, %v658
  %v671 = vadd.f32 %v648, %v658
  %v672 = vadd.f32 %v649, %v658
  %v673 = vadd.f32 %v650, %v658
  %v674 = vadd.f32 %v651, %v658
  %v675 = vadd.f32 %v652, %v658
  %676 = vst.msk [vmem:[%s7] sm:$0xff] %vm66, %v660
  %677 = vst.msk [vmem:[%s7 + $0x8] sm:$0xff] %vm66, %v661
  %678 = vst.msk [vmem:[%s7 + $0x10] sm:$0xff] %vm66, %v662
  %679 = vst.msk [vmem:[%s7 + $0x18] sm:$0xff] %vm66, %v663
  %680 = vst.msk [vmem:[%s7 + $0x20] sm:$0xff] %vm66, %v664
  %681 = vst.msk [vmem:[%s7 + $0x28] sm:$0xff] %vm66, %v665
  %682 = vst.msk [vmem:[%s7 + $0x30] sm:$0xff] %vm66, %v666
  %683 = vst.msk [vmem:[%s7 + $0x38] sm:$0xff] %vm66, %v667
  %684 = vst.msk [vmem:[%s7 + $0x40] sm:$0xff] %vm66, %v668
  %685 = vst.msk [vmem:[%s7 + $0x48] sm:$0xff] %vm66, %v669
  %686 = vst.msk [vmem:[%s7 + $0x50] sm:$0xff] %vm66, %v670
  %687 = vst.msk [vmem:[%s7 + $0x58] sm:$0xff] %vm66, %v671
  %688 = vst.msk [vmem:[%s7 + $0x60] sm:$0xff] %vm66, %v672
  %689 = vst.msk [vmem:[%s7 + $0x68] sm:$0xff] %vm66, %v673
  %690 = vst.msk [vmem:[%s7 + $0x70] sm:$0xff] %vm66, %v674
  %691 = vst.msk [vmem:[%s7 + $0x78] sm:$0xff] %vm66, %v675
  // Predicated region
  $region30: #{decoder_forward.11} parent=0 // pred_check
    _
  $region31: #{decoder_forward.11} parent=0 // pred_check_branch
    %693 = sbr.rel (0) target = $region33
  $region32: #{decoder_forward.11} parent=0 // pred_region
    _
  $region33: #{decoder_forward.11} parent=0 // pred_fallthru
    _
  // Predicated region
  $region34: #{decoder_forward.11} parent=0 // pred_check
    _
  $region35: #{decoder_forward.11} parent=0 // pred_check_branch
    %695 = sbr.rel (0) target = $region37
  $region36: #{decoder_forward.11} parent=0 // pred_region
    _
  $region37: #{decoder_forward.11} parent=0 // pred_fallthru
    _

// kernel: decoder_forward.10
$region0: #{decoder_forward.10}
  #allocation0 [shape = 'u32[]', space=smem, size = 0x4, offset = 0x4, fixed_abs, tag = 'smem constant byte address 0x4 - core index']
  #allocation1 [shape = 'u32[144,128]{1,0:T(1,128)}', space=vmem, size = 0x12000, scoped, tag = 'internal scratch']
  #allocation2 [shape = 'bf16[1,8,16]{2,1,0:T(8,128)(2,1)}', space=vmem, size = 0x800, scoped, tag = 'scratch operand']
  #allocation3 [shape = 'bf16[1,8,16]{2,1,0:T(8,128)(2,1)}', space=vmem, size = 0x800, scoped, tag = 'scratch operand']
  %s0 = inlined_call_operand.vmem [shape: f32[16,8,16], index: 0, kind: input, shape index: {}, may-alias: {0,1,2}]
  %s1 = inlined_call_operand.vmem [shape: f32[16,8,16], index: 1, kind: input, shape index: {}, may-alias: {0,1,2}]
  %s2 = inlined_call_operand.vmem [shape: f32[16,8,16], index: 2, kind: input, shape index: {}, may-alias: {0,1,2}]
  %s3 = inlined_call_operand.vmem [shape: bf16[1,16,16], index: 3, kind: input, shape index: {}]
  %s4 = inlined_call_operand.vmem [shape: f32[1,1,16], index: 4, kind: input, shape index: {}]
  %s5 = inlined_call_operand.vmem [shape: bf16[1,16,16], index: 5, kind: input, shape index: {}]
  %s6 = inlined_call_operand.vmem [shape: f32[1,1,16], index: 6, kind: input, shape index: {}]
  %s7 = inlined_call_operand.vmem [shape: bf16[1,16,16], index: 7, kind: input, shape index: {}]
  %s8 = inlined_call_operand.vmem [shape: f32[1,1,16], index: 8, kind: input, shape index: {}]
  %s9 = inlined_call_operand.vmem [shape: bf16[1,16,16], index: 9, kind: input, shape index: {}]
  %s10 = inlined_call_operand.vmem [shape: f32[1,16], index: 10, kind: input, shape index: {}]
  %s11 = inlined_call_operand.vmem [shape: f32[1,16], index: 11, kind: input, shape index: {}]
  %s12 = inlined_call_operand.vmem [shape: f32[1,16], index: 12, kind: input, shape index: {}]
  %s13 = inlined_call_operand.vmem [shape: f32[16,8,16], index: 13, kind: output, shape index: {}]
  %s14 = sld [smem:[#allocation0]]
  $region89: #{decoder_forward.10} parent=0
    _
  %s16 = ssub.s32 1, %s14
  %s17 = scalar_select 0, %s16, %s14
  loop: start=0, step=1, limit=18
  $region2: #{decoder_forward.10} parent=0 // loop_pre_header
    _
  $region3: #{decoder_forward.10} parent=0 // loop_header
    %s19 = sphi 0, %s23
    %p20 = scmp.ge.s32.totalorder %s19, 18
    %s26 = sphi 0, %s38
    %s27 = sphi 0, %s34
    %s28 = sphi 0, %s26
    %s29 = sphi 0, %s27
    %s30 = sphi 0, %s28
    %s31 = sphi 0, %s29
    %s43 = sphi 0, %s45
    %s46 = sphi 0, %s43
    %s47 = sphi 0, %s46
    %s63 = sphi 0, %s47
    %s69 = sphi 0, %s71
    %s72 = sphi 0, %s69
    %s73 = sphi 0, %s72
    %s89 = sphi 0, %s73
    %s95 = sphi 0, %s97
    %s98 = sphi 0, %s95
    %s99 = sphi 0, %s98
    %s115 = sphi 0, %s99
    %s119 = sphi 0, %s119
    %s121 = sphi 0, %s119
    %s122 = sphi 0, %s121
    %s136 = sphi 0, %s122
    %s140 = sphi 0, %s140
    %s142 = sphi 0, %s140
    %s143 = sphi 0, %s142
    %s157 = sphi 0, %s143
    %s161 = sphi 0, %s161
    %s163 = sphi 0, %s161
    %s164 = sphi 0, %s163
    %s178 = sphi 0, %s164
    %s182 = sphi 0, %s182
    %s184 = sphi 0, %s182
    %s185 = sphi 0, %s184
    %s199 = sphi 0, %s185
    %s203 = sphi 0, %s203
    %s205 = sphi 0, %s203
    %s206 = sphi 0, %s205
    %s220 = sphi 0, %s206
    %s224 = sphi 0, %s224
    %s226 = sphi 0, %s224
    %s227 = sphi 0, %s226
    %s241 = sphi 0, %s227
    %s245 = sphi 0, %s245
    %s247 = sphi 0, %s245
    %s248 = sphi 0, %s247
    %s262 = sphi 0, %s248
    %s266 = sphi 0, %s266
    %s268 = sphi 0, %s266
    %s269 = sphi 0, %s268
    %s283 = sphi 0, %s269
    %s287 = sphi 0, %s287
    %s289 = sphi 0, %s287
    %s290 = sphi 0, %s289
    %s304 = sphi 0, %s290
    %s308 = sphi 0, %s308
    %s310 = sphi 0, %s308
    %s311 = sphi 0, %s310
    %s325 = sphi 0, %s311
    %s333 = sphi 0, %s335
    %s336 = sphi 0, %s333
    %s337 = sphi 0, %s336
    %s353 = sphi 0, %s337
  $region4: #{decoder_forward.10} parent=0 // loop_header_branch
    %22 = sbr.rel (%p20) target = $region8
  $region5: #{decoder_forward.10} parent=0 // loop_body
    %s24 = ssub.s32 %s19, 1
    %s25 = ssub.s32 %s19, 2
    %s32 = sadd.s32 1, %s27
    %p33 = scmp.ge.s32.totalorder %s32, 1
    %s34 = scalar_select %p33, 0, %s32
    %s35 = sadd.s32 1, %s26
    %s36 = scalar_select %p33, %s35, %s26
    %p37 = scmp.ge.s32.totalorder %s36, 16
    %s38 = scalar_select %p37, 0, %s36
    %s39 = ssub.s32 %s26, %s38
    %s40 = ssub.s32 %s27, %s34
    %s41 = sor.u32 %s39, %s40
    %p42 = scmp.eq.s32.totalorder %s41, 0
    %s44 = sadd.s32 %s43, 1
    %s45 = scalar_select %p42, %s43, %s44
    %p48 = pneg %p42
    %p49 = scmp.eq.s32.totalorder %s19, 15
    %p50 = por %p48, %p49
    %p51 = scmp.ne.s32.totalorder %s43, %s46
    %p52 = scmp.eq.s32.totalorder %s19, 0
    %p53 = por %p51, %p52
    %p54 = scmp.ne.s32.totalorder %s43, %s46
    %p55 = scmp.eq.s32.totalorder %s24, 15
    %p56 = por %p54, %p55
    %p57 = scmp.ne.s32.totalorder %s46, %s47
    %p58 = scmp.eq.s32.totalorder %s24, 0
    %p59 = por %p57, %p58
    %p60 = scmp.ne.s32.totalorder %s46, %s47
    %p61 = scmp.eq.s32.totalorder %s25, 15
    %p62 = por %p60, %p61
    %p64 = scmp.ne.s32.totalorder %s47, %s63
    %p65 = scmp.eq.s32.totalorder %s25, 0
    %p66 = por %p64, %p65
    %s67 = ssub.s32 %s26, %s38
    %p68 = scmp.eq.s32.totalorder %s67, 0
    %s70 = sadd.s32 %s69, 1
    %s71 = scalar_select %p68, %s69, %s70
    %p74 = pneg %p68
    %p75 = scmp.eq.s32.totalorder %s19, 15
    %p76 = por %p74, %p75
    %p77 = scmp.ne.s32.totalorder %s69, %s72
    %p78 = scmp.eq.s32.totalorder %s19, 0
    %p79 = por %p77, %p78
    %p80 = scmp.ne.s32.totalorder %s69, %s72
    %p81 = scmp.eq.s32.totalorder %s24, 15
    %p82 = por %p80, %p81
    %p83 = scmp.ne.s32.totalorder %s72, %s73
    %p84 = scmp.eq.s32.totalorder %s24, 0
    %p85 = por %p83, %p84
    %p86 = scmp.ne.s32.totalorder %s72, %s73
    %p87 = scmp.eq.s32.totalorder %s25, 15
    %p88 = por %p86, %p87
    %p90 = scmp.ne.s32.totalorder %s73, %s89
    %p91 = scmp.eq.s32.totalorder %s25, 0
    %p92 = por %p90, %p91
    %s93 = ssub.s32 %s26, %s38
    %p94 = scmp.eq.s32.totalorder %s93, 0
    %s96 = sadd.s32 %s95, 1
    %s97 = scalar_select %p94, %s95, %s96
    %p100 = pneg %p94
    %p101 = scmp.eq.s32.totalorder %s19, 15
    %p102 = por %p100, %p101
    %p103 = scmp.ne.s32.totalorder %s95, %s98
    %p104 = scmp.eq.s32.totalorder %s19, 0
    %p105 = por %p103, %p104
    %p106 = scmp.ne.s32.totalorder %s95, %s98
    %p107 = scmp.eq.s32.totalorder %s24, 15
    %p108 = por %p106, %p107
    %p109 = scmp.ne.s32.totalorder %s98, %s99
    %p110 = scmp.eq.s32.totalorder %s24, 0
    %p111 = por %p109, %p110
    %p112 = scmp.ne.s32.totalorder %s98, %s99
    %p113 = scmp.eq.s32.totalorder %s25, 15
    %p114 = por %p112, %p113
    %p116 = scmp.ne.s32.totalorder %s99, %s115
    %p117 = scmp.eq.s32.totalorder %s25, 0
    %p118 = por %p116, %p117
    %s120 = sadd.s32 %s119, 1
    %p123 = scmp.eq.s32.totalorder %s19, 15
    %p124 = scmp.ne.s32.totalorder %s119, %s121
    %p125 = scmp.eq.s32.totalorder %s19, 0
    %p126 = por %p124, %p125
    %p127 = scmp.ne.s32.totalorder %s119, %s121
    %p128 = scmp.eq.s32.totalorder %s24, 15
    %p129 = por %p127, %p128
    %p130 = scmp.ne.s32.totalorder %s121, %s122
    %p131 = scmp.eq.s32.totalorder %s24, 0
    %p132 = por %p130, %p131
    %p133 = scmp.ne.s32.totalorder %s121, %s122
    %p134 = scmp.eq.s32.totalorder %s25, 15
    %p135 = por %p133, %p134
    %p137 = scmp.ne.s32.totalorder %s122, %s136
    %p138 = scmp.eq.s32.totalorder %s25, 0
    %p139 = por %p137, %p138
    %s141 = sadd.s32 %s140, 1
    %p144 = scmp.eq.s32.totalorder %s19, 15
    %p145 = scmp.ne.s32.totalorder %s140, %s142
    %p146 = scmp.eq.s32.totalorder %s19, 0
    %p147 = por %p145, %p146
    %p148 = scmp.ne.s32.totalorder %s140, %s142
    %p149 = scmp.eq.s32.totalorder %s24, 15
    %p150 = por %p148, %p149
    %p151 = scmp.ne.s32.totalorder %s142, %s143
    %p152 = scmp.eq.s32.totalorder %s24, 0
    %p153 = por %p151, %p152
    %p154 = scmp.ne.s32.totalorder %s142, %s143
    %p155 = scmp.eq.s32.totalorder %s25, 15
    %p156 = por %p154, %p155
    %p158 = scmp.ne.s32.totalorder %s143, %s157
    %p159 = scmp.eq.s32.totalorder %s25, 0
    %p160 = por %p158, %p159
    %s162 = sadd.s32 %s161, 1
    %p165 = scmp.eq.s32.totalorder %s19, 15
    %p166 = scmp.ne.s32.totalorder %s161, %s163
    %p167 = scmp.eq.s32.totalorder %s19, 0
    %p168 = por %p166, %p167
    %p169 = scmp.ne.s32.totalorder %s161, %s163
    %p170 = scmp.eq.s32.totalorder %s24, 15
    %p171 = por %p169, %p170
    %p172 = scmp.ne.s32.totalorder %s163, %s164
    %p173 = scmp.eq.s32.totalorder %s24, 0
    %p174 = por %p172, %p173
    %p175 = scmp.ne.s32.totalorder %s163, %s164
    %p176 = scmp.eq.s32.totalorder %s25, 15
    %p177 = por %p175, %p176
    %p179 = scmp.ne.s32.totalorder %s164, %s178
    %p180 = scmp.eq.s32.totalorder %s25, 0
    %p181 = por %p179, %p180
    %s183 = sadd.s32 %s182, 1
    %p186 = scmp.eq.s32.totalorder %s19, 15
    %p187 = scmp.ne.s32.totalorder %s182, %s184
    %p188 = scmp.eq.s32.totalorder %s19, 0
    %p189 = por %p187, %p188
    %p190 = scmp.ne.s32.totalorder %s182, %s184
    %p191 = scmp.eq.s32.totalorder %s24, 15
    %p192 = por %p190, %p191
    %p193 = scmp.ne.s32.totalorder %s184, %s185
    %p194 = scmp.eq.s32.totalorder %s24, 0
    %p195 = por %p193, %p194
    %p196 = scmp.ne.s32.totalorder %s184, %s185
    %p197 = scmp.eq.s32.totalorder %s25, 15
    %p198 = por %p196, %p197
    %p200 = scmp.ne.s32.totalorder %s185, %s199
    %p201 = scmp.eq.s32.totalorder %s25, 0
    %p202 = por %p200, %p201
    %s204 = sadd.s32 %s203, 1
    %p207 = scmp.eq.s32.totalorder %s19, 15
    %p208 = scmp.ne.s32.totalorder %s203, %s205
    %p209 = scmp.eq.s32.totalorder %s19, 0
    %p210 = por %p208, %p209
    %p211 = scmp.ne.s32.totalorder %s203, %s205
    %p212 = scmp.eq.s32.totalorder %s24, 15
    %p213 = por %p211, %p212
    %p214 = scmp.ne.s32.totalorder %s205, %s206
    %p215 = scmp.eq.s32.totalorder %s24, 0
    %p216 = por %p214, %p215
    %p217 = scmp.ne.s32.totalorder %s205, %s206
    %p218 = scmp.eq.s32.totalorder %s25, 15
    %p219 = por %p217, %p218
    %p221 = scmp.ne.s32.totalorder %s206, %s220
    %p222 = scmp.eq.s32.totalorder %s25, 0
    %p223 = por %p221, %p222
    %s225 = sadd.s32 %s224, 1
    %p228 = scmp.eq.s32.totalorder %s19, 15
    %p229 = scmp.ne.s32.totalorder %s224, %s226
    %p230 = scmp.eq.s32.totalorder %s19, 0
    %p231 = por %p229, %p230
    %p232 = scmp.ne.s32.totalorder %s224, %s226
    %p233 = scmp.eq.s32.totalorder %s24, 15
    %p234 = por %p232, %p233
    %p235 = scmp.ne.s32.totalorder %s226, %s227
    %p236 = scmp.eq.s32.totalorder %s24, 0
    %p237 = por %p235, %p236
    %p238 = scmp.ne.s32.totalorder %s226, %s227
    %p239 = scmp.eq.s32.totalorder %s25, 15
    %p240 = por %p238, %p239
    %p242 = scmp.ne.s32.totalorder %s227, %s241
    %p243 = scmp.eq.s32.totalorder %s25, 0
    %p244 = por %p242, %p243
    %s246 = sadd.s32 %s245, 1
    %p249 = scmp.eq.s32.totalorder %s19, 15
    %p250 = scmp.ne.s32.totalorder %s245, %s247
    %p251 = scmp.eq.s32.totalorder %s19, 0
    %p252 = por %p250, %p251
    %p253 = scmp.ne.s32.totalorder %s245, %s247
    %p254 = scmp.eq.s32.totalorder %s24, 15
    %p255 = por %p253, %p254
    %p256 = scmp.ne.s32.totalorder %s247, %s248
    %p257 = scmp.eq.s32.totalorder %s24, 0
    %p258 = por %p256, %p257
    %p259 = scmp.ne.s32.totalorder %s247, %s248
    %p260 = scmp.eq.s32.totalorder %s25, 15
    %p261 = por %p259, %p260
    %p263 = scmp.ne.s32.totalorder %s248, %s262
    %p264 = scmp.eq.s32.totalorder %s25, 0
    %p265 = por %p263, %p264
    %s267 = sadd.s32 %s266, 1
    %p270 = scmp.eq.s32.totalorder %s19, 15
    %p271 = scmp.ne.s32.totalorder %s266, %s268
    %p272 = scmp.eq.s32.totalorder %s19, 0
    %p273 = por %p271, %p272
    %p274 = scmp.ne.s32.totalorder %s266, %s268
    %p275 = scmp.eq.s32.totalorder %s24, 15
    %p276 = por %p274, %p275
    %p277 = scmp.ne.s32.totalorder %s268, %s269
    %p278 = scmp.eq.s32.totalorder %s24, 0
    %p279 = por %p277, %p278
    %p280 = scmp.ne.s32.totalorder %s268, %s269
    %p281 = scmp.eq.s32.totalorder %s25, 15
    %p282 = por %p280, %p281
    %p284 = scmp.ne.s32.totalorder %s269, %s283
    %p285 = scmp.eq.s32.totalorder %s25, 0
    %p286 = por %p284, %p285
    %s288 = sadd.s32 %s287, 1
    %p291 = scmp.eq.s32.totalorder %s19, 15
    %p292 = scmp.ne.s32.totalorder %s287, %s289
    %p293 = scmp.eq.s32.totalorder %s19, 0
    %p294 = por %p292, %p293
    %p295 = scmp.ne.s32.totalorder %s287, %s289
    %p296 = scmp.eq.s32.totalorder %s24, 15
    %p297 = por %p295, %p296
    %p298 = scmp.ne.s32.totalorder %s289, %s290
    %p299 = scmp.eq.s32.totalorder %s24, 0
    %p300 = por %p298, %p299
    %p301 = scmp.ne.s32.totalorder %s289, %s290
    %p302 = scmp.eq.s32.totalorder %s25, 15
    %p303 = por %p301, %p302
    %p305 = scmp.ne.s32.totalorder %s290, %s304
    %p306 = scmp.eq.s32.totalorder %s25, 0
    %p307 = por %p305, %p306
    %s309 = sadd.s32 %s308, 1
    %p312 = scmp.eq.s32.totalorder %s19, 15
    %p313 = scmp.ne.s32.totalorder %s308, %s310
    %p314 = scmp.eq.s32.totalorder %s19, 0
    %p315 = por %p313, %p314
    %p316 = scmp.ne.s32.totalorder %s308, %s310
    %p317 = scmp.eq.s32.totalorder %s24, 15
    %p318 = por %p316, %p317
    %p319 = scmp.ne.s32.totalorder %s310, %s311
    %p320 = scmp.eq.s32.totalorder %s24, 0
    %p321 = por %p319, %p320
    %p322 = scmp.ne.s32.totalorder %s310, %s311
    %p323 = scmp.eq.s32.totalorder %s25, 15
    %p324 = por %p322, %p323
    %p326 = scmp.ne.s32.totalorder %s311, %s325
    %p327 = scmp.eq.s32.totalorder %s25, 0
    %p328 = por %p326, %p327
    %s329 = ssub.s32 %s26, %s38
    %s330 = ssub.s32 %s27, %s34
    %s331 = sor.u32 %s329, %s330
    %p332 = scmp.eq.s32.totalorder %s331, 0
    %s334 = sadd.s32 %s333, 1
    %s335 = scalar_select %p332, %s333, %s334
    %p338 = pneg %p332
    %p339 = scmp.eq.s32.totalorder %s19, 15
    %p340 = por %p338, %p339
    %p341 = scmp.ne.s32.totalorder %s333, %s336
    %p342 = scmp.eq.s32.totalorder %s19, 0
    %p343 = por %p341, %p342
    %p344 = scmp.ne.s32.totalorder %s333, %s336
    %p345 = scmp.eq.s32.totalorder %s24, 15
    %p346 = por %p344, %p345
    %p347 = scmp.ne.s32.totalorder %s336, %s337
    %p348 = scmp.eq.s32.totalorder %s24, 0
    %p349 = por %p347, %p348
    %p350 = scmp.ne.s32.totalorder %s336, %s337
    %p351 = scmp.eq.s32.totalorder %s25, 15
    %p352 = por %p350, %p351
    %p354 = scmp.ne.s32.totalorder %s337, %s353
    %p355 = scmp.eq.s32.totalorder %s25, 0
    %p356 = por %p354, %p355
    %p357 = scmp.le.s32.totalorder 1, %s19
    %p358 = scmp.lt.s32.totalorder %s19, 17
    %p359 = pnand %p357, %p358
    %p360 = pneg %p359
    // Predicated region
    $region9: #{decoder_forward.10} parent=5 // pred_check
      _
    $region10: #{decoder_forward.10} parent=5 // pred_check_branch
      %362 = sbr.rel (%p359) target = $region12
    $region11: #{decoder_forward.10} parent=5 // pred_region
      %s363 = ssub.s32 %s19, 1
      // Predicated region
      $region13: #{decoder_forward.10} parent=11 // pred_check
        %p364 = pneg %p132
      $region14: #{decoder_forward.10} parent=11 // pred_check_branch
        %366 = sbr.rel (%p364) target = $region16
      $region15: #{decoder_forward.10} parent=11 // pred_region
        _
      $region16: #{decoder_forward.10} parent=11 // pred_fallthru
        _
      // Predicated region
      $region17: #{decoder_forward.10} parent=11 // pred_check
        %p367 = pneg %p153
      $region18: #{decoder_forward.10} parent=11 // pred_check_branch
        %369 = sbr.rel (%p367) target = $region20
      $region19: #{decoder_forward.10} parent=11 // pred_region
        _
      $region20: #{decoder_forward.10} parent=11 // pred_fallthru
        _
      // Predicated region
      $region21: #{decoder_forward.10} parent=11 // pred_check
        %p370 = pneg %p174
      $region22: #{decoder_forward.10} parent=11 // pred_check_branch
        %372 = sbr.rel (%p370) target = $region24
      $region23: #{decoder_forward.10} parent=11 // pred_region
        _
      $region24: #{decoder_forward.10} parent=11 // pred_fallthru
        _
      // Predicated region
      $region25: #{decoder_forward.10} parent=11 // pred_check
        %p373 = pneg %p195
      $region26: #{decoder_forward.10} parent=11 // pred_check_branch
        %375 = sbr.rel (%p373) target = $region28
      $region27: #{decoder_forward.10} parent=11 // pred_region
        _
      $region28: #{decoder_forward.10} parent=11 // pred_fallthru
        _
      // Predicated region
      $region29: #{decoder_forward.10} parent=11 // pred_check
        %p376 = pneg %p216
      $region30: #{decoder_forward.10} parent=11 // pred_check_branch
        %378 = sbr.rel (%p376) target = $region32
      $region31: #{decoder_forward.10} parent=11 // pred_region
        _
      $region32: #{decoder_forward.10} parent=11 // pred_fallthru
        _
      // Predicated region
      $region33: #{decoder_forward.10} parent=11 // pred_check
        %p379 = pneg %p237
      $region34: #{decoder_forward.10} parent=11 // pred_check_branch
        %381 = sbr.rel (%p379) target = $region36
      $region35: #{decoder_forward.10} parent=11 // pred_region
        _
      $region36: #{decoder_forward.10} parent=11 // pred_fallthru
        _
      // Predicated region
      $region37: #{decoder_forward.10} parent=11 // pred_check
        %p382 = pneg %p258
      $region38: #{decoder_forward.10} parent=11 // pred_check_branch
        %384 = sbr.rel (%p382) target = $region40
      $region39: #{decoder_forward.10} parent=11 // pred_region
        _
      $region40: #{decoder_forward.10} parent=11 // pred_fallthru
        _
      // Predicated region
      $region41: #{decoder_forward.10} parent=11 // pred_check
        %p385 = pneg %p279
      $region42: #{decoder_forward.10} parent=11 // pred_check_branch
        %387 = sbr.rel (%p385) target = $region44
      $region43: #{decoder_forward.10} parent=11 // pred_region
        _
      $region44: #{decoder_forward.10} parent=11 // pred_fallthru
        _
      // Predicated region
      $region45: #{decoder_forward.10} parent=11 // pred_check
        %p388 = pneg %p300
      $region46: #{decoder_forward.10} parent=11 // pred_check_branch
        %390 = sbr.rel (%p388) target = $region48
      $region47: #{decoder_forward.10} parent=11 // pred_region
        _
      $region48: #{decoder_forward.10} parent=11 // pred_fallthru
        _
      // Predicated region
      $region49: #{decoder_forward.10} parent=11 // pred_check
        %p391 = pneg %p321
      $region50: #{decoder_forward.10} parent=11 // pred_check_branch
        %393 = sbr.rel (%p391) target = $region52
      $region51: #{decoder_forward.10} parent=11 // pred_region
        _
      $region52: #{decoder_forward.10} parent=11 // pred_fallthru
        _
    $region12: #{decoder_forward.10} parent=5 // pred_fallthru
      _
    %p394 = scmp.lt.s32.totalorder %s19, 16
    // Predicated region
    $region53: #{decoder_forward.10} parent=5 // pred_check
      %p395 = pneg %p394
    $region54: #{decoder_forward.10} parent=5 // pred_check_branch
      %397 = sbr.rel (%p395) target = $region56
    $region55: #{decoder_forward.10} parent=5 // pred_region
      // Predicated region
      $region57: #{decoder_forward.10} parent=55 // pred_check
        %p398 = pneg %p53
      $region58: #{decoder_forward.10} parent=55 // pred_check_branch
        %400 = sbr.rel (%p398) target = $region60
      $region59: #{decoder_forward.10} parent=55 // pred_region
        %p401 = scmp.lt.s32.totalorder %s26, 15
        %s402 = scalar_select %p401, %s26, 15
        %p403 = scmp.lt.s32.totalorder %s27, 0
        %s404 = scalar_select %p403, %s27, 0
        %s405 = sadd.s32 %s404, %s402
        %s406 = smul.addr %s405, 8
        %s407 = scalar_lea.vmem %s0, %s406
      $region60: #{decoder_forward.10} parent=55 // pred_fallthru
        _
      // Predicated region
      $region61: #{decoder_forward.10} parent=55 // pred_check
        %p408 = pneg %p79
      $region62: #{decoder_forward.10} parent=55 // pred_check_branch
        %410 = sbr.rel (%p408) target = $region64
      $region63: #{decoder_forward.10} parent=55 // pred_region
        %p411 = scmp.lt.s32.totalorder %s26, 15
        %s412 = scalar_select %p411, %s26, 15
        %s413 = smul.addr %s412, 8
        %s414 = scalar_lea.vmem %s1, %s413
      $region64: #{decoder_forward.10} parent=55 // pred_fallthru
        _
      // Predicated region
      $region65: #{decoder_forward.10} parent=55 // pred_check
        %p415 = pneg %p105
      $region66: #{decoder_forward.10} parent=55 // pred_check_branch
        %417 = sbr.rel (%p415) target = $region68
      $region67: #{decoder_forward.10} parent=55 // pred_region
        %p418 = scmp.lt.s32.totalorder %s26, 15
        %s419 = scalar_select %p418, %s26, 15
        %s420 = smul.addr %s419, 8
        %s421 = scalar_lea.vmem %s2, %s420
      $region68: #{decoder_forward.10} parent=55 // pred_fallthru
        _
    $region56: #{decoder_forward.10} parent=5 // pred_fallthru
      _
    %p422 = scmp.le.s32.totalorder 1, %s19
    %p423 = scmp.lt.s32.totalorder %s19, 17
    %p424 = pnand %p422, %p423
    %p425 = pneg %p424
    // Predicated region
    $region69: #{decoder_forward.10} parent=5 // pred_check
      _
    $region70: #{decoder_forward.10} parent=5 // pred_check_branch
      %427 = sbr.rel (%p424) target = $region72
    $region71: #{decoder_forward.10} parent=5 // pred_region
      %s428 = ssub.s32 %s19, 1
      %p429 = scmp.lt.s32.totalorder %s28, 15
      %s430 = scalar_select %p429, %s28, 15
      %p431 = scmp.lt.s32.totalorder %s29, 0
      %s432 = scalar_select %p431, %s29, 0
      %s433 = sadd.s32 %s432, %s430
      %s434 = smul.addr %s433, 8
      %s435 = scalar_lea.vmem %s0, %s434
      %p436 = pneg %p59
      %p437 = pneg %p56
      %p438 = scmp.lt.s32.totalorder %s28, 15
      %s439 = scalar_select %p438, %s28, 15
      %s440 = smul.addr %s439, 8
      %s441 = scalar_lea.vmem %s1, %s440
      %p442 = pneg %p85
      %p443 = pneg %p82
      %p444 = scmp.lt.s32.totalorder %s28, 15
      %s445 = scalar_select %p444, %s28, 15
      %s446 = smul.addr %s445, 8
      %s447 = scalar_lea.vmem %s2, %s446
      %p448 = pneg %p111
      %p449 = pneg %p108
      %p450 = pneg %p132
      %p451 = pneg %p129
      %p452 = pneg %p153
      %p453 = pneg %p150
      %p454 = pneg %p174
      %p455 = pneg %p171
      %p456 = pneg %p195
      %p457 = pneg %p192
      %p458 = pneg %p216
      %p459 = pneg %p213
      %p460 = pneg %p237
      %p461 = pneg %p234
      %p462 = pneg %p258
      %p463 = pneg %p255
      %p464 = pneg %p279
      %p465 = pneg %p276
      %p466 = pneg %p300
      %p467 = pneg %p297
      %p468 = pneg %p321
      %p469 = pneg %p318
      %p470 = pneg %p349
      %p471 = pneg %p346
      %p472 = scmp.lt.s32.totalorder %s28, 15
      %s473 = scalar_select %p472, %s28, 15
      %p474 = scmp.lt.s32.totalorder %s29, 0
      %s475 = scalar_select %p474, %s29, 0
      %s476 = sadd.s32 %s475, %s473
      %s477 = smul.addr %s476, 8
      %s478 = scalar_lea.vmem %s13, %s477
      %p479 = scmp.lt.s32.totalorder %s28, 15
      %s480 = scalar_select %p479, %s28, 15
      %p481 = scmp.lt.s32.totalorder %s29, 0
      %s482 = scalar_select %p481, %s29, 0
      %s483 = sadd.s32 %s482, %s480
      %s484 = smul.addr %s483, 8
      %s485 = scalar_lea.vmem %s0, %s484
      %p486 = scmp.lt.s32.totalorder %s28, 15
      %s487 = scalar_select %p486, %s28, 15
      %s488 = smul.addr %s487, 8
      %s489 = scalar_lea.vmem %s1, %s488
      %p490 = scmp.lt.s32.totalorder %s28, 15
      %s491 = scalar_select %p490, %s28, 15
      %s492 = smul.addr %s491, 8
      %s493 = scalar_lea.vmem %s2, %s492
      %p494 = scmp.lt.s32.totalorder %s28, 15
      %s495 = scalar_select %p494, %s28, 15
      %p496 = scmp.lt.s32.totalorder %s29, 0
      %s497 = scalar_select %p496, %s29, 0
      %s498 = sadd.s32 %s497, %s495
      %s499 = smul.addr %s498, 8
      %s500 = scalar_lea.vmem %s13, %s499
      %p502 = scmp.eq.s32.totalorder %s29, 0
      // Predicated region
      $region73: #{decoder_forward.10} parent=71 // pred_check
        %p503 = pneg %p502
      $region74: #{decoder_forward.10} parent=71 // pred_check_branch
        %505 = sbr.rel (%p503) target = $region76
      $region75: #{decoder_forward.10} parent=71 // pred_region
        %v506 = vld [vmem:[%s489] sm:$0xff]
        %v507 = vpack.c.bf16 %v506, %v506
        %v508 = vld [vmem:[%s493] sm:$0xff]
        %v509 = vpack.c.bf16 %v508, %v508
        %v510 = vld [vmem:[%s5] sm:$0xf]
        %v511 = vld [vmem:[%s5 + $0x4] sm:$0xf]
        %v512 = vld [vmem:[%s6] sm:$0x1]
        %v514 = vlaneseq
        %v515 = vshrl.u32 %v514, 7
        %v516 = vsub.s32 0, %v515
        %v517 = vrot.slane %v512, %v516
        %v521 = vunpack.c.l.b16 %v510
        %v522 = vunpack.c.l.b16 %v511
        %v523 = vpack.c.b16 %v522, %v521
        %vm525 = vcmask 130048
        %v527 = vsel %vm525, %v507, 0
        %529 = vmatprep.subr.bf16.mxu0 0
        %530 = vmatpush1.bf16.msra.mxu0 0
        %531 = vmatprep.subr.bf16.mxu0 0
        %532 = vmatpush1.bf16.msra.mxu0 0
        %533 = vmatprep.subr.bf16.mxu0 0
        %534 = vmatpush1.bf16.msra.mxu0 0
        %535 = vmatprep.subr.bf16.mxu0 0
        %536 = vmatpush1.bf16.msra.mxu0 0
        %537 = vmatprep.subr.bf16.mxu0 0
        %538 = vmatpush1.bf16.msra.mxu0 0
        %539 = vmatprep.subr.bf16.mxu0 0
        %540 = vmatpush1.bf16.msra.mxu0 0
        %541 = vmatprep.subr.bf16.mxu0 0
        %542 = vmatpush1.bf16.msra.mxu0 0
        %543 = vmatprep.subr.bf16.mxu0 0
        %544 = vmatpush1.bf16.msra.mxu0 %v523
        %545 = vmatprep.subr.bf16.mxu0 0
        %546 = vmatpush2.bf16.msra.mxu0 0
        %547 = vmatprep.subr.bf16.mxu0 0
        %548 = vmatpush2.bf16.msra.mxu0 0
        %549 = vmatprep.subr.bf16.mxu0 0
        %550 = vmatpush2.bf16.msra.mxu0 0
        %551 = vmatprep.subr.bf16.mxu0 0
        %552 = vmatpush2.bf16.msra.mxu0 0
        %553 = vmatprep.subr.bf16.mxu0 0
        %554 = vmatpush2.bf16.msra.mxu0 0
        %555 = vmatprep.subr.bf16.mxu0 0
        %556 = vmatpush2.bf16.msra.mxu0 0
        %557 = vmatprep.subr.bf16.mxu0 0
        %558 = vmatpush2.bf16.msra.mxu0 0
        %559 = vmatprep.subr.bf16.mxu0 0
        %560 = vmatpush2.bf16.msra.mxu0 0
        %561 = vmatprep.mubr.bf16.mxu0 0
        %562 = vmatmul.mubr.bf16.gmra.mxu0 %v527
        %v563 = vpop.f32.mrf.mxu0
        %v564 = vadd.f32 %v517, %v563
        %v565 = vpop.f32.mrf.mxu0
        %v566 = vpop.f32.mrf.mxu0
        %v567 = vpop.f32.mrf.mxu0
        %568 = vdwg.mxu0
        %v569 = vpack.c.bf16 %v564, %v564
        %vm570 = vcmask 125952
        %571 = vst.msk [vmem:[#allocation2] sm:$0xf] %vm570, %v569
        %v572 = vld [vmem:[%s7] sm:$0xf]
        %v573 = vld [vmem:[%s7 + $0x4] sm:$0xf]
        %v574 = vld [vmem:[%s8] sm:$0x1]
        %v576 = vlaneseq
        %v577 = vshrl.u32 %v576, 7
        %v578 = vsub.s32 0, %v577
        %v579 = vrot.slane %v574, %v578
        %v583 = vunpack.c.l.b16 %v572
        %v584 = vunpack.c.l.b16 %v573
        %v585 = vpack.c.b16 %v584, %v583
        %v588 = vsel %vm525, %v509, 0
        %590 = vmatprep.subr.bf16.mxu0 0
        %591 = vmatpush1.bf16.msra.mxu0 0
        %592 = vmatprep.subr.bf16.mxu0 0
        %593 = vmatpush1.bf16.msra.mxu0 0
        %594 = vmatprep.subr.bf16.mxu0 0
        %595 = vmatpush1.bf16.msra.mxu0 0
        %596 = vmatprep.subr.bf16.mxu0 0
        %597 = vmatpush1.bf16.msra.mxu0 0
        %598 = vmatprep.subr.bf16.mxu0 0
        %599 = vmatpush1.bf16.msra.mxu0 0
        %600 = vmatprep.subr.bf16.mxu0 0
        %601 = vmatpush1.bf16.msra.mxu0 0
        %602 = vmatprep.subr.bf16.mxu0 0
        %603 = vmatpush1.bf16.msra.mxu0 0
        %604 = vmatprep.subr.bf16.mxu0 0
        %605 = vmatpush1.bf16.msra.mxu0 %v585
        %606 = vmatprep.subr.bf16.mxu0 0
        %607 = vmatpush2.bf16.msra.mxu0 0
        %608 = vmatprep.subr.bf16.mxu0 0
        %609 = vmatpush2.bf16.msra.mxu0 0
        %610 = vmatprep.subr.bf16.mxu0 0
        %611 = vmatpush2.bf16.msra.mxu0 0
        %612 = vmatprep.subr.bf16.mxu0 0
        %613 = vmatpush2.bf16.msra.mxu0 0
        %614 = vmatprep.subr.bf16.mxu0 0
        %615 = vmatpush2.bf16.msra.mxu0 0
        %616 = vmatprep.subr.bf16.mxu0 0
        %617 = vmatpush2.bf16.msra.mxu0 0
        %618 = vmatprep.subr.bf16.mxu0 0
        %619 = vmatpush2.bf16.msra.mxu0 0
        %620 = vmatprep.subr.bf16.mxu0 0
        %621 = vmatpush2.bf16.msra.mxu0 0
        %622 = vmatprep.mubr.bf16.mxu0 0
        %623 = vmatmul.mubr.bf16.gmra.mxu0 %v588
        %v624 = vpop.f32.mrf.mxu0
        %v625 = vadd.f32 %v579, %v624
        %v626 = vpop.f32.mrf.mxu0
        %v627 = vpop.f32.mrf.mxu0
        %v628 = vpop.f32.mrf.mxu0
        %629 = vdwg.mxu0
        %v630 = vpack.c.bf16 %v625, %v625
        %631 = vst.msk [vmem:[#allocation3] sm:$0xf] %vm570, %v630
      $region76: #{decoder_forward.10} parent=71 // pred_fallthru
        _
      %v632 = vld [vmem:[%s485] sm:$0xff]
      %v633 = vpack.c.bf16 %v632, %v632
      %v634 = vld [vmem:[%s10] sm:$0x1]
      %v636 = vlaneseq
      %v637 = vshrl.u32 %v636, 7
      %v638 = vsub.s32 0, %v637
      %v639 = vrot.slane %v634, %v638
      %v641 = vadd.f32 %v632, %v639
      %v642 = vld [vmem:[%s3] sm:$0xf]
      %v643 = vld [vmem:[%s3 + $0x4] sm:$0xf]
      %v644 = vld [vmem:[%s4] sm:$0x1]
      %v646 = vlaneseq
      %v647 = vshrl.u32 %v646, 7
      %v648 = vsub.s32 0, %v647
      %v649 = vrot.slane %v644, %v648
      %v653 = vunpack.c.l.b16 %v642
      %v654 = vunpack.c.l.b16 %v643
      %v655 = vpack.c.b16 %v654, %v653
      %vm657 = vcmask 130048
      %v659 = vsel %vm657, %v633, 0
      %661 = vmatprep.subr.bf16.mxu0 0
      %662 = vmatpush1.bf16.msra.mxu0 0
      %663 = vmatprep.subr.bf16.mxu0 0
      %664 = vmatpush1.bf16.msra.mxu0 0
      %665 = vmatprep.subr.bf16.mxu0 0
      %666 = vmatpush1.bf16.msra.mxu0 0
      %667 = vmatprep.subr.bf16.mxu0 0
      %668 = vmatpush1.bf16.msra.mxu0 0
      %669 = vmatprep.subr.bf16.mxu0 0
      %670 = vmatpush1.bf16.msra.mxu0 0
      %671 = vmatprep.subr.bf16.mxu0 0
      %672 = vmatpush1.bf16.msra.mxu0 0
      %673 = vmatprep.subr.bf16.mxu0 0
      %674 = vmatpush1.bf16.msra.mxu0 0
      %675 = vmatprep.subr.bf16.mxu0 0
      %676 = vmatpush1.bf16.msra.mxu0 %v655
      %677 = vmatprep.subr.bf16.mxu0 0
      %678 = vmatpush2.bf16.msra.mxu0 0
      %679 = vmatprep.subr.bf16.mxu0 0
      %680 = vmatpush2.bf16.msra.mxu0 0
      %681 = vmatprep.subr.bf16.mxu0 0
      %682 = vmatpush2.bf16.msra.mxu0 0
      %683 = vmatprep.subr.bf16.mxu0 0
      %684 = vmatpush2.bf16.msra.mxu0 0
      %685 = vmatprep.subr.bf16.mxu0 0
      %686 = vmatpush2.bf16.msra.mxu0 0
      %687 = vmatprep.subr.bf16.mxu0 0
      %688 = vmatpush2.bf16.msra.mxu0 0
      %689 = vmatprep.subr.bf16.mxu0 0
      %690 = vmatpush2.bf16.msra.mxu0 0
      %691 = vmatprep.subr.bf16.mxu0 0
      %692 = vmatpush2.bf16.msra.mxu0 0
      %693 = vmatprep.mubr.bf16.mxu0 0
      %694 = vmatmul.mubr.bf16.gmra.mxu0 %v659
      %v695 = vpop.f32.mrf.mxu0
      %v696 = vadd.f32 %v649, %v695
      %v697 = vpop.f32.mrf.mxu0
      %v698 = vpop.f32.mrf.mxu0
      %v699 = vpop.f32.mrf.mxu0
      %700 = vdwg.mxu0
      %v701 = vmul.f32 %v696, 0.25
      %v702 = vld [vmem:[#allocation2] sm:$0xf]
      %v703 = vld [vmem:[#allocation3] sm:$0xf]
      %v704 = vpack.c.bf16 %v701, %v701
      %v706 = vsel %vm657, %v704, 0
      %v709 = vsel %vm657, %v702, 0
      %711 = vmatprep.subr.bf16.mxu0 0
      %712 = vmatpush1.bf16.xpose.msra.mxu0 0
      %713 = vmatprep.subr.bf16.mxu0 0
      %714 = vmatpush1.bf16.xpose.msra.mxu0 0
      %715 = vmatprep.subr.bf16.mxu0 0
      %716 = vmatpush1.bf16.xpose.msra.mxu0 0
      %717 = vmatprep.subr.bf16.mxu0 0
      %718 = vmatpush1.bf16.xpose.msra.mxu0 0
      %719 = vmatprep.subr.bf16.mxu0 0
      %720 = vmatpush1.bf16.xpose.msra.mxu0 0
      %721 = vmatprep.subr.bf16.mxu0 0
      %722 = vmatpush1.bf16.xpose.msra.mxu0 0
      %723 = vmatprep.subr.bf16.mxu0 0
      %724 = vmatpush1.bf16.xpose.msra.mxu0 0
      %725 = vmatprep.subr.bf16.mxu0 0
      %726 = vmatpush1.bf16.xpose.msra.mxu0 %v709
      %727 = vmatprep.subr.bf16.mxu0 0
      %728 = vmatpush2.bf16.xpose.msra.mxu0 0
      %729 = vmatprep.subr.bf16.mxu0 0
      %730 = vmatpush2.bf16.xpose.msra.mxu0 0
      %731 = vmatprep.subr.bf16.mxu0 0
      %732 = vmatpush2.bf16.xpose.msra.mxu0 0
      %733 = vmatprep.subr.bf16.mxu0 0
      %734 = vmatpush2.bf16.xpose.msra.mxu0 0
      %735 = vmatprep.subr.bf16.mxu0 0
      %736 = vmatpush2.bf16.xpose.msra.mxu0 0
      %737 = vmatprep.subr.bf16.mxu0 0
      %738 = vmatpush2.bf16.xpose.msra.mxu0 0
      %739 = vmatprep.subr.bf16.mxu0 0
      %740 = vmatpush2.bf16.xpose.msra.mxu0 0
      %741 = vmatprep.subr.bf16.mxu0 0
      %742 = vmatpush2.bf16.xpose.msra.mxu0 0
      %743 = vmatprep.mubr.bf16.mxu0 0
      %744 = vmatmul.mubr.bf16.gmra.mxu0 %v706
      %v745 = vpop.f32.mrf.mxu0
      %v746 = vadd.f32 0.0, %v745
      %v747 = vpop.f32.mrf.mxu0
      %v748 = vpop.f32.mrf.mxu0
      %v749 = vpop.f32.mrf.mxu0
      %750 = vdwg.mxu0
      %vm751 = vcmask 64512
      %v752 = vsel %vm751, %v746, -inf
      %753 = vmax.xlane.f32.xlu0 %v752
      %v754 = vpop.xlane.xlu0 %753
      %v755 = vsub.f32 %v746, %v754
      %v756 = vmul.f32 %v755, 1.442695
      %v757 = vpow.pop %v756
      %v758 = vsel %vm751, %v757, 0.0
      %759 = vadd.xlane.f32.xlu0 %v758
      %v760 = vpop.xlane.xlu0 %759
      %v761 = vrcp.pop %v760
      %v762 = vmul.f32 %v757, %v761
      %v763 = vpack.c.bf16 %v762, %v762
      %v765 = vsel %vm751, %v763, 0
      %vm767 = vcmask 1043456
      %v769 = vsel %vm767, %v703, 0
      %771 = vmatprep.subr.bf16.mxu0 0
      %772 = vmatpush1.bf16.msra.mxu0 0
      %773 = vmatprep.subr.bf16.mxu0 0
      %774 = vmatpush1.bf16.msra.mxu0 0
      %775 = vmatprep.subr.bf16.mxu0 0
      %776 = vmatpush1.bf16.msra.mxu0 0
      %777 = vmatprep.subr.bf16.mxu0 0
      %778 = vmatpush1.bf16.msra.mxu0 0
      %779 = vmatprep.subr.bf16.mxu0 0
      %780 = vmatpush1.bf16.msra.mxu0 0
      %781 = vmatprep.subr.bf16.mxu0 0
      %782 = vmatpush1.bf16.msra.mxu0 0
      %783 = vmatprep.subr.bf16.mxu0 0
      %784 = vmatpush1.bf16.msra.mxu0 0
      %785 = vmatprep.subr.bf16.mxu0 0
      %786 = vmatpush1.bf16.msra.mxu0 %v769
      %787 = vmatprep.subr.bf16.mxu0 0
      %788 = vmatpush2.bf16.msra.mxu0 0
      %789 = vmatprep.subr.bf16.mxu0 0
      %790 = vmatpush2.bf16.msra.mxu0 0
      %791 = vmatprep.subr.bf16.mxu0 0
      %792 = vmatpush2.bf16.msra.mxu0 0
      %793 = vmatprep.subr.bf16.mxu0 0
      %794 = vmatpush2.bf16.msra.mxu0 0
      %795 = vmatprep.subr.bf16.mxu0 0
      %796 = vmatpush2.bf16.msra.mxu0 0
      %797 = vmatprep.subr.bf16.mxu0 0
      %798 = vmatpush2.bf16.msra.mxu0 0
      %799 = vmatprep.subr.bf16.mxu0 0
      %800 = vmatpush2.bf16.msra.mxu0 0
      %801 = vmatprep.subr.bf16.mxu0 0
      %802 = vmatpush2.bf16.msra.mxu0 0
      %803 = vmatprep.mubr.bf16.mxu0 0
      %804 = vmatmul.mubr.bf16.gmra.mxu0 %v765
      %v805 = vpop.f32.mrf.mxu0
      %v806 = vadd.f32 0.0, %v805
      %v807 = vpop.f32.mrf.mxu0
      %v808 = vpop.f32.mrf.mxu0
      %v809 = vpop.f32.mrf.mxu0
      %810 = vdwg.mxu0
      %v811 = vpack.c.bf16 %v806, %v806
      %v812 = vld [vmem:[%s9] sm:$0xf]
      %v813 = vld [vmem:[%s9 + $0x4] sm:$0xf]
      %v816 = vunpack.c.l.b16 %v812
      %v817 = vunpack.c.l.b16 %v813
      %v818 = vpack.c.b16 %v817, %v816
      %v821 = vsel %vm657, %v811, 0
      %823 = vmatprep.subr.bf16.mxu0 0
      %824 = vmatpush1.bf16.msra.mxu0 0
      %825 = vmatprep.subr.bf16.mxu0 0
      %826 = vmatpush1.bf16.msra.mxu0 0
      %827 = vmatprep.subr.bf16.mxu0 0
      %828 = vmatpush1.bf16.msra.mxu0 0
      %829 = vmatprep.subr.bf16.mxu0 0
      %830 = vmatpush1.bf16.msra.mxu0 0
      %831 = vmatprep.subr.bf16.mxu0 0
      %832 = vmatpush1.bf16.msra.mxu0 0
      %833 = vmatprep.subr.bf16.mxu0 0
      %834 = vmatpush1.bf16.msra.mxu0 0
      %835 = vmatprep.subr.bf16.mxu0 0
      %836 = vmatpush1.bf16.msra.mxu0 0
      %837 = vmatprep.subr.bf16.mxu0 0
      %838 = vmatpush1.bf16.msra.mxu0 %v818
      %839 = vmatprep.subr.bf16.mxu0 0
      %840 = vmatpush2.bf16.msra.mxu0 0
      %841 = vmatprep.subr.bf16.mxu0 0
      %842 = vmatpush2.bf16.msra.mxu0 0
      %843 = vmatprep.subr.bf16.mxu0 0
      %844 = vmatpush2.bf16.msra.mxu0 0
      %845 = vmatprep.subr.bf16.mxu0 0
      %846 = vmatpush2.bf16.msra.mxu0 0
      %847 = vmatprep.subr.bf16.mxu0 0
      %848 = vmatpush2.bf16.msra.mxu0 0
      %849 = vmatprep.subr.bf16.mxu0 0
      %850 = vmatpush2.bf16.msra.mxu0 0
      %851 = vmatprep.subr.bf16.mxu0 0
      %852 = vmatpush2.bf16.msra.mxu0 0
      %853 = vmatprep.subr.bf16.mxu0 0
      %854 = vmatpush2.bf16.msra.mxu0 0
      %855 = vmatprep.mubr.bf16.mxu0 0
      %856 = vmatmul.mubr.bf16.gmra.mxu0 %v821
      %v857 = vpop.f32.mrf.mxu0
      %v858 = vadd.f32 0.0, %v857
      %v859 = vpop.f32.mrf.mxu0
      %v860 = vpop.f32.mrf.mxu0
      %v861 = vpop.f32.mrf.mxu0
      %862 = vdwg.mxu0
      %v863 = vadd.f32 %v641, %v858
      %v864 = vsel %vm657, %v863, 0.0
      %865 = vadd.xlane.f32.xlu0 %v864
      %v866 = vpop.xlane.xlu0 %865
      %v867 = vrcp.pop 16.0
      %v868 = vmul.f32 %v866, %v867
      %v869 = vmul.f32 %v863, %v863
      %v870 = vsel %vm657, %v869, 0.0
      %871 = vadd.xlane.f32.xlu0 %v870
      %v872 = vpop.xlane.xlu0 %871
      %v873 = vmul.f32 %v872, %v867
      %v874 = vmul.f32 %v868, %v868
      %v875 = vsub.f32 %v873, %v874
      %v876 = vadd.f32 %v875, 1e-05
      %v877 = vrsqrt.pop %v876
      %v878 = vsub.f32 %v863, %v868
      %v879 = vmul.f32 %v878, %v877
      %v880 = vld [vmem:[%s11] sm:$0x1]
      %v882 = vlaneseq
      %v883 = vshrl.u32 %v882, 7
      %v884 = vsub.s32 0, %v883
      %v885 = vrot.slane %v880, %v884
      %v887 = vmul.f32 %v879, %v885
      %v888 = vld [vmem:[%s12] sm:$0x1]
      %v890 = vlaneseq
      %v891 = vshrl.u32 %v890, 7
      %v892 = vsub.s32 0, %v891
      %v893 = vrot.slane %v888, %v892
      %v895 = vadd.f32 %v887, %v893
      %896 = vst.msk [vmem:[%s500] sm:$0xff] %vm657, %v895
      %p897 = scmp.lt.s32.totalorder %s28, 15
      %s898 = scalar_select %p897, %s28, 15
      %p899 = scmp.lt.s32.totalorder %s29, 0
      %s900 = scalar_select %p899, %s29, 0
      %s901 = sadd.s32 %s900, %s898
      %s902 = smul.addr %s901, 8
      %s903 = scalar_lea.vmem %s13, %s902
      // Predicated region
      $region77: #{decoder_forward.10} parent=71 // pred_check
        %p904 = pneg %p346
      $region78: #{decoder_forward.10} parent=71 // pred_check_branch
        %906 = sbr.rel (%p904) target = $region80
      $region79: #{decoder_forward.10} parent=71 // pred_region
        _
      $region80: #{decoder_forward.10} parent=71 // pred_fallthru
        _
    $region72: #{decoder_forward.10} parent=5 // pred_fallthru
      _
    %p907 = scmp.le.s32.totalorder 2, %s19
    // Predicated region
    $region81: #{decoder_forward.10} parent=5 // pred_check
      %p908 = pneg %p907
    $region82: #{decoder_forward.10} parent=5 // pred_check_branch
      %910 = sbr.rel (%p908) target = $region84
    $region83: #{decoder_forward.10} parent=5 // pred_region
      %s911 = ssub.s32 %s19, 2
      // Predicated region
      $region85: #{decoder_forward.10} parent=83 // pred_check
        %p912 = pneg %p352
      $region86: #{decoder_forward.10} parent=83 // pred_check_branch
        %914 = sbr.rel (%p912) target = $region88
      $region87: #{decoder_forward.10} parent=83 // pred_region
        %p915 = scmp.lt.s32.totalorder %s30, 15
        %s916 = scalar_select %p915, %s30, 15
        %p917 = scmp.lt.s32.totalorder %s31, 0
        %s918 = scalar_select %p917, %s31, 0
        %s919 = sadd.s32 %s918, %s916
        %s920 = smul.addr %s919, 8
        %s921 = scalar_lea.vmem %s13, %s920
      $region88: #{decoder_forward.10} parent=83 // pred_fallthru
        _
    $region84: #{decoder_forward.10} parent=5 // pred_fallthru
      _
  $region6: #{decoder_forward.10} parent=0 // loop_footer
    %s23 = sadd.s32 1, %s19
  $region7: #{decoder_forward.10} parent=0 // loop_footer_branch
    %18 = sbr.rel target = $region3
  $region8: #{decoder_forward.10} parent=0 // loop_exit
    _

// kernel: decoder_forward.12
$region0: #{decoder_forward.12}
  #allocation0 [shape = 'u32[]', space=smem, size = 0x4, offset = 0x4, fixed_abs, tag = 'smem constant byte address 0x4 - core index']
  #allocation1 [shape = 'u32[144,128]{1,0:T(1,128)}', space=vmem, size = 0x12000, scoped, tag = 'internal scratch']
  %s0 = inlined_call_operand.vmem [shape: f32[16,128], index: 0, kind: input, shape index: {}]
  %s1 = inlined_call_operand.vmem [shape: bf16[128,128], index: 1, kind: input, shape index: {}]
  %s2 = inlined_call_operand.vmem [shape: f32[1,128], index: 2, kind: input, shape index: {}]
  %s3 = inlined_call_operand.vmem [shape: f32[1,128], index: 3, kind: input, shape index: {}]
  %s4 = inlined_call_operand.vmem [shape: f32[1,128], index: 4, kind: input, shape index: {}]
  %s5 = inlined_call_operand.vmem [shape: f32[16,128], index: 5, kind: output, shape index: {}]
  %s6 = sld [smem:[#allocation0]]
  $region30: #{decoder_forward.12} parent=0
    _
  %s8 = ssub.s32 1, %s6
  %s9 = scalar_select 0, %s8, %s6
  // Predicated region
  $region2: #{decoder_forward.12} parent=0 // pred_check
    _
  $region3: #{decoder_forward.12} parent=0 // pred_check_branch
    %11 = sbr.rel (0) target = $region5
  $region4: #{decoder_forward.12} parent=0 // pred_region
    _
  $region5: #{decoder_forward.12} parent=0 // pred_fallthru
    _
  // Predicated region
  $region6: #{decoder_forward.12} parent=0 // pred_check
    _
  $region7: #{decoder_forward.12} parent=0 // pred_check_branch
    %13 = sbr.rel (0) target = $region9
  $region8: #{decoder_forward.12} parent=0 // pred_region
    _
  $region9: #{decoder_forward.12} parent=0 // pred_fallthru
    _
  // Predicated region
  $region10: #{decoder_forward.12} parent=0 // pred_check
    _
  $region11: #{decoder_forward.12} parent=0 // pred_check_branch
    %15 = sbr.rel (0) target = $region13
  $region12: #{decoder_forward.12} parent=0 // pred_region
    _
  $region13: #{decoder_forward.12} parent=0 // pred_fallthru
    _
  // Predicated region
  $region14: #{decoder_forward.12} parent=0 // pred_check
    _
  $region15: #{decoder_forward.12} parent=0 // pred_check_branch
    %17 = sbr.rel (0) target = $region17
  $region16: #{decoder_forward.12} parent=0 // pred_region
    _
  $region17: #{decoder_forward.12} parent=0 // pred_fallthru
    _
  // Predicated region
  $region18: #{decoder_forward.12} parent=0 // pred_check
    _
  $region19: #{decoder_forward.12} parent=0 // pred_check_branch
    %19 = sbr.rel (0) target = $region21
  $region20: #{decoder_forward.12} parent=0 // pred_region
    _
  $region21: #{decoder_forward.12} parent=0 // pred_fallthru
    _
  %v21 = vld [vmem:[%s0] sm:$0xff]
  %v22 = vld [vmem:[%s0 + $0x8] sm:$0xff]
  %v23 = vpack.c.bf16 %v22, %v21
  %v24 = vld [vmem:[%s1] sm:$0xf]
  %v25 = vld [vmem:[%s1 + $0x4] sm:$0xf]
  %v26 = vld [vmem:[%s1 + $0x8] sm:$0xf]
  %v27 = vld [vmem:[%s1 + $0xc] sm:$0xf]
  %v28 = vld [vmem:[%s1 + $0x10] sm:$0xf]
  %v29 = vld [vmem:[%s1 + $0x14] sm:$0xf]
  %v30 = vld [vmem:[%s1 + $0x18] sm:$0xf]
  %v31 = vld [vmem:[%s1 + $0x1c] sm:$0xf]
  %v32 = vld [vmem:[%s1 + $0x20] sm:$0xf]
  %v33 = vld [vmem:[%s1 + $0x24] sm:$0xf]
  %v34 = vld [vmem:[%s1 + $0x28] sm:$0xf]
  %v35 = vld [vmem:[%s1 + $0x2c] sm:$0xf]
  %v36 = vld [vmem:[%s1 + $0x30] sm:$0xf]
  %v37 = vld [vmem:[%s1 + $0x34] sm:$0xf]
  %v38 = vld [vmem:[%s1 + $0x38] sm:$0xf]
  %v39 = vld [vmem:[%s1 + $0x3c] sm:$0xf]
  %v40 = vld [vmem:[%s2] sm:$0x1]
  %v42 = vlaneseq
  %v43 = vshrl.u32 %v42, 7
  %v44 = vsub.s32 0, %v43
  %v45 = vrot.slane %v40, %v44
  %v63 = vunpack.c.l.b16 %v24
  %v64 = vunpack.c.l.b16 %v25
  %v65 = vunpack.c.l.b16 %v26
  %v66 = vunpack.c.l.b16 %v27
  %v67 = vunpack.c.l.b16 %v28
  %v68 = vunpack.c.l.b16 %v29
  %v69 = vunpack.c.l.b16 %v30
  %v70 = vunpack.c.l.b16 %v31
  %v71 = vunpack.c.l.b16 %v32
  %v72 = vunpack.c.l.b16 %v33
  %v73 = vunpack.c.l.b16 %v34
  %v74 = vunpack.c.l.b16 %v35
  %v75 = vunpack.c.l.b16 %v36
  %v76 = vunpack.c.l.b16 %v37
  %v77 = vunpack.c.l.b16 %v38
  %v78 = vunpack.c.l.b16 %v39
  %v79 = vpack.c.b16 %v64, %v63
  %v80 = vpack.c.b16 %v66, %v65
  %v81 = vpack.c.b16 %v68, %v67
  %v82 = vpack.c.b16 %v70, %v69
  %v83 = vpack.c.b16 %v72, %v71
  %v84 = vpack.c.b16 %v74, %v73
  %v85 = vpack.c.b16 %v76, %v75
  %v86 = vpack.c.b16 %v78, %v77
  %95 = vmatprep.subr.bf16.mxu0 0
  %96 = vmatpush1.bf16.msra.mxu0 %v86
  %97 = vmatprep.subr.bf16.mxu0 0
  %98 = vmatpush1.bf16.msra.mxu0 %v85
  %99 = vmatprep.subr.bf16.mxu0 0
  %100 = vmatpush1.bf16.msra.mxu0 %v84
  %101 = vmatprep.subr.bf16.mxu0 0
  %102 = vmatpush1.bf16.msra.mxu0 %v83
  %103 = vmatprep.subr.bf16.mxu0 0
  %104 = vmatpush1.bf16.msra.mxu0 %v82
  %105 = vmatprep.subr.bf16.mxu0 0
  %106 = vmatpush1.bf16.msra.mxu0 %v81
  %107 = vmatprep.subr.bf16.mxu0 0
  %108 = vmatpush1.bf16.msra.mxu0 %v80
  %109 = vmatprep.subr.bf16.mxu0 0
  %110 = vmatpush1.bf16.msra.mxu0 %v79
  %111 = vmatprep.subr.bf16.mxu0 0
  %112 = vmatpush2.bf16.msra.mxu0 0
  %113 = vmatprep.subr.bf16.mxu0 0
  %114 = vmatpush2.bf16.msra.mxu0 0
  %115 = vmatprep.subr.bf16.mxu0 0
  %116 = vmatpush2.bf16.msra.mxu0 0
  %117 = vmatprep.subr.bf16.mxu0 0
  %118 = vmatpush2.bf16.msra.mxu0 0
  %119 = vmatprep.subr.bf16.mxu0 0
  %120 = vmatpush2.bf16.msra.mxu0 0
  %121 = vmatprep.subr.bf16.mxu0 0
  %122 = vmatpush2.bf16.msra.mxu0 0
  %123 = vmatprep.subr.bf16.mxu0 0
  %124 = vmatpush2.bf16.msra.mxu0 0
  %125 = vmatprep.subr.bf16.mxu0 0
  %126 = vmatpush2.bf16.msra.mxu0 0
  %127 = vmatprep.mubr.bf16.mxu0 0
  %128 = vmatmul.mubr.bf16.gmra.mxu0 %v23
  %v129 = vpop.f32.mrf.mxu0
  %v130 = vadd.f32 %v45, %v129
  %v131 = vpop.f32.mrf.mxu0
  %v132 = vpop.f32.mrf.mxu0
  %v133 = vadd.f32 %v45, %v132
  %v134 = vpop.f32.mrf.mxu0
  %135 = vdwg.mxu0
  %v136 = vmax.f32 %v130, 0.0
  %v137 = vmax.f32 %v133, 0.0
  %138 = vadd.xlane.f32.xlu0 %v136
  %v139 = vpop.xlane.xlu0 %138
  %140 = vadd.xlane.f32.xlu0 %v137
  %v141 = vpop.xlane.xlu0 %140
  %v142 = vrcp.pop 128.0
  %v143 = vmul.f32 %v139, %v142
  %v144 = vmul.f32 %v141, %v142
  %v145 = vmul.f32 %v136, %v136
  %v146 = vmul.f32 %v137, %v137
  %147 = vadd.xlane.f32.xlu0 %v145
  %v148 = vpop.xlane.xlu0 %147
  %149 = vadd.xlane.f32.xlu0 %v146
  %v150 = vpop.xlane.xlu0 %149
  %v151 = vmul.f32 %v148, %v142
  %v152 = vmul.f32 %v150, %v142
  %v153 = vmul.f32 %v143, %v143
  %v154 = vmul.f32 %v144, %v144
  %v155 = vsub.f32 %v151, %v153
  %v156 = vsub.f32 %v152, %v154
  %v157 = vadd.f32 %v155, 1e-05
  %v158 = vadd.f32 %v156, 1e-05
  %v159 = vrsqrt.pop %v157
  %v160 = vrsqrt.pop %v158
  %v161 = vsub.f32 %v136, %v143
  %v162 = vsub.f32 %v137, %v144
  %v163 = vmul.f32 %v161, %v159
  %v164 = vmul.f32 %v162, %v160
  %v165 = vld [vmem:[%s3] sm:$0x1]
  %v167 = vlaneseq
  %v168 = vshrl.u32 %v167, 7
  %v169 = vsub.s32 0, %v168
  %v170 = vrot.slane %v165, %v169
  %v172 = vmul.f32 %v163, %v170
  %v173 = vmul.f32 %v164, %v170
  %v174 = vld [vmem:[%s4] sm:$0x1]
  %v176 = vlaneseq
  %v177 = vshrl.u32 %v176, 7
  %v178 = vsub.s32 0, %v177
  %v179 = vrot.slane %v174, %v178
  %v181 = vadd.f32 %v172, %v179
  %v182 = vadd.f32 %v173, %v179
  %183 = vst [vmem:[%s5] sm:$0xff] %v181
  %184 = vst [vmem:[%s5 + $0x8] sm:$0xff] %v182
  // Predicated region
  $region22: #{decoder_forward.12} parent=0 // pred_check
    _
  $region23: #{decoder_forward.12} parent=0 // pred_check_branch
    %186 = sbr.rel (0) target = $region25
  $region24: #{decoder_forward.12} parent=0 // pred_region
    _
  $region25: #{decoder_forward.12} parent=0 // pred_fallthru
    _
  // Predicated region
  $region26: #{decoder_forward.12} parent=0 // pred_check
    _
  $region27: #{decoder_forward.12} parent=0 // pred_check_branch
    %188 = sbr.rel (0) target = $region29
  $region28: #{decoder_forward.12} parent=0 // pred_region
    _
  $region29: #{decoder_forward.12} parent=0 // pred_fallthru
    _

// kernel: decoder_forward.19
$region0: #{decoder_forward.19}
  #allocation0 [shape = 'u32[]', space=smem, size = 0x4, offset = 0x4, fixed_abs, tag = 'smem constant byte address 0x4 - core index']
  #allocation1 [shape = 'u32[144,128]{1,0:T(1,128)}', space=vmem, size = 0x12000, scoped, tag = 'internal scratch']
  %s0 = inlined_call_operand.vmem [shape: f32[1,2], index: 0, kind: input, shape index: {}]
  %s1 = inlined_call_operand.vmem [shape: f32[16,128], index: 1, kind: input, shape index: {}]
  %s2 = inlined_call_operand.vmem [shape: f32[16,128], index: 2, kind: input, shape index: {}]
  %s3 = inlined_call_operand.vmem [shape: bf16[128,26], index: 3, kind: input, shape index: {}]
  %s4 = inlined_call_operand.vmem [shape: f32[1,26], index: 4, kind: input, shape index: {}]
  %s5 = inlined_call_operand.hbm [shape: f32[16,26], index: 5, kind: output, shape index: {}]
  %s6 = sld [smem:[#allocation0]]
  $region30: #{decoder_forward.19} parent=0
    _
  %s8 = ssub.s32 1, %s6
  %s9 = scalar_select 0, %s8, %s6
  $region1: #{decoder_forward.19} parent=0
    #allocation2 [shape = 'u8[8192]{0}', space=vmem, size = 0x2000, scoped, tag = 'output window, operand 0, single buffered']
    #allocation3 [shape = 's32[1]{0}', space=sflag, size = 0x4, scoped, tag = 'scoped memory for decoder_forward.19']
    %10 = vsyncpa [#allocation3], 0
    // Predicated region
    $region2: #{decoder_forward.19} parent=1 // pred_check
      _
    $region3: #{decoder_forward.19} parent=1 // pred_check_branch
      %12 = sbr.rel (0) target = $region5
    $region4: #{decoder_forward.19} parent=1 // pred_region
      _
    $region5: #{decoder_forward.19} parent=1 // pred_fallthru
      _
    // Predicated region
    $region6: #{decoder_forward.19} parent=1 // pred_check
      _
    $region7: #{decoder_forward.19} parent=1 // pred_check_branch
      %14 = sbr.rel (0) target = $region9
    $region8: #{decoder_forward.19} parent=1 // pred_region
      _
    $region9: #{decoder_forward.19} parent=1 // pred_fallthru
      _
    // Predicated region
    $region10: #{decoder_forward.19} parent=1 // pred_check
      _
    $region11: #{decoder_forward.19} parent=1 // pred_check_branch
      %16 = sbr.rel (0) target = $region13
    $region12: #{decoder_forward.19} parent=1 // pred_region
      _
    $region13: #{decoder_forward.19} parent=1 // pred_fallthru
      _
    // Predicated region
    $region14: #{decoder_forward.19} parent=1 // pred_check
      _
    $region15: #{decoder_forward.19} parent=1 // pred_check_branch
      %18 = sbr.rel (0) target = $region17
    $region16: #{decoder_forward.19} parent=1 // pred_region
      _
    $region17: #{decoder_forward.19} parent=1 // pred_fallthru
      _
    // Predicated region
    $region18: #{decoder_forward.19} parent=1 // pred_check
      _
    $region19: #{decoder_forward.19} parent=1 // pred_check_branch
      %20 = sbr.rel (0) target = $region21
    $region20: #{decoder_forward.19} parent=1 // pred_region
      _
    $region21: #{decoder_forward.19} parent=1 // pred_fallthru
      _
    %v22 = vld [vmem:[%s0] sm:$0x1]
    %v23 = vld [vmem:[%s1] sm:$0xff]
    %v24 = vld [vmem:[%s1 + $0x8] sm:$0xff]
    %v26 = vlaneseq
    %v27 = vshrl.u32 %v26, 7
    %v28 = vsub.s32 0, %v27
    %v29 = vrot.slane %v22, %v28
    %30 = vset.pattern.permute.xlu0 0
    %31 = vperm.xlu0 %30, %v29
    %v32 = vpop.permute.xlu0 %31
    %v34 = vmul.f32 %v23, %v32
    %v35 = vmul.f32 %v24, %v32
    %v36 = vld [vmem:[%s2] sm:$0xff]
    %v37 = vld [vmem:[%s2 + $0x8] sm:$0xff]
    %38 = vset.pattern.permute.xlu0 1
    %39 = vperm.xlu0 %38, %v29
    %v40 = vpop.permute.xlu0 %39
    %v42 = vmul.f32 %v36, %v40
    %v43 = vmul.f32 %v37, %v40
    %v44 = vadd.f32 %v34, %v42
    %v45 = vadd.f32 %v35, %v43
    %v46 = vpack.c.bf16 %v45, %v44
    %v47 = vld [vmem:[%s3] sm:$0xf]
    %v48 = vld [vmem:[%s3 + $0x4] sm:$0xf]
    %v49 = vld [vmem:[%s3 + $0x8] sm:$0xf]
    %v50 = vld [vmem:[%s3 + $0xc] sm:$0xf]
    %v51 = vld [vmem:[%s3 + $0x10] sm:$0xf]
    %v52 = vld [vmem:[%s3 + $0x14] sm:$0xf]
    %v53 = vld [vmem:[%s3 + $0x18] sm:$0xf]
    %v54 = vld [vmem:[%s3 + $0x1c] sm:$0xf]
    %v55 = vld [vmem:[%s3 + $0x20] sm:$0xf]
    %v56 = vld [vmem:[%s3 + $0x24] sm:$0xf]
    %v57 = vld [vmem:[%s3 + $0x28] sm:$0xf]
    %v58 = vld [vmem:[%s3 + $0x2c] sm:$0xf]
    %v59 = vld [vmem:[%s3 + $0x30] sm:$0xf]
    %v60 = vld [vmem:[%s3 + $0x34] sm:$0xf]
    %v61 = vld [vmem:[%s3 + $0x38] sm:$0xf]
    %v62 = vld [vmem:[%s3 + $0x3c] sm:$0xf]
    %v63 = vld [vmem:[%s4] sm:$0x1]
    %v65 = vlaneseq
    %v66 = vshrl.u32 %v65, 7
    %v67 = vsub.s32 0, %v66
    %v68 = vrot.slane %v63, %v67
    %v86 = vunpack.c.l.b16 %v47
    %v87 = vunpack.c.l.b16 %v48
    %v88 = vunpack.c.l.b16 %v49
    %v89 = vunpack.c.l.b16 %v50
    %v90 = vunpack.c.l.b16 %v51
    %v91 = vunpack.c.l.b16 %v52
    %v92 = vunpack.c.l.b16 %v53
    %v93 = vunpack.c.l.b16 %v54
    %v94 = vunpack.c.l.b16 %v55
    %v95 = vunpack.c.l.b16 %v56
    %v96 = vunpack.c.l.b16 %v57
    %v97 = vunpack.c.l.b16 %v58
    %v98 = vunpack.c.l.b16 %v59
    %v99 = vunpack.c.l.b16 %v60
    %v100 = vunpack.c.l.b16 %v61
    %v101 = vunpack.c.l.b16 %v62
    %v102 = vpack.c.b16 %v87, %v86
    %v103 = vpack.c.b16 %v89, %v88
    %v104 = vpack.c.b16 %v91, %v90
    %v105 = vpack.c.b16 %v93, %v92
    %v106 = vpack.c.b16 %v95, %v94
    %v107 = vpack.c.b16 %v97, %v96
    %v108 = vpack.c.b16 %v99, %v98
    %v109 = vpack.c.b16 %v101, %v100
    %118 = vmatprep.subr.bf16.mxu0 0
    %119 = vmatpush1.bf16.msra.mxu0 %v109
    %120 = vmatprep.subr.bf16.mxu0 0
    %121 = vmatpush1.bf16.msra.mxu0 %v108
    %122 = vmatprep.subr.bf16.mxu0 0
    %123 = vmatpush1.bf16.msra.mxu0 %v107
    %124 = vmatprep.subr.bf16.mxu0 0
    %125 = vmatpush1.bf16.msra.mxu0 %v106
    %126 = vmatprep.subr.bf16.mxu0 0
    %127 = vmatpush1.bf16.msra.mxu0 %v105
    %128 = vmatprep.subr.bf16.mxu0 0
    %129 = vmatpush1.bf16.msra.mxu0 %v104
    %130 = vmatprep.subr.bf16.mxu0 0
    %131 = vmatpush1.bf16.msra.mxu0 %v103
    %132 = vmatprep.subr.bf16.mxu0 0
    %133 = vmatpush1.bf16.msra.mxu0 %v102
    %134 = vmatprep.subr.bf16.mxu0 0
    %135 = vmatpush2.bf16.msra.mxu0 0
    %136 = vmatprep.subr.bf16.mxu0 0
    %137 = vmatpush2.bf16.msra.mxu0 0
    %138 = vmatprep.subr.bf16.mxu0 0
    %139 = vmatpush2.bf16.msra.mxu0 0
    %140 = vmatprep.subr.bf16.mxu0 0
    %141 = vmatpush2.bf16.msra.mxu0 0
    %142 = vmatprep.subr.bf16.mxu0 0
    %143 = vmatpush2.bf16.msra.mxu0 0
    %144 = vmatprep.subr.bf16.mxu0 0
    %145 = vmatpush2.bf16.msra.mxu0 0
    %146 = vmatprep.subr.bf16.mxu0 0
    %147 = vmatpush2.bf16.msra.mxu0 0
    %148 = vmatprep.subr.bf16.mxu0 0
    %149 = vmatpush2.bf16.msra.mxu0 0
    %150 = vmatprep.mubr.bf16.mxu0 0
    %151 = vmatmul.mubr.bf16.gmra.mxu0 %v46
    %v152 = vpop.f32.mrf.mxu0
    %v153 = vadd.f32 %v68, %v152
    %v154 = vpop.f32.mrf.mxu0
    %v155 = vpop.f32.mrf.mxu0
    %v156 = vadd.f32 %v68, %v155
    %v157 = vpop.f32.mrf.mxu0
    %158 = vdwg.mxu0
    %vm159 = vcmask 211968
    %160 = vst.msk [vmem:[#allocation2] sm:$0xff] %vm159, %v153
    %161 = vst.msk [vmem:[#allocation2 + $0x8] sm:$0xff] %vm159, %v156
    // Predicated region
    $region22: #{decoder_forward.19} parent=1 // pred_check
      _
    $region23: #{decoder_forward.19} parent=1 // pred_check_branch
      %163 = sbr.rel (0) target = $region25
    $region24: #{decoder_forward.19} parent=1 // pred_region
      %s165 = ssub.s32 256, 256
      %166 = vsyncadd [#allocation3], %s165
      %s167 = sshll.u32 [#allocation2], 4
      %s168 = int_to_ptr.vmem [resolvable:$true] %s167
      %173 = dma.vmem_to_hbm [thread:$0]  %s168, 256, %s5, [#allocation3], 128, 128, 8
    $region25: #{decoder_forward.19} parent=1 // pred_fallthru
      _
    // Predicated region
    $region26: #{decoder_forward.19} parent=1 // pred_check
      _
    $region27: #{decoder_forward.19} parent=1 // pred_check_branch
      %175 = sbr.rel (0) target = $region29
    $region28: #{decoder_forward.19} parent=1 // pred_region
      %176 = dma.done [#allocation3], 256
    $region29: #{decoder_forward.19} parent=1 // pred_fallthru
      _
    %177 = vsyncpa [#allocation3], 1

// kernel: decoder_forward.15
$region0: #{decoder_forward.15}
  #allocation0 [shape = 'u32[]', space=smem, size = 0x4, offset = 0x4, fixed_abs, tag = 'smem constant byte address 0x4 - core index']
  #allocation1 [shape = 'u32[144,128]{1,0:T(1,128)}', space=vmem, size = 0x12000, scoped, tag = 'internal scratch']
  %s0 = inlined_call_operand.vmem [shape: f32[16,128], index: 0, kind: input, shape index: {}]
  %s1 = inlined_call_operand.vmem [shape: bf16[128,512], index: 1, kind: input, shape index: {}]
  %s2 = inlined_call_operand.vmem [shape: f32[1,512], index: 2, kind: input, shape index: {}]
  %s3 = inlined_call_operand.vmem [shape: bf16[512,128], index: 3, kind: input, shape index: {}]
  %s4 = inlined_call_operand.vmem [shape: f32[1,128], index: 4, kind: input, shape index: {}]
  %s5 = inlined_call_operand.vmem [shape: f32[1,128], index: 5, kind: input, shape index: {}]
  %s6 = inlined_call_operand.vmem [shape: f32[1,128], index: 6, kind: input, shape index: {}]
  %s7 = inlined_call_operand.vmem [shape: f32[16,128], index: 7, kind: output, shape index: {}]
  %s8 = sld [smem:[#allocation0]]
  $region38: #{decoder_forward.15} parent=0
    _
  %s10 = ssub.s32 1, %s8
  %s11 = scalar_select 0, %s10, %s8
  // Predicated region
  $region2: #{decoder_forward.15} parent=0 // pred_check
    _
  $region3: #{decoder_forward.15} parent=0 // pred_check_branch
    %13 = sbr.rel (0) target = $region5
  $region4: #{decoder_forward.15} parent=0 // pred_region
    _
  $region5: #{decoder_forward.15} parent=0 // pred_fallthru
    _
  // Predicated region
  $region6: #{decoder_forward.15} parent=0 // pred_check
    _
  $region7: #{decoder_forward.15} parent=0 // pred_check_branch
    %15 = sbr.rel (0) target = $region9
  $region8: #{decoder_forward.15} parent=0 // pred_region
    _
  $region9: #{decoder_forward.15} parent=0 // pred_fallthru
    _
  // Predicated region
  $region10: #{decoder_forward.15} parent=0 // pred_check
    _
  $region11: #{decoder_forward.15} parent=0 // pred_check_branch
    %17 = sbr.rel (0) target = $region13
  $region12: #{decoder_forward.15} parent=0 // pred_region
    _
  $region13: #{decoder_forward.15} parent=0 // pred_fallthru
    _
  // Predicated region
  $region14: #{decoder_forward.15} parent=0 // pred_check
    _
  $region15: #{decoder_forward.15} parent=0 // pred_check_branch
    %19 = sbr.rel (0) target = $region17
  $region16: #{decoder_forward.15} parent=0 // pred_region
    _
  $region17: #{decoder_forward.15} parent=0 // pred_fallthru
    _
  // Predicated region
  $region18: #{decoder_forward.15} parent=0 // pred_check
    _
  $region19: #{decoder_forward.15} parent=0 // pred_check_branch
    %21 = sbr.rel (0) target = $region21
  $region20: #{decoder_forward.15} parent=0 // pred_region
    _
  $region21: #{decoder_forward.15} parent=0 // pred_fallthru
    _
  // Predicated region
  $region22: #{decoder_forward.15} parent=0 // pred_check
    _
  $region23: #{decoder_forward.15} parent=0 // pred_check_branch
    %23 = sbr.rel (0) target = $region25
  $region24: #{decoder_forward.15} parent=0 // pred_region
    _
  $region25: #{decoder_forward.15} parent=0 // pred_fallthru
    _
  // Predicated region
  $region26: #{decoder_forward.15} parent=0 // pred_check
    _
  $region27: #{decoder_forward.15} parent=0 // pred_check_branch
    %25 = sbr.rel (0) target = $region29
  $region28: #{decoder_forward.15} parent=0 // pred_region
    _
  $region29: #{decoder_forward.15} parent=0 // pred_fallthru
    _
  %v27 = vld [vmem:[%s0] sm:$0xff]
  %v28 = vld [vmem:[%s0 + $0x8] sm:$0xff]
  %v29 = vpack.c.bf16 %v28, %v27
  %v30 = vld [vmem:[%s1] sm:$0xff]
  %v31 = vld [vmem:[%s1 + $0x8] sm:$0xff]
  %v32 = vld [vmem:[%s1 + $0x10] sm:$0xff]
  %v33 = vld [vmem:[%s1 + $0x18] sm:$0xff]
  %v34 = vld [vmem:[%s1 + $0x20] sm:$0xff]
  %v35 = vld [vmem:[%s1 + $0x28] sm:$0xff]
  %v36 = vld [vmem:[%s1 + $0x30] sm:$0xff]
  %v37 = vld [vmem:[%s1 + $0x38] sm:$0xff]
  %v38 = vld [vmem:[%s1 + $0x40] sm:$0xff]
  %v39 = vld [vmem:[%s1 + $0x48] sm:$0xff]
  %v40 = vld [vmem:[%s1 + $0x50] sm:$0xff]
  %v41 = vld [vmem:[%s1 + $0x58] sm:$0xff]
  %v42 = vld [vmem:[%s1 + $0x60] sm:$0xff]
  %v43 = vld [vmem:[%s1 + $0x68] sm:$0xff]
  %v44 = vld [vmem:[%s1 + $0x70] sm:$0xff]
  %v45 = vld [vmem:[%s1 + $0x78] sm:$0xff]
  %v46 = vld [vmem:[%s1 + $0x80] sm:$0xff]
  %v47 = vld [vmem:[%s1 + $0x88] sm:$0xff]
  %v48 = vld [vmem:[%s1 + $0x90] sm:$0xff]
  %v49 = vld [vmem:[%s1 + $0x98] sm:$0xff]
  %v50 = vld [vmem:[%s1 + $0xa0] sm:$0xff]
  %v51 = vld [vmem:[%s1 + $0xa8] sm:$0xff]
  %v52 = vld [vmem:[%s1 + $0xb0] sm:$0xff]
  %v53 = vld [vmem:[%s1 + $0xb8] sm:$0xff]
  %v54 = vld [vmem:[%s1 + $0xc0] sm:$0xff]
  %v55 = vld [vmem:[%s1 + $0xc8] sm:$0xff]
  %v56 = vld [vmem:[%s1 + $0xd0] sm:$0xff]
  %v57 = vld [vmem:[%s1 + $0xd8] sm:$0xff]
  %v58 = vld [vmem:[%s1 + $0xe0] sm:$0xff]
  %v59 = vld [vmem:[%s1 + $0xe8] sm:$0xff]
  %v60 = vld [vmem:[%s1 + $0xf0] sm:$0xff]
  %v61 = vld [vmem:[%s1 + $0xf8] sm:$0xff]
  %v62 = vld [vmem:[%s2] sm:$0xf]
  %v64 = vlaneseq
  %v65 = vshrl.u32 %v64, 7
  %v66 = vsub.s32 0, %v65
  %v67 = vrot.slane %v62, %v66
  %v68 = vlaneseq
  %v69 = vshrl.u32 %v68, 7
  %v70 = vsub.s32 1, %v69
  %v71 = vrot.slane %v62, %v70
  %v72 = vlaneseq
  %v73 = vshrl.u32 %v72, 7
  %v74 = vsub.s32 2, %v73
  %v75 = vrot.slane %v62, %v74
  %v76 = vlaneseq
  %v77 = vshrl.u32 %v76, 7
  %v78 = vsub.s32 3, %v77
  %v79 = vrot.slane %v62, %v78
  %v116 = vunpack.c.l.b16 %v30
  %v117 = vunpack.c.h.b16 %v30
  %v118 = vunpack.c.l.b16 %v31
  %v119 = vunpack.c.h.b16 %v31
  %v120 = vunpack.c.l.b16 %v32
  %v121 = vunpack.c.h.b16 %v32
  %v122 = vunpack.c.l.b16 %v33
  %v123 = vunpack.c.h.b16 %v33
  %v124 = vunpack.c.l.b16 %v34
  %v125 = vunpack.c.h.b16 %v34
  %v126 = vunpack.c.l.b16 %v35
  %v127 = vunpack.c.h.b16 %v35
  %v128 = vunpack.c.l.b16 %v36
  %v129 = vunpack.c.h.b16 %v36
  %v130 = vunpack.c.l.b16 %v37
  %v131 = vunpack.c.h.b16 %v37
  %v132 = vunpack.c.l.b16 %v38
  %v133 = vunpack.c.h.b16 %v38
  %v134 = vunpack.c.l.b16 %v39
  %v135 = vunpack.c.h.b16 %v39
  %v136 = vunpack.c.l.b16 %v40
  %v137 = vunpack.c.h.b16 %v40
  %v138 = vunpack.c.l.b16 %v41
  %v139 = vunpack.c.h.b16 %v41
  %v140 = vunpack.c.l.b16 %v42
  %v141 = vunpack.c.h.b16 %v42
  %v142 = vunpack.c.l.b16 %v43
  %v143 = vunpack.c.h.b16 %v43
  %v144 = vunpack.c.l.b16 %v44
  %v145 = vunpack.c.h.b16 %v44
  %v146 = vunpack.c.l.b16 %v45
  %v147 = vunpack.c.h.b16 %v45
  %v148 = vunpack.c.l.b16 %v46
  %v149 = vunpack.c.h.b16 %v46
  %v150 = vunpack.c.l.b16 %v47
  %v151 = vunpack.c.h.b16 %v47
  %v152 = vunpack.c.l.b16 %v48
  %v153 = vunpack.c.h.b16 %v48
  %v154 = vunpack.c.l.b16 %v49
  %v155 = vunpack.c.h.b16 %v49
  %v156 = vunpack.c.l.b16 %v50
  %v157 = vunpack.c.h.b16 %v50
  %v158 = vunpack.c.l.b16 %v51
  %v159 = vunpack.c.h.b16 %v51
  %v160 = vunpack.c.l.b16 %v52
  %v161 = vunpack.c.h.b16 %v52
  %v162 = vunpack.c.l.b16 %v53
  %v163 = vunpack.c.h.b16 %v53
  %v164 = vunpack.c.l.b16 %v54
  %v165 = vunpack.c.h.b16 %v54
  %v166 = vunpack.c.l.b16 %v55
  %v167 = vunpack.c.h.b16 %v55
  %v168 = vunpack.c.l.b16 %v56
  %v169 = vunpack.c.h.b16 %v56
  %v170 = vunpack.c.l.b16 %v57
  %v171 = vunpack.c.h.b16 %v57
  %v172 = vunpack.c.l.b16 %v58
  %v173 = vunpack.c.h.b16 %v58
  %v174 = vunpack.c.l.b16 %v59
  %v175 = vunpack.c.h.b16 %v59
  %v176 = vunpack.c.l.b16 %v60
  %v177 = vunpack.c.h.b16 %v60
  %v178 = vunpack.c.l.b16 %v61
  %v179 = vunpack.c.h.b16 %v61
  %v180 = vpack.c.b16 %v120, %v116
  %v181 = vpack.c.b16 %v121, %v117
  %v182 = vpack.c.b16 %v122, %v118
  %v183 = vpack.c.b16 %v123, %v119
  %v184 = vpack.c.b16 %v128, %v124
  %v185 = vpack.c.b16 %v129, %v125
  %v186 = vpack.c.b16 %v130, %v126
  %v187 = vpack.c.b16 %v131, %v127
  %v188 = vpack.c.b16 %v136, %v132
  %v189 = vpack.c.b16 %v137, %v133
  %v190 = vpack.c.b16 %v138, %v134
  %v191 = vpack.c.b16 %v139, %v135
  %v192 = vpack.c.b16 %v144, %v140
  %v193 = vpack.c.b16 %v145, %v141
  %v194 = vpack.c.b16 %v146, %v142
  %v195 = vpack.c.b16 %v147, %v143
  %v196 = vpack.c.b16 %v152, %v148
  %v197 = vpack.c.b16 %v153, %v149
  %v198 = vpack.c.b16 %v154, %v150
  %v199 = vpack.c.b16 %v155, %v151
  %v200 = vpack.c.b16 %v160, %v156
  %v201 = vpack.c.b16 %v161, %v157
  %v202 = vpack.c.b16 %v162, %v158
  %v203 = vpack.c.b16 %v163, %v159
  %v204 = vpack.c.b16 %v168, %v164
  %v205 = vpack.c.b16 %v169, %v165
  %v206 = vpack.c.b16 %v170, %v166
  %v207 = vpack.c.b16 %v171, %v167
  %v208 = vpack.c.b16 %v176, %v172
  %v209 = vpack.c.b16 %v177, %v173
  %v210 = vpack.c.b16 %v178, %v174
  %v211 = vpack.c.b16 %v179, %v175
  %244 = vmatprep.subr.bf16.mxu0 %v209
  %245 = vmatpush1.bf16.msra.mxu0 %v208
  %246 = vmatprep.subr.bf16.mxu0 %v205
  %247 = vmatpush1.bf16.msra.mxu0 %v204
  %248 = vmatprep.subr.bf16.mxu0 %v201
  %249 = vmatpush1.bf16.msra.mxu0 %v200
  %250 = vmatprep.subr.bf16.mxu0 %v197
  %251 = vmatpush1.bf16.msra.mxu0 %v196
  %252 = vmatprep.subr.bf16.mxu0 %v193
  %253 = vmatpush1.bf16.msra.mxu0 %v192
  %254 = vmatprep.subr.bf16.mxu0 %v189
  %255 = vmatpush1.bf16.msra.mxu0 %v188
  %256 = vmatprep.subr.bf16.mxu0 %v185
  %257 = vmatpush1.bf16.msra.mxu0 %v184
  %258 = vmatprep.subr.bf16.mxu0 %v181
  %259 = vmatpush1.bf16.msra.mxu0 %v180
  %260 = vmatprep.subr.bf16.mxu0 0
  %261 = vmatpush2.bf16.msra.mxu0 0
  %262 = vmatprep.subr.bf16.mxu0 0
  %263 = vmatpush2.bf16.msra.mxu0 0
  %264 = vmatprep.subr.bf16.mxu0 0
  %265 = vmatpush2.bf16.msra.mxu0 0
  %266 = vmatprep.subr.bf16.mxu0 0
  %267 = vmatpush2.bf16.msra.mxu0 0
  %268 = vmatprep.subr.bf16.mxu0 0
  %269 = vmatpush2.bf16.msra.mxu0 0
  %270 = vmatprep.subr.bf16.mxu0 0
  %271 = vmatpush2.bf16.msra.mxu0 0
  %272 = vmatprep.subr.bf16.mxu0 0
  %273 = vmatpush2.bf16.msra.mxu0 0
  %274 = vmatprep.subr.bf16.mxu0 0
  %275 = vmatpush2.bf16.msra.mxu0 0
  %276 = vmatprep.mubr.bf16.mxu0 0
  %277 = vmatmul.mubr.bf16.gmra.mxu0 %v29
  %v278 = vpop.f32.mrf.mxu0
  %v279 = vadd.f32 %v67, %v278
  %v280 = vpop.f32.mrf.mxu0
  %v281 = vadd.f32 %v71, %v280
  %v282 = vpop.f32.mrf.mxu0
  %v283 = vadd.f32 %v67, %v282
  %v284 = vpop.f32.mrf.mxu0
  %v285 = vadd.f32 %v71, %v284
  %286 = vdwg.mxu0
  %287 = vmatprep.subr.bf16.mxu0 %v211
  %288 = vmatpush1.bf16.msra.mxu0 %v210
  %289 = vmatprep.subr.bf16.mxu0 %v207
  %290 = vmatpush1.bf16.msra.mxu0 %v206
  %291 = vmatprep.subr.bf16.mxu0 %v203
  %292 = vmatpush1.bf16.msra.mxu0 %v202
  %293 = vmatprep.subr.bf16.mxu0 %v199
  %294 = vmatpush1.bf16.msra.mxu0 %v198
  %295 = vmatprep.subr.bf16.mxu0 %v195
  %296 = vmatpush1.bf16.msra.mxu0 %v194
  %297 = vmatprep.subr.bf16.mxu0 %v191
  %298 = vmatpush1.bf16.msra.mxu0 %v190
  %299 = vmatprep.subr.bf16.mxu0 %v187
  %300 = vmatpush1.bf16.msra.mxu0 %v186
  %301 = vmatprep.subr.bf16.mxu0 %v183
  %302 = vmatpush1.bf16.msra.mxu0 %v182
  %303 = vmatprep.subr.bf16.mxu0 0
  %304 = vmatpush2.bf16.msra.mxu0 0
  %305 = vmatprep.subr.bf16.mxu0 0
  %306 = vmatpush2.bf16.msra.mxu0 0
  %307 = vmatprep.subr.bf16.mxu0 0
  %308 = vmatpush2.bf16.msra.mxu0 0
  %309 = vmatprep.subr.bf16.mxu0 0
  %310 = vmatpush2.bf16.msra.mxu0 0
  %311 = vmatprep.subr.bf16.mxu0 0
  %312 = vmatpush2.bf16.msra.mxu0 0
  %313 = vmatprep.subr.bf16.mxu0 0
  %314 = vmatpush2.bf16.msra.mxu0 0
  %315 = vmatprep.subr.bf16.mxu0 0
  %316 = vmatpush2.bf16.msra.mxu0 0
  %317 = vmatprep.subr.bf16.mxu0 0
  %318 = vmatpush2.bf16.msra.mxu0 0
  %319 = vmatprep.mubr.bf16.mxu0 0
  %320 = vmatmul.mubr.bf16.gmra.mxu0 %v29
  %v321 = vpop.f32.mrf.mxu0
  %v322 = vadd.f32 %v75, %v321
  %v323 = vpop.f32.mrf.mxu0
  %v324 = vadd.f32 %v79, %v323
  %v325 = vpop.f32.mrf.mxu0
  %v326 = vadd.f32 %v75, %v325
  %v327 = vpop.f32.mrf.mxu0
  %v328 = vadd.f32 %v79, %v327
  %329 = vdwg.mxu0
  %v330 = vmax.f32 %v279, 0.0
  %v331 = vmax.f32 %v281, 0.0
  %v332 = vmax.f32 %v322, 0.0
  %v333 = vmax.f32 %v324, 0.0
  %v334 = vmax.f32 %v283, 0.0
  %v335 = vmax.f32 %v285, 0.0
  %v336 = vmax.f32 %v326, 0.0
  %v337 = vmax.f32 %v328, 0.0
  %v338 = vpack.c.bf16 %v334, %v330
  %v339 = vpack.c.bf16 %v335, %v331
  %v340 = vpack.c.bf16 %v336, %v332
  %v341 = vpack.c.bf16 %v337, %v333
  %v342 = vld [vmem:[%s3] sm:$0xf]
  %v343 = vld [vmem:[%s3 + $0x4] sm:$0xf]
  %v344 = vld [vmem:[%s3 + $0x8] sm:$0xf]
  %v345 = vld [vmem:[%s3 + $0xc] sm:$0xf]
  %v346 = vld [vmem:[%s3 + $0x10] sm:$0xf]
  %v347 = vld [vmem:[%s3 + $0x14] sm:$0xf]
  %v348 = vld [vmem:[%s3 + $0x18] sm:$0xf]
  %v349 = vld [vmem:[%s3 + $0x1c] sm:$0xf]
  %v350 = vld [vmem:[%s3 + $0x20] sm:$0xf]
  %v351 = vld [vmem:[%s3 + $0x24] sm:$0xf]
  %v352 = vld [vmem:[%s3 + $0x28] sm:$0xf]
  %v353 = vld [vmem:[%s3 + $0x2c] sm:$0xf]
  %v354 = vld [vmem:[%s3 + $0x30] sm:$0xf]
  %v355 = vld [vmem:[%s3 + $0x34] sm:$0xf]
  %v356 = vld [vmem:[%s3 + $0x38] sm:$0xf]
  %v357 = vld [vmem:[%s3 + $0x3c] sm:$0xf]
  %v358 = vld [vmem:[%s3 + $0x40] sm:$0xf]
  %v359 = vld [vmem:[%s3 + $0x44] sm:$0xf]
  %v360 = vld [vmem:[%s3 + $0x48] sm:$0xf]
  %v361 = vld [vmem:[%s3 + $0x4c] sm:$0xf]
  %v362 = vld [vmem:[%s3 + $0x50] sm:$0xf]
  %v363 = vld [vmem:[%s3 + $0x54] sm:$0xf]
  %v364 = vld [vmem:[%s3 + $0x58] sm:$0xf]
  %v365 = vld [vmem:[%s3 + $0x5c] sm:$0xf]
  %v366 = vld [vmem:[%s3 + $0x60] sm:$0xf]
  %v367 = vld [vmem:[%s3 + $0x64] sm:$0xf]
  %v368 = vld [vmem:[%s3 + $0x68] sm:$0xf]
  %v369 = vld [vmem:[%s3 + $0x6c] sm:$0xf]
  %v370 = vld [vmem:[%s3 + $0x70] sm:$0xf]
  %v371 = vld [vmem:[%s3 + $0x74] sm:$0xf]
  %v372 = vld [vmem:[%s3 + $0x78] sm:$0xf]
  %v373 = vld [vmem:[%s3 + $0x7c] sm:$0xf]
  %v374 = vld [vmem:[%s3 + $0x80] sm:$0xf]
  %v375 = vld [vmem:[%s3 + $0x84] sm:$0xf]
  %v376 = vld [vmem:[%s3 + $0x88] sm:$0xf]
  %v377 = vld [vmem:[%s3 + $0x8c] sm:$0xf]
  %v378 = vld [vmem:[%s3 + $0x90] sm:$0xf]
  %v379 = vld [vmem:[%s3 + $0x94] sm:$0xf]
  %v380 = vld [vmem:[%s3 + $0x98] sm:$0xf]
  %v381 = vld [vmem:[%s3 + $0x9c] sm:$0xf]
  %v382 = vld [vmem:[%s3 + $0xa0] sm:$0xf]
  %v383 = vld [vmem:[%s3 + $0xa4] sm:$0xf]
  %v384 = vld [vmem:[%s3 + $0xa8] sm:$0xf]
  %v385 = vld [vmem:[%s3 + $0xac] sm:$0xf]
  %v386 = vld [vmem:[%s3 + $0xb0] sm:$0xf]
  %v387 = vld [vmem:[%s3 + $0xb4] sm:$0xf]
  %v388 = vld [vmem:[%s3 + $0xb8] sm:$0xf]
  %v389 = vld [vmem:[%s3 + $0xbc] sm:$0xf]
  %v390 = vld [vmem:[%s3 + $0xc0] sm:$0xf]
  %v391 = vld [vmem:[%s3 + $0xc4] sm:$0xf]
  %v392 = vld [vmem:[%s3 + $0xc8] sm:$0xf]
  %v393 = vld [vmem:[%s3 + $0xcc] sm:$0xf]
  %v394 = vld [vmem:[%s3 + $0xd0] sm:$0xf]
  %v395 = vld [vmem:[%s3 + $0xd4] sm:$0xf]
  %v396 = vld [vmem:[%s3 + $0xd8] sm:$0xf]
  %v397 = vld [vmem:[%s3 + $0xdc] sm:$0xf]
  %v398 = vld [vmem:[%s3 + $0xe0] sm:$0xf]
  %v399 = vld [vmem:[%s3 + $0xe4] sm:$0xf]
  %v400 = vld [vmem:[%s3 + $0xe8] sm:$0xf]
  %v401 = vld [vmem:[%s3 + $0xec] sm:$0xf]
  %v402 = vld [vmem:[%s3 + $0xf0] sm:$0xf]
  %v403 = vld [vmem:[%s3 + $0xf4] sm:$0xf]
  %v404 = vld [vmem:[%s3 + $0xf8] sm:$0xf]
  %v405 = vld [vmem:[%s3 + $0xfc] sm:$0xf]
  %v406 = vld [vmem:[%s4] sm:$0x1]
  %v408 = vlaneseq
  %v409 = vshrl.u32 %v408, 7
  %v410 = vsub.s32 0, %v409
  %v411 = vrot.slane %v406, %v410
  %v477 = vunpack.c.l.b16 %v342
  %v478 = vunpack.c.l.b16 %v343
  %v479 = vunpack.c.l.b16 %v344
  %v480 = vunpack.c.l.b16 %v345
  %v481 = vunpack.c.l.b16 %v346
  %v482 = vunpack.c.l.b16 %v347
  %v483 = vunpack.c.l.b16 %v348
  %v484 = vunpack.c.l.b16 %v349
  %v485 = vunpack.c.l.b16 %v350
  %v486 = vunpack.c.l.b16 %v351
  %v487 = vunpack.c.l.b16 %v352
  %v488 = vunpack.c.l.b16 %v353
  %v489 = vunpack.c.l.b16 %v354
  %v490 = vunpack.c.l.b16 %v355
  %v491 = vunpack.c.l.b16 %v356
  %v492 = vunpack.c.l.b16 %v357
  %v493 = vunpack.c.l.b16 %v358
  %v494 = vunpack.c.l.b16 %v359
  %v495 = vunpack.c.l.b16 %v360
  %v496 = vunpack.c.l.b16 %v361
  %v497 = vunpack.c.l.b16 %v362
  %v498 = vunpack.c.l.b16 %v363
  %v499 = vunpack.c.l.b16 %v364
  %v500 = vunpack.c.l.b16 %v365
  %v501 = vunpack.c.l.b16 %v366
  %v502 = vunpack.c.l.b16 %v367
  %v503 = vunpack.c.l.b16 %v368
  %v504 = vunpack.c.l.b16 %v369
  %v505 = vunpack.c.l.b16 %v370
  %v506 = vunpack.c.l.b16 %v371
  %v507 = vunpack.c.l.b16 %v372
  %v508 = vunpack.c.l.b16 %v373
  %v509 = vunpack.c.l.b16 %v374
  %v510 = vunpack.c.l.b16 %v375
  %v511 = vunpack.c.l.b16 %v376
  %v512 = vunpack.c.l.b16 %v377
  %v513 = vunpack.c.l.b16 %v378
  %v514 = vunpack.c.l.b16 %v379
  %v515 = vunpack.c.l.b16 %v380
  %v516 = vunpack.c.l.b16 %v381
  %v517 = vunpack.c.l.b16 %v382
  %v518 = vunpack.c.l.b16 %v383
  %v519 = vunpack.c.l.b16 %v384
  %v520 = vunpack.c.l.b16 %v385
  %v521 = vunpack.c.l.b16 %v386
  %v522 = vunpack.c.l.b16 %v387
  %v523 = vunpack.c.l.b16 %v388
  %v524 = vunpack.c.l.b16 %v389
  %v525 = vunpack.c.l.b16 %v390
  %v526 = vunpack.c.l.b16 %v391
  %v527 = vunpack.c.l.b16 %v392
  %v528 = vunpack.c.l.b16 %v393
  %v529 = vunpack.c.l.b16 %v394
  %v530 = vunpack.c.l.b16 %v395
  %v531 = vunpack.c.l.b16 %v396
  %v532 = vunpack.c.l.b16 %v397
  %v533 = vunpack.c.l.b16 %v398
  %v534 = vunpack.c.l.b16 %v399
  %v535 = vunpack.c.l.b16 %v400
  %v536 = vunpack.c.l.b16 %v401
  %v537 = vunpack.c.l.b16 %v402
  %v538 = vunpack.c.l.b16 %v403
  %v539 = vunpack.c.l.b16 %v404
  %v540 = vunpack.c.l.b16 %v405
  %v541 = vpack.c.b16 %v478, %v477
  %v542 = vpack.c.b16 %v480, %v479
  %v543 = vpack.c.b16 %v482, %v481
  %v544 = vpack.c.b16 %v484, %v483
  %v545 = vpack.c.b16 %v486, %v485
  %v546 = vpack.c.b16 %v488, %v487
  %v547 = vpack.c.b16 %v490, %v489
  %v548 = vpack.c.b16 %v492, %v491
  %v549 = vpack.c.b16 %v494, %v493
  %v550 = vpack.c.b16 %v496, %v495
  %v551 = vpack.c.b16 %v498, %v497
  %v552 = vpack.c.b16 %v500, %v499
  %v553 = vpack.c.b16 %v502, %v501
  %v554 = vpack.c.b16 %v504, %v503
  %v555 = vpack.c.b16 %v506, %v505
  %v556 = vpack.c.b16 %v508, %v507
  %v557 = vpack.c.b16 %v510, %v509
  %v558 = vpack.c.b16 %v512, %v511
  %v559 = vpack.c.b16 %v514, %v513
  %v560 = vpack.c.b16 %v516, %v515
  %v561 = vpack.c.b16 %v518, %v517
  %v562 = vpack.c.b16 %v520, %v519
  %v563 = vpack.c.b16 %v522, %v521
  %v564 = vpack.c.b16 %v524, %v523
  %v565 = vpack.c.b16 %v526, %v525
  %v566 = vpack.c.b16 %v528, %v527
  %v567 = vpack.c.b16 %v530, %v529
  %v568 = vpack.c.b16 %v532, %v531
  %v569 = vpack.c.b16 %v534, %v533
  %v570 = vpack.c.b16 %v536, %v535
  %v571 = vpack.c.b16 %v538, %v537
  %v572 = vpack.c.b16 %v540, %v539
  %605 = vmatprep.subr.bf16.mxu0 0
  %606 = vmatpush1.bf16.msra.mxu0 %v548
  %607 = vmatprep.subr.bf16.mxu0 0
  %608 = vmatpush1.bf16.msra.mxu0 %v547
  %609 = vmatprep.subr.bf16.mxu0 0
  %610 = vmatpush1.bf16.msra.mxu0 %v546
  %611 = vmatprep.subr.bf16.mxu0 0
  %612 = vmatpush1.bf16.msra.mxu0 %v545
  %613 = vmatprep.subr.bf16.mxu0 0
  %614 = vmatpush1.bf16.msra.mxu0 %v544
  %615 = vmatprep.subr.bf16.mxu0 0
  %616 = vmatpush1.bf16.msra.mxu0 %v543
  %617 = vmatprep.subr.bf16.mxu0 0
  %618 = vmatpush1.bf16.msra.mxu0 %v542
  %619 = vmatprep.subr.bf16.mxu0 0
  %620 = vmatpush1.bf16.msra.mxu0 %v541
  %621 = vmatprep.subr.bf16.mxu0 0
  %622 = vmatpush2.bf16.msra.mxu0 %v556
  %623 = vmatprep.subr.bf16.mxu0 0
  %624 = vmatpush2.bf16.msra.mxu0 %v555
  %625 = vmatprep.subr.bf16.mxu0 0
  %626 = vmatpush2.bf16.msra.mxu0 %v554
  %627 = vmatprep.subr.bf16.mxu0 0
  %628 = vmatpush2.bf16.msra.mxu0 %v553
  %629 = vmatprep.subr.bf16.mxu0 0
  %630 = vmatpush2.bf16.msra.mxu0 %v552
  %631 = vmatprep.subr.bf16.mxu0 0
  %632 = vmatpush2.bf16.msra.mxu0 %v551
  %633 = vmatprep.subr.bf16.mxu0 0
  %634 = vmatpush2.bf16.msra.mxu0 %v550
  %635 = vmatprep.subr.bf16.mxu0 0
  %636 = vmatpush2.bf16.msra.mxu0 %v549
  %637 = vmatprep.mubr.bf16.mxu0 %v339
  %638 = vmatmul.mubr.bf16.gmra.mxu0 %v338
  %v639 = vpop.f32.mrf.mxu0
  %v640 = vadd.f32 %v411, %v639
  %v641 = vpop.f32.mrf.mxu0
  %v642 = vpop.f32.mrf.mxu0
  %v643 = vadd.f32 %v411, %v642
  %v644 = vpop.f32.mrf.mxu0
  %645 = vdwg.mxu0
  %646 = vmatprep.subr.bf16.mxu0 0
  %647 = vmatpush1.bf16.msra.mxu0 %v564
  %648 = vmatprep.subr.bf16.mxu0 0
  %649 = vmatpush1.bf16.msra.mxu0 %v563
  %650 = vmatprep.subr.bf16.mxu0 0
  %651 = vmatpush1.bf16.msra.mxu0 %v562
  %652 = vmatprep.subr.bf16.mxu0 0
  %653 = vmatpush1.bf16.msra.mxu0 %v561
  %654 = vmatprep.subr.bf16.mxu0 0
  %655 = vmatpush1.bf16.msra.mxu0 %v560
  %656 = vmatprep.subr.bf16.mxu0 0
  %657 = vmatpush1.bf16.msra.mxu0 %v559
  %658 = vmatprep.subr.bf16.mxu0 0
  %659 = vmatpush1.bf16.msra.mxu0 %v558
  %660 = vmatprep.subr.bf16.mxu0 0
  %661 = vmatpush1.bf16.msra.mxu0 %v557
  %662 = vmatprep.subr.bf16.mxu0 0
  %663 = vmatpush2.bf16.msra.mxu0 %v572
  %664 = vmatprep.subr.bf16.mxu0 0
  %665 = vmatpush2.bf16.msra.mxu0 %v571
  %666 = vmatprep.subr.bf16.mxu0 0
  %667 = vmatpush2.bf16.msra.mxu0 %v570
  %668 = vmatprep.subr.bf16.mxu0 0
  %669 = vmatpush2.bf16.msra.mxu0 %v569
  %670 = vmatprep.subr.bf16.mxu0 0
  %671 = vmatpush2.bf16.msra.mxu0 %v568
  %672 = vmatprep.subr.bf16.mxu0 0
  %673 = vmatpush2.bf16.msra.mxu0 %v567
  %674 = vmatprep.subr.bf16.mxu0 0
  %675 = vmatpush2.bf16.msra.mxu0 %v566
  %676 = vmatprep.subr.bf16.mxu0 0
  %677 = vmatpush2.bf16.msra.mxu0 %v565
  %678 = vmatprep.mubr.bf16.mxu0 %v341
  %679 = vmatmul.mubr.bf16.gmra.mxu0 %v340
  %v680 = vpop.f32.mrf.mxu0
  %v681 = vadd.f32 %v640, %v680
  %v682 = vpop.f32.mrf.mxu0
  %v683 = vpop.f32.mrf.mxu0
  %v684 = vadd.f32 %v643, %v683
  %v685 = vpop.f32.mrf.mxu0
  %686 = vdwg.mxu0
  %v687 = vadd.f32 %v27, %v681
  %v688 = vadd.f32 %v28, %v684
  %689 = vadd.xlane.f32.xlu0 %v687
  %v690 = vpop.xlane.xlu0 %689
  %691 = vadd.xlane.f32.xlu0 %v688
  %v692 = vpop.xlane.xlu0 %691
  %v693 = vrcp.pop 128.0
  %v694 = vmul.f32 %v690, %v693
  %v695 = vmul.f32 %v692, %v693
  %v696 = vmul.f32 %v687, %v687
  %v697 = vmul.f32 %v688, %v688
  %698 = vadd.xlane.f32.xlu0 %v696
  %v699 = vpop.xlane.xlu0 %698
  %700 = vadd.xlane.f32.xlu0 %v697
  %v701 = vpop.xlane.xlu0 %700
  %v702 = vmul.f32 %v699, %v693
  %v703 = vmul.f32 %v701, %v693
  %v704 = vmul.f32 %v694, %v694
  %v705 = vmul.f32 %v695, %v695
  %v706 = vsub.f32 %v702, %v704
  %v707 = vsub.f32 %v703, %v705
  %v708 = vadd.f32 %v706, 1e-05
  %v709 = vadd.f32 %v707, 1e-05
  %v710 = vrsqrt.pop %v708
  %v711 = vrsqrt.pop %v709
  %v712 = vsub.f32 %v687, %v694
  %v713 = vsub.f32 %v688, %v695
  %v714 = vmul.f32 %v712, %v710
  %v715 = vmul.f32 %v713, %v711
  %v716 = vld [vmem:[%s5] sm:$0x1]
  %v718 = vlaneseq
  %v719 = vshrl.u32 %v718, 7
  %v720 = vsub.s32 0, %v719
  %v721 = vrot.slane %v716, %v720
  %v723 = vmul.f32 %v714, %v721
  %v724 = vmul.f32 %v715, %v721
  %v725 = vld [vmem:[%s6] sm:$0x1]
  %v727 = vlaneseq
  %v728 = vshrl.u32 %v727, 7
  %v729 = vsub.s32 0, %v728
  %v730 = vrot.slane %v725, %v729
  %v732 = vadd.f32 %v723, %v730
  %v733 = vadd.f32 %v724, %v730
  %734 = vst [vmem:[%s7] sm:$0xff] %v732
  %735 = vst [vmem:[%s7 + $0x8] sm:$0xff] %v733
  // Predicated region
  $region30: #{decoder_forward.15} parent=0 // pred_check
    _
  $region31: #{decoder_forward.15} parent=0 // pred_check_branch
    %737 = sbr.rel (0) target = $region33
  $region32: #{decoder_forward.15} parent=0 // pred_region
    _
  $region33: #{decoder_forward.15} parent=0 // pred_fallthru
    _
  // Predicated region
  $region34: #{decoder_forward.15} parent=0 // pred_check
    _
  $region35: #{decoder_forward.15} parent=0 // pred_check_branch
    %739 = sbr.rel (0) target = $region37
  $region36: #{decoder_forward.15} parent=0 // pred_region
    _
  $region37: #{decoder_forward.15} parent=0 // pred_fallthru
    _

// kernel: decoder_forward.13
$region0: #{decoder_forward.13}
  #allocation0 [shape = 'u32[]', space=smem, size = 0x4, offset = 0x4, fixed_abs, tag = 'smem constant byte address 0x4 - core index']
  #allocation1 [shape = 'u32[144,128]{1,0:T(1,128)}', space=vmem, size = 0x12000, scoped, tag = 'internal scratch']
  #allocation2 [shape = 'bf16[8,8,16]{2,1,0:T(8,128)(2,1)}', space=vmem, size = 0x4000, scoped, tag = 'scratch operand']
  #allocation3 [shape = 'bf16[8,8,16]{2,1,0:T(8,128)(2,1)}', space=vmem, size = 0x4000, scoped, tag = 'scratch operand']
  %s0 = inlined_call_operand.vmem [shape: f32[2,8,128], index: 0, kind: input, shape index: {}, may-alias: {0,1,2}]
  %s1 = inlined_call_operand.vmem [shape: f32[2,8,128], index: 1, kind: input, shape index: {}, may-alias: {0,1,2}]
  %s2 = inlined_call_operand.vmem [shape: f32[2,8,128], index: 2, kind: input, shape index: {}, may-alias: {0,1,2}]
  %s3 = inlined_call_operand.vmem [shape: bf16[8,128,16], index: 3, kind: input, shape index: {}]
  %s4 = inlined_call_operand.vmem [shape: f32[8,1,16], index: 4, kind: input, shape index: {}]
  %s5 = inlined_call_operand.vmem [shape: bf16[8,128,16], index: 5, kind: input, shape index: {}]
  %s6 = inlined_call_operand.vmem [shape: f32[8,1,16], index: 6, kind: input, shape index: {}]
  %s7 = inlined_call_operand.vmem [shape: bf16[8,128,16], index: 7, kind: input, shape index: {}]
  %s8 = inlined_call_operand.vmem [shape: f32[8,1,16], index: 8, kind: input, shape index: {}]
  %s9 = inlined_call_operand.vmem [shape: bf16[8,16,128], index: 9, kind: input, shape index: {}]
  %s10 = inlined_call_operand.vmem [shape: f32[1,128], index: 10, kind: input, shape index: {}]
  %s11 = inlined_call_operand.vmem [shape: f32[1,128], index: 11, kind: input, shape index: {}]
  %s12 = inlined_call_operand.vmem [shape: f32[1,128], index: 12, kind: input, shape index: {}]
  %s13 = inlined_call_operand.vmem [shape: f32[2,8,128], index: 13, kind: output, shape index: {}]
  %s14 = sld [smem:[#allocation0]]
  $region89: #{decoder_forward.13} parent=0
    _
  %s16 = ssub.s32 1, %s14
  %s17 = scalar_select 0, %s16, %s14
  loop: start=0, step=1, limit=4
  $region2: #{decoder_forward.13} parent=0 // loop_pre_header
    _
  $region3: #{decoder_forward.13} parent=0 // loop_header
    %s19 = sphi 0, %s23
    %p20 = scmp.ge.s32.totalorder %s19, 4
    %s26 = sphi 0, %s38
    %s27 = sphi 0, %s34
    %s28 = sphi 0, %s26
    %s29 = sphi 0, %s27
    %s30 = sphi 0, %s28
    %s31 = sphi 0, %s29
    %s43 = sphi 0, %s45
    %s46 = sphi 0, %s43
    %s47 = sphi 0, %s46
    %s63 = sphi 0, %s47
    %s69 = sphi 0, %s71
    %s72 = sphi 0, %s69
    %s73 = sphi 0, %s72
    %s89 = sphi 0, %s73
    %s95 = sphi 0, %s97
    %s98 = sphi 0, %s95
    %s99 = sphi 0, %s98
    %s115 = sphi 0, %s99
    %s119 = sphi 0, %s119
    %s121 = sphi 0, %s119
    %s122 = sphi 0, %s121
    %s136 = sphi 0, %s122
    %s140 = sphi 0, %s140
    %s142 = sphi 0, %s140
    %s143 = sphi 0, %s142
    %s157 = sphi 0, %s143
    %s161 = sphi 0, %s161
    %s163 = sphi 0, %s161
    %s164 = sphi 0, %s163
    %s178 = sphi 0, %s164
    %s182 = sphi 0, %s182
    %s184 = sphi 0, %s182
    %s185 = sphi 0, %s184
    %s199 = sphi 0, %s185
    %s203 = sphi 0, %s203
    %s205 = sphi 0, %s203
    %s206 = sphi 0, %s205
    %s220 = sphi 0, %s206
    %s224 = sphi 0, %s224
    %s226 = sphi 0, %s224
    %s227 = sphi 0, %s226
    %s241 = sphi 0, %s227
    %s245 = sphi 0, %s245
    %s247 = sphi 0, %s245
    %s248 = sphi 0, %s247
    %s262 = sphi 0, %s248
    %s266 = sphi 0, %s266
    %s268 = sphi 0, %s266
    %s269 = sphi 0, %s268
    %s283 = sphi 0, %s269
    %s287 = sphi 0, %s287
    %s289 = sphi 0, %s287
    %s290 = sphi 0, %s289
    %s304 = sphi 0, %s290
    %s308 = sphi 0, %s308
    %s310 = sphi 0, %s308
    %s311 = sphi 0, %s310
    %s325 = sphi 0, %s311
    %s333 = sphi 0, %s335
    %s336 = sphi 0, %s333
    %s337 = sphi 0, %s336
    %s353 = sphi 0, %s337
  $region4: #{decoder_forward.13} parent=0 // loop_header_branch
    %22 = sbr.rel (%p20) target = $region8
  $region5: #{decoder_forward.13} parent=0 // loop_body
    %s24 = ssub.s32 %s19, 1
    %s25 = ssub.s32 %s19, 2
    %s32 = sadd.s32 1, %s27
    %p33 = scmp.ge.s32.totalorder %s32, 1
    %s34 = scalar_select %p33, 0, %s32
    %s35 = sadd.s32 1, %s26
    %s36 = scalar_select %p33, %s35, %s26
    %p37 = scmp.ge.s32.totalorder %s36, 2
    %s38 = scalar_select %p37, 0, %s36
    %s39 = ssub.s32 %s26, %s38
    %s40 = ssub.s32 %s27, %s34
    %s41 = sor.u32 %s39, %s40
    %p42 = scmp.eq.s32.totalorder %s41, 0
    %s44 = sadd.s32 %s43, 1
    %s45 = scalar_select %p42, %s43, %s44
    %p48 = pneg %p42
    %p49 = scmp.eq.s32.totalorder %s19, 1
    %p50 = por %p48, %p49
    %p51 = scmp.ne.s32.totalorder %s43, %s46
    %p52 = scmp.eq.s32.totalorder %s19, 0
    %p53 = por %p51, %p52
    %p54 = scmp.ne.s32.totalorder %s43, %s46
    %p55 = scmp.eq.s32.totalorder %s24, 1
    %p56 = por %p54, %p55
    %p57 = scmp.ne.s32.totalorder %s46, %s47
    %p58 = scmp.eq.s32.totalorder %s24, 0
    %p59 = por %p57, %p58
    %p60 = scmp.ne.s32.totalorder %s46, %s47
    %p61 = scmp.eq.s32.totalorder %s25, 1
    %p62 = por %p60, %p61
    %p64 = scmp.ne.s32.totalorder %s47, %s63
    %p65 = scmp.eq.s32.totalorder %s25, 0
    %p66 = por %p64, %p65
    %s67 = ssub.s32 %s26, %s38
    %p68 = scmp.eq.s32.totalorder %s67, 0
    %s70 = sadd.s32 %s69, 1
    %s71 = scalar_select %p68, %s69, %s70
    %p74 = pneg %p68
    %p75 = scmp.eq.s32.totalorder %s19, 1
    %p76 = por %p74, %p75
    %p77 = scmp.ne.s32.totalorder %s69, %s72
    %p78 = scmp.eq.s32.totalorder %s19, 0
    %p79 = por %p77, %p78
    %p80 = scmp.ne.s32.totalorder %s69, %s72
    %p81 = scmp.eq.s32.totalorder %s24, 1
    %p82 = por %p80, %p81
    %p83 = scmp.ne.s32.totalorder %s72, %s73
    %p84 = scmp.eq.s32.totalorder %s24, 0
    %p85 = por %p83, %p84
    %p86 = scmp.ne.s32.totalorder %s72, %s73
    %p87 = scmp.eq.s32.totalorder %s25, 1
    %p88 = por %p86, %p87
    %p90 = scmp.ne.s32.totalorder %s73, %s89
    %p91 = scmp.eq.s32.totalorder %s25, 0
    %p92 = por %p90, %p91
    %s93 = ssub.s32 %s26, %s38
    %p94 = scmp.eq.s32.totalorder %s93, 0
    %s96 = sadd.s32 %s95, 1
    %s97 = scalar_select %p94, %s95, %s96
    %p100 = pneg %p94
    %p101 = scmp.eq.s32.totalorder %s19, 1
    %p102 = por %p100, %p101
    %p103 = scmp.ne.s32.totalorder %s95, %s98
    %p104 = scmp.eq.s32.totalorder %s19, 0
    %p105 = por %p103, %p104
    %p106 = scmp.ne.s32.totalorder %s95, %s98
    %p107 = scmp.eq.s32.totalorder %s24, 1
    %p108 = por %p106, %p107
    %p109 = scmp.ne.s32.totalorder %s98, %s99
    %p110 = scmp.eq.s32.totalorder %s24, 0
    %p111 = por %p109, %p110
    %p112 = scmp.ne.s32.totalorder %s98, %s99
    %p113 = scmp.eq.s32.totalorder %s25, 1
    %p114 = por %p112, %p113
    %p116 = scmp.ne.s32.totalorder %s99, %s115
    %p117 = scmp.eq.s32.totalorder %s25, 0
    %p118 = por %p116, %p117
    %s120 = sadd.s32 %s119, 1
    %p123 = scmp.eq.s32.totalorder %s19, 1
    %p124 = scmp.ne.s32.totalorder %s119, %s121
    %p125 = scmp.eq.s32.totalorder %s19, 0
    %p126 = por %p124, %p125
    %p127 = scmp.ne.s32.totalorder %s119, %s121
    %p128 = scmp.eq.s32.totalorder %s24, 1
    %p129 = por %p127, %p128
    %p130 = scmp.ne.s32.totalorder %s121, %s122
    %p131 = scmp.eq.s32.totalorder %s24, 0
    %p132 = por %p130, %p131
    %p133 = scmp.ne.s32.totalorder %s121, %s122
    %p134 = scmp.eq.s32.totalorder %s25, 1
    %p135 = por %p133, %p134
    %p137 = scmp.ne.s32.totalorder %s122, %s136
    %p138 = scmp.eq.s32.totalorder %s25, 0
    %p139 = por %p137, %p138
    %s141 = sadd.s32 %s140, 1
    %p144 = scmp.eq.s32.totalorder %s19, 1
    %p145 = scmp.ne.s32.totalorder %s140, %s142
    %p146 = scmp.eq.s32.totalorder %s19, 0
    %p147 = por %p145, %p146
    %p148 = scmp.ne.s32.totalorder %s140, %s142
    %p149 = scmp.eq.s32.totalorder %s24, 1
    %p150 = por %p148, %p149
    %p151 = scmp.ne.s32.totalorder %s142, %s143
    %p152 = scmp.eq.s32.totalorder %s24, 0
    %p153 = por %p151, %p152
    %p154 = scmp.ne.s32.totalorder %s142, %s143
    %p155 = scmp.eq.s32.totalorder %s25, 1
    %p156 = por %p154, %p155
    %p158 = scmp.ne.s32.totalorder %s143, %s157
    %p159 = scmp.eq.s32.totalorder %s25, 0
    %p160 = por %p158, %p159
    %s162 = sadd.s32 %s161, 1
    %p165 = scmp.eq.s32.totalorder %s19, 1
    %p166 = scmp.ne.s32.totalorder %s161, %s163
    %p167 = scmp.eq.s32.totalorder %s19, 0
    %p168 = por %p166, %p167
    %p169 = scmp.ne.s32.totalorder %s161, %s163
    %p170 = scmp.eq.s32.totalorder %s24, 1
    %p171 = por %p169, %p170
    %p172 = scmp.ne.s32.totalorder %s163, %s164
    %p173 = scmp.eq.s32.totalorder %s24, 0
    %p174 = por %p172, %p173
    %p175 = scmp.ne.s32.totalorder %s163, %s164
    %p176 = scmp.eq.s32.totalorder %s25, 1
    %p177 = por %p175, %p176
    %p179 = scmp.ne.s32.totalorder %s164, %s178
    %p180 = scmp.eq.s32.totalorder %s25, 0
    %p181 = por %p179, %p180
    %s183 = sadd.s32 %s182, 1
    %p186 = scmp.eq.s32.totalorder %s19, 1
    %p187 = scmp.ne.s32.totalorder %s182, %s184
    %p188 = scmp.eq.s32.totalorder %s19, 0
    %p189 = por %p187, %p188
    %p190 = scmp.ne.s32.totalorder %s182, %s184
    %p191 = scmp.eq.s32.totalorder %s24, 1
    %p192 = por %p190, %p191
    %p193 = scmp.ne.s32.totalorder %s184, %s185
    %p194 = scmp.eq.s32.totalorder %s24, 0
    %p195 = por %p193, %p194
    %p196 = scmp.ne.s32.totalorder %s184, %s185
    %p197 = scmp.eq.s32.totalorder %s25, 1
    %p198 = por %p196, %p197
    %p200 = scmp.ne.s32.totalorder %s185, %s199
    %p201 = scmp.eq.s32.totalorder %s25, 0
    %p202 = por %p200, %p201
    %s204 = sadd.s32 %s203, 1
    %p207 = scmp.eq.s32.totalorder %s19, 1
    %p208 = scmp.ne.s32.totalorder %s203, %s205
    %p209 = scmp.eq.s32.totalorder %s19, 0
    %p210 = por %p208, %p209
    %p211 = scmp.ne.s32.totalorder %s203, %s205
    %p212 = scmp.eq.s32.totalorder %s24, 1
    %p213 = por %p211, %p212
    %p214 = scmp.ne.s32.totalorder %s205, %s206
    %p215 = scmp.eq.s32.totalorder %s24, 0
    %p216 = por %p214, %p215
    %p217 = scmp.ne.s32.totalorder %s205, %s206
    %p218 = scmp.eq.s32.totalorder %s25, 1
    %p219 = por %p217, %p218
    %p221 = scmp.ne.s32.totalorder %s206, %s220
    %p222 = scmp.eq.s32.totalorder %s25, 0
    %p223 = por %p221, %p222
    %s225 = sadd.s32 %s224, 1
    %p228 = scmp.eq.s32.totalorder %s19, 1
    %p229 = scmp.ne.s32.totalorder %s224, %s226
    %p230 = scmp.eq.s32.totalorder %s19, 0
    %p231 = por %p229, %p230
    %p232 = scmp.ne.s32.totalorder %s224, %s226
    %p233 = scmp.eq.s32.totalorder %s24, 1
    %p234 = por %p232, %p233
    %p235 = scmp.ne.s32.totalorder %s226, %s227
    %p236 = scmp.eq.s32.totalorder %s24, 0
    %p237 = por %p235, %p236
    %p238 = scmp.ne.s32.totalorder %s226, %s227
    %p239 = scmp.eq.s32.totalorder %s25, 1
    %p240 = por %p238, %p239
    %p242 = scmp.ne.s32.totalorder %s227, %s241
    %p243 = scmp.eq.s32.totalorder %s25, 0
    %p244 = por %p242, %p243
    %s246 = sadd.s32 %s245, 1
    %p249 = scmp.eq.s32.totalorder %s19, 1
    %p250 = scmp.ne.s32.totalorder %s245, %s247
    %p251 = scmp.eq.s32.totalorder %s19, 0
    %p252 = por %p250, %p251
    %p253 = scmp.ne.s32.totalorder %s245, %s247
    %p254 = scmp.eq.s32.totalorder %s24, 1
    %p255 = por %p253, %p254
    %p256 = scmp.ne.s32.totalorder %s247, %s248
    %p257 = scmp.eq.s32.totalorder %s24, 0
    %p258 = por %p256, %p257
    %p259 = scmp.ne.s32.totalorder %s247, %s248
    %p260 = scmp.eq.s32.totalorder %s25, 1
    %p261 = por %p259, %p260
    %p263 = scmp.ne.s32.totalorder %s248, %s262
    %p264 = scmp.eq.s32.totalorder %s25, 0
    %p265 = por %p263, %p264
    %s267 = sadd.s32 %s266, 1
    %p270 = scmp.eq.s32.totalorder %s19, 1
    %p271 = scmp.ne.s32.totalorder %s266, %s268
    %p272 = scmp.eq.s32.totalorder %s19, 0
    %p273 = por %p271, %p272
    %p274 = scmp.ne.s32.totalorder %s266, %s268
    %p275 = scmp.eq.s32.totalorder %s24, 1
    %p276 = por %p274, %p275
    %p277 = scmp.ne.s32.totalorder %s268, %s269
    %p278 = scmp.eq.s32.totalorder %s24, 0
    %p279 = por %p277, %p278
    %p280 = scmp.ne.s32.totalorder %s268, %s269
    %p281 = scmp.eq.s32.totalorder %s25, 1
    %p282 = por %p280, %p281
    %p284 = scmp.ne.s32.totalorder %s269, %s283
    %p285 = scmp.eq.s32.totalorder %s25, 0
    %p286 = por %p284, %p285
    %s288 = sadd.s32 %s287, 1
    %p291 = scmp.eq.s32.totalorder %s19, 1
    %p292 = scmp.ne.s32.totalorder %s287, %s289
    %p293 = scmp.eq.s32.totalorder %s19, 0
    %p294 = por %p292, %p293
    %p295 = scmp.ne.s32.totalorder %s287, %s289
    %p296 = scmp.eq.s32.totalorder %s24, 1
    %p297 = por %p295, %p296
    %p298 = scmp.ne.s32.totalorder %s289, %s290
    %p299 = scmp.eq.s32.totalorder %s24, 0
    %p300 = por %p298, %p299
    %p301 = scmp.ne.s32.totalorder %s289, %s290
    %p302 = scmp.eq.s32.totalorder %s25, 1
    %p303 = por %p301, %p302
    %p305 = scmp.ne.s32.totalorder %s290, %s304
    %p306 = scmp.eq.s32.totalorder %s25, 0
    %p307 = por %p305, %p306
    %s309 = sadd.s32 %s308, 1
    %p312 = scmp.eq.s32.totalorder %s19, 1
    %p313 = scmp.ne.s32.totalorder %s308, %s310
    %p314 = scmp.eq.s32.totalorder %s19, 0
    %p315 = por %p313, %p314
    %p316 = scmp.ne.s32.totalorder %s308, %s310
    %p317 = scmp.eq.s32.totalorder %s24, 1
    %p318 = por %p316, %p317
    %p319 = scmp.ne.s32.totalorder %s310, %s311
    %p320 = scmp.eq.s32.totalorder %s24, 0
    %p321 = por %p319, %p320
    %p322 = scmp.ne.s32.totalorder %s310, %s311
    %p323 = scmp.eq.s32.totalorder %s25, 1
    %p324 = por %p322, %p323
    %p326 = scmp.ne.s32.totalorder %s311, %s325
    %p327 = scmp.eq.s32.totalorder %s25, 0
    %p328 = por %p326, %p327
    %s329 = ssub.s32 %s26, %s38
    %s330 = ssub.s32 %s27, %s34
    %s331 = sor.u32 %s329, %s330
    %p332 = scmp.eq.s32.totalorder %s331, 0
    %s334 = sadd.s32 %s333, 1
    %s335 = scalar_select %p332, %s333, %s334
    %p338 = pneg %p332
    %p339 = scmp.eq.s32.totalorder %s19, 1
    %p340 = por %p338, %p339
    %p341 = scmp.ne.s32.totalorder %s333, %s336
    %p342 = scmp.eq.s32.totalorder %s19, 0
    %p343 = por %p341, %p342
    %p344 = scmp.ne.s32.totalorder %s333, %s336
    %p345 = scmp.eq.s32.totalorder %s24, 1
    %p346 = por %p344, %p345
    %p347 = scmp.ne.s32.totalorder %s336, %s337
    %p348 = scmp.eq.s32.totalorder %s24, 0
    %p349 = por %p347, %p348
    %p350 = scmp.ne.s32.totalorder %s336, %s337
    %p351 = scmp.eq.s32.totalorder %s25, 1
    %p352 = por %p350, %p351
    %p354 = scmp.ne.s32.totalorder %s337, %s353
    %p355 = scmp.eq.s32.totalorder %s25, 0
    %p356 = por %p354, %p355
    %p357 = scmp.le.s32.totalorder 1, %s19
    %p358 = scmp.lt.s32.totalorder %s19, 3
    %p359 = pnand %p357, %p358
    %p360 = pneg %p359
    // Predicated region
    $region9: #{decoder_forward.13} parent=5 // pred_check
      _
    $region10: #{decoder_forward.13} parent=5 // pred_check_branch
      %362 = sbr.rel (%p359) target = $region12
    $region11: #{decoder_forward.13} parent=5 // pred_region
      %s363 = ssub.s32 %s19, 1
      // Predicated region
      $region13: #{decoder_forward.13} parent=11 // pred_check
        %p364 = pneg %p132
      $region14: #{decoder_forward.13} parent=11 // pred_check_branch
        %366 = sbr.rel (%p364) target = $region16
      $region15: #{decoder_forward.13} parent=11 // pred_region
        _
      $region16: #{decoder_forward.13} parent=11 // pred_fallthru
        _
      // Predicated region
      $region17: #{decoder_forward.13} parent=11 // pred_check
        %p367 = pneg %p153
      $region18: #{decoder_forward.13} parent=11 // pred_check_branch
        %369 = sbr.rel (%p367) target = $region20
      $region19: #{decoder_forward.13} parent=11 // pred_region
        _
      $region20: #{decoder_forward.13} parent=11 // pred_fallthru
        _
      // Predicated region
      $region21: #{decoder_forward.13} parent=11 // pred_check
        %p370 = pneg %p174
      $region22: #{decoder_forward.13} parent=11 // pred_check_branch
        %372 = sbr.rel (%p370) target = $region24
      $region23: #{decoder_forward.13} parent=11 // pred_region
        _
      $region24: #{decoder_forward.13} parent=11 // pred_fallthru
        _
      // Predicated region
      $region25: #{decoder_forward.13} parent=11 // pred_check
        %p373 = pneg %p195
      $region26: #{decoder_forward.13} parent=11 // pred_check_branch
        %375 = sbr.rel (%p373) target = $region28
      $region27: #{decoder_forward.13} parent=11 // pred_region
        _
      $region28: #{decoder_forward.13} parent=11 // pred_fallthru
        _
      // Predicated region
      $region29: #{decoder_forward.13} parent=11 // pred_check
        %p376 = pneg %p216
      $region30: #{decoder_forward.13} parent=11 // pred_check_branch
        %378 = sbr.rel (%p376) target = $region32
      $region31: #{decoder_forward.13} parent=11 // pred_region
        _
      $region32: #{decoder_forward.13} parent=11 // pred_fallthru
        _
      // Predicated region
      $region33: #{decoder_forward.13} parent=11 // pred_check
        %p379 = pneg %p237
      $region34: #{decoder_forward.13} parent=11 // pred_check_branch
        %381 = sbr.rel (%p379) target = $region36
      $region35: #{decoder_forward.13} parent=11 // pred_region
        _
      $region36: #{decoder_forward.13} parent=11 // pred_fallthru
        _
      // Predicated region
      $region37: #{decoder_forward.13} parent=11 // pred_check
        %p382 = pneg %p258
      $region38: #{decoder_forward.13} parent=11 // pred_check_branch
        %384 = sbr.rel (%p382) target = $region40
      $region39: #{decoder_forward.13} parent=11 // pred_region
        _
      $region40: #{decoder_forward.13} parent=11 // pred_fallthru
        _
      // Predicated region
      $region41: #{decoder_forward.13} parent=11 // pred_check
        %p385 = pneg %p279
      $region42: #{decoder_forward.13} parent=11 // pred_check_branch
        %387 = sbr.rel (%p385) target = $region44
      $region43: #{decoder_forward.13} parent=11 // pred_region
        _
      $region44: #{decoder_forward.13} parent=11 // pred_fallthru
        _
      // Predicated region
      $region45: #{decoder_forward.13} parent=11 // pred_check
        %p388 = pneg %p300
      $region46: #{decoder_forward.13} parent=11 // pred_check_branch
        %390 = sbr.rel (%p388) target = $region48
      $region47: #{decoder_forward.13} parent=11 // pred_region
        _
      $region48: #{decoder_forward.13} parent=11 // pred_fallthru
        _
      // Predicated region
      $region49: #{decoder_forward.13} parent=11 // pred_check
        %p391 = pneg %p321
      $region50: #{decoder_forward.13} parent=11 // pred_check_branch
        %393 = sbr.rel (%p391) target = $region52
      $region51: #{decoder_forward.13} parent=11 // pred_region
        _
      $region52: #{decoder_forward.13} parent=11 // pred_fallthru
        _
    $region12: #{decoder_forward.13} parent=5 // pred_fallthru
      _
    %p394 = scmp.lt.s32.totalorder %s19, 2
    // Predicated region
    $region53: #{decoder_forward.13} parent=5 // pred_check
      %p395 = pneg %p394
    $region54: #{decoder_forward.13} parent=5 // pred_check_branch
      %397 = sbr.rel (%p395) target = $region56
    $region55: #{decoder_forward.13} parent=5 // pred_region
      // Predicated region
      $region57: #{decoder_forward.13} parent=55 // pred_check
        %p398 = pneg %p53
      $region58: #{decoder_forward.13} parent=55 // pred_check_branch
        %400 = sbr.rel (%p398) target = $region60
      $region59: #{decoder_forward.13} parent=55 // pred_region
        %p401 = scmp.lt.s32.totalorder %s26, 1
        %s402 = scalar_select %p401, %s26, 1
        %p403 = scmp.lt.s32.totalorder %s27, 0
        %s404 = scalar_select %p403, %s27, 0
        %s405 = sadd.s32 %s404, %s402
        %s406 = smul.addr %s405, 8
        %s407 = scalar_lea.vmem %s0, %s406
      $region60: #{decoder_forward.13} parent=55 // pred_fallthru
        _
      // Predicated region
      $region61: #{decoder_forward.13} parent=55 // pred_check
        %p408 = pneg %p79
      $region62: #{decoder_forward.13} parent=55 // pred_check_branch
        %410 = sbr.rel (%p408) target = $region64
      $region63: #{decoder_forward.13} parent=55 // pred_region
        %p411 = scmp.lt.s32.totalorder %s26, 1
        %s412 = scalar_select %p411, %s26, 1
        %s413 = smul.addr %s412, 8
        %s414 = scalar_lea.vmem %s1, %s413
      $region64: #{decoder_forward.13} parent=55 // pred_fallthru
        _
      // Predicated region
      $region65: #{decoder_forward.13} parent=55 // pred_check
        %p415 = pneg %p105
      $region66: #{decoder_forward.13} parent=55 // pred_check_branch
        %417 = sbr.rel (%p415) target = $region68
      $region67: #{decoder_forward.13} parent=55 // pred_region
        %p418 = scmp.lt.s32.totalorder %s26, 1
        %s419 = scalar_select %p418, %s26, 1
        %s420 = smul.addr %s419, 8
        %s421 = scalar_lea.vmem %s2, %s420
      $region68: #{decoder_forward.13} parent=55 // pred_fallthru
        _
    $region56: #{decoder_forward.13} parent=5 // pred_fallthru
      _
    %p422 = scmp.le.s32.totalorder 1, %s19
    %p423 = scmp.lt.s32.totalorder %s19, 3
    %p424 = pnand %p422, %p423
    %p425 = pneg %p424
    // Predicated region
    $region69: #{decoder_forward.13} parent=5 // pred_check
      _
    $region70: #{decoder_forward.13} parent=5 // pred_check_branch
      %427 = sbr.rel (%p424) target = $region72
    $region71: #{decoder_forward.13} parent=5 // pred_region
      %s428 = ssub.s32 %s19, 1
      %p429 = scmp.lt.s32.totalorder %s28, 1
      %s430 = scalar_select %p429, %s28, 1
      %p431 = scmp.lt.s32.totalorder %s29, 0
      %s432 = scalar_select %p431, %s29, 0
      %s433 = sadd.s32 %s432, %s430
      %s434 = smul.addr %s433, 8
      %s435 = scalar_lea.vmem %s0, %s434
      %p436 = pneg %p59
      %p437 = pneg %p56
      %p438 = scmp.lt.s32.totalorder %s28, 1
      %s439 = scalar_select %p438, %s28, 1
      %s440 = smul.addr %s439, 8
      %s441 = scalar_lea.vmem %s1, %s440
      %p442 = pneg %p85
      %p443 = pneg %p82
      %p444 = scmp.lt.s32.totalorder %s28, 1
      %s445 = scalar_select %p444, %s28, 1
      %s446 = smul.addr %s445, 8
      %s447 = scalar_lea.vmem %s2, %s446
      %p448 = pneg %p111
      %p449 = pneg %p108
      %p450 = pneg %p132
      %p451 = pneg %p129
      %p452 = pneg %p153
      %p453 = pneg %p150
      %p454 = pneg %p174
      %p455 = pneg %p171
      %p456 = pneg %p195
      %p457 = pneg %p192
      %p458 = pneg %p216
      %p459 = pneg %p213
      %p460 = pneg %p237
      %p461 = pneg %p234
      %p462 = pneg %p258
      %p463 = pneg %p255
      %p464 = pneg %p279
      %p465 = pneg %p276
      %p466 = pneg %p300
      %p467 = pneg %p297
      %p468 = pneg %p321
      %p469 = pneg %p318
      %p470 = pneg %p349
      %p471 = pneg %p346
      %p472 = scmp.lt.s32.totalorder %s28, 1
      %s473 = scalar_select %p472, %s28, 1
      %p474 = scmp.lt.s32.totalorder %s29, 0
      %s475 = scalar_select %p474, %s29, 0
      %s476 = sadd.s32 %s475, %s473
      %s477 = smul.addr %s476, 8
      %s478 = scalar_lea.vmem %s13, %s477
      %p479 = scmp.lt.s32.totalorder %s28, 1
      %s480 = scalar_select %p479, %s28, 1
      %p481 = scmp.lt.s32.totalorder %s29, 0
      %s482 = scalar_select %p481, %s29, 0
      %s483 = sadd.s32 %s482, %s480
      %s484 = smul.addr %s483, 8
      %s485 = scalar_lea.vmem %s0, %s484
      %p486 = scmp.lt.s32.totalorder %s28, 1
      %s487 = scalar_select %p486, %s28, 1
      %s488 = smul.addr %s487, 8
      %s489 = scalar_lea.vmem %s1, %s488
      %p490 = scmp.lt.s32.totalorder %s28, 1
      %s491 = scalar_select %p490, %s28, 1
      %s492 = smul.addr %s491, 8
      %s493 = scalar_lea.vmem %s2, %s492
      %p494 = scmp.lt.s32.totalorder %s28, 1
      %s495 = scalar_select %p494, %s28, 1
      %p496 = scmp.lt.s32.totalorder %s29, 0
      %s497 = scalar_select %p496, %s29, 0
      %s498 = sadd.s32 %s497, %s495
      %s499 = smul.addr %s498, 8
      %s500 = scalar_lea.vmem %s13, %s499
      %p502 = scmp.eq.s32.totalorder %s29, 0
      // Predicated region
      $region73: #{decoder_forward.13} parent=71 // pred_check
        %p503 = pneg %p502
      $region74: #{decoder_forward.13} parent=71 // pred_check_branch
        %505 = sbr.rel (%p503) target = $region76
      $region75: #{decoder_forward.13} parent=71 // pred_region
        %v506 = vld [vmem:[%s489] sm:$0xff]
        %v507 = vpack.c.bf16 %v506, %v506
        %v508 = vld [vmem:[%s493] sm:$0xff]
        %v509 = vpack.c.bf16 %v508, %v508
        %v510 = vld [vmem:[%s5] sm:$0xf]
        %v511 = vld [vmem:[%s5 + $0x4] sm:$0xf]
        %v512 = vld [vmem:[%s5 + $0x8] sm:$0xf]
        %v513 = vld [vmem:[%s5 + $0xc] sm:$0xf]
        %v514 = vld [vmem:[%s5 + $0x10] sm:$0xf]
        %v515 = vld [vmem:[%s5 + $0x14] sm:$0xf]
        %v516 = vld [vmem:[%s5 + $0x18] sm:$0xf]
        %v517 = vld [vmem:[%s5 + $0x1c] sm:$0xf]
        %v518 = vld [vmem:[%s5 + $0x20] sm:$0xf]
        %v519 = vld [vmem:[%s5 + $0x24] sm:$0xf]
        %v520 = vld [vmem:[%s5 + $0x28] sm:$0xf]
        %v521 = vld [vmem:[%s5 + $0x2c] sm:$0xf]
        %v522 = vld [vmem:[%s5 + $0x30] sm:$0xf]
        %v523 = vld [vmem:[%s5 + $0x34] sm:$0xf]
        %v524 = vld [vmem:[%s5 + $0x38] sm:$0xf]
        %v525 = vld [vmem:[%s5 + $0x3c] sm:$0xf]
        %v526 = vld [vmem:[%s6] sm:$0x1]
        %v528 = vlaneseq
        %v529 = vshrl.u32 %v528, 7
        %v530 = vsub.s32 0, %v529
        %v531 = vrot.slane %v526, %v530
        %v549 = vunpack.c.l.b16 %v510
        %v550 = vunpack.c.l.b16 %v511
        %v551 = vunpack.c.l.b16 %v512
        %v552 = vunpack.c.l.b16 %v513
        %v553 = vunpack.c.l.b16 %v514
        %v554 = vunpack.c.l.b16 %v515
        %v555 = vunpack.c.l.b16 %v516
        %v556 = vunpack.c.l.b16 %v517
        %v557 = vunpack.c.l.b16 %v518
        %v558 = vunpack.c.l.b16 %v519
        %v559 = vunpack.c.l.b16 %v520
        %v560 = vunpack.c.l.b16 %v521
        %v561 = vunpack.c.l.b16 %v522
        %v562 = vunpack.c.l.b16 %v523
        %v563 = vunpack.c.l.b16 %v524
        %v564 = vunpack.c.l.b16 %v525
        %v565 = vpack.c.b16 %v550, %v549
        %v566 = vpack.c.b16 %v552, %v551
        %v567 = vpack.c.b16 %v554, %v553
        %v568 = vpack.c.b16 %v556, %v555
        %v569 = vpack.c.b16 %v558, %v557
        %v570 = vpack.c.b16 %v560, %v559
        %v571 = vpack.c.b16 %v562, %v561
        %v572 = vpack.c.b16 %v564, %v563
        %581 = vmatprep.subr.bf16.mxu0 0
        %582 = vmatpush1.bf16.msra.mxu0 %v572
        %583 = vmatprep.subr.bf16.mxu0 0
        %584 = vmatpush1.bf16.msra.mxu0 %v571
        %585 = vmatprep.subr.bf16.mxu0 0
        %586 = vmatpush1.bf16.msra.mxu0 %v570
        %587 = vmatprep.subr.bf16.mxu0 0
        %588 = vmatpush1.bf16.msra.mxu0 %v569
        %589 = vmatprep.subr.bf16.mxu0 0
        %590 = vmatpush1.bf16.msra.mxu0 %v568
        %591 = vmatprep.subr.bf16.mxu0 0
        %592 = vmatpush1.bf16.msra.mxu0 %v567
        %593 = vmatprep.subr.bf16.mxu0 0
        %594 = vmatpush1.bf16.msra.mxu0 %v566
        %595 = vmatprep.subr.bf16.mxu0 0
        %596 = vmatpush1.bf16.msra.mxu0 %v565
        %597 = vmatprep.subr.bf16.mxu0 0
        %598 = vmatpush2.bf16.msra.mxu0 0
        %599 = vmatprep.subr.bf16.mxu0 0
        %600 = vmatpush2.bf16.msra.mxu0 0
        %601 = vmatprep.subr.bf16.mxu0 0
        %602 = vmatpush2.bf16.msra.mxu0 0
        %603 = vmatprep.subr.bf16.mxu0 0
        %604 = vmatpush2.bf16.msra.mxu0 0
        %605 = vmatprep.subr.bf16.mxu0 0
        %606 = vmatpush2.bf16.msra.mxu0 0
        %607 = vmatprep.subr.bf16.mxu0 0
        %608 = vmatpush2.bf16.msra.mxu0 0
        %609 = vmatprep.subr.bf16.mxu0 0
        %610 = vmatpush2.bf16.msra.mxu0 0
        %611 = vmatprep.subr.bf16.mxu0 0
        %612 = vmatpush2.bf16.msra.mxu0 0
        %613 = vmatprep.mubr.bf16.mxu0 0
        %614 = vmatmul.mubr.bf16.gmra.mxu0 %v507
        %v615 = vpop.f32.mrf.mxu0
        %v616 = vadd.f32 %v531, %v615
        %v617 = vpop.f32.mrf.mxu0
        %v618 = vpop.f32.mrf.mxu0
        %v619 = vpop.f32.mrf.mxu0
        %620 = vdwg.mxu0
        %v621 = vpack.c.bf16 %v616, %v616
        %vm622 = vcmask 125952
        %623 = vst.msk [vmem:[#allocation2] sm:$0xf] %vm622, %v621
        %v624 = vld [vmem:[%s7] sm:$0xf]
        %v625 = vld [vmem:[%s7 + $0x4] sm:$0xf]
        %v626 = vld [vmem:[%s7 + $0x8] sm:$0xf]
        %v627 = vld [vmem:[%s7 + $0xc] sm:$0xf]
        %v628 = vld [vmem:[%s7 + $0x10] sm:$0xf]
        %v629 = vld [vmem:[%s7 + $0x14] sm:$0xf]
        %v630 = vld [vmem:[%s7 + $0x18] sm:$0xf]
        %v631 = vld [vmem:[%s7 + $0x1c] sm:$0xf]
        %v632 = vld [vmem:[%s7 + $0x20] sm:$0xf]
        %v633 = vld [vmem:[%s7 + $0x24] sm:$0xf]
        %v634 = vld [vmem:[%s7 + $0x28] sm:$0xf]
        %v635 = vld [vmem:[%s7 + $0x2c] sm:$0xf]
        %v636 = vld [vmem:[%s7 + $0x30] sm:$0xf]
        %v637 = vld [vmem:[%s7 + $0x34] sm:$0xf]
        %v638 = vld [vmem:[%s7 + $0x38] sm:$0xf]
        %v639 = vld [vmem:[%s7 + $0x3c] sm:$0xf]
        %v640 = vld [vmem:[%s8] sm:$0x1]
        %v642 = vlaneseq
        %v643 = vshrl.u32 %v642, 7
        %v644 = vsub.s32 0, %v643
        %v645 = vrot.slane %v640, %v644
        %v663 = vunpack.c.l.b16 %v624
        %v664 = vunpack.c.l.b16 %v625
        %v665 = vunpack.c.l.b16 %v626
        %v666 = vunpack.c.l.b16 %v627
        %v667 = vunpack.c.l.b16 %v628
        %v668 = vunpack.c.l.b16 %v629
        %v669 = vunpack.c.l.b16 %v630
        %v670 = vunpack.c.l.b16 %v631
        %v671 = vunpack.c.l.b16 %v632
        %v672 = vunpack.c.l.b16 %v633
        %v673 = vunpack.c.l.b16 %v634
        %v674 = vunpack.c.l.b16 %v635
        %v675 = vunpack.c.l.b16 %v636
        %v676 = vunpack.c.l.b16 %v637
        %v677 = vunpack.c.l.b16 %v638
        %v678 = vunpack.c.l.b16 %v639
        %v679 = vpack.c.b16 %v664, %v663
        %v680 = vpack.c.b16 %v666, %v665
        %v681 = vpack.c.b16 %v668, %v667
        %v682 = vpack.c.b16 %v670, %v669
        %v683 = vpack.c.b16 %v672, %v671
        %v684 = vpack.c.b16 %v674, %v673
        %v685 = vpack.c.b16 %v676, %v675
        %v686 = vpack.c.b16 %v678, %v677
        %695 = vmatprep.subr.bf16.mxu0 0
        %696 = vmatpush1.bf16.msra.mxu0 %v686
        %697 = vmatprep.subr.bf16.mxu0 0
        %698 = vmatpush1.bf16.msra.mxu0 %v685
        %699 = vmatprep.subr.bf16.mxu0 0
        %700 = vmatpush1.bf16.msra.mxu0 %v684
        %701 = vmatprep.subr.bf16.mxu0 0
        %702 = vmatpush1.bf16.msra.mxu0 %v683
        %703 = vmatprep.subr.bf16.mxu0 0
        %704 = vmatpush1.bf16.msra.mxu0 %v682
        %705 = vmatprep.subr.bf16.mxu0 0
        %706 = vmatpush1.bf16.msra.mxu0 %v681
        %707 = vmatprep.subr.bf16.mxu0 0
        %708 = vmatpush1.bf16.msra.mxu0 %v680
        %709 = vmatprep.subr.bf16.mxu0 0
        %710 = vmatpush1.bf16.msra.mxu0 %v679
        %711 = vmatprep.subr.bf16.mxu0 0
        %712 = vmatpush2.bf16.msra.mxu0 0
        %713 = vmatprep.subr.bf16.mxu0 0
        %714 = vmatpush2.bf16.msra.mxu0 0
        %715 = vmatprep.subr.bf16.mxu0 0
        %716 = vmatpush2.bf16.msra.mxu0 0
        %717 = vmatprep.subr.bf16.mxu0 0
        %718 = vmatpush2.bf16.msra.mxu0 0
        %719 = vmatprep.subr.bf16.mxu0 0
        %720 = vmatpush2.bf16.msra.mxu0 0
        %721 = vmatprep.subr.bf16.mxu0 0
        %722 = vmatpush2.bf16.msra.mxu0 0
        %723 = vmatprep.subr.bf16.mxu0 0
        %724 = vmatpush2.bf16.msra.mxu0 0
        %725 = vmatprep.subr.bf16.mxu0 0
        %726 = vmatpush2.bf16.msra.mxu0 0
        %727 = vmatprep.mubr.bf16.mxu0 0
        %728 = vmatmul.mubr.bf16.gmra.mxu0 %v509
        %v729 = vpop.f32.mrf.mxu0
        %v730 = vadd.f32 %v645, %v729
        %v731 = vpop.f32.mrf.mxu0
        %v732 = vpop.f32.mrf.mxu0
        %v733 = vpop.f32.mrf.mxu0
        %734 = vdwg.mxu0
        %v735 = vpack.c.bf16 %v730, %v730
        %736 = vst.msk [vmem:[#allocation3] sm:$0xf] %vm622, %v735
        %s737 = scalar_lea.vmem %s5, 64
        %v738 = vld [vmem:[%s737] sm:$0xf]
        %v739 = vld [vmem:[%s737 + $0x4] sm:$0xf]
        %v740 = vld [vmem:[%s737 + $0x8] sm:$0xf]
        %v741 = vld [vmem:[%s737 + $0xc] sm:$0xf]
        %v742 = vld [vmem:[%s737 + $0x10] sm:$0xf]
        %v743 = vld [vmem:[%s737 + $0x14] sm:$0xf]
        %v744 = vld [vmem:[%s737 + $0x18] sm:$0xf]
        %v745 = vld [vmem:[%s737 + $0x1c] sm:$0xf]
        %v746 = vld [vmem:[%s737 + $0x20] sm:$0xf]
        %v747 = vld [vmem:[%s737 + $0x24] sm:$0xf]
        %v748 = vld [vmem:[%s737 + $0x28] sm:$0xf]
        %v749 = vld [vmem:[%s737 + $0x2c] sm:$0xf]
        %v750 = vld [vmem:[%s737 + $0x30] sm:$0xf]
        %v751 = vld [vmem:[%s737 + $0x34] sm:$0xf]
        %v752 = vld [vmem:[%s737 + $0x38] sm:$0xf]
        %v753 = vld [vmem:[%s737 + $0x3c] sm:$0xf]
        %s754 = scalar_lea.vmem %s6, 1
        %v755 = vld [vmem:[%s754] sm:$0x1]
        %v757 = vlaneseq
        %v758 = vshrl.u32 %v757, 7
        %v759 = vsub.s32 0, %v758
        %v760 = vrot.slane %v755, %v759
        %v778 = vunpack.c.l.b16 %v738
        %v779 = vunpack.c.l.b16 %v739
        %v780 = vunpack.c.l.b16 %v740
        %v781 = vunpack.c.l.b16 %v741
        %v782 = vunpack.c.l.b16 %v742
        %v783 = vunpack.c.l.b16 %v743
        %v784 = vunpack.c.l.b16 %v744
        %v785 = vunpack.c.l.b16 %v745
        %v786 = vunpack.c.l.b16 %v746
        %v787 = vunpack.c.l.b16 %v747
        %v788 = vunpack.c.l.b16 %v748
        %v789 = vunpack.c.l.b16 %v749
        %v790 = vunpack.c.l.b16 %v750
        %v791 = vunpack.c.l.b16 %v751
        %v792 = vunpack.c.l.b16 %v752
        %v793 = vunpack.c.l.b16 %v753
        %v794 = vpack.c.b16 %v779, %v778
        %v795 = vpack.c.b16 %v781, %v780
        %v796 = vpack.c.b16 %v783, %v782
        %v797 = vpack.c.b16 %v785, %v784
        %v798 = vpack.c.b16 %v787, %v786
        %v799 = vpack.c.b16 %v789, %v788
        %v800 = vpack.c.b16 %v791, %v790
        %v801 = vpack.c.b16 %v793, %v792
        %810 = vmatprep.subr.bf16.mxu0 0
        %811 = vmatpush1.bf16.msra.mxu0 %v801
        %812 = vmatprep.subr.bf16.mxu0 0
        %813 = vmatpush1.bf16.msra.mxu0 %v800
        %814 = vmatprep.subr.bf16.mxu0 0
        %815 = vmatpush1.bf16.msra.mxu0 %v799
        %816 = vmatprep.subr.bf16.mxu0 0
        %817 = vmatpush1.bf16.msra.mxu0 %v798
        %818 = vmatprep.subr.bf16.mxu0 0
        %819 = vmatpush1.bf16.msra.mxu0 %v797
        %820 = vmatprep.subr.bf16.mxu0 0
        %821 = vmatpush1.bf16.msra.mxu0 %v796
        %822 = vmatprep.subr.bf16.mxu0 0
        %823 = vmatpush1.bf16.msra.mxu0 %v795
        %824 = vmatprep.subr.bf16.mxu0 0
        %825 = vmatpush1.bf16.msra.mxu0 %v794
        %826 = vmatprep.subr.bf16.mxu0 0
        %827 = vmatpush2.bf16.msra.mxu0 0
        %828 = vmatprep.subr.bf16.mxu0 0
        %829 = vmatpush2.bf16.msra.mxu0 0
        %830 = vmatprep.subr.bf16.mxu0 0
        %831 = vmatpush2.bf16.msra.mxu0 0
        %832 = vmatprep.subr.bf16.mxu0 0
        %833 = vmatpush2.bf16.msra.mxu0 0
        %834 = vmatprep.subr.bf16.mxu0 0
        %835 = vmatpush2.bf16.msra.mxu0 0
        %836 = vmatprep.subr.bf16.mxu0 0
        %837 = vmatpush2.bf16.msra.mxu0 0
        %838 = vmatprep.subr.bf16.mxu0 0
        %839 = vmatpush2.bf16.msra.mxu0 0
        %840 = vmatprep.subr.bf16.mxu0 0
        %841 = vmatpush2.bf16.msra.mxu0 0
        %842 = vmatprep.mubr.bf16.mxu0 0
        %843 = vmatmul.mubr.bf16.gmra.mxu0 %v507
        %v844 = vpop.f32.mrf.mxu0
        %v845 = vadd.f32 %v760, %v844
        %v846 = vpop.f32.mrf.mxu0
        %v847 = vpop.f32.mrf.mxu0
        %v848 = vpop.f32.mrf.mxu0
        %849 = vdwg.mxu0
        %v850 = vpack.c.bf16 %v845, %v845
        %s851 = scalar_lea.vmem [#allocation2], 4
        %852 = vst.msk [vmem:[%s851] sm:$0xf] %vm622, %v850
        %s853 = scalar_lea.vmem %s7, 64
        %v854 = vld [vmem:[%s853] sm:$0xf]
        %v855 = vld [vmem:[%s853 + $0x4] sm:$0xf]
        %v856 = vld [vmem:[%s853 + $0x8] sm:$0xf]
        %v857 = vld [vmem:[%s853 + $0xc] sm:$0xf]
        %v858 = vld [vmem:[%s853 + $0x10] sm:$0xf]
        %v859 = vld [vmem:[%s853 + $0x14] sm:$0xf]
        %v860 = vld [vmem:[%s853 + $0x18] sm:$0xf]
        %v861 = vld [vmem:[%s853 + $0x1c] sm:$0xf]
        %v862 = vld [vmem:[%s853 + $0x20] sm:$0xf]
        %v863 = vld [vmem:[%s853 + $0x24] sm:$0xf]
        %v864 = vld [vmem:[%s853 + $0x28] sm:$0xf]
        %v865 = vld [vmem:[%s853 + $0x2c] sm:$0xf]
        %v866 = vld [vmem:[%s853 + $0x30] sm:$0xf]
        %v867 = vld [vmem:[%s853 + $0x34] sm:$0xf]
        %v868 = vld [vmem:[%s853 + $0x38] sm:$0xf]
        %v869 = vld [vmem:[%s853 + $0x3c] sm:$0xf]
        %s870 = scalar_lea.vmem %s8, 1
        %v871 = vld [vmem:[%s870] sm:$0x1]
        %v873 = vlaneseq
        %v874 = vshrl.u32 %v873, 7
        %v875 = vsub.s32 0, %v874
        %v876 = vrot.slane %v871, %v875
        %v894 = vunpack.c.l.b16 %v854
        %v895 = vunpack.c.l.b16 %v855
        %v896 = vunpack.c.l.b16 %v856
        %v897 = vunpack.c.l.b16 %v857
        %v898 = vunpack.c.l.b16 %v858
        %v899 = vunpack.c.l.b16 %v859
        %v900 = vunpack.c.l.b16 %v860
        %v901 = vunpack.c.l.b16 %v861
        %v902 = vunpack.c.l.b16 %v862
        %v903 = vunpack.c.l.b16 %v863
        %v904 = vunpack.c.l.b16 %v864
        %v905 = vunpack.c.l.b16 %v865
        %v906 = vunpack.c.l.b16 %v866
        %v907 = vunpack.c.l.b16 %v867
        %v908 = vunpack.c.l.b16 %v868
        %v909 = vunpack.c.l.b16 %v869
        %v910 = vpack.c.b16 %v895, %v894
        %v911 = vpack.c.b16 %v897, %v896
        %v912 = vpack.c.b16 %v899, %v898
        %v913 = vpack.c.b16 %v901, %v900
        %v914 = vpack.c.b16 %v903, %v902
        %v915 = vpack.c.b16 %v905, %v904
        %v916 = vpack.c.b16 %v907, %v906
        %v917 = vpack.c.b16 %v909, %v908
        %926 = vmatprep.subr.bf16.mxu0 0
        %927 = vmatpush1.bf16.msra.mxu0 %v917
        %928 = vmatprep.subr.bf16.mxu0 0
        %929 = vmatpush1.bf16.msra.mxu0 %v916
        %930 = vmatprep.subr.bf16.mxu0 0
        %931 = vmatpush1.bf16.msra.mxu0 %v915
        %932 = vmatprep.subr.bf16.mxu0 0
        %933 = vmatpush1.bf16.msra.mxu0 %v914
        %934 = vmatprep.subr.bf16.mxu0 0
        %935 = vmatpush1.bf16.msra.mxu0 %v913
        %936 = vmatprep.subr.bf16.mxu0 0
        %937 = vmatpush1.bf16.msra.mxu0 %v912
        %938 = vmatprep.subr.bf16.mxu0 0
        %939 = vmatpush1.bf16.msra.mxu0 %v911
        %940 = vmatprep.subr.bf16.mxu0 0
        %941 = vmatpush1.bf16.msra.mxu0 %v910
        %942 = vmatprep.subr.bf16.mxu0 0
        %943 = vmatpush2.bf16.msra.mxu0 0
        %944 = vmatprep.subr.bf16.mxu0 0
        %945 = vmatpush2.bf16.msra.mxu0 0
        %946 = vmatprep.subr.bf16.mxu0 0
        %947 = vmatpush2.bf16.msra.mxu0 0
        %948 = vmatprep.subr.bf16.mxu0 0
        %949 = vmatpush2.bf16.msra.mxu0 0
        %950 = vmatprep.subr.bf16.mxu0 0
        %951 = vmatpush2.bf16.msra.mxu0 0
        %952 = vmatprep.subr.bf16.mxu0 0
        %953 = vmatpush2.bf16.msra.mxu0 0
        %954 = vmatprep.subr.bf16.mxu0 0
        %955 = vmatpush2.bf16.msra.mxu0 0
        %956 = vmatprep.subr.bf16.mxu0 0
        %957 = vmatpush2.bf16.msra.mxu0 0
        %958 = vmatprep.mubr.bf16.mxu0 0
        %959 = vmatmul.mubr.bf16.gmra.mxu0 %v509
        %v960 = vpop.f32.mrf.mxu0
        %v961 = vadd.f32 %v876, %v960
        %v962 = vpop.f32.mrf.mxu0
        %v963 = vpop.f32.mrf.mxu0
        %v964 = vpop.f32.mrf.mxu0
        %965 = vdwg.mxu0
        %v966 = vpack.c.bf16 %v961, %v961
        %s967 = scalar_lea.vmem [#allocation3], 4
        %968 = vst.msk [vmem:[%s967] sm:$0xf] %vm622, %v966
        %s969 = scalar_lea.vmem %s5, 128
        %v970 = vld [vmem:[%s969] sm:$0xf]
        %v971 = vld [vmem:[%s969 + $0x4] sm:$0xf]
        %v972 = vld [vmem:[%s969 + $0x8] sm:$0xf]
        %v973 = vld [vmem:[%s969 + $0xc] sm:$0xf]
        %v974 = vld [vmem:[%s969 + $0x10] sm:$0xf]
        %v975 = vld [vmem:[%s969 + $0x14] sm:$0xf]
        %v976 = vld [vmem:[%s969 + $0x18] sm:$0xf]
        %v977 = vld [vmem:[%s969 + $0x1c] sm:$0xf]
        %v978 = vld [vmem:[%s969 + $0x20] sm:$0xf]
        %v979 = vld [vmem:[%s969 + $0x24] sm:$0xf]
        %v980 = vld [vmem:[%s969 + $0x28] sm:$0xf]
        %v981 = vld [vmem:[%s969 + $0x2c] sm:$0xf]
        %v982 = vld [vmem:[%s969 + $0x30] sm:$0xf]
        %v983 = vld [vmem:[%s969 + $0x34] sm:$0xf]
        %v984 = vld [vmem:[%s969 + $0x38] sm:$0xf]
        %v985 = vld [vmem:[%s969 + $0x3c] sm:$0xf]
        %s986 = scalar_lea.vmem %s6, 2
        %v987 = vld [vmem:[%s986] sm:$0x1]
        %v989 = vlaneseq
        %v990 = vshrl.u32 %v989, 7
        %v991 = vsub.s32 0, %v990
        %v992 = vrot.slane %v987, %v991
        %v1010 = vunpack.c.l.b16 %v970
        %v1011 = vunpack.c.l.b16 %v971
        %v1012 = vunpack.c.l.b16 %v972
        %v1013 = vunpack.c.l.b16 %v973
        %v1014 = vunpack.c.l.b16 %v974
        %v1015 = vunpack.c.l.b16 %v975
        %v1016 = vunpack.c.l.b16 %v976
        %v1017 = vunpack.c.l.b16 %v977
        %v1018 = vunpack.c.l.b16 %v978
        %v1019 = vunpack.c.l.b16 %v979
        %v1020 = vunpack.c.l.b16 %v980
        %v1021 = vunpack.c.l.b16 %v981
        %v1022 = vunpack.c.l.b16 %v982
        %v1023 = vunpack.c.l.b16 %v983
        %v1024 = vunpack.c.l.b16 %v984
        %v1025 = vunpack.c.l.b16 %v985
        %v1026 = vpack.c.b16 %v1011, %v1010
        %v1027 = vpack.c.b16 %v1013, %v1012
        %v1028 = vpack.c.b16 %v1015, %v1014
        %v1029 = vpack.c.b16 %v1017, %v1016
        %v1030 = vpack.c.b16 %v1019, %v1018
        %v1031 = vpack.c.b16 %v1021, %v1020
        %v1032 = vpack.c.b16 %v1023, %v1022
        %v1033 = vpack.c.b16 %v1025, %v1024
        %1042 = vmatprep.subr.bf16.mxu0 0
        %1043 = vmatpush1.bf16.msra.mxu0 %v1033
        %1044 = vmatprep.subr.bf16.mxu0 0
        %1045 = vmatpush1.bf16.msra.mxu0 %v1032
        %1046 = vmatprep.subr.bf16.mxu0 0
        %1047 = vmatpush1.bf16.msra.mxu0 %v1031
        %1048 = vmatprep.subr.bf16.mxu0 0
        %1049 = vmatpush1.bf16.msra.mxu0 %v1030
        %1050 = vmatprep.subr.bf16.mxu0 0
        %1051 = vmatpush1.bf16.msra.mxu0 %v1029
        %1052 = vmatprep.subr.bf16.mxu0 0
        %1053 = vmatpush1.bf16.msra.mxu0 %v1028
        %1054 = vmatprep.subr.bf16.mxu0 0
        %1055 = vmatpush1.bf16.msra.mxu0 %v1027
        %1056 = vmatprep.subr.bf16.mxu0 0
        %1057 = vmatpush1.bf16.msra.mxu0 %v1026
        %1058 = vmatprep.subr.bf16.mxu0 0
        %1059 = vmatpush2.bf16.msra.mxu0 0
        %1060 = vmatprep.subr.bf16.mxu0 0
        %1061 = vmatpush2.bf16.msra.mxu0 0
        %1062 = vmatprep.subr.bf16.mxu0 0
        %1063 = vmatpush2.bf16.msra.mxu0 0
        %1064 = vmatprep.subr.bf16.mxu0 0
        %1065 = vmatpush2.bf16.msra.mxu0 0
        %1066 = vmatprep.subr.bf16.mxu0 0
        %1067 = vmatpush2.bf16.msra.mxu0 0
        %1068 = vmatprep.subr.bf16.mxu0 0
        %1069 = vmatpush2.bf16.msra.mxu0 0
        %1070 = vmatprep.subr.bf16.mxu0 0
        %1071 = vmatpush2.bf16.msra.mxu0 0
        %1072 = vmatprep.subr.bf16.mxu0 0
        %1073 = vmatpush2.bf16.msra.mxu0 0
        %1074 = vmatprep.mubr.bf16.mxu0 0
        %1075 = vmatmul.mubr.bf16.gmra.mxu0 %v507
        %v1076 = vpop.f32.mrf.mxu0
        %v1077 = vadd.f32 %v992, %v1076
        %v1078 = vpop.f32.mrf.mxu0
        %v1079 = vpop.f32.mrf.mxu0
        %v1080 = vpop.f32.mrf.mxu0
        %1081 = vdwg.mxu0
        %v1082 = vpack.c.bf16 %v1077, %v1077
        %s1083 = scalar_lea.vmem [#allocation2], 8
        %1084 = vst.msk [vmem:[%s1083] sm:$0xf] %vm622, %v1082
        %s1085 = scalar_lea.vmem %s7, 128
        %v1086 = vld [vmem:[%s1085] sm:$0xf]
        %v1087 = vld [vmem:[%s1085 + $0x4] sm:$0xf]
        %v1088 = vld [vmem:[%s1085 + $0x8] sm:$0xf]
        %v1089 = vld [vmem:[%s1085 + $0xc] sm:$0xf]
        %v1090 = vld [vmem:[%s1085 + $0x10] sm:$0xf]
        %v1091 = vld [vmem:[%s1085 + $0x14] sm:$0xf]
        %v1092 = vld [vmem:[%s1085 + $0x18] sm:$0xf]
        %v1093 = vld [vmem:[%s1085 + $0x1c] sm:$0xf]
        %v1094 = vld [vmem:[%s1085 + $0x20] sm:$0xf]
        %v1095 = vld [vmem:[%s1085 + $0x24] sm:$0xf]
        %v1096 = vld [vmem:[%s1085 + $0x28] sm:$0xf]
        %v1097 = vld [vmem:[%s1085 + $0x2c] sm:$0xf]
        %v1098 = vld [vmem:[%s1085 + $0x30] sm:$0xf]
        %v1099 = vld [vmem:[%s1085 + $0x34] sm:$0xf]
        %v1100 = vld [vmem:[%s1085 + $0x38] sm:$0xf]
        %v1101 = vld [vmem:[%s1085 + $0x3c] sm:$0xf]
        %s1102 = scalar_lea.vmem %s8, 2
        %v1103 = vld [vmem:[%s1102] sm:$0x1]
        %v1105 = vlaneseq
        %v1106 = vshrl.u32 %v1105, 7
        %v1107 = vsub.s32 0, %v1106
        %v1108 = vrot.slane %v1103, %v1107
        %v1126 = vunpack.c.l.b16 %v1086
        %v1127 = vunpack.c.l.b16 %v1087
        %v1128 = vunpack.c.l.b16 %v1088
        %v1129 = vunpack.c.l.b16 %v1089
        %v1130 = vunpack.c.l.b16 %v1090
        %v1131 = vunpack.c.l.b16 %v1091
        %v1132 = vunpack.c.l.b16 %v1092
        %v1133 = vunpack.c.l.b16 %v1093
        %v1134 = vunpack.c.l.b16 %v1094
        %v1135 = vunpack.c.l.b16 %v1095
        %v1136 = vunpack.c.l.b16 %v1096
        %v1137 = vunpack.c.l.b16 %v1097
        %v1138 = vunpack.c.l.b16 %v1098
        %v1139 = vunpack.c.l.b16 %v1099
        %v1140 = vunpack.c.l.b16 %v1100
        %v1141 = vunpack.c.l.b16 %v1101
        %v1142 = vpack.c.b16 %v1127, %v1126
        %v1143 = vpack.c.b16 %v1129, %v1128
        %v1144 = vpack.c.b16 %v1131, %v1130
        %v1145 = vpack.c.b16 %v1133, %v1132
        %v1146 = vpack.c.b16 %v1135, %v1134
        %v1147 = vpack.c.b16 %v1137, %v1136
        %v1148 = vpack.c.b16 %v1139, %v1138
        %v1149 = vpack.c.b16 %v1141, %v1140
        %1158 = vmatprep.subr.bf16.mxu0 0
        %1159 = vmatpush1.bf16.msra.mxu0 %v1149
        %1160 = vmatprep.subr.bf16.mxu0 0
        %1161 = vmatpush1.bf16.msra.mxu0 %v1148
        %1162 = vmatprep.subr.bf16.mxu0 0
        %1163 = vmatpush1.bf16.msra.mxu0 %v1147
        %1164 = vmatprep.subr.bf16.mxu0 0
        %1165 = vmatpush1.bf16.msra.mxu0 %v1146
        %1166 = vmatprep.subr.bf16.mxu0 0
        %1167 = vmatpush1.bf16.msra.mxu0 %v1145
        %1168 = vmatprep.subr.bf16.mxu0 0
        %1169 = vmatpush1.bf16.msra.mxu0 %v1144
        %1170 = vmatprep.subr.bf16.mxu0 0
        %1171 = vmatpush1.bf16.msra.mxu0 %v1143
        %1172 = vmatprep.subr.bf16.mxu0 0
        %1173 = vmatpush1.bf16.msra.mxu0 %v1142
        %1174 = vmatprep.subr.bf16.mxu0 0
        %1175 = vmatpush2.bf16.msra.mxu0 0
        %1176 = vmatprep.subr.bf16.mxu0 0
        %1177 = vmatpush2.bf16.msra.mxu0 0
        %1178 = vmatprep.subr.bf16.mxu0 0
        %1179 = vmatpush2.bf16.msra.mxu0 0
        %1180 = vmatprep.subr.bf16.mxu0 0
        %1181 = vmatpush2.bf16.msra.mxu0 0
        %1182 = vmatprep.subr.bf16.mxu0 0
        %1183 = vmatpush2.bf16.msra.mxu0 0
        %1184 = vmatprep.subr.bf16.mxu0 0
        %1185 = vmatpush2.bf16.msra.mxu0 0
        %1186 = vmatprep.subr.bf16.mxu0 0
        %1187 = vmatpush2.bf16.msra.mxu0 0
        %1188 = vmatprep.subr.bf16.mxu0 0
        %1189 = vmatpush2.bf16.msra.mxu0 0
        %1190 = vmatprep.mubr.bf16.mxu0 0
        %1191 = vmatmul.mubr.bf16.gmra.mxu0 %v509
        %v1192 = vpop.f32.mrf.mxu0
        %v1193 = vadd.f32 %v1108, %v1192
        %v1194 = vpop.f32.mrf.mxu0
        %v1195 = vpop.f32.mrf.mxu0
        %v1196 = vpop.f32.mrf.mxu0
        %1197 = vdwg.mxu0
        %v1198 = vpack.c.bf16 %v1193, %v1193
        %s1199 = scalar_lea.vmem [#allocation3], 8
        %1200 = vst.msk [vmem:[%s1199] sm:$0xf] %vm622, %v1198
        %s1201 = scalar_lea.vmem %s5, 192
        %v1202 = vld [vmem:[%s1201] sm:$0xf]
        %v1203 = vld [vmem:[%s1201 + $0x4] sm:$0xf]
        %v1204 = vld [vmem:[%s1201 + $0x8] sm:$0xf]
        %v1205 = vld [vmem:[%s1201 + $0xc] sm:$0xf]
        %v1206 = vld [vmem:[%s1201 + $0x10] sm:$0xf]
        %v1207 = vld [vmem:[%s1201 + $0x14] sm:$0xf]
        %v1208 = vld [vmem:[%s1201 + $0x18] sm:$0xf]
        %v1209 = vld [vmem:[%s1201 + $0x1c] sm:$0xf]
        %v1210 = vld [vmem:[%s1201 + $0x20] sm:$0xf]
        %v1211 = vld [vmem:[%s1201 + $0x24] sm:$0xf]
        %v1212 = vld [vmem:[%s1201 + $0x28] sm:$0xf]
        %v1213 = vld [vmem:[%s1201 + $0x2c] sm:$0xf]
        %v1214 = vld [vmem:[%s1201 + $0x30] sm:$0xf]
        %v1215 = vld [vmem:[%s1201 + $0x34] sm:$0xf]
        %v1216 = vld [vmem:[%s1201 + $0x38] sm:$0xf]
        %v1217 = vld [vmem:[%s1201 + $0x3c] sm:$0xf]
        %s1218 = scalar_lea.vmem %s6, 3
        %v1219 = vld [vmem:[%s1218] sm:$0x1]
        %v1221 = vlaneseq
        %v1222 = vshrl.u32 %v1221, 7
        %v1223 = vsub.s32 0, %v1222
        %v1224 = vrot.slane %v1219, %v1223
        %v1242 = vunpack.c.l.b16 %v1202
        %v1243 = vunpack.c.l.b16 %v1203
        %v1244 = vunpack.c.l.b16 %v1204
        %v1245 = vunpack.c.l.b16 %v1205
        %v1246 = vunpack.c.l.b16 %v1206
        %v1247 = vunpack.c.l.b16 %v1207
        %v1248 = vunpack.c.l.b16 %v1208
        %v1249 = vunpack.c.l.b16 %v1209
        %v1250 = vunpack.c.l.b16 %v1210
        %v1251 = vunpack.c.l.b16 %v1211
        %v1252 = vunpack.c.l.b16 %v1212
        %v1253 = vunpack.c.l.b16 %v1213
        %v1254 = vunpack.c.l.b16 %v1214
        %v1255 = vunpack.c.l.b16 %v1215
        %v1256 = vunpack.c.l.b16 %v1216
        %v1257 = vunpack.c.l.b16 %v1217
        %v1258 = vpack.c.b16 %v1243, %v1242
        %v1259 = vpack.c.b16 %v1245, %v1244
        %v1260 = vpack.c.b16 %v1247, %v1246
        %v1261 = vpack.c.b16 %v1249, %v1248
        %v1262 = vpack.c.b16 %v1251, %v1250
        %v1263 = vpack.c.b16 %v1253, %v1252
        %v1264 = vpack.c.b16 %v1255, %v1254
        %v1265 = vpack.c.b16 %v1257, %v1256
        %1274 = vmatprep.subr.bf16.mxu0 0
        %1275 = vmatpush1.bf16.msra.mxu0 %v1265
        %1276 = vmatprep.subr.bf16.mxu0 0
        %1277 = vmatpush1.bf16.msra.mxu0 %v1264
        %1278 = vmatprep.subr.bf16.mxu0 0
        %1279 = vmatpush1.bf16.msra.mxu0 %v1263
        %1280 = vmatprep.subr.bf16.mxu0 0
        %1281 = vmatpush1.bf16.msra.mxu0 %v1262
        %1282 = vmatprep.subr.bf16.mxu0 0
        %1283 = vmatpush1.bf16.msra.mxu0 %v1261
        %1284 = vmatprep.subr.bf16.mxu0 0
        %1285 = vmatpush1.bf16.msra.mxu0 %v1260
        %1286 = vmatprep.subr.bf16.mxu0 0
        %1287 = vmatpush1.bf16.msra.mxu0 %v1259
        %1288 = vmatprep.subr.bf16.mxu0 0
        %1289 = vmatpush1.bf16.msra.mxu0 %v1258
        %1290 = vmatprep.subr.bf16.mxu0 0
        %1291 = vmatpush2.bf16.msra.mxu0 0
        %1292 = vmatprep.subr.bf16.mxu0 0
        %1293 = vmatpush2.bf16.msra.mxu0 0
        %1294 = vmatprep.subr.bf16.mxu0 0
        %1295 = vmatpush2.bf16.msra.mxu0 0
        %1296 = vmatprep.subr.bf16.mxu0 0
        %1297 = vmatpush2.bf16.msra.mxu0 0
        %1298 = vmatprep.subr.bf16.mxu0 0
        %1299 = vmatpush2.bf16.msra.mxu0 0
        %1300 = vmatprep.subr.bf16.mxu0 0
        %1301 = vmatpush2.bf16.msra.mxu0 0
        %1302 = vmatprep.subr.bf16.mxu0 0
        %1303 = vmatpush2.bf16.msra.mxu0 0
        %1304 = vmatprep.subr.bf16.mxu0 0
        %1305 = vmatpush2.bf16.msra.mxu0 0
        %1306 = vmatprep.mubr.bf16.mxu0 0
        %1307 = vmatmul.mubr.bf16.gmra.mxu0 %v507
        %v1308 = vpop.f32.mrf.mxu0
        %v1309 = vadd.f32 %v1224, %v1308
        %v1310 = vpop.f32.mrf.mxu0
        %v1311 = vpop.f32.mrf.mxu0
        %v1312 = vpop.f32.mrf.mxu0
        %1313 = vdwg.mxu0
        %v1314 = vpack.c.bf16 %v1309, %v1309
        %s1315 = scalar_lea.vmem [#allocation2], 12
        %1316 = vst.msk [vmem:[%s1315] sm:$0xf] %vm622, %v1314
        %s1317 = scalar_lea.vmem %s7, 192
        %v1318 = vld [vmem:[%s1317] sm:$0xf]
        %v1319 = vld [vmem:[%s1317 + $0x4] sm:$0xf]
        %v1320 = vld [vmem:[%s1317 + $0x8] sm:$0xf]
        %v1321 = vld [vmem:[%s1317 + $0xc] sm:$0xf]
        %v1322 = vld [vmem:[%s1317 + $0x10] sm:$0xf]
        %v1323 = vld [vmem:[%s1317 + $0x14] sm:$0xf]
        %v1324 = vld [vmem:[%s1317 + $0x18] sm:$0xf]
        %v1325 = vld [vmem:[%s1317 + $0x1c] sm:$0xf]
        %v1326 = vld [vmem:[%s1317 + $0x20] sm:$0xf]
        %v1327 = vld [vmem:[%s1317 + $0x24] sm:$0xf]
        %v1328 = vld [vmem:[%s1317 + $0x28] sm:$0xf]
        %v1329 = vld [vmem:[%s1317 + $0x2c] sm:$0xf]
        %v1330 = vld [vmem:[%s1317 + $0x30] sm:$0xf]
        %v1331 = vld [vmem:[%s1317 + $0x34] sm:$0xf]
        %v1332 = vld [vmem:[%s1317 + $0x38] sm:$0xf]
        %v1333 = vld [vmem:[%s1317 + $0x3c] sm:$0xf]
        %s1334 = scalar_lea.vmem %s8, 3
        %v1335 = vld [vmem:[%s1334] sm:$0x1]
        %v1337 = vlaneseq
        %v1338 = vshrl.u32 %v1337, 7
        %v1339 = vsub.s32 0, %v1338
        %v1340 = vrot.slane %v1335, %v1339
        %v1358 = vunpack.c.l.b16 %v1318
        %v1359 = vunpack.c.l.b16 %v1319
        %v1360 = vunpack.c.l.b16 %v1320
        %v1361 = vunpack.c.l.b16 %v1321
        %v1362 = vunpack.c.l.b16 %v1322
        %v1363 = vunpack.c.l.b16 %v1323
        %v1364 = vunpack.c.l.b16 %v1324
        %v1365 = vunpack.c.l.b16 %v1325
        %v1366 = vunpack.c.l.b16 %v1326
        %v1367 = vunpack.c.l.b16 %v1327
        %v1368 = vunpack.c.l.b16 %v1328
        %v1369 = vunpack.c.l.b16 %v1329
        %v1370 = vunpack.c.l.b16 %v1330
        %v1371 = vunpack.c.l.b16 %v1331
        %v1372 = vunpack.c.l.b16 %v1332
        %v1373 = vunpack.c.l.b16 %v1333
        %v1374 = vpack.c.b16 %v1359, %v1358
        %v1375 = vpack.c.b16 %v1361, %v1360
        %v1376 = vpack.c.b16 %v1363, %v1362
        %v1377 = vpack.c.b16 %v1365, %v1364
        %v1378 = vpack.c.b16 %v1367, %v1366
        %v1379 = vpack.c.b16 %v1369, %v1368
        %v1380 = vpack.c.b16 %v1371, %v1370
        %v1381 = vpack.c.b16 %v1373, %v1372
        %1390 = vmatprep.subr.bf16.mxu0 0
        %1391 = vmatpush1.bf16.msra.mxu0 %v1381
        %1392 = vmatprep.subr.bf16.mxu0 0
        %1393 = vmatpush1.bf16.msra.mxu0 %v1380
        %1394 = vmatprep.subr.bf16.mxu0 0
        %1395 = vmatpush1.bf16.msra.mxu0 %v1379
        %1396 = vmatprep.subr.bf16.mxu0 0
        %1397 = vmatpush1.bf16.msra.mxu0 %v1378
        %1398 = vmatprep.subr.bf16.mxu0 0
        %1399 = vmatpush1.bf16.msra.mxu0 %v1377
        %1400 = vmatprep.subr.bf16.mxu0 0
        %1401 = vmatpush1.bf16.msra.mxu0 %v1376
        %1402 = vmatprep.subr.bf16.mxu0 0
        %1403 = vmatpush1.bf16.msra.mxu0 %v1375
        %1404 = vmatprep.subr.bf16.mxu0 0
        %1405 = vmatpush1.bf16.msra.mxu0 %v1374
        %1406 = vmatprep.subr.bf16.mxu0 0
        %1407 = vmatpush2.bf16.msra.mxu0 0
        %1408 = vmatprep.subr.bf16.mxu0 0
        %1409 = vmatpush2.bf16.msra.mxu0 0
        %1410 = vmatprep.subr.bf16.mxu0 0
        %1411 = vmatpush2.bf16.msra.mxu0 0
        %1412 = vmatprep.subr.bf16.mxu0 0
        %1413 = vmatpush2.bf16.msra.mxu0 0
        %1414 = vmatprep.subr.bf16.mxu0 0
        %1415 = vmatpush2.bf16.msra.mxu0 0
        %1416 = vmatprep.subr.bf16.mxu0 0
        %1417 = vmatpush2.bf16.msra.mxu0 0
        %1418 = vmatprep.subr.bf16.mxu0 0
        %1419 = vmatpush2.bf16.msra.mxu0 0
        %1420 = vmatprep.subr.bf16.mxu0 0
        %1421 = vmatpush2.bf16.msra.mxu0 0
        %1422 = vmatprep.mubr.bf16.mxu0 0
        %1423 = vmatmul.mubr.bf16.gmra.mxu0 %v509
        %v1424 = vpop.f32.mrf.mxu0
        %v1425 = vadd.f32 %v1340, %v1424
        %v1426 = vpop.f32.mrf.mxu0
        %v1427 = vpop.f32.mrf.mxu0
        %v1428 = vpop.f32.mrf.mxu0
        %1429 = vdwg.mxu0
        %v1430 = vpack.c.bf16 %v1425, %v1425
        %s1431 = scalar_lea.vmem [#allocation3], 12
        %1432 = vst.msk [vmem:[%s1431] sm:$0xf] %vm622, %v1430
        %s1433 = scalar_lea.vmem %s5, 256
        %v1434 = vld [vmem:[%s1433] sm:$0xf]
        %v1435 = vld [vmem:[%s1433 + $0x4] sm:$0xf]
        %v1436 = vld [vmem:[%s1433 + $0x8] sm:$0xf]
        %v1437 = vld [vmem:[%s1433 + $0xc] sm:$0xf]
        %v1438 = vld [vmem:[%s1433 + $0x10] sm:$0xf]
        %v1439 = vld [vmem:[%s1433 + $0x14] sm:$0xf]
        %v1440 = vld [vmem:[%s1433 + $0x18] sm:$0xf]
        %v1441 = vld [vmem:[%s1433 + $0x1c] sm:$0xf]
        %v1442 = vld [vmem:[%s1433 + $0x20] sm:$0xf]
        %v1443 = vld [vmem:[%s1433 + $0x24] sm:$0xf]
        %v1444 = vld [vmem:[%s1433 + $0x28] sm:$0xf]
        %v1445 = vld [vmem:[%s1433 + $0x2c] sm:$0xf]
        %v1446 = vld [vmem:[%s1433 + $0x30] sm:$0xf]
        %v1447 = vld [vmem:[%s1433 + $0x34] sm:$0xf]
        %v1448 = vld [vmem:[%s1433 + $0x38] sm:$0xf]
        %v1449 = vld [vmem:[%s1433 + $0x3c] sm:$0xf]
        %s1450 = scalar_lea.vmem %s6, 4
        %v1451 = vld [vmem:[%s1450] sm:$0x1]
        %v1453 = vlaneseq
        %v1454 = vshrl.u32 %v1453, 7
        %v1455 = vsub.s32 0, %v1454
        %v1456 = vrot.slane %v1451, %v1455
        %v1474 = vunpack.c.l.b16 %v1434
        %v1475 = vunpack.c.l.b16 %v1435
        %v1476 = vunpack.c.l.b16 %v1436
        %v1477 = vunpack.c.l.b16 %v1437
        %v1478 = vunpack.c.l.b16 %v1438
        %v1479 = vunpack.c.l.b16 %v1439
        %v1480 = vunpack.c.l.b16 %v1440
        %v1481 = vunpack.c.l.b16 %v1441
        %v1482 = vunpack.c.l.b16 %v1442
        %v1483 = vunpack.c.l.b16 %v1443
        %v1484 = vunpack.c.l.b16 %v1444
        %v1485 = vunpack.c.l.b16 %v1445
        %v1486 = vunpack.c.l.b16 %v1446
        %v1487 = vunpack.c.l.b16 %v1447
        %v1488 = vunpack.c.l.b16 %v1448
        %v1489 = vunpack.c.l.b16 %v1449
        %v1490 = vpack.c.b16 %v1475, %v1474
        %v1491 = vpack.c.b16 %v1477, %v1476
        %v1492 = vpack.c.b16 %v1479, %v1478
        %v1493 = vpack.c.b16 %v1481, %v1480
        %v1494 = vpack.c.b16 %v1483, %v1482
        %v1495 = vpack.c.b16 %v1485, %v1484
        %v1496 = vpack.c.b16 %v1487, %v1486
        %v1497 = vpack.c.b16 %v1489, %v1488
        %1506 = vmatprep.subr.bf16.mxu0 0
        %1507 = vmatpush1.bf16.msra.mxu0 %v1497
        %1508 = vmatprep.subr.bf16.mxu0 0
        %1509 = vmatpush1.bf16.msra.mxu0 %v1496
        %1510 = vmatprep.subr.bf16.mxu0 0
        %1511 = vmatpush1.bf16.msra.mxu0 %v1495
        %1512 = vmatprep.subr.bf16.mxu0 0
        %1513 = vmatpush1.bf16.msra.mxu0 %v1494
        %1514 = vmatprep.subr.bf16.mxu0 0
        %1515 = vmatpush1.bf16.msra.mxu0 %v1493
        %1516 = vmatprep.subr.bf16.mxu0 0
        %1517 = vmatpush1.bf16.msra.mxu0 %v1492
        %1518 = vmatprep.subr.bf16.mxu0 0
        %1519 = vmatpush1.bf16.msra.mxu0 %v1491
        %1520 = vmatprep.subr.bf16.mxu0 0
        %1521 = vmatpush1.bf16.msra.mxu0 %v1490
        %1522 = vmatprep.subr.bf16.mxu0 0
        %1523 = vmatpush2.bf16.msra.mxu0 0
        %1524 = vmatprep.subr.bf16.mxu0 0
        %1525 = vmatpush2.bf16.msra.mxu0 0
        %1526 = vmatprep.subr.bf16.mxu0 0
        %1527 = vmatpush2.bf16.msra.mxu0 0
        %1528 = vmatprep.subr.bf16.mxu0 0
        %1529 = vmatpush2.bf16.msra.mxu0 0
        %1530 = vmatprep.subr.bf16.mxu0 0
        %1531 = vmatpush2.bf16.msra.mxu0 0
        %1532 = vmatprep.subr.bf16.mxu0 0
        %1533 = vmatpush2.bf16.msra.mxu0 0
        %1534 = vmatprep.subr.bf16.mxu0 0
        %1535 = vmatpush2.bf16.msra.mxu0 0
        %1536 = vmatprep.subr.bf16.mxu0 0
        %1537 = vmatpush2.bf16.msra.mxu0 0
        %1538 = vmatprep.mubr.bf16.mxu0 0
        %1539 = vmatmul.mubr.bf16.gmra.mxu0 %v507
        %v1540 = vpop.f32.mrf.mxu0
        %v1541 = vadd.f32 %v1456, %v1540
        %v1542 = vpop.f32.mrf.mxu0
        %v1543 = vpop.f32.mrf.mxu0
        %v1544 = vpop.f32.mrf.mxu0
        %1545 = vdwg.mxu0
        %v1546 = vpack.c.bf16 %v1541, %v1541
        %s1547 = scalar_lea.vmem [#allocation2], 16
        %1548 = vst.msk [vmem:[%s1547] sm:$0xf] %vm622, %v1546
        %s1549 = scalar_lea.vmem %s7, 256
        %v1550 = vld [vmem:[%s1549] sm:$0xf]
        %v1551 = vld [vmem:[%s1549 + $0x4] sm:$0xf]
        %v1552 = vld [vmem:[%s1549 + $0x8] sm:$0xf]
        %v1553 = vld [vmem:[%s1549 + $0xc] sm:$0xf]
        %v1554 = vld [vmem:[%s1549 + $0x10] sm:$0xf]
        %v1555 = vld [vmem:[%s1549 + $0x14] sm:$0xf]
        %v1556 = vld [vmem:[%s1549 + $0x18] sm:$0xf]
        %v1557 = vld [vmem:[%s1549 + $0x1c] sm:$0xf]
        %v1558 = vld [vmem:[%s1549 + $0x20] sm:$0xf]
        %v1559 = vld [vmem:[%s1549 + $0x24] sm:$0xf]
        %v1560 = vld [vmem:[%s1549 + $0x28] sm:$0xf]
        %v1561 = vld [vmem:[%s1549 + $0x2c] sm:$0xf]
        %v1562 = vld [vmem:[%s1549 + $0x30] sm:$0xf]
        %v1563 = vld [vmem:[%s1549 + $0x34] sm:$0xf]
        %v1564 = vld [vmem:[%s1549 + $0x38] sm:$0xf]
        %v1565 = vld [vmem:[%s1549 + $0x3c] sm:$0xf]
        %s1566 = scalar_lea.vmem %s8, 4
        %v1567 = vld [vmem:[%s1566] sm:$0x1]
        %v1569 = vlaneseq
        %v1570 = vshrl.u32 %v1569, 7
        %v1571 = vsub.s32 0, %v1570
        %v1572 = vrot.slane %v1567, %v1571
        %v1590 = vunpack.c.l.b16 %v1550
        %v1591 = vunpack.c.l.b16 %v1551
        %v1592 = vunpack.c.l.b16 %v1552
        %v1593 = vunpack.c.l.b16 %v1553
        %v1594 = vunpack.c.l.b16 %v1554
        %v1595 = vunpack.c.l.b16 %v1555
        %v1596 = vunpack.c.l.b16 %v1556
        %v1597 = vunpack.c.l.b16 %v1557
        %v1598 = vunpack.c.l.b16 %v1558
        %v1599 = vunpack.c.l.b16 %v1559
        %v1600 = vunpack.c.l.b16 %v1560
        %v1601 = vunpack.c.l.b16 %v1561
        %v1602 = vunpack.c.l.b16 %v1562
        %v1603 = vunpack.c.l.b16 %v1563
        %v1604 = vunpack.c.l.b16 %v1564
        %v1605 = vunpack.c.l.b16 %v1565
        %v1606 = vpack.c.b16 %v1591, %v1590
        %v1607 = vpack.c.b16 %v1593, %v1592
        %v1608 = vpack.c.b16 %v1595, %v1594
        %v1609 = vpack.c.b16 %v1597, %v1596
        %v1610 = vpack.c.b16 %v1599, %v1598
        %v1611 = vpack.c.b16 %v1601, %v1600
        %v1612 = vpack.c.b16 %v1603, %v1602
        %v1613 = vpack.c.b16 %v1605, %v1604
        %1622 = vmatprep.subr.bf16.mxu0 0
        %1623 = vmatpush1.bf16.msra.mxu0 %v1613
        %1624 = vmatprep.subr.bf16.mxu0 0
        %1625 = vmatpush1.bf16.msra.mxu0 %v1612
        %1626 = vmatprep.subr.bf16.mxu0 0
        %1627 = vmatpush1.bf16.msra.mxu0 %v1611
        %1628 = vmatprep.subr.bf16.mxu0 0
        %1629 = vmatpush1.bf16.msra.mxu0 %v1610
        %1630 = vmatprep.subr.bf16.mxu0 0
        %1631 = vmatpush1.bf16.msra.mxu0 %v1609
        %1632 = vmatprep.subr.bf16.mxu0 0
        %1633 = vmatpush1.bf16.msra.mxu0 %v1608
        %1634 = vmatprep.subr.bf16.mxu0 0
        %1635 = vmatpush1.bf16.msra.mxu0 %v1607
        %1636 = vmatprep.subr.bf16.mxu0 0
        %1637 = vmatpush1.bf16.msra.mxu0 %v1606
        %1638 = vmatprep.subr.bf16.mxu0 0
        %1639 = vmatpush2.bf16.msra.mxu0 0
        %1640 = vmatprep.subr.bf16.mxu0 0
        %1641 = vmatpush2.bf16.msra.mxu0 0
        %1642 = vmatprep.subr.bf16.mxu0 0
        %1643 = vmatpush2.bf16.msra.mxu0 0
        %1644 = vmatprep.subr.bf16.mxu0 0
        %1645 = vmatpush2.bf16.msra.mxu0 0
        %1646 = vmatprep.subr.bf16.mxu0 0
        %1647 = vmatpush2.bf16.msra.mxu0 0
        %1648 = vmatprep.subr.bf16.mxu0 0
        %1649 = vmatpush2.bf16.msra.mxu0 0
        %1650 = vmatprep.subr.bf16.mxu0 0
        %1651 = vmatpush2.bf16.msra.mxu0 0
        %1652 = vmatprep.subr.bf16.mxu0 0
        %1653 = vmatpush2.bf16.msra.mxu0 0
        %1654 = vmatprep.mubr.bf16.mxu0 0
        %1655 = vmatmul.mubr.bf16.gmra.mxu0 %v509
        %v1656 = vpop.f32.mrf.mxu0
        %v1657 = vadd.f32 %v1572, %v1656
        %v1658 = vpop.f32.mrf.mxu0
        %v1659 = vpop.f32.mrf.mxu0
        %v1660 = vpop.f32.mrf.mxu0
        %1661 = vdwg.mxu0
        %v1662 = vpack.c.bf16 %v1657, %v1657
        %s1663 = scalar_lea.vmem [#allocation3], 16
        %1664 = vst.msk [vmem:[%s1663] sm:$0xf] %vm622, %v1662
        %s1665 = scalar_lea.vmem %s5, 320
        %v1666 = vld [vmem:[%s1665] sm:$0xf]
        %v1667 = vld [vmem:[%s1665 + $0x4] sm:$0xf]
        %v1668 = vld [vmem:[%s1665 + $0x8] sm:$0xf]
        %v1669 = vld [vmem:[%s1665 + $0xc] sm:$0xf]
        %v1670 = vld [vmem:[%s1665 + $0x10] sm:$0xf]
        %v1671 = vld [vmem:[%s1665 + $0x14] sm:$0xf]
        %v1672 = vld [vmem:[%s1665 + $0x18] sm:$0xf]
        %v1673 = vld [vmem:[%s1665 + $0x1c] sm:$0xf]
        %v1674 = vld [vmem:[%s1665 + $0x20] sm:$0xf]
        %v1675 = vld [vmem:[%s1665 + $0x24] sm:$0xf]
        %v1676 = vld [vmem:[%s1665 + $0x28] sm:$0xf]
        %v1677 = vld [vmem:[%s1665 + $0x2c] sm:$0xf]
        %v1678 = vld [vmem:[%s1665 + $0x30] sm:$0xf]
        %v1679 = vld [vmem:[%s1665 + $0x34] sm:$0xf]
        %v1680 = vld [vmem:[%s1665 + $0x38] sm:$0xf]
        %v1681 = vld [vmem:[%s1665 + $0x3c] sm:$0xf]
        %s1682 = scalar_lea.vmem %s6, 5
        %v1683 = vld [vmem:[%s1682] sm:$0x1]
        %v1685 = vlaneseq
        %v1686 = vshrl.u32 %v1685, 7
        %v1687 = vsub.s32 0, %v1686
        %v1688 = vrot.slane %v1683, %v1687
        %v1706 = vunpack.c.l.b16 %v1666
        %v1707 = vunpack.c.l.b16 %v1667
        %v1708 = vunpack.c.l.b16 %v1668
        %v1709 = vunpack.c.l.b16 %v1669
        %v1710 = vunpack.c.l.b16 %v1670
        %v1711 = vunpack.c.l.b16 %v1671
        %v1712 = vunpack.c.l.b16 %v1672
        %v1713 = vunpack.c.l.b16 %v1673
        %v1714 = vunpack.c.l.b16 %v1674
        %v1715 = vunpack.c.l.b16 %v1675
        %v1716 = vunpack.c.l.b16 %v1676
        %v1717 = vunpack.c.l.b16 %v1677
        %v1718 = vunpack.c.l.b16 %v1678
        %v1719 = vunpack.c.l.b16 %v1679
        %v1720 = vunpack.c.l.b16 %v1680
        %v1721 = vunpack.c.l.b16 %v1681
        %v1722 = vpack.c.b16 %v1707, %v1706
        %v1723 = vpack.c.b16 %v1709, %v1708
        %v1724 = vpack.c.b16 %v1711, %v1710
        %v1725 = vpack.c.b16 %v1713, %v1712
        %v1726 = vpack.c.b16 %v1715, %v1714
        %v1727 = vpack.c.b16 %v1717, %v1716
        %v1728 = vpack.c.b16 %v1719, %v1718
        %v1729 = vpack.c.b16 %v1721, %v1720
        %1738 = vmatprep.subr.bf16.mxu0 0
        %1739 = vmatpush1.bf16.msra.mxu0 %v1729
        %1740 = vmatprep.subr.bf16.mxu0 0
        %1741 = vmatpush1.bf16.msra.mxu0 %v1728
        %1742 = vmatprep.subr.bf16.mxu0 0
        %1743 = vmatpush1.bf16.msra.mxu0 %v1727
        %1744 = vmatprep.subr.bf16.mxu0 0
        %1745 = vmatpush1.bf16.msra.mxu0 %v1726
        %1746 = vmatprep.subr.bf16.mxu0 0
        %1747 = vmatpush1.bf16.msra.mxu0 %v1725
        %1748 = vmatprep.subr.bf16.mxu0 0
        %1749 = vmatpush1.bf16.msra.mxu0 %v1724
        %1750 = vmatprep.subr.bf16.mxu0 0
        %1751 = vmatpush1.bf16.msra.mxu0 %v1723
        %1752 = vmatprep.subr.bf16.mxu0 0
        %1753 = vmatpush1.bf16.msra.mxu0 %v1722
        %1754 = vmatprep.subr.bf16.mxu0 0
        %1755 = vmatpush2.bf16.msra.mxu0 0
        %1756 = vmatprep.subr.bf16.mxu0 0
        %1757 = vmatpush2.bf16.msra.mxu0 0
        %1758 = vmatprep.subr.bf16.mxu0 0
        %1759 = vmatpush2.bf16.msra.mxu0 0
        %1760 = vmatprep.subr.bf16.mxu0 0
        %1761 = vmatpush2.bf16.msra.mxu0 0
        %1762 = vmatprep.subr.bf16.mxu0 0
        %1763 = vmatpush2.bf16.msra.mxu0 0
        %1764 = vmatprep.subr.bf16.mxu0 0
        %1765 = vmatpush2.bf16.msra.mxu0 0
        %1766 = vmatprep.subr.bf16.mxu0 0
        %1767 = vmatpush2.bf16.msra.mxu0 0
        %1768 = vmatprep.subr.bf16.mxu0 0
        %1769 = vmatpush2.bf16.msra.mxu0 0
        %1770 = vmatprep.mubr.bf16.mxu0 0
        %1771 = vmatmul.mubr.bf16.gmra.mxu0 %v507
        %v1772 = vpop.f32.mrf.mxu0
        %v1773 = vadd.f32 %v1688, %v1772
        %v1774 = vpop.f32.mrf.mxu0
        %v1775 = vpop.f32.mrf.mxu0
        %v1776 = vpop.f32.mrf.mxu0
        %1777 = vdwg.mxu0
        %v1778 = vpack.c.bf16 %v1773, %v1773
        %s1779 = scalar_lea.vmem [#allocation2], 20
        %1780 = vst.msk [vmem:[%s1779] sm:$0xf] %vm622, %v1778
        %s1781 = scalar_lea.vmem %s7, 320
        %v1782 = vld [vmem:[%s1781] sm:$0xf]
        %v1783 = vld [vmem:[%s1781 + $0x4] sm:$0xf]
        %v1784 = vld [vmem:[%s1781 + $0x8] sm:$0xf]
        %v1785 = vld [vmem:[%s1781 + $0xc] sm:$0xf]
        %v1786 = vld [vmem:[%s1781 + $0x10] sm:$0xf]
        %v1787 = vld [vmem:[%s1781 + $0x14] sm:$0xf]
        %v1788 = vld [vmem:[%s1781 + $0x18] sm:$0xf]
        %v1789 = vld [vmem:[%s1781 + $0x1c] sm:$0xf]
        %v1790 = vld [vmem:[%s1781 + $0x20] sm:$0xf]
        %v1791 = vld [vmem:[%s1781 + $0x24] sm:$0xf]
        %v1792 = vld [vmem:[%s1781 + $0x28] sm:$0xf]
        %v1793 = vld [vmem:[%s1781 + $0x2c] sm:$0xf]
        %v1794 = vld [vmem:[%s1781 + $0x30] sm:$0xf]
        %v1795 = vld [vmem:[%s1781 + $0x34] sm:$0xf]
        %v1796 = vld [vmem:[%s1781 + $0x38] sm:$0xf]
        %v1797 = vld [vmem:[%s1781 + $0x3c] sm:$0xf]
        %s1798 = scalar_lea.vmem %s8, 5
        %v1799 = vld [vmem:[%s1798] sm:$0x1]
        %v1801 = vlaneseq
        %v1802 = vshrl.u32 %v1801, 7
        %v1803 = vsub.s32 0, %v1802
        %v1804 = vrot.slane %v1799, %v1803
        %v1822 = vunpack.c.l.b16 %v1782
        %v1823 = vunpack.c.l.b16 %v1783
        %v1824 = vunpack.c.l.b16 %v1784
        %v1825 = vunpack.c.l.b16 %v1785
        %v1826 = vunpack.c.l.b16 %v1786
        %v1827 = vunpack.c.l.b16 %v1787
        %v1828 = vunpack.c.l.b16 %v1788
        %v1829 = vunpack.c.l.b16 %v1789
        %v1830 = vunpack.c.l.b16 %v1790
        %v1831 = vunpack.c.l.b16 %v1791
        %v1832 = vunpack.c.l.b16 %v1792
        %v1833 = vunpack.c.l.b16 %v1793
        %v1834 = vunpack.c.l.b16 %v1794
        %v1835 = vunpack.c.l.b16 %v1795
        %v1836 = vunpack.c.l.b16 %v1796
        %v1837 = vunpack.c.l.b16 %v1797
        %v1838 = vpack.c.b16 %v1823, %v1822
        %v1839 = vpack.c.b16 %v1825, %v1824
        %v1840 = vpack.c.b16 %v1827, %v1826
        %v1841 = vpack.c.b16 %v1829, %v1828
        %v1842 = vpack.c.b16 %v1831, %v1830
        %v1843 = vpack.c.b16 %v1833, %v1832
        %v1844 = vpack.c.b16 %v1835, %v1834
        %v1845 = vpack.c.b16 %v1837, %v1836
        %1854 = vmatprep.subr.bf16.mxu0 0
        %1855 = vmatpush1.bf16.msra.mxu0 %v1845
        %1856 = vmatprep.subr.bf16.mxu0 0
        %1857 = vmatpush1.bf16.msra.mxu0 %v1844
        %1858 = vmatprep.subr.bf16.mxu0 0
        %1859 = vmatpush1.bf16.msra.mxu0 %v1843
        %1860 = vmatprep.subr.bf16.mxu0 0
        %1861 = vmatpush1.bf16.msra.mxu0 %v1842
        %1862 = vmatprep.subr.bf16.mxu0 0
        %1863 = vmatpush1.bf16.msra.mxu0 %v1841
        %1864 = vmatprep.subr.bf16.mxu0 0
        %1865 = vmatpush1.bf16.msra.mxu0 %v1840
        %1866 = vmatprep.subr.bf16.mxu0 0
        %1867 = vmatpush1.bf16.msra.mxu0 %v1839
        %1868 = vmatprep.subr.bf16.mxu0 0
        %1869 = vmatpush1.bf16.msra.mxu0 %v1838
        %1870 = vmatprep.subr.bf16.mxu0 0
        %1871 = vmatpush2.bf16.msra.mxu0 0
        %1872 = vmatprep.subr.bf16.mxu0 0
        %1873 = vmatpush2.bf16.msra.mxu0 0
        %1874 = vmatprep.subr.bf16.mxu0 0
        %1875 = vmatpush2.bf16.msra.mxu0 0
        %1876 = vmatprep.subr.bf16.mxu0 0
        %1877 = vmatpush2.bf16.msra.mxu0 0
        %1878 = vmatprep.subr.bf16.mxu0 0
        %1879 = vmatpush2.bf16.msra.mxu0 0
        %1880 = vmatprep.subr.bf16.mxu0 0
        %1881 = vmatpush2.bf16.msra.mxu0 0
        %1882 = vmatprep.subr.bf16.mxu0 0
        %1883 = vmatpush2.bf16.msra.mxu0 0
        %1884 = vmatprep.subr.bf16.mxu0 0
        %1885 = vmatpush2.bf16.msra.mxu0 0
        %1886 = vmatprep.mubr.bf16.mxu0 0
        %1887 = vmatmul.mubr.bf16.gmra.mxu0 %v509
        %v1888 = vpop.f32.mrf.mxu0
        %v1889 = vadd.f32 %v1804, %v1888
        %v1890 = vpop.f32.mrf.mxu0
        %v1891 = vpop.f32.mrf.mxu0
        %v1892 = vpop.f32.mrf.mxu0
        %1893 = vdwg.mxu0
        %v1894 = vpack.c.bf16 %v1889, %v1889
        %s1895 = scalar_lea.vmem [#allocation3], 20
        %1896 = vst.msk [vmem:[%s1895] sm:$0xf] %vm622, %v1894
        %s1897 = scalar_lea.vmem %s5, 384
        %v1898 = vld [vmem:[%s1897] sm:$0xf]
        %v1899 = vld [vmem:[%s1897 + $0x4] sm:$0xf]
        %v1900 = vld [vmem:[%s1897 + $0x8] sm:$0xf]
        %v1901 = vld [vmem:[%s1897 + $0xc] sm:$0xf]
        %v1902 = vld [vmem:[%s1897 + $0x10] sm:$0xf]
        %v1903 = vld [vmem:[%s1897 + $0x14] sm:$0xf]
        %v1904 = vld [vmem:[%s1897 + $0x18] sm:$0xf]
        %v1905 = vld [vmem:[%s1897 + $0x1c] sm:$0xf]
        %v1906 = vld [vmem:[%s1897 + $0x20] sm:$0xf]
        %v1907 = vld [vmem:[%s1897 + $0x24] sm:$0xf]
        %v1908 = vld [vmem:[%s1897 + $0x28] sm:$0xf]
        %v1909 = vld [vmem:[%s1897 + $0x2c] sm:$0xf]
        %v1910 = vld [vmem:[%s1897 + $0x30] sm:$0xf]
        %v1911 = vld [vmem:[%s1897 + $0x34] sm:$0xf]
        %v1912 = vld [vmem:[%s1897 + $0x38] sm:$0xf]
        %v1913 = vld [vmem:[%s1897 + $0x3c] sm:$0xf]
        %s1914 = scalar_lea.vmem %s6, 6
        %v1915 = vld [vmem:[%s1914] sm:$0x1]
        %v1917 = vlaneseq
        %v1918 = vshrl.u32 %v1917, 7
        %v1919 = vsub.s32 0, %v1918
        %v1920 = vrot.slane %v1915, %v1919
        %v1938 = vunpack.c.l.b16 %v1898
        %v1939 = vunpack.c.l.b16 %v1899
        %v1940 = vunpack.c.l.b16 %v1900
        %v1941 = vunpack.c.l.b16 %v1901
        %v1942 = vunpack.c.l.b16 %v1902
        %v1943 = vunpack.c.l.b16 %v1903
        %v1944 = vunpack.c.l.b16 %v1904
        %v1945 = vunpack.c.l.b16 %v1905
        %v1946 = vunpack.c.l.b16 %v1906
        %v1947 = vunpack.c.l.b16 %v1907
        %v1948 = vunpack.c.l.b16 %v1908
        %v1949 = vunpack.c.l.b16 %v1909
        %v1950 = vunpack.c.l.b16 %v1910
        %v1951 = vunpack.c.l.b16 %v1911
        %v1952 = vunpack.c.l.b16 %v1912
        %v1953 = vunpack.c.l.b16 %v1913
        %v1954 = vpack.c.b16 %v1939, %v1938
        %v1955 = vpack.c.b16 %v1941, %v1940
        %v1956 = vpack.c.b16 %v1943, %v1942
        %v1957 = vpack.c.b16 %v1945, %v1944
        %v1958 = vpack.c.b16 %v1947, %v1946
        %v1959 = vpack.c.b16 %v1949, %v1948
        %v1960 = vpack.c.b16 %v1951, %v1950
        %v1961 = vpack.c.b16 %v1953, %v1952
        %1970 = vmatprep.subr.bf16.mxu0 0
        %1971 = vmatpush1.bf16.msra.mxu0 %v1961
        %1972 = vmatprep.subr.bf16.mxu0 0
        %1973 = vmatpush1.bf16.msra.mxu0 %v1960
        %1974 = vmatprep.subr.bf16.mxu0 0
        %1975 = vmatpush1.bf16.msra.mxu0 %v1959
        %1976 = vmatprep.subr.bf16.mxu0 0
        %1977 = vmatpush1.bf16.msra.mxu0 %v1958
        %1978 = vmatprep.subr.bf16.mxu0 0
        %1979 = vmatpush1.bf16.msra.mxu0 %v1957
        %1980 = vmatprep.subr.bf16.mxu0 0
        %1981 = vmatpush1.bf16.msra.mxu0 %v1956
        %1982 = vmatprep.subr.bf16.mxu0 0
        %1983 = vmatpush1.bf16.msra.mxu0 %v1955
        %1984 = vmatprep.subr.bf16.mxu0 0
        %1985 = vmatpush1.bf16.msra.mxu0 %v1954
        %1986 = vmatprep.subr.bf16.mxu0 0
        %1987 = vmatpush2.bf16.msra.mxu0 0
        %1988 = vmatprep.subr.bf16.mxu0 0
        %1989 = vmatpush2.bf16.msra.mxu0 0
        %1990 = vmatprep.subr.bf16.mxu0 0
        %1991 = vmatpush2.bf16.msra.mxu0 0
        %1992 = vmatprep.subr.bf16.mxu0 0
        %1993 = vmatpush2.bf16.msra.mxu0 0
        %1994 = vmatprep.subr.bf16.mxu0 0
        %1995 = vmatpush2.bf16.msra.mxu0 0
        %1996 = vmatprep.subr.bf16.mxu0 0
        %1997 = vmatpush2.bf16.msra.mxu0 0
        %1998 = vmatprep.subr.bf16.mxu0 0
        %1999 = vmatpush2.bf16.msra.mxu0 0
        %2000 = vmatprep.subr.bf16.mxu0 0
        %2001 = vmatpush2.bf16.msra.mxu0 0
        %2002 = vmatprep.mubr.bf16.mxu0 0
        %2003 = vmatmul.mubr.bf16.gmra.mxu0 %v507
        %v2004 = vpop.f32.mrf.mxu0
        %v2005 = vadd.f32 %v1920, %v2004
        %v2006 = vpop.f32.mrf.mxu0
        %v2007 = vpop.f32.mrf.mxu0
        %v2008 = vpop.f32.mrf.mxu0
        %2009 = vdwg.mxu0
        %v2010 = vpack.c.bf16 %v2005, %v2005
        %s2011 = scalar_lea.vmem [#allocation2], 24
        %2012 = vst.msk [vmem:[%s2011] sm:$0xf] %vm622, %v2010
        %s2013 = scalar_lea.vmem %s7, 384
        %v2014 = vld [vmem:[%s2013] sm:$0xf]
        %v2015 = vld [vmem:[%s2013 + $0x4] sm:$0xf]
        %v2016 = vld [vmem:[%s2013 + $0x8] sm:$0xf]
        %v2017 = vld [vmem:[%s2013 + $0xc] sm:$0xf]
        %v2018 = vld [vmem:[%s2013 + $0x10] sm:$0xf]
        %v2019 = vld [vmem:[%s2013 + $0x14] sm:$0xf]
        %v2020 = vld [vmem:[%s2013 + $0x18] sm:$0xf]
        %v2021 = vld [vmem:[%s2013 + $0x1c] sm:$0xf]
        %v2022 = vld [vmem:[%s2013 + $0x20] sm:$0xf]
        %v2023 = vld [vmem:[%s2013 + $0x24] sm:$0xf]
        %v2024 = vld [vmem:[%s2013 + $0x28] sm:$0xf]
        %v2025 = vld [vmem:[%s2013 + $0x2c] sm:$0xf]
        %v2026 = vld [vmem:[%s2013 + $0x30] sm:$0xf]
        %v2027 = vld [vmem:[%s2013 + $0x34] sm:$0xf]
        %v2028 = vld [vmem:[%s2013 + $0x38] sm:$0xf]
        %v2029 = vld [vmem:[%s2013 + $0x3c] sm:$0xf]
        %s2030 = scalar_lea.vmem %s8, 6
        %v2031 = vld [vmem:[%s2030] sm:$0x1]
        %v2033 = vlaneseq
        %v2034 = vshrl.u32 %v2033, 7
        %v2035 = vsub.s32 0, %v2034
        %v2036 = vrot.slane %v2031, %v2035
        %v2054 = vunpack.c.l.b16 %v2014
        %v2055 = vunpack.c.l.b16 %v2015
        %v2056 = vunpack.c.l.b16 %v2016
        %v2057 = vunpack.c.l.b16 %v2017
        %v2058 = vunpack.c.l.b16 %v2018
        %v2059 = vunpack.c.l.b16 %v2019
        %v2060 = vunpack.c.l.b16 %v2020
        %v2061 = vunpack.c.l.b16 %v2021
        %v2062 = vunpack.c.l.b16 %v2022
        %v2063 = vunpack.c.l.b16 %v2023
        %v2064 = vunpack.c.l.b16 %v2024
        %v2065 = vunpack.c.l.b16 %v2025
        %v2066 = vunpack.c.l.b16 %v2026
        %v2067 = vunpack.c.l.b16 %v2027
        %v2068 = vunpack.c.l.b16 %v2028
        %v2069 = vunpack.c.l.b16 %v2029
        %v2070 = vpack.c.b16 %v2055, %v2054
        %v2071 = vpack.c.b16 %v2057, %v2056
        %v2072 = vpack.c.b16 %v2059, %v2058
        %v2073 = vpack.c.b16 %v2061, %v2060
        %v2074 = vpack.c.b16 %v2063, %v2062
        %v2075 = vpack.c.b16 %v2065, %v2064
        %v2076 = vpack.c.b16 %v2067, %v2066
        %v2077 = vpack.c.b16 %v2069, %v2068
        %2086 = vmatprep.subr.bf16.mxu0 0
        %2087 = vmatpush1.bf16.msra.mxu0 %v2077
        %2088 = vmatprep.subr.bf16.mxu0 0
        %2089 = vmatpush1.bf16.msra.mxu0 %v2076
        %2090 = vmatprep.subr.bf16.mxu0 0
        %2091 = vmatpush1.bf16.msra.mxu0 %v2075
        %2092 = vmatprep.subr.bf16.mxu0 0
        %2093 = vmatpush1.bf16.msra.mxu0 %v2074
        %2094 = vmatprep.subr.bf16.mxu0 0
        %2095 = vmatpush1.bf16.msra.mxu0 %v2073
        %2096 = vmatprep.subr.bf16.mxu0 0
        %2097 = vmatpush1.bf16.msra.mxu0 %v2072
        %2098 = vmatprep.subr.bf16.mxu0 0
        %2099 = vmatpush1.bf16.msra.mxu0 %v2071
        %2100 = vmatprep.subr.bf16.mxu0 0
        %2101 = vmatpush1.bf16.msra.mxu0 %v2070
        %2102 = vmatprep.subr.bf16.mxu0 0
        %2103 = vmatpush2.bf16.msra.mxu0 0
        %2104 = vmatprep.subr.bf16.mxu0 0
        %2105 = vmatpush2.bf16.msra.mxu0 0
        %2106 = vmatprep.subr.bf16.mxu0 0
        %2107 = vmatpush2.bf16.msra.mxu0 0
        %2108 = vmatprep.subr.bf16.mxu0 0
        %2109 = vmatpush2.bf16.msra.mxu0 0
        %2110 = vmatprep.subr.bf16.mxu0 0
        %2111 = vmatpush2.bf16.msra.mxu0 0
        %2112 = vmatprep.subr.bf16.mxu0 0
        %2113 = vmatpush2.bf16.msra.mxu0 0
        %2114 = vmatprep.subr.bf16.mxu0 0
        %2115 = vmatpush2.bf16.msra.mxu0 0
        %2116 = vmatprep.subr.bf16.mxu0 0
        %2117 = vmatpush2.bf16.msra.mxu0 0
        %2118 = vmatprep.mubr.bf16.mxu0 0
        %2119 = vmatmul.mubr.bf16.gmra.mxu0 %v509
        %v2120 = vpop.f32.mrf.mxu0
        %v2121 = vadd.f32 %v2036, %v2120
        %v2122 = vpop.f32.mrf.mxu0
        %v2123 = vpop.f32.mrf.mxu0
        %v2124 = vpop.f32.mrf.mxu0
        %2125 = vdwg.mxu0
        %v2126 = vpack.c.bf16 %v2121, %v2121
        %s2127 = scalar_lea.vmem [#allocation3], 24
        %2128 = vst.msk [vmem:[%s2127] sm:$0xf] %vm622, %v2126
        %s2129 = scalar_lea.vmem %s5, 448
        %v2130 = vld [vmem:[%s2129] sm:$0xf]
        %v2131 = vld [vmem:[%s2129 + $0x4] sm:$0xf]
        %v2132 = vld [vmem:[%s2129 + $0x8] sm:$0xf]
        %v2133 = vld [vmem:[%s2129 + $0xc] sm:$0xf]
        %v2134 = vld [vmem:[%s2129 + $0x10] sm:$0xf]
        %v2135 = vld [vmem:[%s2129 + $0x14] sm:$0xf]
        %v2136 = vld [vmem:[%s2129 + $0x18] sm:$0xf]
        %v2137 = vld [vmem:[%s2129 + $0x1c] sm:$0xf]
        %v2138 = vld [vmem:[%s2129 + $0x20] sm:$0xf]
        %v2139 = vld [vmem:[%s2129 + $0x24] sm:$0xf]
        %v2140 = vld [vmem:[%s2129 + $0x28] sm:$0xf]
        %v2141 = vld [vmem:[%s2129 + $0x2c] sm:$0xf]
        %v2142 = vld [vmem:[%s2129 + $0x30] sm:$0xf]
        %v2143 = vld [vmem:[%s2129 + $0x34] sm:$0xf]
        %v2144 = vld [vmem:[%s2129 + $0x38] sm:$0xf]
        %v2145 = vld [vmem:[%s2129 + $0x3c] sm:$0xf]
        %s2146 = scalar_lea.vmem %s6, 7
        %v2147 = vld [vmem:[%s2146] sm:$0x1]
        %v2149 = vlaneseq
        %v2150 = vshrl.u32 %v2149, 7
        %v2151 = vsub.s32 0, %v2150
        %v2152 = vrot.slane %v2147, %v2151
        %v2170 = vunpack.c.l.b16 %v2130
        %v2171 = vunpack.c.l.b16 %v2131
        %v2172 = vunpack.c.l.b16 %v2132
        %v2173 = vunpack.c.l.b16 %v2133
        %v2174 = vunpack.c.l.b16 %v2134
        %v2175 = vunpack.c.l.b16 %v2135
        %v2176 = vunpack.c.l.b16 %v2136
        %v2177 = vunpack.c.l.b16 %v2137
        %v2178 = vunpack.c.l.b16 %v2138
        %v2179 = vunpack.c.l.b16 %v2139
        %v2180 = vunpack.c.l.b16 %v2140
        %v2181 = vunpack.c.l.b16 %v2141
        %v2182 = vunpack.c.l.b16 %v2142
        %v2183 = vunpack.c.l.b16 %v2143
        %v2184 = vunpack.c.l.b16 %v2144
        %v2185 = vunpack.c.l.b16 %v2145
        %v2186 = vpack.c.b16 %v2171, %v2170
        %v2187 = vpack.c.b16 %v2173, %v2172
        %v2188 = vpack.c.b16 %v2175, %v2174
        %v2189 = vpack.c.b16 %v2177, %v2176
        %v2190 = vpack.c.b16 %v2179, %v2178
        %v2191 = vpack.c.b16 %v2181, %v2180
        %v2192 = vpack.c.b16 %v2183, %v2182
        %v2193 = vpack.c.b16 %v2185, %v2184
        %2202 = vmatprep.subr.bf16.mxu0 0
        %2203 = vmatpush1.bf16.msra.mxu0 %v2193
        %2204 = vmatprep.subr.bf16.mxu0 0
        %2205 = vmatpush1.bf16.msra.mxu0 %v2192
        %2206 = vmatprep.subr.bf16.mxu0 0
        %2207 = vmatpush1.bf16.msra.mxu0 %v2191
        %2208 = vmatprep.subr.bf16.mxu0 0
        %2209 = vmatpush1.bf16.msra.mxu0 %v2190
        %2210 = vmatprep.subr.bf16.mxu0 0
        %2211 = vmatpush1.bf16.msra.mxu0 %v2189
        %2212 = vmatprep.subr.bf16.mxu0 0
        %2213 = vmatpush1.bf16.msra.mxu0 %v2188
        %2214 = vmatprep.subr.bf16.mxu0 0
        %2215 = vmatpush1.bf16.msra.mxu0 %v2187
        %2216 = vmatprep.subr.bf16.mxu0 0
        %2217 = vmatpush1.bf16.msra.mxu0 %v2186
        %2218 = vmatprep.subr.bf16.mxu0 0
        %2219 = vmatpush2.bf16.msra.mxu0 0
        %2220 = vmatprep.subr.bf16.mxu0 0
        %2221 = vmatpush2.bf16.msra.mxu0 0
        %2222 = vmatprep.subr.bf16.mxu0 0
        %2223 = vmatpush2.bf16.msra.mxu0 0
        %2224 = vmatprep.subr.bf16.mxu0 0
        %2225 = vmatpush2.bf16.msra.mxu0 0
        %2226 = vmatprep.subr.bf16.mxu0 0
        %2227 = vmatpush2.bf16.msra.mxu0 0
        %2228 = vmatprep.subr.bf16.mxu0 0
        %2229 = vmatpush2.bf16.msra.mxu0 0
        %2230 = vmatprep.subr.bf16.mxu0 0
        %2231 = vmatpush2.bf16.msra.mxu0 0
        %2232 = vmatprep.subr.bf16.mxu0 0
        %2233 = vmatpush2.bf16.msra.mxu0 0
        %2234 = vmatprep.mubr.bf16.mxu0 0
        %2235 = vmatmul.mubr.bf16.gmra.mxu0 %v507
        %v2236 = vpop.f32.mrf.mxu0
        %v2237 = vadd.f32 %v2152, %v2236
        %v2238 = vpop.f32.mrf.mxu0
        %v2239 = vpop.f32.mrf.mxu0
        %v2240 = vpop.f32.mrf.mxu0
        %2241 = vdwg.mxu0
        %v2242 = vpack.c.bf16 %v2237, %v2237
        %s2243 = scalar_lea.vmem [#allocation2], 28
        %2244 = vst.msk [vmem:[%s2243] sm:$0xf] %vm622, %v2242
        %s2245 = scalar_lea.vmem %s7, 448
        %v2246 = vld [vmem:[%s2245] sm:$0xf]
        %v2247 = vld [vmem:[%s2245 + $0x4] sm:$0xf]
        %v2248 = vld [vmem:[%s2245 + $0x8] sm:$0xf]
        %v2249 = vld [vmem:[%s2245 + $0xc] sm:$0xf]
        %v2250 = vld [vmem:[%s2245 + $0x10] sm:$0xf]
        %v2251 = vld [vmem:[%s2245 + $0x14] sm:$0xf]
        %v2252 = vld [vmem:[%s2245 + $0x18] sm:$0xf]
        %v2253 = vld [vmem:[%s2245 + $0x1c] sm:$0xf]
        %v2254 = vld [vmem:[%s2245 + $0x20] sm:$0xf]
        %v2255 = vld [vmem:[%s2245 + $0x24] sm:$0xf]
        %v2256 = vld [vmem:[%s2245 + $0x28] sm:$0xf]
        %v2257 = vld [vmem:[%s2245 + $0x2c] sm:$0xf]
        %v2258 = vld [vmem:[%s2245 + $0x30] sm:$0xf]
        %v2259 = vld [vmem:[%s2245 + $0x34] sm:$0xf]
        %v2260 = vld [vmem:[%s2245 + $0x38] sm:$0xf]
        %v2261 = vld [vmem:[%s2245 + $0x3c] sm:$0xf]
        %s2262 = scalar_lea.vmem %s8, 7
        %v2263 = vld [vmem:[%s2262] sm:$0x1]
        %v2265 = vlaneseq
        %v2266 = vshrl.u32 %v2265, 7
        %v2267 = vsub.s32 0, %v2266
        %v2268 = vrot.slane %v2263, %v2267
        %v2286 = vunpack.c.l.b16 %v2246
        %v2287 = vunpack.c.l.b16 %v2247
        %v2288 = vunpack.c.l.b16 %v2248
        %v2289 = vunpack.c.l.b16 %v2249
        %v2290 = vunpack.c.l.b16 %v2250
        %v2291 = vunpack.c.l.b16 %v2251
        %v2292 = vunpack.c.l.b16 %v2252
        %v2293 = vunpack.c.l.b16 %v2253
        %v2294 = vunpack.c.l.b16 %v2254
        %v2295 = vunpack.c.l.b16 %v2255
        %v2296 = vunpack.c.l.b16 %v2256
        %v2297 = vunpack.c.l.b16 %v2257
        %v2298 = vunpack.c.l.b16 %v2258
        %v2299 = vunpack.c.l.b16 %v2259
        %v2300 = vunpack.c.l.b16 %v2260
        %v2301 = vunpack.c.l.b16 %v2261
        %v2302 = vpack.c.b16 %v2287, %v2286
        %v2303 = vpack.c.b16 %v2289, %v2288
        %v2304 = vpack.c.b16 %v2291, %v2290
        %v2305 = vpack.c.b16 %v2293, %v2292
        %v2306 = vpack.c.b16 %v2295, %v2294
        %v2307 = vpack.c.b16 %v2297, %v2296
        %v2308 = vpack.c.b16 %v2299, %v2298
        %v2309 = vpack.c.b16 %v2301, %v2300
        %2318 = vmatprep.subr.bf16.mxu0 0
        %2319 = vmatpush1.bf16.msra.mxu0 %v2309
        %2320 = vmatprep.subr.bf16.mxu0 0
        %2321 = vmatpush1.bf16.msra.mxu0 %v2308
        %2322 = vmatprep.subr.bf16.mxu0 0
        %2323 = vmatpush1.bf16.msra.mxu0 %v2307
        %2324 = vmatprep.subr.bf16.mxu0 0
        %2325 = vmatpush1.bf16.msra.mxu0 %v2306
        %2326 = vmatprep.subr.bf16.mxu0 0
        %2327 = vmatpush1.bf16.msra.mxu0 %v2305
        %2328 = vmatprep.subr.bf16.mxu0 0
        %2329 = vmatpush1.bf16.msra.mxu0 %v2304
        %2330 = vmatprep.subr.bf16.mxu0 0
        %2331 = vmatpush1.bf16.msra.mxu0 %v2303
        %2332 = vmatprep.subr.bf16.mxu0 0
        %2333 = vmatpush1.bf16.msra.mxu0 %v2302
        %2334 = vmatprep.subr.bf16.mxu0 0
        %2335 = vmatpush2.bf16.msra.mxu0 0
        %2336 = vmatprep.subr.bf16.mxu0 0
        %2337 = vmatpush2.bf16.msra.mxu0 0
        %2338 = vmatprep.subr.bf16.mxu0 0
        %2339 = vmatpush2.bf16.msra.mxu0 0
        %2340 = vmatprep.subr.bf16.mxu0 0
        %2341 = vmatpush2.bf16.msra.mxu0 0
        %2342 = vmatprep.subr.bf16.mxu0 0
        %2343 = vmatpush2.bf16.msra.mxu0 0
        %2344 = vmatprep.subr.bf16.mxu0 0
        %2345 = vmatpush2.bf16.msra.mxu0 0
        %2346 = vmatprep.subr.bf16.mxu0 0
        %2347 = vmatpush2.bf16.msra.mxu0 0
        %2348 = vmatprep.subr.bf16.mxu0 0
        %2349 = vmatpush2.bf16.msra.mxu0 0
        %2350 = vmatprep.mubr.bf16.mxu0 0
        %2351 = vmatmul.mubr.bf16.gmra.mxu0 %v509
        %v2352 = vpop.f32.mrf.mxu0
        %v2353 = vadd.f32 %v2268, %v2352
        %v2354 = vpop.f32.mrf.mxu0
        %v2355 = vpop.f32.mrf.mxu0
        %v2356 = vpop.f32.mrf.mxu0
        %2357 = vdwg.mxu0
        %v2358 = vpack.c.bf16 %v2353, %v2353
        %s2359 = scalar_lea.vmem [#allocation3], 28
        %2360 = vst.msk [vmem:[%s2359] sm:$0xf] %vm622, %v2358
      $region76: #{decoder_forward.13} parent=71 // pred_fallthru
        _
      %v2361 = vld [vmem:[%s485] sm:$0xff]
      %v2362 = vpack.c.bf16 %v2361, %v2361
      %v2363 = vld [vmem:[%s10] sm:$0x1]
      %v2365 = vlaneseq
      %v2366 = vshrl.u32 %v2365, 7
      %v2367 = vsub.s32 0, %v2366
      %v2368 = vrot.slane %v2363, %v2367
      %v2370 = vadd.f32 %v2361, %v2368
      %v2371 = vld [vmem:[%s3] sm:$0xf]
      %v2372 = vld [vmem:[%s3 + $0x4] sm:$0xf]
      %v2373 = vld [vmem:[%s3 + $0x8] sm:$0xf]
      %v2374 = vld [vmem:[%s3 + $0xc] sm:$0xf]
      %v2375 = vld [vmem:[%s3 + $0x10] sm:$0xf]
      %v2376 = vld [vmem:[%s3 + $0x14] sm:$0xf]
      %v2377 = vld [vmem:[%s3 + $0x18] sm:$0xf]
      %v2378 = vld [vmem:[%s3 + $0x1c] sm:$0xf]
      %v2379 = vld [vmem:[%s3 + $0x20] sm:$0xf]
      %v2380 = vld [vmem:[%s3 + $0x24] sm:$0xf]
      %v2381 = vld [vmem:[%s3 + $0x28] sm:$0xf]
      %v2382 = vld [vmem:[%s3 + $0x2c] sm:$0xf]
      %v2383 = vld [vmem:[%s3 + $0x30] sm:$0xf]
      %v2384 = vld [vmem:[%s3 + $0x34] sm:$0xf]
      %v2385 = vld [vmem:[%s3 + $0x38] sm:$0xf]
      %v2386 = vld [vmem:[%s3 + $0x3c] sm:$0xf]
      %v2387 = vld [vmem:[%s4] sm:$0x1]
      %v2389 = vlaneseq
      %v2390 = vshrl.u32 %v2389, 7
      %v2391 = vsub.s32 0, %v2390
      %v2392 = vrot.slane %v2387, %v2391
      %v2410 = vunpack.c.l.b16 %v2371
      %v2411 = vunpack.c.l.b16 %v2372
      %v2412 = vunpack.c.l.b16 %v2373
      %v2413 = vunpack.c.l.b16 %v2374
      %v2414 = vunpack.c.l.b16 %v2375
      %v2415 = vunpack.c.l.b16 %v2376
      %v2416 = vunpack.c.l.b16 %v2377
      %v2417 = vunpack.c.l.b16 %v2378
      %v2418 = vunpack.c.l.b16 %v2379
      %v2419 = vunpack.c.l.b16 %v2380
      %v2420 = vunpack.c.l.b16 %v2381
      %v2421 = vunpack.c.l.b16 %v2382
      %v2422 = vunpack.c.l.b16 %v2383
      %v2423 = vunpack.c.l.b16 %v2384
      %v2424 = vunpack.c.l.b16 %v2385
      %v2425 = vunpack.c.l.b16 %v2386
      %v2426 = vpack.c.b16 %v2411, %v2410
      %v2427 = vpack.c.b16 %v2413, %v2412
      %v2428 = vpack.c.b16 %v2415, %v2414
      %v2429 = vpack.c.b16 %v2417, %v2416
      %v2430 = vpack.c.b16 %v2419, %v2418
      %v2431 = vpack.c.b16 %v2421, %v2420
      %v2432 = vpack.c.b16 %v2423, %v2422
      %v2433 = vpack.c.b16 %v2425, %v2424
      %2442 = vmatprep.subr.bf16.mxu0 0
      %2443 = vmatpush1.bf16.msra.mxu0 %v2433
      %2444 = vmatprep.subr.bf16.mxu0 0
      %2445 = vmatpush1.bf16.msra.mxu0 %v2432
      %2446 = vmatprep.subr.bf16.mxu0 0
      %2447 = vmatpush1.bf16.msra.mxu0 %v2431
      %2448 = vmatprep.subr.bf16.mxu0 0
      %2449 = vmatpush1.bf16.msra.mxu0 %v2430
      %2450 = vmatprep.subr.bf16.mxu0 0
      %2451 = vmatpush1.bf16.msra.mxu0 %v2429
      %2452 = vmatprep.subr.bf16.mxu0 0
      %2453 = vmatpush1.bf16.msra.mxu0 %v2428
      %2454 = vmatprep.subr.bf16.mxu0 0
      %2455 = vmatpush1.bf16.msra.mxu0 %v2427
      %2456 = vmatprep.subr.bf16.mxu0 0
      %2457 = vmatpush1.bf16.msra.mxu0 %v2426
      %2458 = vmatprep.subr.bf16.mxu0 0
      %2459 = vmatpush2.bf16.msra.mxu0 0
      %2460 = vmatprep.subr.bf16.mxu0 0
      %2461 = vmatpush2.bf16.msra.mxu0 0
      %2462 = vmatprep.subr.bf16.mxu0 0
      %2463 = vmatpush2.bf16.msra.mxu0 0
      %2464 = vmatprep.subr.bf16.mxu0 0
      %2465 = vmatpush2.bf16.msra.mxu0 0
      %2466 = vmatprep.subr.bf16.mxu0 0
      %2467 = vmatpush2.bf16.msra.mxu0 0
      %2468 = vmatprep.subr.bf16.mxu0 0
      %2469 = vmatpush2.bf16.msra.mxu0 0
      %2470 = vmatprep.subr.bf16.mxu0 0
      %2471 = vmatpush2.bf16.msra.mxu0 0
      %2472 = vmatprep.subr.bf16.mxu0 0
      %2473 = vmatpush2.bf16.msra.mxu0 0
      %2474 = vmatprep.mubr.bf16.mxu0 0
      %2475 = vmatmul.mubr.bf16.gmra.mxu0 %v2362
      %v2476 = vpop.f32.mrf.mxu0
      %v2477 = vadd.f32 %v2392, %v2476
      %v2478 = vpop.f32.mrf.mxu0
      %v2479 = vpop.f32.mrf.mxu0
      %v2480 = vpop.f32.mrf.mxu0
      %2481 = vdwg.mxu0
      %v2482 = vmul.f32 %v2477, 0.25
      %v2483 = vld [vmem:[#allocation2] sm:$0xf]
      %v2484 = vld [vmem:[#allocation3] sm:$0xf]
      %v2485 = vpack.c.bf16 %v2482, %v2482
      %vm2486 = vcmask 130048
      %v2488 = vsel %vm2486, %v2485, 0
      %v2491 = vsel %vm2486, %v2483, 0
      %2493 = vmatprep.subr.bf16.mxu0 0
      %2494 = vmatpush1.bf16.xpose.msra.mxu0 0
      %2495 = vmatprep.subr.bf16.mxu0 0
      %2496 = vmatpush1.bf16.xpose.msra.mxu0 0
      %2497 = vmatprep.subr.bf16.mxu0 0
      %2498 = vmatpush1.bf16.xpose.msra.mxu0 0
      %2499 = vmatprep.subr.bf16.mxu0 0
      %2500 = vmatpush1.bf16.xpose.msra.mxu0 0
      %2501 = vmatprep.subr.bf16.mxu0 0
      %2502 = vmatpush1.bf16.xpose.msra.mxu0 0
      %2503 = vmatprep.subr.bf16.mxu0 0
      %2504 = vmatpush1.bf16.xpose.msra.mxu0 0
      %2505 = vmatprep.subr.bf16.mxu0 0
      %2506 = vmatpush1.bf16.xpose.msra.mxu0 0
      %2507 = vmatprep.subr.bf16.mxu0 0
      %2508 = vmatpush1.bf16.xpose.msra.mxu0 %v2491
      %2509 = vmatprep.subr.bf16.mxu0 0
      %2510 = vmatpush2.bf16.xpose.msra.mxu0 0
      %2511 = vmatprep.subr.bf16.mxu0 0
      %2512 = vmatpush2.bf16.xpose.msra.mxu0 0
      %2513 = vmatprep.subr.bf16.mxu0 0
      %2514 = vmatpush2.bf16.xpose.msra.mxu0 0
      %2515 = vmatprep.subr.bf16.mxu0 0
      %2516 = vmatpush2.bf16.xpose.msra.mxu0 0
      %2517 = vmatprep.subr.bf16.mxu0 0
      %2518 = vmatpush2.bf16.xpose.msra.mxu0 0
      %2519 = vmatprep.subr.bf16.mxu0 0
      %2520 = vmatpush2.bf16.xpose.msra.mxu0 0
      %2521 = vmatprep.subr.bf16.mxu0 0
      %2522 = vmatpush2.bf16.xpose.msra.mxu0 0
      %2523 = vmatprep.subr.bf16.mxu0 0
      %2524 = vmatpush2.bf16.xpose.msra.mxu0 0
      %2525 = vmatprep.mubr.bf16.mxu0 0
      %2526 = vmatmul.mubr.bf16.gmra.mxu0 %v2488
      %v2527 = vpop.f32.mrf.mxu0
      %v2528 = vadd.f32 0.0, %v2527
      %v2529 = vpop.f32.mrf.mxu0
      %v2530 = vpop.f32.mrf.mxu0
      %v2531 = vpop.f32.mrf.mxu0
      %2532 = vdwg.mxu0
      %vm2533 = vcmask 64512
      %v2534 = vsel %vm2533, %v2528, -inf
      %2535 = vmax.xlane.f32.xlu0 %v2534
      %v2536 = vpop.xlane.xlu0 %2535
      %v2537 = vsub.f32 %v2528, %v2536
      %v2538 = vmul.f32 %v2537, 1.442695
      %v2539 = vpow.pop %v2538
      %v2540 = vsel %vm2533, %v2539, 0.0
      %2541 = vadd.xlane.f32.xlu0 %v2540
      %v2542 = vpop.xlane.xlu0 %2541
      %v2543 = vrcp.pop %v2542
      %v2544 = vmul.f32 %v2539, %v2543
      %v2545 = vpack.c.bf16 %v2544, %v2544
      %v2547 = vsel %vm2533, %v2545, 0
      %vm2549 = vcmask 1043456
      %v2551 = vsel %vm2549, %v2484, 0
      %2553 = vmatprep.subr.bf16.mxu0 0
      %2554 = vmatpush1.bf16.msra.mxu0 0
      %2555 = vmatprep.subr.bf16.mxu0 0
      %2556 = vmatpush1.bf16.msra.mxu0 0
      %2557 = vmatprep.subr.bf16.mxu0 0
      %2558 = vmatpush1.bf16.msra.mxu0 0
      %2559 = vmatprep.subr.bf16.mxu0 0
      %2560 = vmatpush1.bf16.msra.mxu0 0
      %2561 = vmatprep.subr.bf16.mxu0 0
      %2562 = vmatpush1.bf16.msra.mxu0 0
      %2563 = vmatprep.subr.bf16.mxu0 0
      %2564 = vmatpush1.bf16.msra.mxu0 0
      %2565 = vmatprep.subr.bf16.mxu0 0
      %2566 = vmatpush1.bf16.msra.mxu0 0
      %2567 = vmatprep.subr.bf16.mxu0 0
      %2568 = vmatpush1.bf16.msra.mxu0 %v2551
      %2569 = vmatprep.subr.bf16.mxu0 0
      %2570 = vmatpush2.bf16.msra.mxu0 0
      %2571 = vmatprep.subr.bf16.mxu0 0
      %2572 = vmatpush2.bf16.msra.mxu0 0
      %2573 = vmatprep.subr.bf16.mxu0 0
      %2574 = vmatpush2.bf16.msra.mxu0 0
      %2575 = vmatprep.subr.bf16.mxu0 0
      %2576 = vmatpush2.bf16.msra.mxu0 0
      %2577 = vmatprep.subr.bf16.mxu0 0
      %2578 = vmatpush2.bf16.msra.mxu0 0
      %2579 = vmatprep.subr.bf16.mxu0 0
      %2580 = vmatpush2.bf16.msra.mxu0 0
      %2581 = vmatprep.subr.bf16.mxu0 0
      %2582 = vmatpush2.bf16.msra.mxu0 0
      %2583 = vmatprep.subr.bf16.mxu0 0
      %2584 = vmatpush2.bf16.msra.mxu0 0
      %2585 = vmatprep.mubr.bf16.mxu0 0
      %2586 = vmatmul.mubr.bf16.gmra.mxu0 %v2547
      %v2587 = vpop.f32.mrf.mxu0
      %v2588 = vadd.f32 0.0, %v2587
      %v2589 = vpop.f32.mrf.mxu0
      %v2590 = vpop.f32.mrf.mxu0
      %v2591 = vpop.f32.mrf.mxu0
      %2592 = vdwg.mxu0
      %v2593 = vpack.c.bf16 %v2588, %v2588
      %v2594 = vld [vmem:[%s9] sm:$0xf]
      %v2595 = vld [vmem:[%s9 + $0x4] sm:$0xf]
      %v2598 = vunpack.c.l.b16 %v2594
      %v2599 = vunpack.c.l.b16 %v2595
      %v2600 = vpack.c.b16 %v2599, %v2598
      %v2603 = vsel %vm2486, %v2593, 0
      %2605 = vmatprep.subr.bf16.mxu0 0
      %2606 = vmatpush1.bf16.msra.mxu0 0
      %2607 = vmatprep.subr.bf16.mxu0 0
      %2608 = vmatpush1.bf16.msra.mxu0 0
      %2609 = vmatprep.subr.bf16.mxu0 0
      %2610 = vmatpush1.bf16.msra.mxu0 0
      %2611 = vmatprep.subr.bf16.mxu0 0
      %2612 = vmatpush1.bf16.msra.mxu0 0
      %2613 = vmatprep.subr.bf16.mxu0 0
      %2614 = vmatpush1.bf16.msra.mxu0 0
      %2615 = vmatprep.subr.bf16.mxu0 0
      %2616 = vmatpush1.bf16.msra.mxu0 0
      %2617 = vmatprep.subr.bf16.mxu0 0
      %2618 = vmatpush1.bf16.msra.mxu0 0
      %2619 = vmatprep.subr.bf16.mxu0 0
      %2620 = vmatpush1.bf16.msra.mxu0 %v2600
      %2621 = vmatprep.subr.bf16.mxu0 0
      %2622 = vmatpush2.bf16.msra.mxu0 0
      %2623 = vmatprep.subr.bf16.mxu0 0
      %2624 = vmatpush2.bf16.msra.mxu0 0
      %2625 = vmatprep.subr.bf16.mxu0 0
      %2626 = vmatpush2.bf16.msra.mxu0 0
      %2627 = vmatprep.subr.bf16.mxu0 0
      %2628 = vmatpush2.bf16.msra.mxu0 0
      %2629 = vmatprep.subr.bf16.mxu0 0
      %2630 = vmatpush2.bf16.msra.mxu0 0
      %2631 = vmatprep.subr.bf16.mxu0 0
      %2632 = vmatpush2.bf16.msra.mxu0 0
      %2633 = vmatprep.subr.bf16.mxu0 0
      %2634 = vmatpush2.bf16.msra.mxu0 0
      %2635 = vmatprep.subr.bf16.mxu0 0
      %2636 = vmatpush2.bf16.msra.mxu0 0
      %2637 = vmatprep.mubr.bf16.mxu0 0
      %2638 = vmatmul.mubr.bf16.gmra.mxu0 %v2603
      %v2639 = vpop.f32.mrf.mxu0
      %v2640 = vadd.f32 0.0, %v2639
      %v2641 = vpop.f32.mrf.mxu0
      %v2642 = vpop.f32.mrf.mxu0
      %v2643 = vpop.f32.mrf.mxu0
      %2644 = vdwg.mxu0
      %v2645 = vadd.f32 %v2370, %v2640
      %s2646 = scalar_lea.vmem %s3, 64
      %v2647 = vld [vmem:[%s2646] sm:$0xf]
      %v2648 = vld [vmem:[%s2646 + $0x4] sm:$0xf]
      %v2649 = vld [vmem:[%s2646 + $0x8] sm:$0xf]
      %v2650 = vld [vmem:[%s2646 + $0xc] sm:$0xf]
      %v2651 = vld [vmem:[%s2646 + $0x10] sm:$0xf]
      %v2652 = vld [vmem:[%s2646 + $0x14] sm:$0xf]
      %v2653 = vld [vmem:[%s2646 + $0x18] sm:$0xf]
      %v2654 = vld [vmem:[%s2646 + $0x1c] sm:$0xf]
      %v2655 = vld [vmem:[%s2646 + $0x20] sm:$0xf]
      %v2656 = vld [vmem:[%s2646 + $0x24] sm:$0xf]
      %v2657 = vld [vmem:[%s2646 + $0x28] sm:$0xf]
      %v2658 = vld [vmem:[%s2646 + $0x2c] sm:$0xf]
      %v2659 = vld [vmem:[%s2646 + $0x30] sm:$0xf]
      %v2660 = vld [vmem:[%s2646 + $0x34] sm:$0xf]
      %v2661 = vld [vmem:[%s2646 + $0x38] sm:$0xf]
      %v2662 = vld [vmem:[%s2646 + $0x3c] sm:$0xf]
      %s2663 = scalar_lea.vmem %s4, 1
      %v2664 = vld [vmem:[%s2663] sm:$0x1]
      %v2666 = vlaneseq
      %v2667 = vshrl.u32 %v2666, 7
      %v2668 = vsub.s32 0, %v2667
      %v2669 = vrot.slane %v2664, %v2668
      %v2687 = vunpack.c.l.b16 %v2647
      %v2688 = vunpack.c.l.b16 %v2648
      %v2689 = vunpack.c.l.b16 %v2649
      %v2690 = vunpack.c.l.b16 %v2650
      %v2691 = vunpack.c.l.b16 %v2651
      %v2692 = vunpack.c.l.b16 %v2652
      %v2693 = vunpack.c.l.b16 %v2653
      %v2694 = vunpack.c.l.b16 %v2654
      %v2695 = vunpack.c.l.b16 %v2655
      %v2696 = vunpack.c.l.b16 %v2656
      %v2697 = vunpack.c.l.b16 %v2657
      %v2698 = vunpack.c.l.b16 %v2658
      %v2699 = vunpack.c.l.b16 %v2659
      %v2700 = vunpack.c.l.b16 %v2660
      %v2701 = vunpack.c.l.b16 %v2661
      %v2702 = vunpack.c.l.b16 %v2662
      %v2703 = vpack.c.b16 %v2688, %v2687
      %v2704 = vpack.c.b16 %v2690, %v2689
      %v2705 = vpack.c.b16 %v2692, %v2691
      %v2706 = vpack.c.b16 %v2694, %v2693
      %v2707 = vpack.c.b16 %v2696, %v2695
      %v2708 = vpack.c.b16 %v2698, %v2697
      %v2709 = vpack.c.b16 %v2700, %v2699
      %v2710 = vpack.c.b16 %v2702, %v2701
      %2719 = vmatprep.subr.bf16.mxu0 0
      %2720 = vmatpush1.bf16.msra.mxu0 %v2710
      %2721 = vmatprep.subr.bf16.mxu0 0
      %2722 = vmatpush1.bf16.msra.mxu0 %v2709
      %2723 = vmatprep.subr.bf16.mxu0 0
      %2724 = vmatpush1.bf16.msra.mxu0 %v2708
      %2725 = vmatprep.subr.bf16.mxu0 0
      %2726 = vmatpush1.bf16.msra.mxu0 %v2707
      %2727 = vmatprep.subr.bf16.mxu0 0
      %2728 = vmatpush1.bf16.msra.mxu0 %v2706
      %2729 = vmatprep.subr.bf16.mxu0 0
      %2730 = vmatpush1.bf16.msra.mxu0 %v2705
      %2731 = vmatprep.subr.bf16.mxu0 0
      %2732 = vmatpush1.bf16.msra.mxu0 %v2704
      %2733 = vmatprep.subr.bf16.mxu0 0
      %2734 = vmatpush1.bf16.msra.mxu0 %v2703
      %2735 = vmatprep.subr.bf16.mxu0 0
      %2736 = vmatpush2.bf16.msra.mxu0 0
      %2737 = vmatprep.subr.bf16.mxu0 0
      %2738 = vmatpush2.bf16.msra.mxu0 0
      %2739 = vmatprep.subr.bf16.mxu0 0
      %2740 = vmatpush2.bf16.msra.mxu0 0
      %2741 = vmatprep.subr.bf16.mxu0 0
      %2742 = vmatpush2.bf16.msra.mxu0 0
      %2743 = vmatprep.subr.bf16.mxu0 0
      %2744 = vmatpush2.bf16.msra.mxu0 0
      %2745 = vmatprep.subr.bf16.mxu0 0
      %2746 = vmatpush2.bf16.msra.mxu0 0
      %2747 = vmatprep.subr.bf16.mxu0 0
      %2748 = vmatpush2.bf16.msra.mxu0 0
      %2749 = vmatprep.subr.bf16.mxu0 0
      %2750 = vmatpush2.bf16.msra.mxu0 0
      %2751 = vmatprep.mubr.bf16.mxu0 0
      %2752 = vmatmul.mubr.bf16.gmra.mxu0 %v2362
      %v2753 = vpop.f32.mrf.mxu0
      %v2754 = vadd.f32 %v2669, %v2753
      %v2755 = vpop.f32.mrf.mxu0
      %v2756 = vpop.f32.mrf.mxu0
      %v2757 = vpop.f32.mrf.mxu0
      %2758 = vdwg.mxu0
      %v2759 = vmul.f32 %v2754, 0.25
      %s2760 = scalar_lea.vmem [#allocation2], 4
      %v2761 = vld [vmem:[%s2760] sm:$0xf]
      %s2762 = scalar_lea.vmem [#allocation3], 4
      %v2763 = vld [vmem:[%s2762] sm:$0xf]
      %v2764 = vpack.c.bf16 %v2759, %v2759
      %v2766 = vsel %vm2486, %v2764, 0
      %v2769 = vsel %vm2486, %v2761, 0
      %2771 = vmatprep.subr.bf16.mxu0 0
      %2772 = vmatpush1.bf16.xpose.msra.mxu0 0
      %2773 = vmatprep.subr.bf16.mxu0 0
      %2774 = vmatpush1.bf16.xpose.msra.mxu0 0
      %2775 = vmatprep.subr.bf16.mxu0 0
      %2776 = vmatpush1.bf16.xpose.msra.mxu0 0
      %2777 = vmatprep.subr.bf16.mxu0 0
      %2778 = vmatpush1.bf16.xpose.msra.mxu0 0
      %2779 = vmatprep.subr.bf16.mxu0 0
      %2780 = vmatpush1.bf16.xpose.msra.mxu0 0
      %2781 = vmatprep.subr.bf16.mxu0 0
      %2782 = vmatpush1.bf16.xpose.msra.mxu0 0
      %2783 = vmatprep.subr.bf16.mxu0 0
      %2784 = vmatpush1.bf16.xpose.msra.mxu0 0
      %2785 = vmatprep.subr.bf16.mxu0 0
      %2786 = vmatpush1.bf16.xpose.msra.mxu0 %v2769
      %2787 = vmatprep.subr.bf16.mxu0 0
      %2788 = vmatpush2.bf16.xpose.msra.mxu0 0
      %2789 = vmatprep.subr.bf16.mxu0 0
      %2790 = vmatpush2.bf16.xpose.msra.mxu0 0
      %2791 = vmatprep.subr.bf16.mxu0 0
      %2792 = vmatpush2.bf16.xpose.msra.mxu0 0
      %2793 = vmatprep.subr.bf16.mxu0 0
      %2794 = vmatpush2.bf16.xpose.msra.mxu0 0
      %2795 = vmatprep.subr.bf16.mxu0 0
      %2796 = vmatpush2.bf16.xpose.msra.mxu0 0
      %2797 = vmatprep.subr.bf16.mxu0 0
      %2798 = vmatpush2.bf16.xpose.msra.mxu0 0
      %2799 = vmatprep.subr.bf16.mxu0 0
      %2800 = vmatpush2.bf16.xpose.msra.mxu0 0
      %2801 = vmatprep.subr.bf16.mxu0 0
      %2802 = vmatpush2.bf16.xpose.msra.mxu0 0
      %2803 = vmatprep.mubr.bf16.mxu0 0
      %2804 = vmatmul.mubr.bf16.gmra.mxu0 %v2766
      %v2805 = vpop.f32.mrf.mxu0
      %v2806 = vadd.f32 0.0, %v2805
      %v2807 = vpop.f32.mrf.mxu0
      %v2808 = vpop.f32.mrf.mxu0
      %v2809 = vpop.f32.mrf.mxu0
      %2810 = vdwg.mxu0
      %v2811 = vsel %vm2533, %v2806, -inf
      %2812 = vmax.xlane.f32.xlu0 %v2811
      %v2813 = vpop.xlane.xlu0 %2812
      %v2814 = vsub.f32 %v2806, %v2813
      %v2815 = vmul.f32 %v2814, 1.442695
      %v2816 = vpow.pop %v2815
      %v2817 = vsel %vm2533, %v2816, 0.0
      %2818 = vadd.xlane.f32.xlu0 %v2817
      %v2819 = vpop.xlane.xlu0 %2818
      %v2820 = vrcp.pop %v2819
      %v2821 = vmul.f32 %v2816, %v2820
      %v2822 = vpack.c.bf16 %v2821, %v2821
      %v2824 = vsel %vm2533, %v2822, 0
      %v2827 = vsel %vm2549, %v2763, 0
      %2829 = vmatprep.subr.bf16.mxu0 0
      %2830 = vmatpush1.bf16.msra.mxu0 0
      %2831 = vmatprep.subr.bf16.mxu0 0
      %2832 = vmatpush1.bf16.msra.mxu0 0
      %2833 = vmatprep.subr.bf16.mxu0 0
      %2834 = vmatpush1.bf16.msra.mxu0 0
      %2835 = vmatprep.subr.bf16.mxu0 0
      %2836 = vmatpush1.bf16.msra.mxu0 0
      %2837 = vmatprep.subr.bf16.mxu0 0
      %2838 = vmatpush1.bf16.msra.mxu0 0
      %2839 = vmatprep.subr.bf16.mxu0 0
      %2840 = vmatpush1.bf16.msra.mxu0 0
      %2841 = vmatprep.subr.bf16.mxu0 0
      %2842 = vmatpush1.bf16.msra.mxu0 0
      %2843 = vmatprep.subr.bf16.mxu0 0
      %2844 = vmatpush1.bf16.msra.mxu0 %v2827
      %2845 = vmatprep.subr.bf16.mxu0 0
      %2846 = vmatpush2.bf16.msra.mxu0 0
      %2847 = vmatprep.subr.bf16.mxu0 0
      %2848 = vmatpush2.bf16.msra.mxu0 0
      %2849 = vmatprep.subr.bf16.mxu0 0
      %2850 = vmatpush2.bf16.msra.mxu0 0
      %2851 = vmatprep.subr.bf16.mxu0 0
      %2852 = vmatpush2.bf16.msra.mxu0 0
      %2853 = vmatprep.subr.bf16.mxu0 0
      %2854 = vmatpush2.bf16.msra.mxu0 0
      %2855 = vmatprep.subr.bf16.mxu0 0
      %2856 = vmatpush2.bf16.msra.mxu0 0
      %2857 = vmatprep.subr.bf16.mxu0 0
      %2858 = vmatpush2.bf16.msra.mxu0 0
      %2859 = vmatprep.subr.bf16.mxu0 0
      %2860 = vmatpush2.bf16.msra.mxu0 0
      %2861 = vmatprep.mubr.bf16.mxu0 0
      %2862 = vmatmul.mubr.bf16.gmra.mxu0 %v2824
      %v2863 = vpop.f32.mrf.mxu0
      %v2864 = vadd.f32 0.0, %v2863
      %v2865 = vpop.f32.mrf.mxu0
      %v2866 = vpop.f32.mrf.mxu0
      %v2867 = vpop.f32.mrf.mxu0
      %2868 = vdwg.mxu0
      %v2869 = vpack.c.bf16 %v2864, %v2864
      %s2870 = scalar_lea.vmem %s9, 8
      %v2871 = vld [vmem:[%s2870] sm:$0xf]
      %v2872 = vld [vmem:[%s2870 + $0x4] sm:$0xf]
      %v2875 = vunpack.c.l.b16 %v2871
      %v2876 = vunpack.c.l.b16 %v2872
      %v2877 = vpack.c.b16 %v2876, %v2875
      %v2880 = vsel %vm2486, %v2869, 0
      %2882 = vmatprep.subr.bf16.mxu0 0
      %2883 = vmatpush1.bf16.msra.mxu0 0
      %2884 = vmatprep.subr.bf16.mxu0 0
      %2885 = vmatpush1.bf16.msra.mxu0 0
      %2886 = vmatprep.subr.bf16.mxu0 0
      %2887 = vmatpush1.bf16.msra.mxu0 0
      %2888 = vmatprep.subr.bf16.mxu0 0
      %2889 = vmatpush1.bf16.msra.mxu0 0
      %2890 = vmatprep.subr.bf16.mxu0 0
      %2891 = vmatpush1.bf16.msra.mxu0 0
      %2892 = vmatprep.subr.bf16.mxu0 0
      %2893 = vmatpush1.bf16.msra.mxu0 0
      %2894 = vmatprep.subr.bf16.mxu0 0
      %2895 = vmatpush1.bf16.msra.mxu0 0
      %2896 = vmatprep.subr.bf16.mxu0 0
      %2897 = vmatpush1.bf16.msra.mxu0 %v2877
      %2898 = vmatprep.subr.bf16.mxu0 0
      %2899 = vmatpush2.bf16.msra.mxu0 0
      %2900 = vmatprep.subr.bf16.mxu0 0
      %2901 = vmatpush2.bf16.msra.mxu0 0
      %2902 = vmatprep.subr.bf16.mxu0 0
      %2903 = vmatpush2.bf16.msra.mxu0 0
      %2904 = vmatprep.subr.bf16.mxu0 0
      %2905 = vmatpush2.bf16.msra.mxu0 0
      %2906 = vmatprep.subr.bf16.mxu0 0
      %2907 = vmatpush2.bf16.msra.mxu0 0
      %2908 = vmatprep.subr.bf16.mxu0 0
      %2909 = vmatpush2.bf16.msra.mxu0 0
      %2910 = vmatprep.subr.bf16.mxu0 0
      %2911 = vmatpush2.bf16.msra.mxu0 0
      %2912 = vmatprep.subr.bf16.mxu0 0
      %2913 = vmatpush2.bf16.msra.mxu0 0
      %2914 = vmatprep.mubr.bf16.mxu0 0
      %2915 = vmatmul.mubr.bf16.gmra.mxu0 %v2880
      %v2916 = vpop.f32.mrf.mxu0
      %v2917 = vadd.f32 0.0, %v2916
      %v2918 = vpop.f32.mrf.mxu0
      %v2919 = vpop.f32.mrf.mxu0
      %v2920 = vpop.f32.mrf.mxu0
      %2921 = vdwg.mxu0
      %v2922 = vadd.f32 %v2645, %v2917
      %s2923 = scalar_lea.vmem %s3, 128
      %v2924 = vld [vmem:[%s2923] sm:$0xf]
      %v2925 = vld [vmem:[%s2923 + $0x4] sm:$0xf]
      %v2926 = vld [vmem:[%s2923 + $0x8] sm:$0xf]
      %v2927 = vld [vmem:[%s2923 + $0xc] sm:$0xf]
      %v2928 = vld [vmem:[%s2923 + $0x10] sm:$0xf]
      %v2929 = vld [vmem:[%s2923 + $0x14] sm:$0xf]
      %v2930 = vld [vmem:[%s2923 + $0x18] sm:$0xf]
      %v2931 = vld [vmem:[%s2923 + $0x1c] sm:$0xf]
      %v2932 = vld [vmem:[%s2923 + $0x20] sm:$0xf]
      %v2933 = vld [vmem:[%s2923 + $0x24] sm:$0xf]
      %v2934 = vld [vmem:[%s2923 + $0x28] sm:$0xf]
      %v2935 = vld [vmem:[%s2923 + $0x2c] sm:$0xf]
      %v2936 = vld [vmem:[%s2923 + $0x30] sm:$0xf]
      %v2937 = vld [vmem:[%s2923 + $0x34] sm:$0xf]
      %v2938 = vld [vmem:[%s2923 + $0x38] sm:$0xf]
      %v2939 = vld [vmem:[%s2923 + $0x3c] sm:$0xf]
      %s2940 = scalar_lea.vmem %s4, 2
      %v2941 = vld [vmem:[%s2940] sm:$0x1]
      %v2943 = vlaneseq
      %v2944 = vshrl.u32 %v2943, 7
      %v2945 = vsub.s32 0, %v2944
      %v2946 = vrot.slane %v2941, %v2945
      %v2964 = vunpack.c.l.b16 %v2924
      %v2965 = vunpack.c.l.b16 %v2925
      %v2966 = vunpack.c.l.b16 %v2926
      %v2967 = vunpack.c.l.b16 %v2927
      %v2968 = vunpack.c.l.b16 %v2928
      %v2969 = vunpack.c.l.b16 %v2929
      %v2970 = vunpack.c.l.b16 %v2930
      %v2971 = vunpack.c.l.b16 %v2931
      %v2972 = vunpack.c.l.b16 %v2932
      %v2973 = vunpack.c.l.b16 %v2933
      %v2974 = vunpack.c.l.b16 %v2934
      %v2975 = vunpack.c.l.b16 %v2935
      %v2976 = vunpack.c.l.b16 %v2936
      %v2977 = vunpack.c.l.b16 %v2937
      %v2978 = vunpack.c.l.b16 %v2938
      %v2979 = vunpack.c.l.b16 %v2939
      %v2980 = vpack.c.b16 %v2965, %v2964
      %v2981 = vpack.c.b16 %v2967, %v2966
      %v2982 = vpack.c.b16 %v2969, %v2968
      %v2983 = vpack.c.b16 %v2971, %v2970
      %v2984 = vpack.c.b16 %v2973, %v2972
      %v2985 = vpack.c.b16 %v2975, %v2974
      %v2986 = vpack.c.b16 %v2977, %v2976
      %v2987 = vpack.c.b16 %v2979, %v2978
      %2996 = vmatprep.subr.bf16.mxu0 0
      %2997 = vmatpush1.bf16.msra.mxu0 %v2987
      %2998 = vmatprep.subr.bf16.mxu0 0
      %2999 = vmatpush1.bf16.msra.mxu0 %v2986
      %3000 = vmatprep.subr.bf16.mxu0 0
      %3001 = vmatpush1.bf16.msra.mxu0 %v2985
      %3002 = vmatprep.subr.bf16.mxu0 0
      %3003 = vmatpush1.bf16.msra.mxu0 %v2984
      %3004 = vmatprep.subr.bf16.mxu0 0
      %3005 = vmatpush1.bf16.msra.mxu0 %v2983
      %3006 = vmatprep.subr.bf16.mxu0 0
      %3007 = vmatpush1.bf16.msra.mxu0 %v2982
      %3008 = vmatprep.subr.bf16.mxu0 0
      %3009 = vmatpush1.bf16.msra.mxu0 %v2981
      %3010 = vmatprep.subr.bf16.mxu0 0
      %3011 = vmatpush1.bf16.msra.mxu0 %v2980
      %3012 = vmatprep.subr.bf16.mxu0 0
      %3013 = vmatpush2.bf16.msra.mxu0 0
      %3014 = vmatprep.subr.bf16.mxu0 0
      %3015 = vmatpush2.bf16.msra.mxu0 0
      %3016 = vmatprep.subr.bf16.mxu0 0
      %3017 = vmatpush2.bf16.msra.mxu0 0
      %3018 = vmatprep.subr.bf16.mxu0 0
      %3019 = vmatpush2.bf16.msra.mxu0 0
      %3020 = vmatprep.subr.bf16.mxu0 0
      %3021 = vmatpush2.bf16.msra.mxu0 0
      %3022 = vmatprep.subr.bf16.mxu0 0
      %3023 = vmatpush2.bf16.msra.mxu0 0
      %3024 = vmatprep.subr.bf16.mxu0 0
      %3025 = vmatpush2.bf16.msra.mxu0 0
      %3026 = vmatprep.subr.bf16.mxu0 0
      %3027 = vmatpush2.bf16.msra.mxu0 0
      %3028 = vmatprep.mubr.bf16.mxu0 0
      %3029 = vmatmul.mubr.bf16.gmra.mxu0 %v2362
      %v3030 = vpop.f32.mrf.mxu0
      %v3031 = vadd.f32 %v2946, %v3030
      %v3032 = vpop.f32.mrf.mxu0
      %v3033 = vpop.f32.mrf.mxu0
      %v3034 = vpop.f32.mrf.mxu0
      %3035 = vdwg.mxu0
      %v3036 = vmul.f32 %v3031, 0.25
      %s3037 = scalar_lea.vmem [#allocation2], 8
      %v3038 = vld [vmem:[%s3037] sm:$0xf]
      %s3039 = scalar_lea.vmem [#allocation3], 8
      %v3040 = vld [vmem:[%s3039] sm:$0xf]
      %v3041 = vpack.c.bf16 %v3036, %v3036
      %v3043 = vsel %vm2486, %v3041, 0
      %v3046 = vsel %vm2486, %v3038, 0
      %3048 = vmatprep.subr.bf16.mxu0 0
      %3049 = vmatpush1.bf16.xpose.msra.mxu0 0
      %3050 = vmatprep.subr.bf16.mxu0 0
      %3051 = vmatpush1.bf16.xpose.msra.mxu0 0
      %3052 = vmatprep.subr.bf16.mxu0 0
      %3053 = vmatpush1.bf16.xpose.msra.mxu0 0
      %3054 = vmatprep.subr.bf16.mxu0 0
      %3055 = vmatpush1.bf16.xpose.msra.mxu0 0
      %3056 = vmatprep.subr.bf16.mxu0 0
      %3057 = vmatpush1.bf16.xpose.msra.mxu0 0
      %3058 = vmatprep.subr.bf16.mxu0 0
      %3059 = vmatpush1.bf16.xpose.msra.mxu0 0
      %3060 = vmatprep.subr.bf16.mxu0 0
      %3061 = vmatpush1.bf16.xpose.msra.mxu0 0
      %3062 = vmatprep.subr.bf16.mxu0 0
      %3063 = vmatpush1.bf16.xpose.msra.mxu0 %v3046
      %3064 = vmatprep.subr.bf16.mxu0 0
      %3065 = vmatpush2.bf16.xpose.msra.mxu0 0
      %3066 = vmatprep.subr.bf16.mxu0 0
      %3067 = vmatpush2.bf16.xpose.msra.mxu0 0
      %3068 = vmatprep.subr.bf16.mxu0 0
      %3069 = vmatpush2.bf16.xpose.msra.mxu0 0
      %3070 = vmatprep.subr.bf16.mxu0 0
      %3071 = vmatpush2.bf16.xpose.msra.mxu0 0
      %3072 = vmatprep.subr.bf16.mxu0 0
      %3073 = vmatpush2.bf16.xpose.msra.mxu0 0
      %3074 = vmatprep.subr.bf16.mxu0 0
      %3075 = vmatpush2.bf16.xpose.msra.mxu0 0
      %3076 = vmatprep.subr.bf16.mxu0 0
      %3077 = vmatpush2.bf16.xpose.msra.mxu0 0
      %3078 = vmatprep.subr.bf16.mxu0 0
      %3079 = vmatpush2.bf16.xpose.msra.mxu0 0
      %3080 = vmatprep.mubr.bf16.mxu0 0
      %3081 = vmatmul.mubr.bf16.gmra.mxu0 %v3043
      %v3082 = vpop.f32.mrf.mxu0
      %v3083 = vadd.f32 0.0, %v3082
      %v3084 = vpop.f32.mrf.mxu0
      %v3085 = vpop.f32.mrf.mxu0
      %v3086 = vpop.f32.mrf.mxu0
      %3087 = vdwg.mxu0
      %v3088 = vsel %vm2533, %v3083, -inf
      %3089 = vmax.xlane.f32.xlu0 %v3088
      %v3090 = vpop.xlane.xlu0 %3089
      %v3091 = vsub.f32 %v3083, %v3090
      %v3092 = vmul.f32 %v3091, 1.442695
      %v3093 = vpow.pop %v3092
      %v3094 = vsel %vm2533, %v3093, 0.0
      %3095 = vadd.xlane.f32.xlu0 %v3094
      %v3096 = vpop.xlane.xlu0 %3095
      %v3097 = vrcp.pop %v3096
      %v3098 = vmul.f32 %v3093, %v3097
      %v3099 = vpack.c.bf16 %v3098, %v3098
      %v3101 = vsel %vm2533, %v3099, 0
      %v3104 = vsel %vm2549, %v3040, 0
      %3106 = vmatprep.subr.bf16.mxu0 0
      %3107 = vmatpush1.bf16.msra.mxu0 0
      %3108 = vmatprep.subr.bf16.mxu0 0
      %3109 = vmatpush1.bf16.msra.mxu0 0
      %3110 = vmatprep.subr.bf16.mxu0 0
      %3111 = vmatpush1.bf16.msra.mxu0 0
      %3112 = vmatprep.subr.bf16.mxu0 0
      %3113 = vmatpush1.bf16.msra.mxu0 0
      %3114 = vmatprep.subr.bf16.mxu0 0
      %3115 = vmatpush1.bf16.msra.mxu0 0
      %3116 = vmatprep.subr.bf16.mxu0 0
      %3117 = vmatpush1.bf16.msra.mxu0 0
      %3118 = vmatprep.subr.bf16.mxu0 0
      %3119 = vmatpush1.bf16.msra.mxu0 0
      %3120 = vmatprep.subr.bf16.mxu0 0
      %3121 = vmatpush1.bf16.msra.mxu0 %v3104
      %3122 = vmatprep.subr.bf16.mxu0 0
      %3123 = vmatpush2.bf16.msra.mxu0 0
      %3124 = vmatprep.subr.bf16.mxu0 0
      %3125 = vmatpush2.bf16.msra.mxu0 0
      %3126 = vmatprep.subr.bf16.mxu0 0
      %3127 = vmatpush2.bf16.msra.mxu0 0
      %3128 = vmatprep.subr.bf16.mxu0 0
      %3129 = vmatpush2.bf16.msra.mxu0 0
      %3130 = vmatprep.subr.bf16.mxu0 0
      %3131 = vmatpush2.bf16.msra.mxu0 0
      %3132 = vmatprep.subr.bf16.mxu0 0
      %3133 = vmatpush2.bf16.msra.mxu0 0
      %3134 = vmatprep.subr.bf16.mxu0 0
      %3135 = vmatpush2.bf16.msra.mxu0 0
      %3136 = vmatprep.subr.bf16.mxu0 0
      %3137 = vmatpush2.bf16.msra.mxu0 0
      %3138 = vmatprep.mubr.bf16.mxu0 0
      %3139 = vmatmul.mubr.bf16.gmra.mxu0 %v3101
      %v3140 = vpop.f32.mrf.mxu0
      %v3141 = vadd.f32 0.0, %v3140
      %v3142 = vpop.f32.mrf.mxu0
      %v3143 = vpop.f32.mrf.mxu0
      %v3144 = vpop.f32.mrf.mxu0
      %3145 = vdwg.mxu0
      %v3146 = vpack.c.bf16 %v3141, %v3141
      %s3147 = scalar_lea.vmem %s9, 16
      %v3148 = vld [vmem:[%s3147] sm:$0xf]
      %v3149 = vld [vmem:[%s3147 + $0x4] sm:$0xf]
      %v3152 = vunpack.c.l.b16 %v3148
      %v3153 = vunpack.c.l.b16 %v3149
      %v3154 = vpack.c.b16 %v3153, %v3152
      %v3157 = vsel %vm2486, %v3146, 0
      %3159 = vmatprep.subr.bf16.mxu0 0
      %3160 = vmatpush1.bf16.msra.mxu0 0
      %3161 = vmatprep.subr.bf16.mxu0 0
      %3162 = vmatpush1.bf16.msra.mxu0 0
      %3163 = vmatprep.subr.bf16.mxu0 0
      %3164 = vmatpush1.bf16.msra.mxu0 0
      %3165 = vmatprep.subr.bf16.mxu0 0
      %3166 = vmatpush1.bf16.msra.mxu0 0
      %3167 = vmatprep.subr.bf16.mxu0 0
      %3168 = vmatpush1.bf16.msra.mxu0 0
      %3169 = vmatprep.subr.bf16.mxu0 0
      %3170 = vmatpush1.bf16.msra.mxu0 0
      %3171 = vmatprep.subr.bf16.mxu0 0
      %3172 = vmatpush1.bf16.msra.mxu0 0
      %3173 = vmatprep.subr.bf16.mxu0 0
      %3174 = vmatpush1.bf16.msra.mxu0 %v3154
      %3175 = vmatprep.subr.bf16.mxu0 0
      %3176 = vmatpush2.bf16.msra.mxu0 0
      %3177 = vmatprep.subr.bf16.mxu0 0
      %3178 = vmatpush2.bf16.msra.mxu0 0
      %3179 = vmatprep.subr.bf16.mxu0 0
      %3180 = vmatpush2.bf16.msra.mxu0 0
      %3181 = vmatprep.subr.bf16.mxu0 0
      %3182 = vmatpush2.bf16.msra.mxu0 0
      %3183 = vmatprep.subr.bf16.mxu0 0
      %3184 = vmatpush2.bf16.msra.mxu0 0
      %3185 = vmatprep.subr.bf16.mxu0 0
      %3186 = vmatpush2.bf16.msra.mxu0 0
      %3187 = vmatprep.subr.bf16.mxu0 0
      %3188 = vmatpush2.bf16.msra.mxu0 0
      %3189 = vmatprep.subr.bf16.mxu0 0
      %3190 = vmatpush2.bf16.msra.mxu0 0
      %3191 = vmatprep.mubr.bf16.mxu0 0
      %3192 = vmatmul.mubr.bf16.gmra.mxu0 %v3157
      %v3193 = vpop.f32.mrf.mxu0
      %v3194 = vadd.f32 0.0, %v3193
      %v3195 = vpop.f32.mrf.mxu0
      %v3196 = vpop.f32.mrf.mxu0
      %v3197 = vpop.f32.mrf.mxu0
      %3198 = vdwg.mxu0
      %v3199 = vadd.f32 %v2922, %v3194
      %s3200 = scalar_lea.vmem %s3, 192
      %v3201 = vld [vmem:[%s3200] sm:$0xf]
      %v3202 = vld [vmem:[%s3200 + $0x4] sm:$0xf]
      %v3203 = vld [vmem:[%s3200 + $0x8] sm:$0xf]
      %v3204 = vld [vmem:[%s3200 + $0xc] sm:$0xf]
      %v3205 = vld [vmem:[%s3200 + $0x10] sm:$0xf]
      %v3206 = vld [vmem:[%s3200 + $0x14] sm:$0xf]
      %v3207 = vld [vmem:[%s3200 + $0x18] sm:$0xf]
      %v3208 = vld [vmem:[%s3200 + $0x1c] sm:$0xf]
      %v3209 = vld [vmem:[%s3200 + $0x20] sm:$0xf]
      %v3210 = vld [vmem:[%s3200 + $0x24] sm:$0xf]
      %v3211 = vld [vmem:[%s3200 + $0x28] sm:$0xf]
      %v3212 = vld [vmem:[%s3200 + $0x2c] sm:$0xf]
      %v3213 = vld [vmem:[%s3200 + $0x30] sm:$0xf]
      %v3214 = vld [vmem:[%s3200 + $0x34] sm:$0xf]
      %v3215 = vld [vmem:[%s3200 + $0x38] sm:$0xf]
      %v3216 = vld [vmem:[%s3200 + $0x3c] sm:$0xf]
      %s3217 = scalar_lea.vmem %s4, 3
      %v3218 = vld [vmem:[%s3217] sm:$0x1]
      %v3220 = vlaneseq
      %v3221 = vshrl.u32 %v3220, 7
      %v3222 = vsub.s32 0, %v3221
      %v3223 = vrot.slane %v3218, %v3222
      %v3241 = vunpack.c.l.b16 %v3201
      %v3242 = vunpack.c.l.b16 %v3202
      %v3243 = vunpack.c.l.b16 %v3203
      %v3244 = vunpack.c.l.b16 %v3204
      %v3245 = vunpack.c.l.b16 %v3205
      %v3246 = vunpack.c.l.b16 %v3206
      %v3247 = vunpack.c.l.b16 %v3207
      %v3248 = vunpack.c.l.b16 %v3208
      %v3249 = vunpack.c.l.b16 %v3209
      %v3250 = vunpack.c.l.b16 %v3210
      %v3251 = vunpack.c.l.b16 %v3211
      %v3252 = vunpack.c.l.b16 %v3212
      %v3253 = vunpack.c.l.b16 %v3213
      %v3254 = vunpack.c.l.b16 %v3214
      %v3255 = vunpack.c.l.b16 %v3215
      %v3256 = vunpack.c.l.b16 %v3216
      %v3257 = vpack.c.b16 %v3242, %v3241
      %v3258 = vpack.c.b16 %v3244, %v3243
      %v3259 = vpack.c.b16 %v3246, %v3245
      %v3260 = vpack.c.b16 %v3248, %v3247
      %v3261 = vpack.c.b16 %v3250, %v3249
      %v3262 = vpack.c.b16 %v3252, %v3251
      %v3263 = vpack.c.b16 %v3254, %v3253
      %v3264 = vpack.c.b16 %v3256, %v3255
      %3273 = vmatprep.subr.bf16.mxu0 0
      %3274 = vmatpush1.bf16.msra.mxu0 %v3264
      %3275 = vmatprep.subr.bf16.mxu0 0
      %3276 = vmatpush1.bf16.msra.mxu0 %v3263
      %3277 = vmatprep.subr.bf16.mxu0 0
      %3278 = vmatpush1.bf16.msra.mxu0 %v3262
      %3279 = vmatprep.subr.bf16.mxu0 0
      %3280 = vmatpush1.bf16.msra.mxu0 %v3261
      %3281 = vmatprep.subr.bf16.mxu0 0
      %3282 = vmatpush1.bf16.msra.mxu0 %v3260
      %3283 = vmatprep.subr.bf16.mxu0 0
      %3284 = vmatpush1.bf16.msra.mxu0 %v3259
      %3285 = vmatprep.subr.bf16.mxu0 0
      %3286 = vmatpush1.bf16.msra.mxu0 %v3258
      %3287 = vmatprep.subr.bf16.mxu0 0
      %3288 = vmatpush1.bf16.msra.mxu0 %v3257
      %3289 = vmatprep.subr.bf16.mxu0 0
      %3290 = vmatpush2.bf16.msra.mxu0 0
      %3291 = vmatprep.subr.bf16.mxu0 0
      %3292 = vmatpush2.bf16.msra.mxu0 0
      %3293 = vmatprep.subr.bf16.mxu0 0
      %3294 = vmatpush2.bf16.msra.mxu0 0
      %3295 = vmatprep.subr.bf16.mxu0 0
      %3296 = vmatpush2.bf16.msra.mxu0 0
      %3297 = vmatprep.subr.bf16.mxu0 0
      %3298 = vmatpush2.bf16.msra.mxu0 0
      %3299 = vmatprep.subr.bf16.mxu0 0
      %3300 = vmatpush2.bf16.msra.mxu0 0
      %3301 = vmatprep.subr.bf16.mxu0 0
      %3302 = vmatpush2.bf16.msra.mxu0 0
      %3303 = vmatprep.subr.bf16.mxu0 0
      %3304 = vmatpush2.bf16.msra.mxu0 0
      %3305 = vmatprep.mubr.bf16.mxu0 0
      %3306 = vmatmul.mubr.bf16.gmra.mxu0 %v2362
      %v3307 = vpop.f32.mrf.mxu0
      %v3308 = vadd.f32 %v3223, %v3307
      %v3309 = vpop.f32.mrf.mxu0
      %v3310 = vpop.f32.mrf.mxu0
      %v3311 = vpop.f32.mrf.mxu0
      %3312 = vdwg.mxu0
      %v3313 = vmul.f32 %v3308, 0.25
      %s3314 = scalar_lea.vmem [#allocation2], 12
      %v3315 = vld [vmem:[%s3314] sm:$0xf]
      %s3316 = scalar_lea.vmem [#allocation3], 12
      %v3317 = vld [vmem:[%s3316] sm:$0xf]
      %v3318 = vpack.c.bf16 %v3313, %v3313
      %v3320 = vsel %vm2486, %v3318, 0
      %v3323 = vsel %vm2486, %v3315, 0
      %3325 = vmatprep.subr.bf16.mxu0 0
      %3326 = vmatpush1.bf16.xpose.msra.mxu0 0
      %3327 = vmatprep.subr.bf16.mxu0 0
      %3328 = vmatpush1.bf16.xpose.msra.mxu0 0
      %3329 = vmatprep.subr.bf16.mxu0 0
      %3330 = vmatpush1.bf16.xpose.msra.mxu0 0
      %3331 = vmatprep.subr.bf16.mxu0 0
      %3332 = vmatpush1.bf16.xpose.msra.mxu0 0
      %3333 = vmatprep.subr.bf16.mxu0 0
      %3334 = vmatpush1.bf16.xpose.msra.mxu0 0
      %3335 = vmatprep.subr.bf16.mxu0 0
      %3336 = vmatpush1.bf16.xpose.msra.mxu0 0
      %3337 = vmatprep.subr.bf16.mxu0 0
      %3338 = vmatpush1.bf16.xpose.msra.mxu0 0
      %3339 = vmatprep.subr.bf16.mxu0 0
      %3340 = vmatpush1.bf16.xpose.msra.mxu0 %v3323
      %3341 = vmatprep.subr.bf16.mxu0 0
      %3342 = vmatpush2.bf16.xpose.msra.mxu0 0
      %3343 = vmatprep.subr.bf16.mxu0 0
      %3344 = vmatpush2.bf16.xpose.msra.mxu0 0
      %3345 = vmatprep.subr.bf16.mxu0 0
      %3346 = vmatpush2.bf16.xpose.msra.mxu0 0
      %3347 = vmatprep.subr.bf16.mxu0 0
      %3348 = vmatpush2.bf16.xpose.msra.mxu0 0
      %3349 = vmatprep.subr.bf16.mxu0 0
      %3350 = vmatpush2.bf16.xpose.msra.mxu0 0
      %3351 = vmatprep.subr.bf16.mxu0 0
      %3352 = vmatpush2.bf16.xpose.msra.mxu0 0
      %3353 = vmatprep.subr.bf16.mxu0 0
      %3354 = vmatpush2.bf16.xpose.msra.mxu0 0
      %3355 = vmatprep.subr.bf16.mxu0 0
      %3356 = vmatpush2.bf16.xpose.msra.mxu0 0
      %3357 = vmatprep.mubr.bf16.mxu0 0
      %3358 = vmatmul.mubr.bf16.gmra.mxu0 %v3320
      %v3359 = vpop.f32.mrf.mxu0
      %v3360 = vadd.f32 0.0, %v3359
      %v3361 = vpop.f32.mrf.mxu0
      %v3362 = vpop.f32.mrf.mxu0
      %v3363 = vpop.f32.mrf.mxu0
      %3364 = vdwg.mxu0
      %v3365 = vsel %vm2533, %v3360, -inf
      %3366 = vmax.xlane.f32.xlu0 %v3365
      %v3367 = vpop.xlane.xlu0 %3366
      %v3368 = vsub.f32 %v3360, %v3367
      %v3369 = vmul.f32 %v3368, 1.442695
      %v3370 = vpow.pop %v3369
      %v3371 = vsel %vm2533, %v3370, 0.0
      %3372 = vadd.xlane.f32.xlu0 %v3371
      %v3373 = vpop.xlane.xlu0 %3372
      %v3374 = vrcp.pop %v3373
      %v3375 = vmul.f32 %v3370, %v3374
      %v3376 = vpack.c.bf16 %v3375, %v3375
      %v3378 = vsel %vm2533, %v3376, 0
      %v3381 = vsel %vm2549, %v3317, 0
      %3383 = vmatprep.subr.bf16.mxu0 0
      %3384 = vmatpush1.bf16.msra.mxu0 0
      %3385 = vmatprep.subr.bf16.mxu0 0
      %3386 = vmatpush1.bf16.msra.mxu0 0
      %3387 = vmatprep.subr.bf16.mxu0 0
      %3388 = vmatpush1.bf16.msra.mxu0 0
      %3389 = vmatprep.subr.bf16.mxu0 0
      %3390 = vmatpush1.bf16.msra.mxu0 0
      %3391 = vmatprep.subr.bf16.mxu0 0
      %3392 = vmatpush1.bf16.msra.mxu0 0
      %3393 = vmatprep.subr.bf16.mxu0 0
      %3394 = vmatpush1.bf16.msra.mxu0 0
      %3395 = vmatprep.subr.bf16.mxu0 0
      %3396 = vmatpush1.bf16.msra.mxu0 0
      %3397 = vmatprep.subr.bf16.mxu0 0
      %3398 = vmatpush1.bf16.msra.mxu0 %v3381
      %3399 = vmatprep.subr.bf16.mxu0 0
      %3400 = vmatpush2.bf16.msra.mxu0 0
      %3401 = vmatprep.subr.bf16.mxu0 0
      %3402 = vmatpush2.bf16.msra.mxu0 0
      %3403 = vmatprep.subr.bf16.mxu0 0
      %3404 = vmatpush2.bf16.msra.mxu0 0
      %3405 = vmatprep.subr.bf16.mxu0 0
      %3406 = vmatpush2.bf16.msra.mxu0 0
      %3407 = vmatprep.subr.bf16.mxu0 0
      %3408 = vmatpush2.bf16.msra.mxu0 0
      %3409 = vmatprep.subr.bf16.mxu0 0
      %3410 = vmatpush2.bf16.msra.mxu0 0
      %3411 = vmatprep.subr.bf16.mxu0 0
      %3412 = vmatpush2.bf16.msra.mxu0 0
      %3413 = vmatprep.subr.bf16.mxu0 0
      %3414 = vmatpush2.bf16.msra.mxu0 0
      %3415 = vmatprep.mubr.bf16.mxu0 0
      %3416 = vmatmul.mubr.bf16.gmra.mxu0 %v3378
      %v3417 = vpop.f32.mrf.mxu0
      %v3418 = vadd.f32 0.0, %v3417
      %v3419 = vpop.f32.mrf.mxu0
      %v3420 = vpop.f32.mrf.mxu0
      %v3421 = vpop.f32.mrf.mxu0
      %3422 = vdwg.mxu0
      %v3423 = vpack.c.bf16 %v3418, %v3418
      %s3424 = scalar_lea.vmem %s9, 24
      %v3425 = vld [vmem:[%s3424] sm:$0xf]
      %v3426 = vld [vmem:[%s3424 + $0x4] sm:$0xf]
      %v3429 = vunpack.c.l.b16 %v3425
      %v3430 = vunpack.c.l.b16 %v3426
      %v3431 = vpack.c.b16 %v3430, %v3429
      %v3434 = vsel %vm2486, %v3423, 0
      %3436 = vmatprep.subr.bf16.mxu0 0
      %3437 = vmatpush1.bf16.msra.mxu0 0
      %3438 = vmatprep.subr.bf16.mxu0 0
      %3439 = vmatpush1.bf16.msra.mxu0 0
      %3440 = vmatprep.subr.bf16.mxu0 0
      %3441 = vmatpush1.bf16.msra.mxu0 0
      %3442 = vmatprep.subr.bf16.mxu0 0
      %3443 = vmatpush1.bf16.msra.mxu0 0
      %3444 = vmatprep.subr.bf16.mxu0 0
      %3445 = vmatpush1.bf16.msra.mxu0 0
      %3446 = vmatprep.subr.bf16.mxu0 0
      %3447 = vmatpush1.bf16.msra.mxu0 0
      %3448 = vmatprep.subr.bf16.mxu0 0
      %3449 = vmatpush1.bf16.msra.mxu0 0
      %3450 = vmatprep.subr.bf16.mxu0 0
      %3451 = vmatpush1.bf16.msra.mxu0 %v3431
      %3452 = vmatprep.subr.bf16.mxu0 0
      %3453 = vmatpush2.bf16.msra.mxu0 0
      %3454 = vmatprep.subr.bf16.mxu0 0
      %3455 = vmatpush2.bf16.msra.mxu0 0
      %3456 = vmatprep.subr.bf16.mxu0 0
      %3457 = vmatpush2.bf16.msra.mxu0 0
      %3458 = vmatprep.subr.bf16.mxu0 0
      %3459 = vmatpush2.bf16.msra.mxu0 0
      %3460 = vmatprep.subr.bf16.mxu0 0
      %3461 = vmatpush2.bf16.msra.mxu0 0
      %3462 = vmatprep.subr.bf16.mxu0 0
      %3463 = vmatpush2.bf16.msra.mxu0 0
      %3464 = vmatprep.subr.bf16.mxu0 0
      %3465 = vmatpush2.bf16.msra.mxu0 0
      %3466 = vmatprep.subr.bf16.mxu0 0
      %3467 = vmatpush2.bf16.msra.mxu0 0
      %3468 = vmatprep.mubr.bf16.mxu0 0
      %3469 = vmatmul.mubr.bf16.gmra.mxu0 %v3434
      %v3470 = vpop.f32.mrf.mxu0
      %v3471 = vadd.f32 0.0, %v3470
      %v3472 = vpop.f32.mrf.mxu0
      %v3473 = vpop.f32.mrf.mxu0
      %v3474 = vpop.f32.mrf.mxu0
      %3475 = vdwg.mxu0
      %v3476 = vadd.f32 %v3199, %v3471
      %s3477 = scalar_lea.vmem %s3, 256
      %v3478 = vld [vmem:[%s3477] sm:$0xf]
      %v3479 = vld [vmem:[%s3477 + $0x4] sm:$0xf]
      %v3480 = vld [vmem:[%s3477 + $0x8] sm:$0xf]
      %v3481 = vld [vmem:[%s3477 + $0xc] sm:$0xf]
      %v3482 = vld [vmem:[%s3477 + $0x10] sm:$0xf]
      %v3483 = vld [vmem:[%s3477 + $0x14] sm:$0xf]
      %v3484 = vld [vmem:[%s3477 + $0x18] sm:$0xf]
      %v3485 = vld [vmem:[%s3477 + $0x1c] sm:$0xf]
      %v3486 = vld [vmem:[%s3477 + $0x20] sm:$0xf]
      %v3487 = vld [vmem:[%s3477 + $0x24] sm:$0xf]
      %v3488 = vld [vmem:[%s3477 + $0x28] sm:$0xf]
      %v3489 = vld [vmem:[%s3477 + $0x2c] sm:$0xf]
      %v3490 = vld [vmem:[%s3477 + $0x30] sm:$0xf]
      %v3491 = vld [vmem:[%s3477 + $0x34] sm:$0xf]
      %v3492 = vld [vmem:[%s3477 + $0x38] sm:$0xf]
      %v3493 = vld [vmem:[%s3477 + $0x3c] sm:$0xf]
      %s3494 = scalar_lea.vmem %s4, 4
      %v3495 = vld [vmem:[%s3494] sm:$0x1]
      %v3497 = vlaneseq
      %v3498 = vshrl.u32 %v3497, 7
      %v3499 = vsub.s32 0, %v3498
      %v3500 = vrot.slane %v3495, %v3499
      %v3518 = vunpack.c.l.b16 %v3478
      %v3519 = vunpack.c.l.b16 %v3479
      %v3520 = vunpack.c.l.b16 %v3480
      %v3521 = vunpack.c.l.b16 %v3481
      %v3522 = vunpack.c.l.b16 %v3482
      %v3523 = vunpack.c.l.b16 %v3483
      %v3524 = vunpack.c.l.b16 %v3484
      %v3525 = vunpack.c.l.b16 %v3485
      %v3526 = vunpack.c.l.b16 %v3486
      %v3527 = vunpack.c.l.b16 %v3487
      %v3528 = vunpack.c.l.b16 %v3488
      %v3529 = vunpack.c.l.b16 %v3489
      %v3530 = vunpack.c.l.b16 %v3490
      %v3531 = vunpack.c.l.b16 %v3491
      %v3532 = vunpack.c.l.b16 %v3492
      %v3533 = vunpack.c.l.b16 %v3493
      %v3534 = vpack.c.b16 %v3519, %v3518
      %v3535 = vpack.c.b16 %v3521, %v3520
      %v3536 = vpack.c.b16 %v3523, %v3522
      %v3537 = vpack.c.b16 %v3525, %v3524
      %v3538 = vpack.c.b16 %v3527, %v3526
      %v3539 = vpack.c.b16 %v3529, %v3528
      %v3540 = vpack.c.b16 %v3531, %v3530
      %v3541 = vpack.c.b16 %v3533, %v3532
      %3550 = vmatprep.subr.bf16.mxu0 0
      %3551 = vmatpush1.bf16.msra.mxu0 %v3541
      %3552 = vmatprep.subr.bf16.mxu0 0
      %3553 = vmatpush1.bf16.msra.mxu0 %v3540
      %3554 = vmatprep.subr.bf16.mxu0 0
      %3555 = vmatpush1.bf16.msra.mxu0 %v3539
      %3556 = vmatprep.subr.bf16.mxu0 0
      %3557 = vmatpush1.bf16.msra.mxu0 %v3538
      %3558 = vmatprep.subr.bf16.mxu0 0
      %3559 = vmatpush1.bf16.msra.mxu0 %v3537
      %3560 = vmatprep.subr.bf16.mxu0 0
      %3561 = vmatpush1.bf16.msra.mxu0 %v3536
      %3562 = vmatprep.subr.bf16.mxu0 0
      %3563 = vmatpush1.bf16.msra.mxu0 %v3535
      %3564 = vmatprep.subr.bf16.mxu0 0
      %3565 = vmatpush1.bf16.msra.mxu0 %v3534
      %3566 = vmatprep.subr.bf16.mxu0 0
      %3567 = vmatpush2.bf16.msra.mxu0 0
      %3568 = vmatprep.subr.bf16.mxu0 0
      %3569 = vmatpush2.bf16.msra.mxu0 0
      %3570 = vmatprep.subr.bf16.mxu0 0
      %3571 = vmatpush2.bf16.msra.mxu0 0
      %3572 = vmatprep.subr.bf16.mxu0 0
      %3573 = vmatpush2.bf16.msra.mxu0 0
      %3574 = vmatprep.subr.bf16.mxu0 0
      %3575 = vmatpush2.bf16.msra.mxu0 0
      %3576 = vmatprep.subr.bf16.mxu0 0
      %3577 = vmatpush2.bf16.msra.mxu0 0
      %3578 = vmatprep.subr.bf16.mxu0 0
      %3579 = vmatpush2.bf16.msra.mxu0 0
      %3580 = vmatprep.subr.bf16.mxu0 0
      %3581 = vmatpush2.bf16.msra.mxu0 0
      %3582 = vmatprep.mubr.bf16.mxu0 0
      %3583 = vmatmul.mubr.bf16.gmra.mxu0 %v2362
      %v3584 = vpop.f32.mrf.mxu0
      %v3585 = vadd.f32 %v3500, %v3584
      %v3586 = vpop.f32.mrf.mxu0
      %v3587 = vpop.f32.mrf.mxu0
      %v3588 = vpop.f32.mrf.mxu0
      %3589 = vdwg.mxu0
      %v3590 = vmul.f32 %v3585, 0.25
      %s3591 = scalar_lea.vmem [#allocation2], 16
      %v3592 = vld [vmem:[%s3591] sm:$0xf]
      %s3593 = scalar_lea.vmem [#allocation3], 16
      %v3594 = vld [vmem:[%s3593] sm:$0xf]
      %v3595 = vpack.c.bf16 %v3590, %v3590
      %v3597 = vsel %vm2486, %v3595, 0
      %v3600 = vsel %vm2486, %v3592, 0
      %3602 = vmatprep.subr.bf16.mxu0 0
      %3603 = vmatpush1.bf16.xpose.msra.mxu0 0
      %3604 = vmatprep.subr.bf16.mxu0 0
      %3605 = vmatpush1.bf16.xpose.msra.mxu0 0
      %3606 = vmatprep.subr.bf16.mxu0 0
      %3607 = vmatpush1.bf16.xpose.msra.mxu0 0
      %3608 = vmatprep.subr.bf16.mxu0 0
      %3609 = vmatpush1.bf16.xpose.msra.mxu0 0
      %3610 = vmatprep.subr.bf16.mxu0 0
      %3611 = vmatpush1.bf16.xpose.msra.mxu0 0
      %3612 = vmatprep.subr.bf16.mxu0 0
      %3613 = vmatpush1.bf16.xpose.msra.mxu0 0
      %3614 = vmatprep.subr.bf16.mxu0 0
      %3615 = vmatpush1.bf16.xpose.msra.mxu0 0
      %3616 = vmatprep.subr.bf16.mxu0 0
      %3617 = vmatpush1.bf16.xpose.msra.mxu0 %v3600
      %3618 = vmatprep.subr.bf16.mxu0 0
      %3619 = vmatpush2.bf16.xpose.msra.mxu0 0
      %3620 = vmatprep.subr.bf16.mxu0 0
      %3621 = vmatpush2.bf16.xpose.msra.mxu0 0
      %3622 = vmatprep.subr.bf16.mxu0 0
      %3623 = vmatpush2.bf16.xpose.msra.mxu0 0
      %3624 = vmatprep.subr.bf16.mxu0 0
      %3625 = vmatpush2.bf16.xpose.msra.mxu0 0
      %3626 = vmatprep.subr.bf16.mxu0 0
      %3627 = vmatpush2.bf16.xpose.msra.mxu0 0
      %3628 = vmatprep.subr.bf16.mxu0 0
      %3629 = vmatpush2.bf16.xpose.msra.mxu0 0
      %3630 = vmatprep.subr.bf16.mxu0 0
      %3631 = vmatpush2.bf16.xpose.msra.mxu0 0
      %3632 = vmatprep.subr.bf16.mxu0 0
      %3633 = vmatpush2.bf16.xpose.msra.mxu0 0
      %3634 = vmatprep.mubr.bf16.mxu0 0
      %3635 = vmatmul.mubr.bf16.gmra.mxu0 %v3597
      %v3636 = vpop.f32.mrf.mxu0
      %v3637 = vadd.f32 0.0, %v3636
      %v3638 = vpop.f32.mrf.mxu0
      %v3639 = vpop.f32.mrf.mxu0
      %v3640 = vpop.f32.mrf.mxu0
      %3641 = vdwg.mxu0
      %v3642 = vsel %vm2533, %v3637, -inf
      %3643 = vmax.xlane.f32.xlu0 %v3642
      %v3644 = vpop.xlane.xlu0 %3643
      %v3645 = vsub.f32 %v3637, %v3644
      %v3646 = vmul.f32 %v3645, 1.442695
      %v3647 = vpow.pop %v3646
      %v3648 = vsel %vm2533, %v3647, 0.0
      %3649 = vadd.xlane.f32.xlu0 %v3648
      %v3650 = vpop.xlane.xlu0 %3649
      %v3651 = vrcp.pop %v3650
      %v3652 = vmul.f32 %v3647, %v3651
      %v3653 = vpack.c.bf16 %v3652, %v3652
      %v3655 = vsel %vm2533, %v3653, 0
      %v3658 = vsel %vm2549, %v3594, 0
      %3660 = vmatprep.subr.bf16.mxu0 0
      %3661 = vmatpush1.bf16.msra.mxu0 0
      %3662 = vmatprep.subr.bf16.mxu0 0
      %3663 = vmatpush1.bf16.msra.mxu0 0
      %3664 = vmatprep.subr.bf16.mxu0 0
      %3665 = vmatpush1.bf16.msra.mxu0 0
      %3666 = vmatprep.subr.bf16.mxu0 0
      %3667 = vmatpush1.bf16.msra.mxu0 0
      %3668 = vmatprep.subr.bf16.mxu0 0
      %3669 = vmatpush1.bf16.msra.mxu0 0
      %3670 = vmatprep.subr.bf16.mxu0 0
      %3671 = vmatpush1.bf16.msra.mxu0 0
      %3672 = vmatprep.subr.bf16.mxu0 0
      %3673 = vmatpush1.bf16.msra.mxu0 0
      %3674 = vmatprep.subr.bf16.mxu0 0
      %3675 = vmatpush1.bf16.msra.mxu0 %v3658
      %3676 = vmatprep.subr.bf16.mxu0 0
      %3677 = vmatpush2.bf16.msra.mxu0 0
      %3678 = vmatprep.subr.bf16.mxu0 0
      %3679 = vmatpush2.bf16.msra.mxu0 0
      %3680 = vmatprep.subr.bf16.mxu0 0
      %3681 = vmatpush2.bf16.msra.mxu0 0
      %3682 = vmatprep.subr.bf16.mxu0 0
      %3683 = vmatpush2.bf16.msra.mxu0 0
      %3684 = vmatprep.subr.bf16.mxu0 0
      %3685 = vmatpush2.bf16.msra.mxu0 0
      %3686 = vmatprep.subr.bf16.mxu0 0
      %3687 = vmatpush2.bf16.msra.mxu0 0
      %3688 = vmatprep.subr.bf16.mxu0 0
      %3689 = vmatpush2.bf16.msra.mxu0 0
      %3690 = vmatprep.subr.bf16.mxu0 0
      %3691 = vmatpush2.bf16.msra.mxu0 0
      %3692 = vmatprep.mubr.bf16.mxu0 0
      %3693 = vmatmul.mubr.bf16.gmra.mxu0 %v3655
      %v3694 = vpop.f32.mrf.mxu0
      %v3695 = vadd.f32 0.0, %v3694
      %v3696 = vpop.f32.mrf.mxu0
      %v3697 = vpop.f32.mrf.mxu0
      %v3698 = vpop.f32.mrf.mxu0
      %3699 = vdwg.mxu0
      %v3700 = vpack.c.bf16 %v3695, %v3695
      %s3701 = scalar_lea.vmem %s9, 32
      %v3702 = vld [vmem:[%s3701] sm:$0xf]
      %v3703 = vld [vmem:[%s3701 + $0x4] sm:$0xf]
      %v3706 = vunpack.c.l.b16 %v3702
      %v3707 = vunpack.c.l.b16 %v3703
      %v3708 = vpack.c.b16 %v3707, %v3706
      %v3711 = vsel %vm2486, %v3700, 0
      %3713 = vmatprep.subr.bf16.mxu0 0
      %3714 = vmatpush1.bf16.msra.mxu0 0
      %3715 = vmatprep.subr.bf16.mxu0 0
      %3716 = vmatpush1.bf16.msra.mxu0 0
      %3717 = vmatprep.subr.bf16.mxu0 0
      %3718 = vmatpush1.bf16.msra.mxu0 0
      %3719 = vmatprep.subr.bf16.mxu0 0
      %3720 = vmatpush1.bf16.msra.mxu0 0
      %3721 = vmatprep.subr.bf16.mxu0 0
      %3722 = vmatpush1.bf16.msra.mxu0 0
      %3723 = vmatprep.subr.bf16.mxu0 0
      %3724 = vmatpush1.bf16.msra.mxu0 0
      %3725 = vmatprep.subr.bf16.mxu0 0
      %3726 = vmatpush1.bf16.msra.mxu0 0
      %3727 = vmatprep.subr.bf16.mxu0 0
      %3728 = vmatpush1.bf16.msra.mxu0 %v3708
      %3729 = vmatprep.subr.bf16.mxu0 0
      %3730 = vmatpush2.bf16.msra.mxu0 0
      %3731 = vmatprep.subr.bf16.mxu0 0
      %3732 = vmatpush2.bf16.msra.mxu0 0
      %3733 = vmatprep.subr.bf16.mxu0 0
      %3734 = vmatpush2.bf16.msra.mxu0 0
      %3735 = vmatprep.subr.bf16.mxu0 0
      %3736 = vmatpush2.bf16.msra.mxu0 0
      %3737 = vmatprep.subr.bf16.mxu0 0
      %3738 = vmatpush2.bf16.msra.mxu0 0
      %3739 = vmatprep.subr.bf16.mxu0 0
      %3740 = vmatpush2.bf16.msra.mxu0 0
      %3741 = vmatprep.subr.bf16.mxu0 0
      %3742 = vmatpush2.bf16.msra.mxu0 0
      %3743 = vmatprep.subr.bf16.mxu0 0
      %3744 = vmatpush2.bf16.msra.mxu0 0
      %3745 = vmatprep.mubr.bf16.mxu0 0
      %3746 = vmatmul.mubr.bf16.gmra.mxu0 %v3711
      %v3747 = vpop.f32.mrf.mxu0
      %v3748 = vadd.f32 0.0, %v3747
      %v3749 = vpop.f32.mrf.mxu0
      %v3750 = vpop.f32.mrf.mxu0
      %v3751 = vpop.f32.mrf.mxu0
      %3752 = vdwg.mxu0
      %v3753 = vadd.f32 %v3476, %v3748
      %s3754 = scalar_lea.vmem %s3, 320
      %v3755 = vld [vmem:[%s3754] sm:$0xf]
      %v3756 = vld [vmem:[%s3754 + $0x4] sm:$0xf]
      %v3757 = vld [vmem:[%s3754 + $0x8] sm:$0xf]
      %v3758 = vld [vmem:[%s3754 + $0xc] sm:$0xf]
      %v3759 = vld [vmem:[%s3754 + $0x10] sm:$0xf]
      %v3760 = vld [vmem:[%s3754 + $0x14] sm:$0xf]
      %v3761 = vld [vmem:[%s3754 + $0x18] sm:$0xf]
      %v3762 = vld [vmem:[%s3754 + $0x1c] sm:$0xf]
      %v3763 = vld [vmem:[%s3754 + $0x20] sm:$0xf]
      %v3764 = vld [vmem:[%s3754 + $0x24] sm:$0xf]
      %v3765 = vld [vmem:[%s3754 + $0x28] sm:$0xf]
      %v3766 = vld [vmem:[%s3754 + $0x2c] sm:$0xf]
      %v3767 = vld [vmem:[%s3754 + $0x30] sm:$0xf]
      %v3768 = vld [vmem:[%s3754 + $0x34] sm:$0xf]
      %v3769 = vld [vmem:[%s3754 + $0x38] sm:$0xf]
      %v3770 = vld [vmem:[%s3754 + $0x3c] sm:$0xf]
      %s3771 = scalar_lea.vmem %s4, 5
      %v3772 = vld [vmem:[%s3771] sm:$0x1]
      %v3774 = vlaneseq
      %v3775 = vshrl.u32 %v3774, 7
      %v3776 = vsub.s32 0, %v3775
      %v3777 = vrot.slane %v3772, %v3776
      %v3795 = vunpack.c.l.b16 %v3755
      %v3796 = vunpack.c.l.b16 %v3756
      %v3797 = vunpack.c.l.b16 %v3757
      %v3798 = vunpack.c.l.b16 %v3758
      %v3799 = vunpack.c.l.b16 %v3759
      %v3800 = vunpack.c.l.b16 %v3760
      %v3801 = vunpack.c.l.b16 %v3761
      %v3802 = vunpack.c.l.b16 %v3762
      %v3803 = vunpack.c.l.b16 %v3763
      %v3804 = vunpack.c.l.b16 %v3764
      %v3805 = vunpack.c.l.b16 %v3765
      %v3806 = vunpack.c.l.b16 %v3766
      %v3807 = vunpack.c.l.b16 %v3767
      %v3808 = vunpack.c.l.b16 %v3768
      %v3809 = vunpack.c.l.b16 %v3769
      %v3810 = vunpack.c.l.b16 %v3770
      %v3811 = vpack.c.b16 %v3796, %v3795
      %v3812 = vpack.c.b16 %v3798, %v3797
      %v3813 = vpack.c.b16 %v3800, %v3799
      %v3814 = vpack.c.b16 %v3802, %v3801
      %v3815 = vpack.c.b16 %v3804, %v3803
      %v3816 = vpack.c.b16 %v3806, %v3805
      %v3817 = vpack.c.b16 %v3808, %v3807
      %v3818 = vpack.c.b16 %v3810, %v3809
      %3827 = vmatprep.subr.bf16.mxu0 0
      %3828 = vmatpush1.bf16.msra.mxu0 %v3818
      %3829 = vmatprep.subr.bf16.mxu0 0
      %3830 = vmatpush1.bf16.msra.mxu0 %v3817
      %3831 = vmatprep.subr.bf16.mxu0 0
      %3832 = vmatpush1.bf16.msra.mxu0 %v3816
      %3833 = vmatprep.subr.bf16.mxu0 0
      %3834 = vmatpush1.bf16.msra.mxu0 %v3815
      %3835 = vmatprep.subr.bf16.mxu0 0
      %3836 = vmatpush1.bf16.msra.mxu0 %v3814
      %3837 = vmatprep.subr.bf16.mxu0 0
      %3838 = vmatpush1.bf16.msra.mxu0 %v3813
      %3839 = vmatprep.subr.bf16.mxu0 0
      %3840 = vmatpush1.bf16.msra.mxu0 %v3812
      %3841 = vmatprep.subr.bf16.mxu0 0
      %3842 = vmatpush1.bf16.msra.mxu0 %v3811
      %3843 = vmatprep.subr.bf16.mxu0 0
      %3844 = vmatpush2.bf16.msra.mxu0 0
      %3845 = vmatprep.subr.bf16.mxu0 0
      %3846 = vmatpush2.bf16.msra.mxu0 0
      %3847 = vmatprep.subr.bf16.mxu0 0
      %3848 = vmatpush2.bf16.msra.mxu0 0
      %3849 = vmatprep.subr.bf16.mxu0 0
      %3850 = vmatpush2.bf16.msra.mxu0 0
      %3851 = vmatprep.subr.bf16.mxu0 0
      %3852 = vmatpush2.bf16.msra.mxu0 0
      %3853 = vmatprep.subr.bf16.mxu0 0
      %3854 = vmatpush2.bf16.msra.mxu0 0
      %3855 = vmatprep.subr.bf16.mxu0 0
      %3856 = vmatpush2.bf16.msra.mxu0 0
      %3857 = vmatprep.subr.bf16.mxu0 0
      %3858 = vmatpush2.bf16.msra.mxu0 0
      %3859 = vmatprep.mubr.bf16.mxu0 0
      %3860 = vmatmul.mubr.bf16.gmra.mxu0 %v2362
      %v3861 = vpop.f32.mrf.mxu0
      %v3862 = vadd.f32 %v3777, %v3861
      %v3863 = vpop.f32.mrf.mxu0
      %v3864 = vpop.f32.mrf.mxu0
      %v3865 = vpop.f32.mrf.mxu0
      %3866 = vdwg.mxu0
      %v3867 = vmul.f32 %v3862, 0.25
      %s3868 = scalar_lea.vmem [#allocation2], 20
      %v3869 = vld [vmem:[%s3868] sm:$0xf]
      %s3870 = scalar_lea.vmem [#allocation3], 20
      %v3871 = vld [vmem:[%s3870] sm:$0xf]
      %v3872 = vpack.c.bf16 %v3867, %v3867
      %v3874 = vsel %vm2486, %v3872, 0
      %v3877 = vsel %vm2486, %v3869, 0
      %3879 = vmatprep.subr.bf16.mxu0 0
      %3880 = vmatpush1.bf16.xpose.msra.mxu0 0
      %3881 = vmatprep.subr.bf16.mxu0 0
      %3882 = vmatpush1.bf16.xpose.msra.mxu0 0
      %3883 = vmatprep.subr.bf16.mxu0 0
      %3884 = vmatpush1.bf16.xpose.msra.mxu0 0
      %3885 = vmatprep.subr.bf16.mxu0 0
      %3886 = vmatpush1.bf16.xpose.msra.mxu0 0
      %3887 = vmatprep.subr.bf16.mxu0 0
      %3888 = vmatpush1.bf16.xpose.msra.mxu0 0
      %3889 = vmatprep.subr.bf16.mxu0 0
      %3890 = vmatpush1.bf16.xpose.msra.mxu0 0
      %3891 = vmatprep.subr.bf16.mxu0 0
      %3892 = vmatpush1.bf16.xpose.msra.mxu0 0
      %3893 = vmatprep.subr.bf16.mxu0 0
      %3894 = vmatpush1.bf16.xpose.msra.mxu0 %v3877
      %3895 = vmatprep.subr.bf16.mxu0 0
      %3896 = vmatpush2.bf16.xpose.msra.mxu0 0
      %3897 = vmatprep.subr.bf16.mxu0 0
      %3898 = vmatpush2.bf16.xpose.msra.mxu0 0
      %3899 = vmatprep.subr.bf16.mxu0 0
      %3900 = vmatpush2.bf16.xpose.msra.mxu0 0
      %3901 = vmatprep.subr.bf16.mxu0 0
      %3902 = vmatpush2.bf16.xpose.msra.mxu0 0
      %3903 = vmatprep.subr.bf16.mxu0 0
      %3904 = vmatpush2.bf16.xpose.msra.mxu0 0
      %3905 = vmatprep.subr.bf16.mxu0 0
      %3906 = vmatpush2.bf16.xpose.msra.mxu0 0
      %3907 = vmatprep.subr.bf16.mxu0 0
      %3908 = vmatpush2.bf16.xpose.msra.mxu0 0
      %3909 = vmatprep.subr.bf16.mxu0 0
      %3910 = vmatpush2.bf16.xpose.msra.mxu0 0
      %3911 = vmatprep.mubr.bf16.mxu0 0
      %3912 = vmatmul.mubr.bf16.gmra.mxu0 %v3874
      %v3913 = vpop.f32.mrf.mxu0
      %v3914 = vadd.f32 0.0, %v3913
      %v3915 = vpop.f32.mrf.mxu0
      %v3916 = vpop.f32.mrf.mxu0
      %v3917 = vpop.f32.mrf.mxu0
      %3918 = vdwg.mxu0
      %v3919 = vsel %vm2533, %v3914, -inf
      %3920 = vmax.xlane.f32.xlu0 %v3919
      %v3921 = vpop.xlane.xlu0 %3920
      %v3922 = vsub.f32 %v3914, %v3921
      %v3923 = vmul.f32 %v3922, 1.442695
      %v3924 = vpow.pop %v3923
      %v3925 = vsel %vm2533, %v3924, 0.0
      %3926 = vadd.xlane.f32.xlu0 %v3925
      %v3927 = vpop.xlane.xlu0 %3926
      %v3928 = vrcp.pop %v3927
      %v3929 = vmul.f32 %v3924, %v3928
      %v3930 = vpack.c.bf16 %v3929, %v3929
      %v3932 = vsel %vm2533, %v3930, 0
      %v3935 = vsel %vm2549, %v3871, 0
      %3937 = vmatprep.subr.bf16.mxu0 0
      %3938 = vmatpush1.bf16.msra.mxu0 0
      %3939 = vmatprep.subr.bf16.mxu0 0
      %3940 = vmatpush1.bf16.msra.mxu0 0
      %3941 = vmatprep.subr.bf16.mxu0 0
      %3942 = vmatpush1.bf16.msra.mxu0 0
      %3943 = vmatprep.subr.bf16.mxu0 0
      %3944 = vmatpush1.bf16.msra.mxu0 0
      %3945 = vmatprep.subr.bf16.mxu0 0
      %3946 = vmatpush1.bf16.msra.mxu0 0
      %3947 = vmatprep.subr.bf16.mxu0 0
      %3948 = vmatpush1.bf16.msra.mxu0 0
      %3949 = vmatprep.subr.bf16.mxu0 0
      %3950 = vmatpush1.bf16.msra.mxu0 0
      %3951 = vmatprep.subr.bf16.mxu0 0
      %3952 = vmatpush1.bf16.msra.mxu0 %v3935
      %3953 = vmatprep.subr.bf16.mxu0 0
      %3954 = vmatpush2.bf16.msra.mxu0 0
      %3955 = vmatprep.subr.bf16.mxu0 0
      %3956 = vmatpush2.bf16.msra.mxu0 0
      %3957 = vmatprep.subr.bf16.mxu0 0
      %3958 = vmatpush2.bf16.msra.mxu0 0
      %3959 = vmatprep.subr.bf16.mxu0 0
      %3960 = vmatpush2.bf16.msra.mxu0 0
      %3961 = vmatprep.subr.bf16.mxu0 0
      %3962 = vmatpush2.bf16.msra.mxu0 0
      %3963 = vmatprep.subr.bf16.mxu0 0
      %3964 = vmatpush2.bf16.msra.mxu0 0
      %3965 = vmatprep.subr.bf16.mxu0 0
      %3966 = vmatpush2.bf16.msra.mxu0 0
      %3967 = vmatprep.subr.bf16.mxu0 0
      %3968 = vmatpush2.bf16.msra.mxu0 0
      %3969 = vmatprep.mubr.bf16.mxu0 0
      %3970 = vmatmul.mubr.bf16.gmra.mxu0 %v3932
      %v3971 = vpop.f32.mrf.mxu0
      %v3972 = vadd.f32 0.0, %v3971
      %v3973 = vpop.f32.mrf.mxu0
      %v3974 = vpop.f32.mrf.mxu0
      %v3975 = vpop.f32.mrf.mxu0
      %3976 = vdwg.mxu0
      %v3977 = vpack.c.bf16 %v3972, %v3972
      %s3978 = scalar_lea.vmem %s9, 40
      %v3979 = vld [vmem:[%s3978] sm:$0xf]
      %v3980 = vld [vmem:[%s3978 + $0x4] sm:$0xf]
      %v3983 = vunpack.c.l.b16 %v3979
      %v3984 = vunpack.c.l.b16 %v3980
      %v3985 = vpack.c.b16 %v3984, %v3983
      %v3988 = vsel %vm2486, %v3977, 0
      %3990 = vmatprep.subr.bf16.mxu0 0
      %3991 = vmatpush1.bf16.msra.mxu0 0
      %3992 = vmatprep.subr.bf16.mxu0 0
      %3993 = vmatpush1.bf16.msra.mxu0 0
      %3994 = vmatprep.subr.bf16.mxu0 0
      %3995 = vmatpush1.bf16.msra.mxu0 0
      %3996 = vmatprep.subr.bf16.mxu0 0
      %3997 = vmatpush1.bf16.msra.mxu0 0
      %3998 = vmatprep.subr.bf16.mxu0 0
      %3999 = vmatpush1.bf16.msra.mxu0 0
      %4000 = vmatprep.subr.bf16.mxu0 0
      %4001 = vmatpush1.bf16.msra.mxu0 0
      %4002 = vmatprep.subr.bf16.mxu0 0
      %4003 = vmatpush1.bf16.msra.mxu0 0
      %4004 = vmatprep.subr.bf16.mxu0 0
      %4005 = vmatpush1.bf16.msra.mxu0 %v3985
      %4006 = vmatprep.subr.bf16.mxu0 0
      %4007 = vmatpush2.bf16.msra.mxu0 0
      %4008 = vmatprep.subr.bf16.mxu0 0
      %4009 = vmatpush2.bf16.msra.mxu0 0
      %4010 = vmatprep.subr.bf16.mxu0 0
      %4011 = vmatpush2.bf16.msra.mxu0 0
      %4012 = vmatprep.subr.bf16.mxu0 0
      %4013 = vmatpush2.bf16.msra.mxu0 0
      %4014 = vmatprep.subr.bf16.mxu0 0
      %4015 = vmatpush2.bf16.msra.mxu0 0
      %4016 = vmatprep.subr.bf16.mxu0 0
      %4017 = vmatpush2.bf16.msra.mxu0 0
      %4018 = vmatprep.subr.bf16.mxu0 0
      %4019 = vmatpush2.bf16.msra.mxu0 0
      %4020 = vmatprep.subr.bf16.mxu0 0
      %4021 = vmatpush2.bf16.msra.mxu0 0
      %4022 = vmatprep.mubr.bf16.mxu0 0
      %4023 = vmatmul.mubr.bf16.gmra.mxu0 %v3988
      %v4024 = vpop.f32.mrf.mxu0
      %v4025 = vadd.f32 0.0, %v4024
      %v4026 = vpop.f32.mrf.mxu0
      %v4027 = vpop.f32.mrf.mxu0
      %v4028 = vpop.f32.mrf.mxu0
      %4029 = vdwg.mxu0
      %v4030 = vadd.f32 %v3753, %v4025
      %s4031 = scalar_lea.vmem %s3, 384
      %v4032 = vld [vmem:[%s4031] sm:$0xf]
      %v4033 = vld [vmem:[%s4031 + $0x4] sm:$0xf]
      %v4034 = vld [vmem:[%s4031 + $0x8] sm:$0xf]
      %v4035 = vld [vmem:[%s4031 + $0xc] sm:$0xf]
      %v4036 = vld [vmem:[%s4031 + $0x10] sm:$0xf]
      %v4037 = vld [vmem:[%s4031 + $0x14] sm:$0xf]
      %v4038 = vld [vmem:[%s4031 + $0x18] sm:$0xf]
      %v4039 = vld [vmem:[%s4031 + $0x1c] sm:$0xf]
      %v4040 = vld [vmem:[%s4031 + $0x20] sm:$0xf]
      %v4041 = vld [vmem:[%s4031 + $0x24] sm:$0xf]
      %v4042 = vld [vmem:[%s4031 + $0x28] sm:$0xf]
      %v4043 = vld [vmem:[%s4031 + $0x2c] sm:$0xf]
      %v4044 = vld [vmem:[%s4031 + $0x30] sm:$0xf]
      %v4045 = vld [vmem:[%s4031 + $0x34] sm:$0xf]
      %v4046 = vld [vmem:[%s4031 + $0x38] sm:$0xf]
      %v4047 = vld [vmem:[%s4031 + $0x3c] sm:$0xf]
      %s4048 = scalar_lea.vmem %s4, 6
      %v4049 = vld [vmem:[%s4048] sm:$0x1]
      %v4051 = vlaneseq
      %v4052 = vshrl.u32 %v4051, 7
      %v4053 = vsub.s32 0, %v4052
      %v4054 = vrot.slane %v4049, %v4053
      %v4072 = vunpack.c.l.b16 %v4032
      %v4073 = vunpack.c.l.b16 %v4033
      %v4074 = vunpack.c.l.b16 %v4034
      %v4075 = vunpack.c.l.b16 %v4035
      %v4076 = vunpack.c.l.b16 %v4036
      %v4077 = vunpack.c.l.b16 %v4037
      %v4078 = vunpack.c.l.b16 %v4038
      %v4079 = vunpack.c.l.b16 %v4039
      %v4080 = vunpack.c.l.b16 %v4040
      %v4081 = vunpack.c.l.b16 %v4041
      %v4082 = vunpack.c.l.b16 %v4042
      %v4083 = vunpack.c.l.b16 %v4043
      %v4084 = vunpack.c.l.b16 %v4044
      %v4085 = vunpack.c.l.b16 %v4045
      %v4086 = vunpack.c.l.b16 %v4046
      %v4087 = vunpack.c.l.b16 %v4047
      %v4088 = vpack.c.b16 %v4073, %v4072
      %v4089 = vpack.c.b16 %v4075, %v4074
      %v4090 = vpack.c.b16 %v4077, %v4076
      %v4091 = vpack.c.b16 %v4079, %v4078
      %v4092 = vpack.c.b16 %v4081, %v4080
      %v4093 = vpack.c.b16 %v4083, %v4082
      %v4094 = vpack.c.b16 %v4085, %v4084
      %v4095 = vpack.c.b16 %v4087, %v4086
      %4104 = vmatprep.subr.bf16.mxu0 0
      %4105 = vmatpush1.bf16.msra.mxu0 %v4095
      %4106 = vmatprep.subr.bf16.mxu0 0
      %4107 = vmatpush1.bf16.msra.mxu0 %v4094
      %4108 = vmatprep.subr.bf16.mxu0 0
      %4109 = vmatpush1.bf16.msra.mxu0 %v4093
      %4110 = vmatprep.subr.bf16.mxu0 0
      %4111 = vmatpush1.bf16.msra.mxu0 %v4092
      %4112 = vmatprep.subr.bf16.mxu0 0
      %4113 = vmatpush1.bf16.msra.mxu0 %v4091
      %4114 = vmatprep.subr.bf16.mxu0 0
      %4115 = vmatpush1.bf16.msra.mxu0 %v4090
      %4116 = vmatprep.subr.bf16.mxu0 0
      %4117 = vmatpush1.bf16.msra.mxu0 %v4089
      %4118 = vmatprep.subr.bf16.mxu0 0
      %4119 = vmatpush1.bf16.msra.mxu0 %v4088
      %4120 = vmatprep.subr.bf16.mxu0 0
      %4121 = vmatpush2.bf16.msra.mxu0 0
      %4122 = vmatprep.subr.bf16.mxu0 0
      %4123 = vmatpush2.bf16.msra.mxu0 0
      %4124 = vmatprep.subr.bf16.mxu0 0
      %4125 = vmatpush2.bf16.msra.mxu0 0
      %4126 = vmatprep.subr.bf16.mxu0 0
      %4127 = vmatpush2.bf16.msra.mxu0 0
      %4128 = vmatprep.subr.bf16.mxu0 0
      %4129 = vmatpush2.bf16.msra.mxu0 0
      %4130 = vmatprep.subr.bf16.mxu0 0
      %4131 = vmatpush2.bf16.msra.mxu0 0
      %4132 = vmatprep.subr.bf16.mxu0 0
      %4133 = vmatpush2.bf16.msra.mxu0 0
      %4134 = vmatprep.subr.bf16.mxu0 0
      %4135 = vmatpush2.bf16.msra.mxu0 0
      %4136 = vmatprep.mubr.bf16.mxu0 0
      %4137 = vmatmul.mubr.bf16.gmra.mxu0 %v2362
      %v4138 = vpop.f32.mrf.mxu0
      %v4139 = vadd.f32 %v4054, %v4138
      %v4140 = vpop.f32.mrf.mxu0
      %v4141 = vpop.f32.mrf.mxu0
      %v4142 = vpop.f32.mrf.mxu0
      %4143 = vdwg.mxu0
      %v4144 = vmul.f32 %v4139, 0.25
      %s4145 = scalar_lea.vmem [#allocation2], 24
      %v4146 = vld [vmem:[%s4145] sm:$0xf]
      %s4147 = scalar_lea.vmem [#allocation3], 24
      %v4148 = vld [vmem:[%s4147] sm:$0xf]
      %v4149 = vpack.c.bf16 %v4144, %v4144
      %v4151 = vsel %vm2486, %v4149, 0
      %v4154 = vsel %vm2486, %v4146, 0
      %4156 = vmatprep.subr.bf16.mxu0 0
      %4157 = vmatpush1.bf16.xpose.msra.mxu0 0
      %4158 = vmatprep.subr.bf16.mxu0 0
      %4159 = vmatpush1.bf16.xpose.msra.mxu0 0
      %4160 = vmatprep.subr.bf16.mxu0 0
      %4161 = vmatpush1.bf16.xpose.msra.mxu0 0
      %4162 = vmatprep.subr.bf16.mxu0 0
      %4163 = vmatpush1.bf16.xpose.msra.mxu0 0
      %4164 = vmatprep.subr.bf16.mxu0 0
      %4165 = vmatpush1.bf16.xpose.msra.mxu0 0
      %4166 = vmatprep.subr.bf16.mxu0 0
      %4167 = vmatpush1.bf16.xpose.msra.mxu0 0
      %4168 = vmatprep.subr.bf16.mxu0 0
      %4169 = vmatpush1.bf16.xpose.msra.mxu0 0
      %4170 = vmatprep.subr.bf16.mxu0 0
      %4171 = vmatpush1.bf16.xpose.msra.mxu0 %v4154
      %4172 = vmatprep.subr.bf16.mxu0 0
      %4173 = vmatpush2.bf16.xpose.msra.mxu0 0
      %4174 = vmatprep.subr.bf16.mxu0 0
      %4175 = vmatpush2.bf16.xpose.msra.mxu0 0
      %4176 = vmatprep.subr.bf16.mxu0 0
      %4177 = vmatpush2.bf16.xpose.msra.mxu0 0
      %4178 = vmatprep.subr.bf16.mxu0 0
      %4179 = vmatpush2.bf16.xpose.msra.mxu0 0
      %4180 = vmatprep.subr.bf16.mxu0 0
      %4181 = vmatpush2.bf16.xpose.msra.mxu0 0
      %4182 = vmatprep.subr.bf16.mxu0 0
      %4183 = vmatpush2.bf16.xpose.msra.mxu0 0
      %4184 = vmatprep.subr.bf16.mxu0 0
      %4185 = vmatpush2.bf16.xpose.msra.mxu0 0
      %4186 = vmatprep.subr.bf16.mxu0 0
      %4187 = vmatpush2.bf16.xpose.msra.mxu0 0
      %4188 = vmatprep.mubr.bf16.mxu0 0
      %4189 = vmatmul.mubr.bf16.gmra.mxu0 %v4151
      %v4190 = vpop.f32.mrf.mxu0
      %v4191 = vadd.f32 0.0, %v4190
      %v4192 = vpop.f32.mrf.mxu0
      %v4193 = vpop.f32.mrf.mxu0
      %v4194 = vpop.f32.mrf.mxu0
      %4195 = vdwg.mxu0
      %v4196 = vsel %vm2533, %v4191, -inf
      %4197 = vmax.xlane.f32.xlu0 %v4196
      %v4198 = vpop.xlane.xlu0 %4197
      %v4199 = vsub.f32 %v4191, %v4198
      %v4200 = vmul.f32 %v4199, 1.442695
      %v4201 = vpow.pop %v4200
      %v4202 = vsel %vm2533, %v4201, 0.0
      %4203 = vadd.xlane.f32.xlu0 %v4202
      %v4204 = vpop.xlane.xlu0 %4203
      %v4205 = vrcp.pop %v4204
      %v4206 = vmul.f32 %v4201, %v4205
      %v4207 = vpack.c.bf16 %v4206, %v4206
      %v4209 = vsel %vm2533, %v4207, 0
      %v4212 = vsel %vm2549, %v4148, 0
      %4214 = vmatprep.subr.bf16.mxu0 0
      %4215 = vmatpush1.bf16.msra.mxu0 0
      %4216 = vmatprep.subr.bf16.mxu0 0
      %4217 = vmatpush1.bf16.msra.mxu0 0
      %4218 = vmatprep.subr.bf16.mxu0 0
      %4219 = vmatpush1.bf16.msra.mxu0 0
      %4220 = vmatprep.subr.bf16.mxu0 0
      %4221 = vmatpush1.bf16.msra.mxu0 0
      %4222 = vmatprep.subr.bf16.mxu0 0
      %4223 = vmatpush1.bf16.msra.mxu0 0
      %4224 = vmatprep.subr.bf16.mxu0 0
      %4225 = vmatpush1.bf16.msra.mxu0 0
      %4226 = vmatprep.subr.bf16.mxu0 0
      %4227 = vmatpush1.bf16.msra.mxu0 0
      %4228 = vmatprep.subr.bf16.mxu0 0
      %4229 = vmatpush1.bf16.msra.mxu0 %v4212
      %4230 = vmatprep.subr.bf16.mxu0 0
      %4231 = vmatpush2.bf16.msra.mxu0 0
      %4232 = vmatprep.subr.bf16.mxu0 0
      %4233 = vmatpush2.bf16.msra.mxu0 0
      %4234 = vmatprep.subr.bf16.mxu0 0
      %4235 = vmatpush2.bf16.msra.mxu0 0
      %4236 = vmatprep.subr.bf16.mxu0 0
      %4237 = vmatpush2.bf16.msra.mxu0 0
      %4238 = vmatprep.subr.bf16.mxu0 0
      %4239 = vmatpush2.bf16.msra.mxu0 0
      %4240 = vmatprep.subr.bf16.mxu0 0
      %4241 = vmatpush2.bf16.msra.mxu0 0
      %4242 = vmatprep.subr.bf16.mxu0 0
      %4243 = vmatpush2.bf16.msra.mxu0 0
      %4244 = vmatprep.subr.bf16.mxu0 0
      %4245 = vmatpush2.bf16.msra.mxu0 0
      %4246 = vmatprep.mubr.bf16.mxu0 0
      %4247 = vmatmul.mubr.bf16.gmra.mxu0 %v4209
      %v4248 = vpop.f32.mrf.mxu0
      %v4249 = vadd.f32 0.0, %v4248
      %v4250 = vpop.f32.mrf.mxu0
      %v4251 = vpop.f32.mrf.mxu0
      %v4252 = vpop.f32.mrf.mxu0
      %4253 = vdwg.mxu0
      %v4254 = vpack.c.bf16 %v4249, %v4249
      %s4255 = scalar_lea.vmem %s9, 48
      %v4256 = vld [vmem:[%s4255] sm:$0xf]
      %v4257 = vld [vmem:[%s4255 + $0x4] sm:$0xf]
      %v4260 = vunpack.c.l.b16 %v4256
      %v4261 = vunpack.c.l.b16 %v4257
      %v4262 = vpack.c.b16 %v4261, %v4260
      %v4265 = vsel %vm2486, %v4254, 0
      %4267 = vmatprep.subr.bf16.mxu0 0
      %4268 = vmatpush1.bf16.msra.mxu0 0
      %4269 = vmatprep.subr.bf16.mxu0 0
      %4270 = vmatpush1.bf16.msra.mxu0 0
      %4271 = vmatprep.subr.bf16.mxu0 0
      %4272 = vmatpush1.bf16.msra.mxu0 0
      %4273 = vmatprep.subr.bf16.mxu0 0
      %4274 = vmatpush1.bf16.msra.mxu0 0
      %4275 = vmatprep.subr.bf16.mxu0 0
      %4276 = vmatpush1.bf16.msra.mxu0 0
      %4277 = vmatprep.subr.bf16.mxu0 0
      %4278 = vmatpush1.bf16.msra.mxu0 0
      %4279 = vmatprep.subr.bf16.mxu0 0
      %4280 = vmatpush1.bf16.msra.mxu0 0
      %4281 = vmatprep.subr.bf16.mxu0 0
      %4282 = vmatpush1.bf16.msra.mxu0 %v4262
      %4283 = vmatprep.subr.bf16.mxu0 0
      %4284 = vmatpush2.bf16.msra.mxu0 0
      %4285 = vmatprep.subr.bf16.mxu0 0
      %4286 = vmatpush2.bf16.msra.mxu0 0
      %4287 = vmatprep.subr.bf16.mxu0 0
      %4288 = vmatpush2.bf16.msra.mxu0 0
      %4289 = vmatprep.subr.bf16.mxu0 0
      %4290 = vmatpush2.bf16.msra.mxu0 0
      %4291 = vmatprep.subr.bf16.mxu0 0
      %4292 = vmatpush2.bf16.msra.mxu0 0
      %4293 = vmatprep.subr.bf16.mxu0 0
      %4294 = vmatpush2.bf16.msra.mxu0 0
      %4295 = vmatprep.subr.bf16.mxu0 0
      %4296 = vmatpush2.bf16.msra.mxu0 0
      %4297 = vmatprep.subr.bf16.mxu0 0
      %4298 = vmatpush2.bf16.msra.mxu0 0
      %4299 = vmatprep.mubr.bf16.mxu0 0
      %4300 = vmatmul.mubr.bf16.gmra.mxu0 %v4265
      %v4301 = vpop.f32.mrf.mxu0
      %v4302 = vadd.f32 0.0, %v4301
      %v4303 = vpop.f32.mrf.mxu0
      %v4304 = vpop.f32.mrf.mxu0
      %v4305 = vpop.f32.mrf.mxu0
      %4306 = vdwg.mxu0
      %v4307 = vadd.f32 %v4030, %v4302
      %s4308 = scalar_lea.vmem %s3, 448
      %v4309 = vld [vmem:[%s4308] sm:$0xf]
      %v4310 = vld [vmem:[%s4308 + $0x4] sm:$0xf]
      %v4311 = vld [vmem:[%s4308 + $0x8] sm:$0xf]
      %v4312 = vld [vmem:[%s4308 + $0xc] sm:$0xf]
      %v4313 = vld [vmem:[%s4308 + $0x10] sm:$0xf]
      %v4314 = vld [vmem:[%s4308 + $0x14] sm:$0xf]
      %v4315 = vld [vmem:[%s4308 + $0x18] sm:$0xf]
      %v4316 = vld [vmem:[%s4308 + $0x1c] sm:$0xf]
      %v4317 = vld [vmem:[%s4308 + $0x20] sm:$0xf]
      %v4318 = vld [vmem:[%s4308 + $0x24] sm:$0xf]
      %v4319 = vld [vmem:[%s4308 + $0x28] sm:$0xf]
      %v4320 = vld [vmem:[%s4308 + $0x2c] sm:$0xf]
      %v4321 = vld [vmem:[%s4308 + $0x30] sm:$0xf]
      %v4322 = vld [vmem:[%s4308 + $0x34] sm:$0xf]
      %v4323 = vld [vmem:[%s4308 + $0x38] sm:$0xf]
      %v4324 = vld [vmem:[%s4308 + $0x3c] sm:$0xf]
      %s4325 = scalar_lea.vmem %s4, 7
      %v4326 = vld [vmem:[%s4325] sm:$0x1]
      %v4328 = vlaneseq
      %v4329 = vshrl.u32 %v4328, 7
      %v4330 = vsub.s32 0, %v4329
      %v4331 = vrot.slane %v4326, %v4330
      %v4349 = vunpack.c.l.b16 %v4309
      %v4350 = vunpack.c.l.b16 %v4310
      %v4351 = vunpack.c.l.b16 %v4311
      %v4352 = vunpack.c.l.b16 %v4312
      %v4353 = vunpack.c.l.b16 %v4313
      %v4354 = vunpack.c.l.b16 %v4314
      %v4355 = vunpack.c.l.b16 %v4315
      %v4356 = vunpack.c.l.b16 %v4316
      %v4357 = vunpack.c.l.b16 %v4317
      %v4358 = vunpack.c.l.b16 %v4318
      %v4359 = vunpack.c.l.b16 %v4319
      %v4360 = vunpack.c.l.b16 %v4320
      %v4361 = vunpack.c.l.b16 %v4321
      %v4362 = vunpack.c.l.b16 %v4322
      %v4363 = vunpack.c.l.b16 %v4323
      %v4364 = vunpack.c.l.b16 %v4324
      %v4365 = vpack.c.b16 %v4350, %v4349
      %v4366 = vpack.c.b16 %v4352, %v4351
      %v4367 = vpack.c.b16 %v4354, %v4353
      %v4368 = vpack.c.b16 %v4356, %v4355
      %v4369 = vpack.c.b16 %v4358, %v4357
      %v4370 = vpack.c.b16 %v4360, %v4359
      %v4371 = vpack.c.b16 %v4362, %v4361
      %v4372 = vpack.c.b16 %v4364, %v4363
      %4381 = vmatprep.subr.bf16.mxu0 0
      %4382 = vmatpush1.bf16.msra.mxu0 %v4372
      %4383 = vmatprep.subr.bf16.mxu0 0
      %4384 = vmatpush1.bf16.msra.mxu0 %v4371
      %4385 = vmatprep.subr.bf16.mxu0 0
      %4386 = vmatpush1.bf16.msra.mxu0 %v4370
      %4387 = vmatprep.subr.bf16.mxu0 0
      %4388 = vmatpush1.bf16.msra.mxu0 %v4369
      %4389 = vmatprep.subr.bf16.mxu0 0
      %4390 = vmatpush1.bf16.msra.mxu0 %v4368
      %4391 = vmatprep.subr.bf16.mxu0 0
      %4392 = vmatpush1.bf16.msra.mxu0 %v4367
      %4393 = vmatprep.subr.bf16.mxu0 0
      %4394 = vmatpush1.bf16.msra.mxu0 %v4366
      %4395 = vmatprep.subr.bf16.mxu0 0
      %4396 = vmatpush1.bf16.msra.mxu0 %v4365
      %4397 = vmatprep.subr.bf16.mxu0 0
      %4398 = vmatpush2.bf16.msra.mxu0 0
      %4399 = vmatprep.subr.bf16.mxu0 0
      %4400 = vmatpush2.bf16.msra.mxu0 0
      %4401 = vmatprep.subr.bf16.mxu0 0
      %4402 = vmatpush2.bf16.msra.mxu0 0
      %4403 = vmatprep.subr.bf16.mxu0 0
      %4404 = vmatpush2.bf16.msra.mxu0 0
      %4405 = vmatprep.subr.bf16.mxu0 0
      %4406 = vmatpush2.bf16.msra.mxu0 0
      %4407 = vmatprep.subr.bf16.mxu0 0
      %4408 = vmatpush2.bf16.msra.mxu0 0
      %4409 = vmatprep.subr.bf16.mxu0 0
      %4410 = vmatpush2.bf16.msra.mxu0 0
      %4411 = vmatprep.subr.bf16.mxu0 0
      %4412 = vmatpush2.bf16.msra.mxu0 0
      %4413 = vmatprep.mubr.bf16.mxu0 0
      %4414 = vmatmul.mubr.bf16.gmra.mxu0 %v2362
      %v4415 = vpop.f32.mrf.mxu0
      %v4416 = vadd.f32 %v4331, %v4415
      %v4417 = vpop.f32.mrf.mxu0
      %v4418 = vpop.f32.mrf.mxu0
      %v4419 = vpop.f32.mrf.mxu0
      %4420 = vdwg.mxu0
      %v4421 = vmul.f32 %v4416, 0.25
      %s4422 = scalar_lea.vmem [#allocation2], 28
      %v4423 = vld [vmem:[%s4422] sm:$0xf]
      %s4424 = scalar_lea.vmem [#allocation3], 28
      %v4425 = vld [vmem:[%s4424] sm:$0xf]
      %v4426 = vpack.c.bf16 %v4421, %v4421
      %v4428 = vsel %vm2486, %v4426, 0
      %v4431 = vsel %vm2486, %v4423, 0
      %4433 = vmatprep.subr.bf16.mxu0 0
      %4434 = vmatpush1.bf16.xpose.msra.mxu0 0
      %4435 = vmatprep.subr.bf16.mxu0 0
      %4436 = vmatpush1.bf16.xpose.msra.mxu0 0
      %4437 = vmatprep.subr.bf16.mxu0 0
      %4438 = vmatpush1.bf16.xpose.msra.mxu0 0
      %4439 = vmatprep.subr.bf16.mxu0 0
      %4440 = vmatpush1.bf16.xpose.msra.mxu0 0
      %4441 = vmatprep.subr.bf16.mxu0 0
      %4442 = vmatpush1.bf16.xpose.msra.mxu0 0
      %4443 = vmatprep.subr.bf16.mxu0 0
      %4444 = vmatpush1.bf16.xpose.msra.mxu0 0
      %4445 = vmatprep.subr.bf16.mxu0 0
      %4446 = vmatpush1.bf16.xpose.msra.mxu0 0
      %4447 = vmatprep.subr.bf16.mxu0 0
      %4448 = vmatpush1.bf16.xpose.msra.mxu0 %v4431
      %4449 = vmatprep.subr.bf16.mxu0 0
      %4450 = vmatpush2.bf16.xpose.msra.mxu0 0
      %4451 = vmatprep.subr.bf16.mxu0 0
      %4452 = vmatpush2.bf16.xpose.msra.mxu0 0
      %4453 = vmatprep.subr.bf16.mxu0 0
      %4454 = vmatpush2.bf16.xpose.msra.mxu0 0
      %4455 = vmatprep.subr.bf16.mxu0 0
      %4456 = vmatpush2.bf16.xpose.msra.mxu0 0
      %4457 = vmatprep.subr.bf16.mxu0 0
      %4458 = vmatpush2.bf16.xpose.msra.mxu0 0
      %4459 = vmatprep.subr.bf16.mxu0 0
      %4460 = vmatpush2.bf16.xpose.msra.mxu0 0
      %4461 = vmatprep.subr.bf16.mxu0 0
      %4462 = vmatpush2.bf16.xpose.msra.mxu0 0
      %4463 = vmatprep.subr.bf16.mxu0 0
      %4464 = vmatpush2.bf16.xpose.msra.mxu0 0
      %4465 = vmatprep.mubr.bf16.mxu0 0
      %4466 = vmatmul.mubr.bf16.gmra.mxu0 %v4428
      %v4467 = vpop.f32.mrf.mxu0
      %v4468 = vadd.f32 0.0, %v4467
      %v4469 = vpop.f32.mrf.mxu0
      %v4470 = vpop.f32.mrf.mxu0
      %v4471 = vpop.f32.mrf.mxu0
      %4472 = vdwg.mxu0
      %v4473 = vsel %vm2533, %v4468, -inf
      %4474 = vmax.xlane.f32.xlu0 %v4473
      %v4475 = vpop.xlane.xlu0 %4474
      %v4476 = vsub.f32 %v4468, %v4475
      %v4477 = vmul.f32 %v4476, 1.442695
      %v4478 = vpow.pop %v4477
      %v4479 = vsel %vm2533, %v4478, 0.0
      %4480 = vadd.xlane.f32.xlu0 %v4479
      %v4481 = vpop.xlane.xlu0 %4480
      %v4482 = vrcp.pop %v4481
      %v4483 = vmul.f32 %v4478, %v4482
      %v4484 = vpack.c.bf16 %v4483, %v4483
      %v4486 = vsel %vm2533, %v4484, 0
      %v4489 = vsel %vm2549, %v4425, 0
      %4491 = vmatprep.subr.bf16.mxu0 0
      %4492 = vmatpush1.bf16.msra.mxu0 0
      %4493 = vmatprep.subr.bf16.mxu0 0
      %4494 = vmatpush1.bf16.msra.mxu0 0
      %4495 = vmatprep.subr.bf16.mxu0 0
      %4496 = vmatpush1.bf16.msra.mxu0 0
      %4497 = vmatprep.subr.bf16.mxu0 0
      %4498 = vmatpush1.bf16.msra.mxu0 0
      %4499 = vmatprep.subr.bf16.mxu0 0
      %4500 = vmatpush1.bf16.msra.mxu0 0
      %4501 = vmatprep.subr.bf16.mxu0 0
      %4502 = vmatpush1.bf16.msra.mxu0 0
      %4503 = vmatprep.subr.bf16.mxu0 0
      %4504 = vmatpush1.bf16.msra.mxu0 0
      %4505 = vmatprep.subr.bf16.mxu0 0
      %4506 = vmatpush1.bf16.msra.mxu0 %v4489
      %4507 = vmatprep.subr.bf16.mxu0 0
      %4508 = vmatpush2.bf16.msra.mxu0 0
      %4509 = vmatprep.subr.bf16.mxu0 0
      %4510 = vmatpush2.bf16.msra.mxu0 0
      %4511 = vmatprep.subr.bf16.mxu0 0
      %4512 = vmatpush2.bf16.msra.mxu0 0
      %4513 = vmatprep.subr.bf16.mxu0 0
      %4514 = vmatpush2.bf16.msra.mxu0 0
      %4515 = vmatprep.subr.bf16.mxu0 0
      %4516 = vmatpush2.bf16.msra.mxu0 0
      %4517 = vmatprep.subr.bf16.mxu0 0
      %4518 = vmatpush2.bf16.msra.mxu0 0
      %4519 = vmatprep.subr.bf16.mxu0 0
      %4520 = vmatpush2.bf16.msra.mxu0 0
      %4521 = vmatprep.subr.bf16.mxu0 0
      %4522 = vmatpush2.bf16.msra.mxu0 0
      %4523 = vmatprep.mubr.bf16.mxu0 0
      %4524 = vmatmul.mubr.bf16.gmra.mxu0 %v4486
      %v4525 = vpop.f32.mrf.mxu0
      %v4526 = vadd.f32 0.0, %v4525
      %v4527 = vpop.f32.mrf.mxu0
      %v4528 = vpop.f32.mrf.mxu0
      %v4529 = vpop.f32.mrf.mxu0
      %4530 = vdwg.mxu0
      %v4531 = vpack.c.bf16 %v4526, %v4526
      %s4532 = scalar_lea.vmem %s9, 56
      %v4533 = vld [vmem:[%s4532] sm:$0xf]
      %v4534 = vld [vmem:[%s4532 + $0x4] sm:$0xf]
      %v4537 = vunpack.c.l.b16 %v4533
      %v4538 = vunpack.c.l.b16 %v4534
      %v4539 = vpack.c.b16 %v4538, %v4537
      %v4542 = vsel %vm2486, %v4531, 0
      %4544 = vmatprep.subr.bf16.mxu0 0
      %4545 = vmatpush1.bf16.msra.mxu0 0
      %4546 = vmatprep.subr.bf16.mxu0 0
      %4547 = vmatpush1.bf16.msra.mxu0 0
      %4548 = vmatprep.subr.bf16.mxu0 0
      %4549 = vmatpush1.bf16.msra.mxu0 0
      %4550 = vmatprep.subr.bf16.mxu0 0
      %4551 = vmatpush1.bf16.msra.mxu0 0
      %4552 = vmatprep.subr.bf16.mxu0 0
      %4553 = vmatpush1.bf16.msra.mxu0 0
      %4554 = vmatprep.subr.bf16.mxu0 0
      %4555 = vmatpush1.bf16.msra.mxu0 0
      %4556 = vmatprep.subr.bf16.mxu0 0
      %4557 = vmatpush1.bf16.msra.mxu0 0
      %4558 = vmatprep.subr.bf16.mxu0 0
      %4559 = vmatpush1.bf16.msra.mxu0 %v4539
      %4560 = vmatprep.subr.bf16.mxu0 0
      %4561 = vmatpush2.bf16.msra.mxu0 0
      %4562 = vmatprep.subr.bf16.mxu0 0
      %4563 = vmatpush2.bf16.msra.mxu0 0
      %4564 = vmatprep.subr.bf16.mxu0 0
      %4565 = vmatpush2.bf16.msra.mxu0 0
      %4566 = vmatprep.subr.bf16.mxu0 0
      %4567 = vmatpush2.bf16.msra.mxu0 0
      %4568 = vmatprep.subr.bf16.mxu0 0
      %4569 = vmatpush2.bf16.msra.mxu0 0
      %4570 = vmatprep.subr.bf16.mxu0 0
      %4571 = vmatpush2.bf16.msra.mxu0 0
      %4572 = vmatprep.subr.bf16.mxu0 0
      %4573 = vmatpush2.bf16.msra.mxu0 0
      %4574 = vmatprep.subr.bf16.mxu0 0
      %4575 = vmatpush2.bf16.msra.mxu0 0
      %4576 = vmatprep.mubr.bf16.mxu0 0
      %4577 = vmatmul.mubr.bf16.gmra.mxu0 %v4542
      %v4578 = vpop.f32.mrf.mxu0
      %v4579 = vadd.f32 0.0, %v4578
      %v4580 = vpop.f32.mrf.mxu0
      %v4581 = vpop.f32.mrf.mxu0
      %v4582 = vpop.f32.mrf.mxu0
      %4583 = vdwg.mxu0
      %v4584 = vadd.f32 %v4307, %v4579
      %4585 = vadd.xlane.f32.xlu0 %v4584
      %v4586 = vpop.xlane.xlu0 %4585
      %v4587 = vrcp.pop 128.0
      %v4588 = vmul.f32 %v4586, %v4587
      %v4589 = vmul.f32 %v4584, %v4584
      %4590 = vadd.xlane.f32.xlu0 %v4589
      %v4591 = vpop.xlane.xlu0 %4590
      %v4592 = vmul.f32 %v4591, %v4587
      %v4593 = vmul.f32 %v4588, %v4588
      %v4594 = vsub.f32 %v4592, %v4593
      %v4595 = vadd.f32 %v4594, 1e-05
      %v4596 = vrsqrt.pop %v4595
      %v4597 = vsub.f32 %v4584, %v4588
      %v4598 = vmul.f32 %v4597, %v4596
      %v4599 = vld [vmem:[%s11] sm:$0x1]
      %v4601 = vlaneseq
      %v4602 = vshrl.u32 %v4601, 7
      %v4603 = vsub.s32 0, %v4602
      %v4604 = vrot.slane %v4599, %v4603
      %v4606 = vmul.f32 %v4598, %v4604
      %v4607 = vld [vmem:[%s12] sm:$0x1]
      %v4609 = vlaneseq
      %v4610 = vshrl.u32 %v4609, 7
      %v4611 = vsub.s32 0, %v4610
      %v4612 = vrot.slane %v4607, %v4611
      %v4614 = vadd.f32 %v4606, %v4612
      %4615 = vst [vmem:[%s500] sm:$0xff] %v4614
      %p4616 = scmp.lt.s32.totalorder %s28, 1
      %s4617 = scalar_select %p4616, %s28, 1
      %p4618 = scmp.lt.s32.totalorder %s29, 0
      %s4619 = scalar_select %p4618, %s29, 0
      %s4620 = sadd.s32 %s4619, %s4617
      %s4621 = smul.addr %s4620, 8
      %s4622 = scalar_lea.vmem %s13, %s4621
      // Predicated region
      $region77: #{decoder_forward.13} parent=71 // pred_check
        %p4623 = pneg %p346
      $region78: #{decoder_forward.13} parent=71 // pred_check_branch
        %4625 = sbr.rel (%p4623) target = $region80
      $region79: #{decoder_forward.13} parent=71 // pred_region
        _
      $region80: #{decoder_forward.13} parent=71 // pred_fallthru
        _
    $region72: #{decoder_forward.13} parent=5 // pred_fallthru
      _
    %p4626 = scmp.le.s32.totalorder 2, %s19
    // Predicated region
    $region81: #{decoder_forward.13} parent=5 // pred_check
      %p4627 = pneg %p4626
    $region82: #{decoder_forward.13} parent=5 // pred_check_branch
      %4629 = sbr.rel (%p4627) target = $region84
    $region83: #{decoder_forward.13} parent=5 // pred_region
      %s4630 = ssub.s32 %s19, 2
      // Predicated region
      $region85: #{decoder_forward.13} parent=83 // pred_check
        %p4631 = pneg %p352
      $region86: #{decoder_forward.13} parent=83 // pred_check_branch
        %4633 = sbr.rel (%p4631) target = $region88
      $region87: #{decoder_forward.13} parent=83 // pred_region
        %p4634 = scmp.lt.s32.totalorder %s30, 1
        %s4635 = scalar_select %p4634, %s30, 1
        %p4636 = scmp.lt.s32.totalorder %s31, 0
        %s4637 = scalar_select %p4636, %s31, 0
        %s4638 = sadd.s32 %s4637, %s4635
        %s4639 = smul.addr %s4638, 8
        %s4640 = scalar_lea.vmem %s13, %s4639
      $region88: #{decoder_forward.13} parent=83 // pred_fallthru
        _
    $region84: #{decoder_forward.13} parent=5 // pred_fallthru
      _
  $region6: #{decoder_forward.13} parent=0 // loop_footer
    %s23 = sadd.s32 1, %s19
  $region7: #{decoder_forward.13} parent=0 // loop_footer_branch
    %18 = sbr.rel target = $region3
  $region8: #{decoder_forward.13} parent=0 // loop_exit
    _

</llo_original>
